<compile_context>
chip_gen: v5e
topology: v5e:2x2
jax: 0.10.0
libtpu: 0.0.40
codegen_flags: <defaults>
</compile_context>

<pallas_src>
import functools

import numpy as np
import jax
import jax.numpy as jnp
from jax.experimental import pallas as pl
from jax.experimental.pallas import tpu as pltpu

MXU_DTYPE = jnp.bfloat16
_VMEM_LIMIT = 32 * 1024 * 1024        # safe on v5e/v6e/v7x; re-derive per chip
LANE_PAD = 128                        # lane-dense output padding
_UNROLL_MAX_T = 16                    # fully unroll recurrences up to this length


def _round_up(x, m):
    return ((x + m - 1) // m) * m


# ----------------------------------------------------------------------------
# Kernel 1: TextCNN turn encoder -- per-tap matmul accumulation, masked max-pool
# ----------------------------------------------------------------------------
def _cnn_kernel(x_ref, w_ref, b_ref, mask_ref, o_ref, *, l_out, ks_max):
    x = x_ref[...]                                         # [TN, L+ks-1, E] bf16
    w = w_ref[...]                                         # [ksm, E, outp] bf16
    # conv = sum over taps of (shifted x) @ w_tap  -- no lane concat / im2col
    acc = jnp.zeros((x.shape[0], l_out, w.shape[-1]), jnp.float32)
    for j in range(ks_max):
        acc = acc + jnp.einsum('nle,ec->nlc', x[:, j:j + l_out, :], w[j],
                               preferred_element_type=jnp.float32)
    act = jnp.maximum(acc + b_ref[...], 0.0)               # relu(conv + bias)
    act = act * mask_ref[...]                              # mask invalid tail positions
    o_ref[...] = jnp.max(act, axis=1).astype(o_ref.dtype)  # lane-dense [TN, 128] store


def _prep_cnn(cnn):
    ws, bs = cnn['w'], cnn['b']
    ks_list = tuple(int(w.shape[0]) for w in ws)
    ks_max = max(ks_list)
    e = ws[0].shape[1]
    k = ws[0].shape[2]
    taps = []
    for w in ws:
        taps.append(jnp.pad(w, ((0, ks_max - w.shape[0]), (0, 0), (0, 0))))  # zero taps
    wtap = jnp.concatenate(taps, axis=2)                   # [ksm, E, nk*K]
    out_dim = wtap.shape[2]
    out_pad = max(LANE_PAD, _round_up(out_dim, LANE_PAD))
    wtap = jnp.pad(wtap, ((0, 0), (0, 0), (0, out_pad - out_dim))).astype(MXU_DTYPE)
    bcat = jnp.pad(jnp.concatenate(bs, axis=0), (0, out_pad - out_dim))
    bcat = bcat.reshape(1, out_pad).astype(jnp.float32)
    col_ks = np.ones((out_pad,), np.int32)                 # pad cols -> always valid (weight is 0)
    for i, ks in enumerate(ks_list):
        col_ks[i * k:(i + 1) * k] = ks
    return dict(w=wtap, b=bcat, col_ks=col_ks, ks_max=ks_max,
                out_dim=out_dim, out_pad=out_pad, e=e)


def cnn_encoder(x, prep):
    """x: [N, L, E] -> bf16 [N, out_dim] (relu-conv + max-pool-over-time)."""
    n, l, e = x.shape
    ksm, outp = prep['ks_max'], prep['out_pad']
    x = jnp.pad(x.astype(MXU_DTYPE), ((0, 0), (0, ksm - 1), (0, 0)))
    tile_n = min(512, _round_up(n, 8))                     # sweepable; 512+ at real sizes
    n_pad = _round_up(n, tile_n)
    x = jnp.pad(x, ((0, n_pad - n), (0, 0), (0, 0)))
    # position t is valid for a column of kernel size ks iff t <= L - ks
    tmask = jnp.asarray(
        (np.arange(l)[:, None] <= (l - prep['col_ks'])[None, :]).astype(np.float32))
    kern = functools.partial(_cnn_kernel, l_out=l, ks_max=ksm)
    out = pl.pallas_call(
        kern,
        out_shape=jax.ShapeDtypeStruct((n_pad, outp), MXU_DTYPE),  # bf16 slab (halves HBM writeback)
        grid=(n_pad // tile_n,),
        in_specs=[
            pl.BlockSpec((tile_n, l + ksm - 1, e), lambda i: (i, 0, 0)),
            pl.BlockSpec((ksm, e, outp), lambda i: (0, 0, 0)),
            pl.BlockSpec((1, outp), lambda i: (0, 0)),
            pl.BlockSpec((l, outp), lambda i: (0, 0)),
        ],
        out_specs=pl.BlockSpec((tile_n, outp), lambda i: (i, 0)),
        compiler_params=pltpu.CompilerParams(
            dimension_semantics=("parallel",), vmem_limit_bytes=_VMEM_LIMIT),
    )(x, prep['w'], prep['b'], tmask)
    return out[:n, :prep['out_dim']]


# ----------------------------------------------------------------------------
# GRU weight prep: fused [Din, 3H] / [H, 3H] bf16 weights, merged biases
#   (gate order r, z, n; bhn kept separate for the r*(h@Whn + bhn) term)
# ----------------------------------------------------------------------------
def _prep_gru(p):
    h = p['w_hh'].shape[0]
    wih, whh, bih, bhh = p['w_ih'], p['w_hh'], p['b_ih'], p['b_hh']
    bi = jnp.concatenate([bih[0:2 * h] + bhh[0:2 * h], bih[2 * h:3 * h]], axis=0)
    return dict(
        wih=wih.astype(MXU_DTYPE),                          # [Din, 3H]
        whh=whh.astype(MXU_DTYPE),                          # [H, 3H] bf16 (MXU-native)
        bi=bi.reshape(1, 3 * h).astype(jnp.float32),
        bhn=bhh[2 * h:3 * h].reshape(1, h).astype(jnp.float32),
    )


def _prep_bigru(p_fwd, p_bwd):
    f, b = _prep_gru(p_fwd), _prep_gru(p_bwd)
    return {k: jnp.stack([f[k], b[k]], axis=0) for k in f}


def _run_steps(t_steps, step):
    """Fully unroll short recurrences; loop otherwise."""
    if t_steps <= _UNROLL_MAX_T:
        for t in range(t_steps):
            step(t)
    else:
        pl.loop(0, t_steps)(step)


# ----------------------------------------------------------------------------
# Kernel 2a: masked unidirectional GRU, returns last hidden state only
# ----------------------------------------------------------------------------
def _gru_last_kernel(x_ref, m_ref, h0_ref, wih_ref, whh_ref, bi_ref, bhn_ref,
                     hT_ref, g_s, h_s, *, hdim):
    x = x_ref[...]                                          # [T, tb, Din] bf16
    t_steps = x_ref.shape[0]
    # hoisted input projection: ONE [Din, 3H] MXU pass for all timesteps
    g_s[...] = jnp.einsum('tbd,dh->tbh', x, wih_ref[...],
                          preferred_element_type=jnp.float32) + bi_ref[...]
    whh = whh_ref[...]                                      # [H, 3H] bf16
    bhn = bhn_ref[...]
    h_s[...] = h0_ref[...]

    def step(t):
        h = h_s[...]
        hh = jnp.dot(h.astype(MXU_DTYPE), whh,
                     preferred_element_type=jnp.float32)    # fused [H,3H] recurrent dot
        g = g_s[t]
        r = jax.nn.sigmoid(g[:, 0:hdim] + hh[:, 0:hdim])
        z = jax.nn.sigmoid(g[:, hdim:2 * hdim] + hh[:, hdim:2 * hdim])
        n = jnp.tanh(g[:, 2 * hdim:3 * hdim] + r * (hh[:, 2 * hdim:3 * hdim] + bhn))
        h_new = (1.0 - z) * n + z * h
        m = m_ref[t]                                        # [tb, 1]
        h_s[...] = m * h_new + (1.0 - m) * h                # skip padded steps

    _run_steps(t_steps, step)
    hT_ref[...] = h_s[...]


def gru_last_forward(x, mask, h0, p):
    t, b, din = x.shape
    h = h0.shape[1]
    tile_b = min(64, _round_up(b, 8))
    b_pad = _round_up(b, tile_b)

    def padb(a, axis):
        pad = [(0, 0)] * a.ndim
        pad[axis] = (0, b_pad - b)
        return jnp.pad(a, pad)

    x, mask, h0 = padb(x, 1), padb(mask, 1), padb(h0, 0)

    def wspec(shape):
        return pl.BlockSpec(shape, lambda i, _n=len(shape): (0,) * _n)

    out = pl.pallas_call(
        functools.partial(_gru_last_kernel, hdim=h),
        out_shape=jax.ShapeDtypeStruct((b_pad, h), jnp.float32),
        grid=(b_pad // tile_b,),
        in_specs=[
            pl.BlockSpec((t, tile_b, din), lambda i: (0, i, 0)),
            pl.BlockSpec((t, tile_b, 1), lambda i: (0, i, 0)),
            pl.BlockSpec((tile_b, h), lambda i: (i, 0)),
            wspec(p['wih'].shape), wspec(p['whh'].shape),
            wspec(p['bi'].shape), wspec(p['bhn'].shape),
        ],
        out_specs=pl.BlockSpec((tile_b, h), lambda i: (i, 0)),
        scratch_shapes=[pltpu.VMEM((t, tile_b, 3 * h), jnp.float32),
                        pltpu.VMEM((tile_b, h), jnp.float32)],
        compiler_params=pltpu.CompilerParams(
            dimension_semantics=("parallel",), vmem_limit_bytes=_VMEM_LIMIT),
    )(x, mask, h0, p['wih'], p['whh'], p['bi'], p['bhn'])
    return out[:b]


# ----------------------------------------------------------------------------
# Kernel 2b: fused bidirectional masked GRU over conversation turns
#   single lane-dense [T, B, H] output (fwd lanes 0:H/2, bwd lanes H/2:H)
# ----------------------------------------------------------------------------
def _bigru_kernel(x_ref, m_ref, wih_ref, whh_ref, bi_ref, bhn_ref, o_ref,
                  gf_s, gb_s, of_s, ob_s, hf_s, hb_s, *, hdim):
    x = x_ref[...]                                          # [T, tb, Din] bf16
    t_steps = x_ref.shape[0]
    # hoisted input projections, one fused [Din, 3H'] pass per direction
    gf_s[...] = jnp.einsum('tbd,dh->tbh', x, wih_ref[0],
                           preferred_element_type=jnp.float32) + bi_ref[0]
    gb_s[...] = jnp.einsum('tbd,dh->tbh', x, wih_ref[1],
                           preferred_element_type=jnp.float32) + bi_ref[1]
    whh_f, whh_b = whh_ref[0], whh_ref[1]                   # bf16 [H', 3H']
    bhn_f, bhn_b = bhn_ref[0], bhn_ref[1]
    hf_s[...] = jnp.zeros_like(hf_s)
    hb_s[...] = jnp.zeros_like(hb_s)

    def step(t):
        tb = t_steps - 1 - t
        # forward direction at timestep t
        hf = hf_s[...]
        hh = jnp.dot(hf.astype(MXU_DTYPE), whh_f, preferred_element_type=jnp.float32)
        g = gf_s[t]
        r = jax.nn.sigmoid(g[:, 0:hdim] + hh[:, 0:hdim])
        z = jax.nn.sigmoid(g[:, hdim:2 * hdim] + hh[:, hdim:2 * hdim])
        n = jnp.tanh(g[:, 2 * hdim:] + r * (hh[:, 2 * hdim:] + bhn_f))
        hf_new = (1.0 - z) * n + z * hf
        m = m_ref[t]
        hf_s[...] = m * hf_new + (1.0 - m) * hf
        of_s[t] = m * hf_new                                # padded positions -> 0
        # backward direction at timestep tb (stored at tb -> already un-reversed)
        hb = hb_s[...]
        hhb = jnp.dot(hb.astype(MXU_DTYPE), whh_b, preferred_element_type=jnp.float32)
        gb = gb_s[tb]
        rb = jax.nn.sigmoid(gb[:, 0:hdim] + hhb[:, 0:hdim])
        zb = jax.nn.sigmoid(gb[:, hdim:2 * hdim] + hhb[:, hdim:2 * hdim])
        nb = jnp.tanh(gb[:, 2 * hdim:] + rb * (hhb[:, 2 * hdim:] + bhn_b))
        hb_new = (1.0 - zb) * nb + zb * hb
        mb = m_ref[tb]
        hb_s[...] = mb * hb_new + (1.0 - mb) * hb           # mask-skip == pack_padded
        ob_s[tb] = mb * hb_new

    _run_steps(t_steps, step)
    # single lane-dense store of both directions
    o_ref[...] = jnp.concatenate([of_s[...], ob_s[...]], axis=-1)


def bigru_forward(x, mask, p):
    t, b, din = x.shape
    h2 = p['whh'].shape[1]                                  # H // 2
    tile_b = min(64, _round_up(b, 8))
    b_pad = _round_up(b, tile_b)

    def padb(a):
        return jnp.pad(a, ((0, 0), (0, b_pad - b), (0, 0)))

    x, mask = padb(x), padb(mask)

    def wspec(shape):
        return pl.BlockSpec(shape, lambda i, _n=len(shape): (0,) * _n)

    out = pl.pallas_call(
        functools.partial(_bigru_kernel, hdim=h2),
        out_shape=jax.ShapeDtypeStruct((t, b_pad, 2 * h2), jnp.float32),
        grid=(b_pad // tile_b,),
        in_specs=[
            pl.BlockSpec((t, tile_b, din), lambda i: (0, i, 0)),
            pl.BlockSpec((t, tile_b, 1), lambda i: (0, i, 0)),
            wspec(p['wih'].shape), wspec(p['whh'].shape),
            wspec(p['bi'].shape), wspec(p['bhn'].shape),
        ],
        out_specs=pl.BlockSpec((t, tile_b, 2 * h2), lambda i: (0, i, 0)),
        scratch_shapes=[pltpu.VMEM((t, tile_b, 3 * h2), jnp.float32)] * 2
                     + [pltpu.VMEM((t, tile_b, h2), jnp.float32)] * 2
                     + [pltpu.VMEM((tile_b, h2), jnp.float32)] * 2,
        compiler_params=pltpu.CompilerParams(
            dimension_semantics=("parallel",), vmem_limit_bytes=_VMEM_LIMIT),
    )(x, mask, p['wih'], p['whh'], p['bi'], p['bhn'])
    return out[:, :b, :]


# ----------------------------------------------------------------------------
# Kernel 3: fused gated GCN + user-attention pooling + MLP head + sigmoid
#   projection lane order [hs | mi gip | mo gop] -> 2 MXU aggregations / layer
# ----------------------------------------------------------------------------
def _gcn_att_mlp_kernel(h_ref, ain_ref, aout_ref, tmask_ref, user_ref,
                        wg_ref, bg_ref,
                        w1u_ref, w1f_ref, b1_ref, w2_ref, b2_ref, wo_ref, bo_ref,
                        o_ref, *, num_layers, hdim):
    h = h_ref[...]                                          # [tb, T, H] f32
    ain = ain_ref[...]                                      # [tb, T, T] bf16
    aout = aout_ref[...]
    tmask = tmask_ref[...]                                  # [tb, T] f32
    tmask3 = tmask[:, :, None]
    for l in range(num_layers):
        # one concatenated [H, 5H] projection per layer (single MXU pass)
        proj = jnp.einsum('btd,de->bte', h.astype(MXU_DTYPE), wg_ref[l],
                          preferred_element_type=jnp.float32) + bg_ref[l]
        hs = proj[..., 0:hdim]
        msg_in = proj[..., hdim:3 * hdim].astype(MXU_DTYPE)       # [mi | gip]
        msg_out = proj[..., 3 * hdim:5 * hdim].astype(MXU_DTYPE)  # [mo | gop]
        # adjacency aggregation on the MXU (batched matmul, N = 2H per pass)
        agg_in = jnp.einsum('bqk,bkh->bqh', ain, msg_in,
                            preferred_element_type=jnp.float32)
        agg_out = jnp.einsum('bqk,bkh->bqh', aout, msg_out,
                             preferred_element_type=jnp.float32)
        gi = jax.nn.sigmoid(agg_in[..., hdim:2 * hdim])
        go = jax.nn.sigmoid(agg_out[..., hdim:2 * hdim])
        h = jnp.maximum(hs + gi * agg_in[..., 0:hdim] + go * agg_out[..., 0:hdim],
                        0.0) * tmask3                       # zero invalid turns

    # attention with the user query ('u' branch)
    user = user_ref[...]                                    # [tb, H]
    scores = jnp.sum(h * user[:, None, :], axis=-1) + (tmask - 1.0) * 1e30
    scores = scores - jnp.max(scores, axis=-1, keepdims=True)
    ew = jnp.exp(scores)
    att = ew * pl.reciprocal(jnp.sum(ew, axis=-1, keepdims=True), approx=True)
    final = jnp.sum(h * att[:, :, None], axis=1)            # [tb, H]
    # MLP over concat([user, final]) (concat realized as split matmul)
    h1 = jnp.maximum(
        jnp.dot(user, w1u_ref[...], preferred_element_type=jnp.float32)
        + jnp.dot(final, w1f_ref[...], preferred_element_type=jnp.float32)
        + b1_ref[...], 0.0)
    h2 = jnp.maximum(
        jnp.dot(h1, w2_ref[...], preferred_element_type=jnp.float32) + b2_ref[...], 0.0)
    logit = jnp.dot(h2, wo_ref[...], preferred_element_type=jnp.float32) + bo_ref[...]
    o_ref[...] = jax.nn.sigmoid(logit)                      # lane-dense [tb, 128]


def _prep_gcn(p):
    # lane order [hs | mi gip | mo gop] so the two aggregations are contiguous
    w = jnp.concatenate([p['ws'], p['wi'], p['wgi'], p['wo'], p['wgo']],
                        axis=2).astype(MXU_DTYPE)           # [L, H, 5H]
    b = jnp.concatenate([p['bs'], p['bi'], p['bgi'], p['bo'], p['bgo']],
                        axis=1).astype(jnp.float32)         # [L, 5H]
    return dict(w=w, b=b)


def _prep_mlp(p):
    h = p['w1'].shape[1]
    h2 = p['w2'].shape[1]
    wo = jnp.pad(p['wo'], ((0, 0), (0, LANE_PAD - p['wo'].shape[1])))
    bo = jnp.pad(p['bo'], (0, LANE_PAD - p['bo'].shape[0])).reshape(1, LANE_PAD)
    return dict(w1u=p['w1'][:h], w1f=p['w1'][h:], b1=p['b1'].reshape(1, h),
                w2=p['w2'], b2=p['b2'].reshape(1, h2), wo=wo, bo=bo)


def gcn_att_mlp_forward(conv_out, ain, aout, tmask, user_out, gcn_p, mlp_p):
    b, t, h = conv_out.shape
    num_layers = gcn_p['w'].shape[0]
    tile_b = min(64, _round_up(b, 8))
    b_pad = _round_up(b, tile_b)

    def pad_b(a):
        return jnp.pad(a, [(0, b_pad - b)] + [(0, 0)] * (a.ndim - 1))

    conv_out = pad_b(conv_out)
    ain = pad_b(ain.astype(MXU_DTYPE))                      # 0/1 masks: bf16 exact
    aout = pad_b(aout.astype(MXU_DTYPE))
    tmask, user_out = pad_b(tmask), pad_b(user_out)

    def wspec(shape):
        return pl.BlockSpec(shape, lambda i, _s=len(shape): (0,) * _s)

    kern = functools.partial(_gcn_att_mlp_kernel, num_layers=num_layers, hdim=h)
    out = pl.pallas_call(
        kern,
        out_shape=jax.ShapeDtypeStruct((b_pad, LANE_PAD), jnp.float32),
        grid=(b_pad // tile_b,),
        in_specs=[
            pl.BlockSpec((tile_b, t, h), lambda i: (i, 0, 0)),
            pl.BlockSpec((tile_b, t, t), lambda i: (i, 0, 0)),
            pl.BlockSpec((tile_b, t, t), lambda i: (i, 0, 0)),
            pl.BlockSpec((tile_b, t), lambda i: (i, 0)),
            pl.BlockSpec((tile_b, h), lambda i: (i, 0)),
            wspec(gcn_p['w'].shape), wspec(gcn_p['b'].shape),
            wspec(mlp_p['w1u'].shape), wspec(mlp_p['w1f'].shape), wspec(mlp_p['b1'].shape),
            wspec(mlp_p['w2'].shape), wspec(mlp_p['b2'].shape),
            wspec(mlp_p['wo'].shape), wspec(mlp_p['bo'].shape),
        ],
        out_specs=pl.BlockSpec((tile_b, LANE_PAD), lambda i: (i, 0)),
        compiler_params=pltpu.CompilerParams(
            dimension_semantics=("parallel",), vmem_limit_bytes=_VMEM_LIMIT),
    )(conv_out, ain, aout, tmask, user_out, gcn_p['w'], gcn_p['b'],
      mlp_p['w1u'], mlp_p['w1f'], mlp_p['b1'], mlp_p['w2'], mlp_p['b2'],
      mlp_p['wo'], mlp_p['bo'])
    return out[:b, 0]


# ----------------------------------------------------------------------------
# Parameters (deterministic init) and synthetic data
# ----------------------------------------------------------------------------
def init_params(key, cfg):
    E, H, F = cfg['embedding_dim'], cfg['hidden_dim'], cfg['factor_dim']
    K, V, U = cfg['kernal_num'], cfg['vocab_num'], cfg['user_num']
    L = cfg['gcn_layers_num']
    TH = K * len(cfg['kernel_sizes'])
    it = iter(jax.random.split(key, 40))

    def nrm(shape, s=0.1):
        return (s * jax.random.normal(next(it), shape)).astype(jnp.float32)

    def gru_p(din, h):
        return dict(w_ih=nrm((din, 3 * h)), w_hh=nrm((h, 3 * h)),
                    b_ih=nrm((3 * h,)), b_hh=nrm((3 * h,)))

    word_emb = nrm((V, E)).at[0].set(0.0)           # padding_idx = 0
    return dict(
        word_emb=word_emb,
        user_emb=nrm((U, F)),
        f2h_w=nrm((F, H)), f2h_b=nrm((H,)),
        cnn=dict(w=[nrm((k, E, K)) for k in cfg['kernel_sizes']],
                 b=[nrm((K,)) for _ in cfg['kernel_sizes']]),
        gru_user=gru_p(TH, H),
        gru_fwd=gru_p(TH + F, H // 2),
        gru_bwd=gru_p(TH + F, H // 2),
        gcn=dict(ws=nrm((L, H, H)), wi=nrm((L, H, H)), wo=nrm((L, H, H)),
                 wgi=nrm((L, H, H)), wgo=nrm((L, H, H)),
                 bs=nrm((L, H)), bi=nrm((L, H)), bo=nrm((L, H)),
                 bgi=nrm((L, H)), bgo=nrm((L, H))),
        mlp=dict(w1=nrm((2 * H, H)), b1=nrm((H,)),
                 w2=nrm((H, H // 2)), b2=nrm((H // 2,)),
                 wo=nrm((H // 2, 1)), bo=nrm((1,))),
    )


def make_data(key, cfg, max_turns=4, seq_len=8, hist_len=6):
    C, U, V = cfg['conv_num'], cfg['user_num'], cfg['vocab_num']
    k1, k2, k3, k4, k5 = jax.random.split(key, 5)

    nt = jnp.clip(2 + jnp.arange(C) % (max_turns - 1), 2, max_turns)
    turn_idx = jnp.arange(max_turns)
    valid = turn_idx[None, :] < nt[:, None]                         # [C, MT]
    uids = jax.random.randint(k1, (C, max_turns), 0, U)
    col0 = jnp.where(valid, uids, -1)
    col1 = 10 * jnp.arange(C)[:, None] + 2 * turn_idx[None, :] + 5  # timestamps
    col2 = jnp.broadcast_to(turn_idx[None, :], (C, max_turns))
    col3 = jnp.zeros((C, max_turns), jnp.int32)
    words = jax.random.randint(k2, (C, max_turns, seq_len), 1, V)
    words = jnp.where(valid[:, :, None], words, 0)
    conv_data = jnp.concatenate(
        [col0[..., None], col1[..., None], col2[..., None], col3[..., None],
         words], axis=-1).astype(jnp.int32)

    h_conv = jax.random.randint(k3, (U, hist_len), 0, C)
    h_time = jax.random.randint(k4, (U, hist_len), 0, 10 * C + 10)
    h_turn = jax.random.randint(k5, (U, hist_len), 0, max_turns)
    user_history = jnp.stack([h_conv, h_time, h_turn], axis=-1).astype(jnp.int32)

    tri = (turn_idx[:, None] > turn_idx[None, :]).astype(jnp.float32)[None]
    vmask = (valid[:, :, None] & valid[:, None, :]).astype(jnp.float32)
    arc_in = tri * vmask
    arc_out = jnp.transpose(arc_in, (0, 2, 1))
    return dict(conv_data=conv_data, user_history=user_history,
                arc_in=arc_in, arc_out=arc_out)


# ----------------------------------------------------------------------------
# Full DCR forward (glue in plain JAX, hot paths in Pallas kernels above)
# ----------------------------------------------------------------------------
def dcr_forward(params, data, uc_pairs, cfg):
    f32, bf16 = jnp.float32, MXU_DTYPE
    userids = uc_pairs[:, 0]
    convids = uc_pairs[:, 1]
    conv_data = data['conv_data']
    history = data['user_history'][userids]                 # [B, HL, 3]
    convs = conv_data[convids]                              # [B, MT, 4+SL]
    arc_in = data['arc_in'][convids].astype(f32)            # [B, MT, MT]
    arc_out = data['arc_out'][convids].astype(f32)
    B, MT = convs.shape[0], convs.shape[1]
    HL = history.shape[1]
    SL = convs.shape[2] - 4
    E = params['word_emb'].shape[1]

    cnn_prep = _prep_cnn(params['cnn'])
    gru_u_prep = _prep_gru(params['gru_user'])
    bigru_prep = _prep_bigru(params['gru_fwd'], params['gru_bwd'])
    gcn_prep = _prep_gcn(params['gcn'])
    mlp_prep = _prep_mlp(params['mlp'])
    word_emb_bf = params['word_emb'].astype(bf16)

    # ---- user history messages (masked GRU == sort/pack_padded semantics) ----
    his_valid = history[:, :, 1] < convs[:, 0, 1][:, None]          # [B, HL]
    his_conv = jnp.where(his_valid, history[:, :, 0], 0)
    his_turn = jnp.where(his_valid, history[:, :, 2], 0)
    his_words = conv_data[his_conv, his_turn][..., 4:]              # [B, HL, SL]
    his_emb = jnp.take(word_emb_bf, his_words, axis=0)              # [B, HL, SL, E]
    his_reps = cnn_encoder(his_emb.reshape(B * HL, SL, E), cnn_prep)
    TH = his_reps.shape[1]
    his_reps = his_reps.reshape(B, HL, TH)                          # bf16

    user_init = jnp.tanh(jnp.take(params['user_emb'], userids, axis=0)
                         @ params['f2h_w'] + params['f2h_b'])       # [B, H]
    x_u = jnp.transpose(his_reps, (1, 0, 2)).astype(bf16)           # [HL, B, TH]
    m_u = jnp.transpose(his_valid.astype(f32), (1, 0))[:, :, None]  # [HL, B, 1]
    user_out = gru_last_forward(x_u, m_u, user_init, gru_u_prep)    # [B, H]

    # ---- conversation turns ----
    turn_valid = convs[:, :, 0] >= 0                                # [B, MT]
    turn_words = convs[:, :, 4:]
    turn_emb = jnp.take(word_emb_bf, turn_words, axis=0)
    turn_reps = cnn_encoder(turn_emb.reshape(B * MT, SL, E),
                            cnn_prep).reshape(B, MT, TH)
    turn_uids = jnp.where(turn_valid, convs[:, :, 0], 0)
    turn_feat = jnp.concatenate(
        [jnp.take(params['user_emb'], turn_uids, axis=0),
         turn_reps.astype(f32)], axis=-1)

    # fused bidirectional masked GRU over turns (single lane-dense output)
    x_c = jnp.transpose(turn_feat, (1, 0, 2)).astype(bf16)          # [MT, B, TH+F]
    m_c = jnp.transpose(turn_valid.astype(f32), (1, 0))[:, :, None]
    conv_tm = bigru_forward(x_c, m_c, bigru_prep)                   # [MT, B, H]
    conv_out = jnp.transpose(conv_tm, (1, 0, 2))                    # [B, MT, H]

    # ---- fused GCN + user-attention pooling + MLP head + sigmoid ----
    out = gcn_att_mlp_forward(conv_out, arc_in, arc_out,
                              turn_valid.astype(f32), user_out,
                              gcn_prep, mlp_prep)
    return out                                                      # [B]


if __name__ == "__main__":
    cfg = dict(user_num=6, conv_num=5, vocab_num=40, factor_dim=8,
               kernal_num=8, kernel_sizes=(2, 3, 4), embedding_dim=16,
               hidden_dim=32, gcn_layers_num=2, mlp_layers_num=2)
    key = jax.random.PRNGKey(0)
    kp, kd = jax.random.split(key)
    params = init_params(kp, cfg)
    data = make_data(kd, cfg, max_turns=4, seq_len=8, hist_len=6)
    uc_pairs = jnp.array([[0, 0], [3, 2]], dtype=jnp.int32)

    fwd = jax.jit(functools.partial(dcr_forward, cfg=cfg))
    out = fwd(params, data, uc_pairs)
    out = jax.block_until_ready(out)
    assert out.shape == (2,) and out.dtype == jnp.float32
    assert bool(jnp.all(jnp.isfinite(out)))
    print("KERNEL_OK")
</pallas_src>

<mosaic_0001>
module attributes {stable_mosaic.version = 11 : i64} {
  func.func @_cnn_kernel(%arg0: i32, %arg1: memref<8x11x16xbf16, #tpu.memory_space<vmem>>, %arg2: memref<4x16x128xbf16, #tpu.memory_space<vmem>>, %arg3: memref<1x128xf32, #tpu.memory_space<vmem>>, %arg4: memref<8x128xf32, #tpu.memory_space<vmem>>, %arg5: memref<8x128xbf16, #tpu.memory_space<vmem>>) attributes {dimension_semantics = [#tpu.dimension_semantics<parallel>], iteration_bounds = array<i64: 1>, scalar_prefetch = 0 : i64, scratch_operands = 0 : i64, tpu.core_type = #tpu.core_type<tc>, window_params = [{transform_indices = @transform_0, window_bounds = array<i64: 8, 11, 16>}, {pipeline_mode = #tpu.pipeline_mode<synchronous>, transform_indices = @transform_1, window_bounds = array<i64: 4, 16, 128>}, {pipeline_mode = #tpu.pipeline_mode<synchronous>, transform_indices = @transform_2, window_bounds = array<i64: 1, 128>}, {pipeline_mode = #tpu.pipeline_mode<synchronous>, transform_indices = @transform_3, window_bounds = array<i64: 8, 128>}, {transform_indices = @transform_4, window_bounds = array<i64: 8, 128>}]} {
    %c0 = arith.constant 0 : index
    %c0_0 = arith.constant 0 : index
    %c0_1 = arith.constant 0 : index
    %0 = vector.load %arg1[%c0, %c0_0, %c0_1] : memref<8x11x16xbf16, #tpu.memory_space<vmem>>, vector<8x11x16xbf16>
    %c0_2 = arith.constant 0 : index
    %c0_3 = arith.constant 0 : index
    %c0_4 = arith.constant 0 : index
    %1 = vector.load %arg2[%c0_2, %c0_3, %c0_4] : memref<4x16x128xbf16, #tpu.memory_space<vmem>>, vector<4x16x128xbf16>
    %cst = arith.constant 0.000000e+00 : f32
    %2 = vector.broadcast %cst : f32 to vector<8x8x128xf32>
    %3 = vector.extract_strided_slice %0 {offsets = [0, 0, 0], sizes = [8, 8, 16], strides = [1, 1, 1]} : vector<8x11x16xbf16> to vector<8x8x16xbf16>
    %4 = vector.extract_strided_slice %1 {offsets = [0, 0, 0], sizes = [1, 16, 128], strides = [1, 1, 1]} : vector<4x16x128xbf16> to vector<1x16x128xbf16>
    %5 = vector.shape_cast %4 : vector<1x16x128xbf16> to vector<16x128xbf16>
    "tpu.trace_start"() <{level = 10 : i32, message = "nle,ec->nlc"}> : () -> ()
    %cst_5 = arith.constant dense<0.000000e+00> : vector<8x8x128xf32>
    %6 = tpu.matmul %3, %5, %cst_5 {dimension_numbers = #tpu.dot_dimension_numbers<[2], [0], [0, 1], [1], [0, 0, 0, 1, 1, 1], [], []>} : vector<8x8x16xbf16>, vector<16x128xbf16>, vector<8x8x128xf32> -> vector<8x8x128xf32>
    "tpu.trace_stop"() : () -> ()
    %7 = arith.addf %2, %6 : vector<8x8x128xf32>
    %8 = vector.extract_strided_slice %0 {offsets = [0, 1, 0], sizes = [8, 8, 16], strides = [1, 1, 1]} : vector<8x11x16xbf16> to vector<8x8x16xbf16>
    %9 = vector.extract_strided_slice %1 {offsets = [1, 0, 0], sizes = [1, 16, 128], strides = [1, 1, 1]} : vector<4x16x128xbf16> to vector<1x16x128xbf16>
    %10 = vector.shape_cast %9 : vector<1x16x128xbf16> to vector<16x128xbf16>
    "tpu.trace_start"() <{level = 10 : i32, message = "nle,ec->nlc"}> : () -> ()
    %cst_6 = arith.constant dense<0.000000e+00> : vector<8x8x128xf32>
    %11 = tpu.matmul %8, %10, %cst_6 {dimension_numbers = #tpu.dot_dimension_numbers<[2], [0], [0, 1], [1], [0, 0, 0, 1, 1, 1], [], []>} : vector<8x8x16xbf16>, vector<16x128xbf16>, vector<8x8x128xf32> -> vector<8x8x128xf32>
    "tpu.trace_stop"() : () -> ()
    %12 = arith.addf %7, %11 : vector<8x8x128xf32>
    %13 = vector.extract_strided_slice %0 {offsets = [0, 2, 0], sizes = [8, 8, 16], strides = [1, 1, 1]} : vector<8x11x16xbf16> to vector<8x8x16xbf16>
    %14 = vector.extract_strided_slice %1 {offsets = [2, 0, 0], sizes = [1, 16, 128], strides = [1, 1, 1]} : vector<4x16x128xbf16> to vector<1x16x128xbf16>
    %15 = vector.shape_cast %14 : vector<1x16x128xbf16> to vector<16x128xbf16>
    "tpu.trace_start"() <{level = 10 : i32, message = "nle,ec->nlc"}> : () -> ()
    %cst_7 = arith.constant dense<0.000000e+00> : vector<8x8x128xf32>
    %16 = tpu.matmul %13, %15, %cst_7 {dimension_numbers = #tpu.dot_dimension_numbers<[2], [0], [0, 1], [1], [0, 0, 0, 1, 1, 1], [], []>} : vector<8x8x16xbf16>, vector<16x128xbf16>, vector<8x8x128xf32> -> vector<8x8x128xf32>
    "tpu.trace_stop"() : () -> ()
    %17 = arith.addf %12, %16 : vector<8x8x128xf32>
    %18 = vector.extract_strided_slice %0 {offsets = [0, 3, 0], sizes = [8, 8, 16], strides = [1, 1, 1]} : vector<8x11x16xbf16> to vector<8x8x16xbf16>
    %19 = vector.extract_strided_slice %1 {offsets = [3, 0, 0], sizes = [1, 16, 128], strides = [1, 1, 1]} : vector<4x16x128xbf16> to vector<1x16x128xbf16>
    %20 = vector.shape_cast %19 : vector<1x16x128xbf16> to vector<16x128xbf16>
    "tpu.trace_start"() <{level = 10 : i32, message = "nle,ec->nlc"}> : () -> ()
    %cst_8 = arith.constant dense<0.000000e+00> : vector<8x8x128xf32>
    %21 = tpu.matmul %18, %20, %cst_8 {dimension_numbers = #tpu.dot_dimension_numbers<[2], [0], [0, 1], [1], [0, 0, 0, 1, 1, 1], [], []>} : vector<8x8x16xbf16>, vector<16x128xbf16>, vector<8x8x128xf32> -> vector<8x8x128xf32>
    "tpu.trace_stop"() : () -> ()
    %22 = arith.addf %17, %21 : vector<8x8x128xf32>
    %c0_9 = arith.constant 0 : index
    %c0_10 = arith.constant 0 : index
    %23 = vector.load %arg3[%c0_9, %c0_10] : memref<1x128xf32, #tpu.memory_space<vmem>>, vector<1x128xf32>
    %24 = vector.shape_cast %23 : vector<1x128xf32> to vector<1x1x128xf32>
    %25 = vector.broadcast %24 : vector<1x1x128xf32> to vector<8x8x128xf32>
    %26 = arith.addf %22, %25 : vector<8x8x128xf32>
    %cst_11 = arith.constant 0.000000e+00 : f32
    %27 = vector.broadcast %cst_11 : f32 to vector<8x8x128xf32>
    %28 = arith.maximumf %26, %27 : vector<8x8x128xf32>
    %c0_12 = arith.constant 0 : index
    %c0_13 = arith.constant 0 : index
    %29 = vector.load %arg4[%c0_12, %c0_13] : memref<8x128xf32, #tpu.memory_space<vmem>>, vector<8x128xf32>
    %30 = vector.shape_cast %29 : vector<8x128xf32> to vector<1x8x128xf32>
    %31 = vector.broadcast %30 : vector<1x8x128xf32> to vector<8x8x128xf32>
    %32 = arith.mulf %28, %31 : vector<8x8x128xf32>
    %cst_14 = arith.constant dense<0xFF800000> : vector<8x128xf32>
    %33 = vector.multi_reduction <maximumf>, %32, %cst_14 [1] : vector<8x8x128xf32> to vector<8x128xf32>
    %34 = arith.truncf %33 : vector<8x128xf32> to vector<8x128xbf16>
    %c0_15 = arith.constant 0 : index
    %c0_16 = arith.constant 0 : index
    %35 = vector.load %arg5[%c0_15, %c0_16] : memref<8x128xbf16, #tpu.memory_space<vmem>>, vector<8x128xbf16>
    tpu.vector_store %arg5[%c0_15, %c0_16], %34 {strides = array<i32>} : memref<8x128xbf16, #tpu.memory_space<vmem>>, vector<8x128xbf16>,
    return
  }
  func.func @transform_0(%arg0: i32) -> (i32, i32, i32) {
    %c0_i32 = arith.constant 0 : i32
    %c0_i32_0 = arith.constant 0 : i32
    %c0_i32_1 = arith.constant 0 : i32
    return %arg0, %c0_i32, %c0_i32_0 : i32, i32, i32
  }
  func.func @transform_1(%arg0: i32) -> (i32, i32, i32) {
    %c0_i32 = arith.constant 0 : i32
    %c0_i32_0 = arith.constant 0 : i32
    %c0_i32_1 = arith.constant 0 : i32
    %c0_i32_2 = arith.constant 0 : i32
    return %c0_i32, %c0_i32_0, %c0_i32_1 : i32, i32, i32
  }
  func.func @transform_2(%arg0: i32) -> (i32, i32) {
    %c0_i32 = arith.constant 0 : i32
    %c0_i32_0 = arith.constant 0 : i32
    %c0_i32_1 = arith.constant 0 : i32
    return %c0_i32, %c0_i32_0 : i32, i32
  }
  func.func @transform_3(%arg0: i32) -> (i32, i32) {
    %c0_i32 = arith.constant 0 : i32
    %c0_i32_0 = arith.constant 0 : i32
    %c0_i32_1 = arith.constant 0 : i32
    return %c0_i32, %c0_i32_0 : i32, i32
  }
  func.func @transform_4(%arg0: i32) -> (i32, i32) {
    %c0_i32 = arith.constant 0 : i32
    %c0_i32_0 = arith.constant 0 : i32
    return %arg0, %c0_i32 : i32, i32
  }
}

module attributes {stable_mosaic.version = 11 : i64} {
  func.func @_bigru_kernel(%arg0: i32, %arg1: memref<4x8x32xbf16, #tpu.memory_space<vmem>>, %arg2: memref<4x8x1xf32, #tpu.memory_space<vmem>>, %arg3: memref<2x32x48xbf16, #tpu.memory_space<vmem>>, %arg4: memref<2x16x48xbf16, #tpu.memory_space<vmem>>, %arg5: memref<2x1x48xf32, #tpu.memory_space<vmem>>, %arg6: memref<2x1x16xf32, #tpu.memory_space<vmem>>, %arg7: memref<4x8x32xf32, #tpu.memory_space<vmem>>, %arg8: memref<4x8x48xf32, #tpu.memory_space<vmem>>, %arg9: memref<4x8x48xf32, #tpu.memory_space<vmem>>, %arg10: memref<4x8x16xf32, #tpu.memory_space<vmem>>, %arg11: memref<4x8x16xf32, #tpu.memory_space<vmem>>, %arg12: memref<8x16xf32, #tpu.memory_space<vmem>>, %arg13: memref<8x16xf32, #tpu.memory_space<vmem>>) attributes {dimension_semantics = [#tpu.dimension_semantics<parallel>], iteration_bounds = array<i64: 1>, scalar_prefetch = 0 : i64, scratch_operands = 6 : i64, tpu.core_type = #tpu.core_type<tc>, window_params = [{transform_indices = @transform_0, window_bounds = array<i64: 4, 8, 32>}, {transform_indices = @transform_1, window_bounds = array<i64: 4, 8, 1>}, {pipeline_mode = #tpu.pipeline_mode<synchronous>, transform_indices = @transform_2, window_bounds = array<i64: 2, 32, 48>}, {pipeline_mode = #tpu.pipeline_mode<synchronous>, transform_indices = @transform_3, window_bounds = array<i64: 2, 16, 48>}, {pipeline_mode = #tpu.pipeline_mode<synchronous>, transform_indices = @transform_4, window_bounds = array<i64: 2, 1, 48>}, {pipeline_mode = #tpu.pipeline_mode<synchronous>, transform_indices = @transform_5, window_bounds = array<i64: 2, 1, 16>}, {transform_indices = @transform_6, window_bounds = array<i64: 4, 8, 32>}]} {
    %c0 = arith.constant 0 : index
    %c0_0 = arith.constant 0 : index
    %c0_1 = arith.constant 0 : index
    %0 = vector.load %arg1[%c0, %c0_0, %c0_1] : memref<4x8x32xbf16, #tpu.memory_space<vmem>>, vector<4x8x32xbf16>
    %c0_2 = arith.constant 0 : index
    %c0_3 = arith.constant 0 : index
    %c0_4 = arith.constant 0 : index
    %1 = vector.load %arg3[%c0_2, %c0_3, %c0_4] : memref<2x32x48xbf16, #tpu.memory_space<vmem>>, vector<1x32x48xbf16>
    %2 = vector.shape_cast %1 : vector<1x32x48xbf16> to vector<32x48xbf16>
    "tpu.trace_start"() <{level = 10 : i32, message = "tbd,dh->tbh"}> : () -> ()
    %cst = arith.constant dense<0.000000e+00> : vector<4x8x48xf32>
    %3 = tpu.matmul %0, %2, %cst {dimension_numbers = #tpu.dot_dimension_numbers<[2], [0], [0, 1], [1], [0, 0, 0, 1, 1, 1], [], []>} : vector<4x8x32xbf16>, vector<32x48xbf16>, vector<4x8x48xf32> -> vector<4x8x48xf32>
    "tpu.trace_stop"() : () -> ()
    %c0_5 = arith.constant 0 : index
    %c0_6 = arith.constant 0 : index
    %c0_7 = arith.constant 0 : index
    %4 = vector.load %arg5[%c0_5, %c0_6, %c0_7] : memref<2x1x48xf32, #tpu.memory_space<vmem>>, vector<1x1x48xf32>
    %5 = vector.shape_cast %4 : vector<1x1x48xf32> to vector<1x48xf32>
    %6 = vector.shape_cast %5 : vector<1x48xf32> to vector<1x1x48xf32>
    %7 = vector.broadcast %6 : vector<1x1x48xf32> to vector<4x8x48xf32>
    %8 = arith.addf %3, %7 : vector<4x8x48xf32>
    %c0_8 = arith.constant 0 : index
    %c0_9 = arith.constant 0 : index
    %c0_10 = arith.constant 0 : index
    %9 = vector.load %arg8[%c0_8, %c0_9, %c0_10] : memref<4x8x48xf32, #tpu.memory_space<vmem>>, vector<4x8x48xf32>
    tpu.vector_store %arg8[%c0_8, %c0_9, %c0_10], %8 {strides = array<i32>} : memref<4x8x48xf32, #tpu.memory_space<vmem>>, vector<4x8x48xf32>,
    %c1 = arith.constant 1 : index
    %c0_11 = arith.constant 0 : index
    %c0_12 = arith.constant 0 : index
    %10 = vector.load %arg3[%c1, %c0_11, %c0_12] : memref<2x32x48xbf16, #tpu.memory_space<vmem>>, vector<1x32x48xbf16>
    %11 = vector.shape_cast %10 : vector<1x32x48xbf16> to vector<32x48xbf16>
    "tpu.trace_start"() <{level = 10 : i32, message = "tbd,dh->tbh"}> : () -> ()
    %cst_13 = arith.constant dense<0.000000e+00> : vector<4x8x48xf32>
    %12 = tpu.matmul %0, %11, %cst_13 {dimension_numbers = #tpu.dot_dimension_numbers<[2], [0], [0, 1], [1], [0, 0, 0, 1, 1, 1], [], []>} : vector<4x8x32xbf16>, vector<32x48xbf16>, vector<4x8x48xf32> -> vector<4x8x48xf32>
    "tpu.trace_stop"() : () -> ()
    %c1_14 = arith.constant 1 : index
    %c0_15 = arith.constant 0 : index
    %c0_16 = arith.constant 0 : index
    %13 = vector.load %arg5[%c1_14, %c0_15, %c0_16] : memref<2x1x48xf32, #tpu.memory_space<vmem>>, vector<1x1x48xf32>
    %14 = vector.shape_cast %13 : vector<1x1x48xf32> to vector<1x48xf32>
    %15 = vector.shape_cast %14 : vector<1x48xf32> to vector<1x1x48xf32>
    %16 = vector.broadcast %15 : vector<1x1x48xf32> to vector<4x8x48xf32>
    %17 = arith.addf %12, %16 : vector<4x8x48xf32>
    %c0_17 = arith.constant 0 : index
    %c0_18 = arith.constant 0 : index
    %c0_19 = arith.constant 0 : index
    %18 = vector.load %arg9[%c0_17, %c0_18, %c0_19] : memref<4x8x48xf32, #tpu.memory_space<vmem>>, vector<4x8x48xf32>
    tpu.vector_store %arg9[%c0_17, %c0_18, %c0_19], %17 {strides = array<i32>} : memref<4x8x48xf32, #tpu.memory_space<vmem>>, vector<4x8x48xf32>,
    %c0_20 = arith.constant 0 : index
    %c0_21 = arith.constant 0 : index
    %c0_22 = arith.constant 0 : index
    %19 = vector.load %arg4[%c0_20, %c0_21, %c0_22] : memref<2x16x48xbf16, #tpu.memory_space<vmem>>, vector<1x16x48xbf16>
    %20 = vector.shape_cast %19 : vector<1x16x48xbf16> to vector<16x48xbf16>
    %c1_23 = arith.constant 1 : index
    %c0_24 = arith.constant 0 : index
    %c0_25 = arith.constant 0 : index
    %21 = vector.load %arg4[%c1_23, %c0_24, %c0_25] : memref<2x16x48xbf16, #tpu.memory_space<vmem>>, vector<1x16x48xbf16>
    %22 = vector.shape_cast %21 : vector<1x16x48xbf16> to vector<16x48xbf16>
    %c0_26 = arith.constant 0 : index
    %c0_27 = arith.constant 0 : index
    %c0_28 = arith.constant 0 : index
    %23 = vector.load %arg6[%c0_26, %c0_27, %c0_28] : memref<2x1x16xf32, #tpu.memory_space<vmem>>, vector<1x1x16xf32>
    %24 = vector.shape_cast %23 : vector<1x1x16xf32> to vector<1x16xf32>
    %c1_29 = arith.constant 1 : index
    %c0_30 = arith.constant 0 : index
    %c0_31 = arith.constant 0 : index
    %25 = vector.load %arg6[%c1_29, %c0_30, %c0_31] : memref<2x1x16xf32, #tpu.memory_space<vmem>>, vector<1x1x16xf32>
    %26 = vector.shape_cast %25 : vector<1x1x16xf32> to vector<1x16xf32>
    %cst_32 = arith.constant 0.000000e+00 : f32
    %27 = vector.broadcast %cst_32 : f32 to vector<8x16xf32>
    %c0_33 = arith.constant 0 : index
    %c0_34 = arith.constant 0 : index
    %28 = vector.load %arg12[%c0_33, %c0_34] : memref<8x16xf32, #tpu.memory_space<vmem>>, vector<8x16xf32>
    tpu.vector_store %arg12[%c0_33, %c0_34], %27 {strides = array<i32>} : memref<8x16xf32, #tpu.memory_space<vmem>>, vector<8x16xf32>,
    %cst_35 = arith.constant 0.000000e+00 : f32
    %29 = vector.broadcast %cst_35 : f32 to vector<8x16xf32>
    %c0_36 = arith.constant 0 : index
    %c0_37 = arith.constant 0 : index
    %30 = vector.load %arg13[%c0_36, %c0_37] : memref<8x16xf32, #tpu.memory_space<vmem>>, vector<8x16xf32>
    tpu.vector_store %arg13[%c0_36, %c0_37], %29 {strides = array<i32>} : memref<8x16xf32, #tpu.memory_space<vmem>>, vector<8x16xf32>,
    %c0_38 = arith.constant 0 : index
    %c0_39 = arith.constant 0 : index
    %31 = vector.load %arg12[%c0_38, %c0_39] : memref<8x16xf32, #tpu.memory_space<vmem>>, vector<8x16xf32>
    %32 = arith.truncf %31 : vector<8x16xf32> to vector<8x16xbf16>
    %cst_40 = arith.constant dense<0.000000e+00> : vector<8x48xf32>
    %33 = tpu.matmul %32, %20, %cst_40 {dimension_numbers = #tpu.dot_dimension_numbers<[1], [0], [0], [1], [0, 0, 1, 1], [], []>} : vector<8x16xbf16>, vector<16x48xbf16>, vector<8x48xf32> -> vector<8x48xf32>
    %c0_41 = arith.constant 0 : index
    %c0_42 = arith.constant 0 : index
    %c0_43 = arith.constant 0 : index
    %34 = vector.load %arg8[%c0_41, %c0_42, %c0_43] : memref<4x8x48xf32, #tpu.memory_space<vmem>>, vector<1x8x48xf32>
    %35 = vector.shape_cast %34 : vector<1x8x48xf32> to vector<8x48xf32>
    %36 = vector.extract_strided_slice %35 {offsets = [0, 0], sizes = [8, 16], strides = [1, 1]} : vector<8x48xf32> to vector<8x16xf32>
    %37 = vector.extract_strided_slice %33 {offsets = [0, 0], sizes = [8, 16], strides = [1, 1]} : vector<8x48xf32> to vector<8x16xf32>
    %38 = arith.addf %36, %37 : vector<8x16xf32>
    %39 = arith.negf %38 : vector<8x16xf32>
    %40 = math.exp %39 : vector<8x16xf32>
    %cst_44 = arith.constant 1.000000e+00 : f32
    %41 = vector.broadcast %cst_44 : f32 to vector<8x16xf32>
    %42 = arith.addf %41, %40 : vector<8x16xf32>
    %43 = arith.divf %41, %42 : vector<8x16xf32>
    %44 = vector.extract_strided_slice %35 {offsets = [0, 16], sizes = [8, 16], strides = [1, 1]} : vector<8x48xf32> to vector<8x16xf32>
    %45 = vector.extract_strided_slice %33 {offsets = [0, 16], sizes = [8, 16], strides = [1, 1]} : vector<8x48xf32> to vector<8x16xf32>
    %46 = arith.addf %44, %45 : vector<8x16xf32>
    %47 = arith.negf %46 : vector<8x16xf32>
    %48 = math.exp %47 : vector<8x16xf32>
    %cst_45 = arith.constant 1.000000e+00 : f32
    %49 = vector.broadcast %cst_45 : f32 to vector<8x16xf32>
    %50 = arith.addf %49, %48 : vector<8x16xf32>
    %51 = arith.divf %49, %50 : vector<8x16xf32>
    %52 = vector.extract_strided_slice %35 {offsets = [0, 32], sizes = [8, 16], strides = [1, 1]} : vector<8x48xf32> to vector<8x16xf32>
    %53 = vector.extract_strided_slice %33 {offsets = [0, 32], sizes = [8, 16], strides = [1, 1]} : vector<8x48xf32> to vector<8x16xf32>
    %54 = vector.broadcast %24 : vector<1x16xf32> to vector<8x16xf32>
    %55 = arith.addf %53, %54 : vector<8x16xf32>
    %56 = arith.mulf %43, %55 : vector<8x16xf32>
    %57 = arith.addf %52, %56 : vector<8x16xf32>
    %58 = math.tanh %57 : vector<8x16xf32>
    %cst_46 = arith.constant 1.000000e+00 : f32
    %59 = vector.broadcast %cst_46 : f32 to vector<8x16xf32>
    %60 = arith.subf %59, %51 : vector<8x16xf32>
    %61 = arith.mulf %60, %58 : vector<8x16xf32>
    %62 = arith.mulf %51, %31 : vector<8x16xf32>
    %63 = arith.addf %61, %62 : vector<8x16xf32>
    %c0_47 = arith.constant 0 : index
    %c0_48 = arith.constant 0 : index
    %c0_49 = arith.constant 0 : index
    %64 = vector.load %arg2[%c0_47, %c0_48, %c0_49] : memref<4x8x1xf32, #tpu.memory_space<vmem>>, vector<1x8x1xf32>
    %65 = vector.shape_cast %64 : vector<1x8x1xf32> to vector<8x1xf32>
    %66 = vector.broadcast %65 : vector<8x1xf32> to vector<8x16xf32>
    %67 = arith.mulf %66, %63 : vector<8x16xf32>
    %cst_50 = arith.constant 1.000000e+00 : f32
    %68 = vector.broadcast %cst_50 : f32 to vector<8x1xf32>
    %69 = arith.subf %68, %65 : vector<8x1xf32>
    %70 = vector.broadcast %69 : vector<8x1xf32> to vector<8x16xf32>
    %71 = arith.mulf %70, %31 : vector<8x16xf32>
    %72 = arith.addf %67, %71 : vector<8x16xf32>
    %c0_51 = arith.constant 0 : index
    %c0_52 = arith.constant 0 : index
    %73 = vector.load %arg12[%c0_51, %c0_52] : memref<8x16xf32, #tpu.memory_space<vmem>>, vector<8x16xf32>
    tpu.vector_store %arg12[%c0_51, %c0_52], %72 {strides = array<i32>} : memref<8x16xf32, #tpu.memory_space<vmem>>, vector<8x16xf32>,
    %74 = vector.broadcast %65 : vector<8x1xf32> to vector<8x16xf32>
    %75 = arith.mulf %74, %63 : vector<8x16xf32>
    %c0_53 = arith.constant 0 : index
    %c0_54 = arith.constant 0 : index
    %c0_55 = arith.constant 0 : index
    %76 = vector.load %arg10[%c0_53, %c0_54, %c0_55] : memref<4x8x16xf32, #tpu.memory_space<vmem>>, vector<1x8x16xf32>
    %77 = vector.shape_cast %76 : vector<1x8x16xf32> to vector<8x16xf32>
    %78 = vector.shape_cast %75 : vector<8x16xf32> to vector<1x8x16xf32>
    tpu.vector_store %arg10[%c0_53, %c0_54, %c0_55], %78 {strides = array<i32>} : memref<4x8x16xf32, #tpu.memory_space<vmem>>, vector<1x8x16xf32>,
    %c0_56 = arith.constant 0 : index
    %c0_57 = arith.constant 0 : index
    %79 = vector.load %arg13[%c0_56, %c0_57] : memref<8x16xf32, #tpu.memory_space<vmem>>, vector<8x16xf32>
    %80 = arith.truncf %79 : vector<8x16xf32> to vector<8x16xbf16>
    %cst_58 = arith.constant dense<0.000000e+00> : vector<8x48xf32>
    %81 = tpu.matmul %80, %22, %cst_58 {dimension_numbers = #tpu.dot_dimension_numbers<[1], [0], [0], [1], [0, 0, 1, 1], [], []>} : vector<8x16xbf16>, vector<16x48xbf16>, vector<8x48xf32> -> vector<8x48xf32>
    %c3 = arith.constant 3 : index
    %c0_59 = arith.constant 0 : index
    %c0_60 = arith.constant 0 : index
    %82 = vector.load %arg9[%c3, %c0_59, %c0_60] : memref<4x8x48xf32, #tpu.memory_space<vmem>>, vector<1x8x48xf32>
    %83 = vector.shape_cast %82 : vector<1x8x48xf32> to vector<8x48xf32>
    %84 = vector.extract_strided_slice %83 {offsets = [0, 0], sizes = [8, 16], strides = [1, 1]} : vector<8x48xf32> to vector<8x16xf32>
    %85 = vector.extract_strided_slice %81 {offsets = [0, 0], sizes = [8, 16], strides = [1, 1]} : vector<8x48xf32> to vector<8x16xf32>
    %86 = arith.addf %84, %85 : vector<8x16xf32>
    %87 = arith.negf %86 : vector<8x16xf32>
    %88 = math.exp %87 : vector<8x16xf32>
    %cst_61 = arith.constant 1.000000e+00 : f32
    %89 = vector.broadcast %cst_61 : f32 to vector<8x16xf32>
    %90 = arith.addf %89, %88 : vector<8x16xf32>
    %91 = arith.divf %89, %90 : vector<8x16xf32>
    %92 = vector.extract_strided_slice %83 {offsets = [0, 16], sizes = [8, 16], strides = [1, 1]} : vector<8x48xf32> to vector<8x16xf32>
    %93 = vector.extract_strided_slice %81 {offsets = [0, 16], sizes = [8, 16], strides = [1, 1]} : vector<8x48xf32> to vector<8x16xf32>
    %94 = arith.addf %92, %93 : vector<8x16xf32>
    %95 = arith.negf %94 : vector<8x16xf32>
    %96 = math.exp %95 : vector<8x16xf32>
    %cst_62 = arith.constant 1.000000e+00 : f32
    %97 = vector.broadcast %cst_62 : f32 to vector<8x16xf32>
    %98 = arith.addf %97, %96 : vector<8x16xf32>
    %99 = arith.divf %97, %98 : vector<8x16xf32>
    %100 = vector.extract_strided_slice %83 {offsets = [0, 32], sizes = [8, 16], strides = [1, 1]} : vector<8x48xf32> to vector<8x16xf32>
    %101 = vector.extract_strided_slice %81 {offsets = [0, 32], sizes = [8, 16], strides = [1, 1]} : vector<8x48xf32> to vector<8x16xf32>
    %102 = vector.broadcast %26 : vector<1x16xf32> to vector<8x16xf32>
    %103 = arith.addf %101, %102 : vector<8x16xf32>
    %104 = arith.mulf %91, %103 : vector<8x16xf32>
    %105 = arith.addf %100, %104 : vector<8x16xf32>
    %106 = math.tanh %105 : vector<8x16xf32>
    %cst_63 = arith.constant 1.000000e+00 : f32
    %107 = vector.broadcast %cst_63 : f32 to vector<8x16xf32>
    %108 = arith.subf %107, %99 : vector<8x16xf32>
    %109 = arith.mulf %108, %106 : vector<8x16xf32>
    %110 = arith.mulf %99, %79 : vector<8x16xf32>
    %111 = arith.addf %109, %110 : vector<8x16xf32>
    %c3_64 = arith.constant 3 : index
    %c0_65 = arith.constant 0 : index
    %c0_66 = arith.constant 0 : index
    %112 = vector.load %arg2[%c3_64, %c0_65, %c0_66] : memref<4x8x1xf32, #tpu.memory_space<vmem>>, vector<1x8x1xf32>
    %113 = vector.shape_cast %112 : vector<1x8x1xf32> to vector<8x1xf32>
    %114 = vector.broadcast %113 : vector<8x1xf32> to vector<8x16xf32>
    %115 = arith.mulf %114, %111 : vector<8x16xf32>
    %cst_67 = arith.constant 1.000000e+00 : f32
    %116 = vector.broadcast %cst_67 : f32 to vector<8x1xf32>
    %117 = arith.subf %116, %113 : vector<8x1xf32>
    %118 = vector.broadcast %117 : vector<8x1xf32> to vector<8x16xf32>
    %119 = arith.mulf %118, %79 : vector<8x16xf32>
    %120 = arith.addf %115, %119 : vector<8x16xf32>
    %c0_68 = arith.constant 0 : index
    %c0_69 = arith.constant 0 : index
    %121 = vector.load %arg13[%c0_68, %c0_69] : memref<8x16xf32, #tpu.memory_space<vmem>>, vector<8x16xf32>
    tpu.vector_store %arg13[%c0_68, %c0_69], %120 {strides = array<i32>} : memref<8x16xf32, #tpu.memory_space<vmem>>, vector<8x16xf32>,
    %122 = vector.broadcast %113 : vector<8x1xf32> to vector<8x16xf32>
    %123 = arith.mulf %122, %111 : vector<8x16xf32>
    %c3_70 = arith.constant 3 : index
    %c0_71 = arith.constant 0 : index
    %c0_72 = arith.constant 0 : index
    %124 = vector.load %arg11[%c3_70, %c0_71, %c0_72] : memref<4x8x16xf32, #tpu.memory_space<vmem>>, vector<1x8x16xf32>
    %125 = vector.shape_cast %124 : vector<1x8x16xf32> to vector<8x16xf32>
    %126 = vector.shape_cast %123 : vector<8x16xf32> to vector<1x8x16xf32>
    tpu.vector_store %arg11[%c3_70, %c0_71, %c0_72], %126 {strides = array<i32>} : memref<4x8x16xf32, #tpu.memory_space<vmem>>, vector<1x8x16xf32>,
    %c0_73 = arith.constant 0 : index
    %c0_74 = arith.constant 0 : index
    %127 = vector.load %arg12[%c0_73, %c0_74] : memref<8x16xf32, #tpu.memory_space<vmem>>, vector<8x16xf32>
    %128 = arith.truncf %127 : vector<8x16xf32> to vector<8x16xbf16>
    %cst_75 = arith.constant dense<0.000000e+00> : vector<8x48xf32>
    %129 = tpu.matmul %128, %20, %cst_75 {dimension_numbers = #tpu.dot_dimension_numbers<[1], [0], [0], [1], [0, 0, 1, 1], [], []>} : vector<8x16xbf16>, vector<16x48xbf16>, vector<8x48xf32> -> vector<8x48xf32>
    %c1_76 = arith.constant 1 : index
    %c0_77 = arith.constant 0 : index
    %c0_78 = arith.constant 0 : index
    %130 = vector.load %arg8[%c1_76, %c0_77, %c0_78] : memref<4x8x48xf32, #tpu.memory_space<vmem>>, vector<1x8x48xf32>
    %131 = vector.shape_cast %130 : vector<1x8x48xf32> to vector<8x48xf32>
    %132 = vector.extract_strided_slice %131 {offsets = [0, 0], sizes = [8, 16], strides = [1, 1]} : vector<8x48xf32> to vector<8x16xf32>
    %133 = vector.extract_strided_slice %129 {offsets = [0, 0], sizes = [8, 16], strides = [1, 1]} : vector<8x48xf32> to vector<8x16xf32>
    %134 = arith.addf %132, %133 : vector<8x16xf32>
    %135 = arith.negf %134 : vector<8x16xf32>
    %136 = math.exp %135 : vector<8x16xf32>
    %cst_79 = arith.constant 1.000000e+00 : f32
    %137 = vector.broadcast %cst_79 : f32 to vector<8x16xf32>
    %138 = arith.addf %137, %136 : vector<8x16xf32>
    %139 = arith.divf %137, %138 : vector<8x16xf32>
    %140 = vector.extract_strided_slice %131 {offsets = [0, 16], sizes = [8, 16], strides = [1, 1]} : vector<8x48xf32> to vector<8x16xf32>
    %141 = vector.extract_strided_slice %129 {offsets = [0, 16], sizes = [8, 16], strides = [1, 1]} : vector<8x48xf32> to vector<8x16xf32>
    %142 = arith.addf %140, %141 : vector<8x16xf32>
    %143 = arith.negf %142 : vector<8x16xf32>
    %144 = math.exp %143 : vector<8x16xf32>
    %cst_80 = arith.constant 1.000000e+00 : f32
    %145 = vector.broadcast %cst_80 : f32 to vector<8x16xf32>
    %146 = arith.addf %145, %144 : vector<8x16xf32>
    %147 = arith.divf %145, %146 : vector<8x16xf32>
    %148 = vector.extract_strided_slice %131 {offsets = [0, 32], sizes = [8, 16], strides = [1, 1]} : vector<8x48xf32> to vector<8x16xf32>
    %149 = vector.extract_strided_slice %129 {offsets = [0, 32], sizes = [8, 16], strides = [1, 1]} : vector<8x48xf32> to vector<8x16xf32>
    %150 = vector.broadcast %24 : vector<1x16xf32> to vector<8x16xf32>
    %151 = arith.addf %149, %150 : vector<8x16xf32>
    %152 = arith.mulf %139, %151 : vector<8x16xf32>
    %153 = arith.addf %148, %152 : vector<8x16xf32>
    %154 = math.tanh %153 : vector<8x16xf32>
    %cst_81 = arith.constant 1.000000e+00 : f32
    %155 = vector.broadcast %cst_81 : f32 to vector<8x16xf32>
    %156 = arith.subf %155, %147 : vector<8x16xf32>
    %157 = arith.mulf %156, %154 : vector<8x16xf32>
    %158 = arith.mulf %147, %127 : vector<8x16xf32>
    %159 = arith.addf %157, %158 : vector<8x16xf32>
    %c1_82 = arith.constant 1 : index
    %c0_83 = arith.constant 0 : index
    %c0_84 = arith.constant 0 : index
    %160 = vector.load %arg2[%c1_82, %c0_83, %c0_84] : memref<4x8x1xf32, #tpu.memory_space<vmem>>, vector<1x8x1xf32>
    %161 = vector.shape_cast %160 : vector<1x8x1xf32> to vector<8x1xf32>
    %162 = vector.broadcast %161 : vector<8x1xf32> to vector<8x16xf32>
    %163 = arith.mulf %162, %159 : vector<8x16xf32>
    %cst_85 = arith.constant 1.000000e+00 : f32
    %164 = vector.broadcast %cst_85 : f32 to vector<8x1xf32>
    %165 = arith.subf %164, %161 : vector<8x1xf32>
    %166 = vector.broadcast %165 : vector<8x1xf32> to vector<8x16xf32>
    %167 = arith.mulf %166, %127 : vector<8x16xf32>
    %168 = arith.addf %163, %167 : vector<8x16xf32>
    %c0_86 = arith.constant 0 : index
    %c0_87 = arith.constant 0 : index
    %169 = vector.load %arg12[%c0_86, %c0_87] : memref<8x16xf32, #tpu.memory_space<vmem>>, vector<8x16xf32>
    tpu.vector_store %arg12[%c0_86, %c0_87], %168 {strides = array<i32>} : memref<8x16xf32, #tpu.memory_space<vmem>>, vector<8x16xf32>,
    %170 = vector.broadcast %161 : vector<8x1xf32> to vector<8x16xf32>
    %171 = arith.mulf %170, %159 : vector<8x16xf32>
    %c1_88 = arith.constant 1 : index
    %c0_89 = arith.constant 0 : index
    %c0_90 = arith.constant 0 : index
    %172 = vector.load %arg10[%c1_88, %c0_89, %c0_90] : memref<4x8x16xf32, #tpu.memory_space<vmem>>, vector<1x8x16xf32>
    %173 = vector.shape_cast %172 : vector<1x8x16xf32> to vector<8x16xf32>
    %174 = vector.shape_cast %171 : vector<8x16xf32> to vector<1x8x16xf32>
    tpu.vector_store %arg10[%c1_88, %c0_89, %c0_90], %174 {strides = array<i32>} : memref<4x8x16xf32, #tpu.memory_space<vmem>>, vector<1x8x16xf32>,
    %c0_91 = arith.constant 0 : index
    %c0_92 = arith.constant 0 : index
    %175 = vector.load %arg13[%c0_91, %c0_92] : memref<8x16xf32, #tpu.memory_space<vmem>>, vector<8x16xf32>
    %176 = arith.truncf %175 : vector<8x16xf32> to vector<8x16xbf16>
    %cst_93 = arith.constant dense<0.000000e+00> : vector<8x48xf32>
    %177 = tpu.matmul %176, %22, %cst_93 {dimension_numbers = #tpu.dot_dimension_numbers<[1], [0], [0], [1], [0, 0, 1, 1], [], []>} : vector<8x16xbf16>, vector<16x48xbf16>, vector<8x48xf32> -> vector<8x48xf32>
    %c2 = arith.constant 2 : index
    %c0_94 = arith.constant 0 : index
    %c0_95 = arith.constant 0 : index
    %178 = vector.load %arg9[%c2, %c0_94, %c0_95] : memref<4x8x48xf32, #tpu.memory_space<vmem>>, vector<1x8x48xf32>
    %179 = vector.shape_cast %178 : vector<1x8x48xf32> to vector<8x48xf32>
    %180 = vector.extract_strided_slice %179 {offsets = [0, 0], sizes = [8, 16], strides = [1, 1]} : vector<8x48xf32> to vector<8x16xf32>
    %181 = vector.extract_strided_slice %177 {offsets = [0, 0], sizes = [8, 16], strides = [1, 1]} : vector<8x48xf32> to vector<8x16xf32>
    %182 = arith.addf %180, %181 : vector<8x16xf32>
    %183 = arith.negf %182 : vector<8x16xf32>
    %184 = math.exp %183 : vector<8x16xf32>
    %cst_96 = arith.constant 1.000000e+00 : f32
    %185 = vector.broadcast %cst_96 : f32 to vector<8x16xf32>
    %186 = arith.addf %185, %184 : vector<8x16xf32>
    %187 = arith.divf %185, %186 : vector<8x16xf32>
    %188 = vector.extract_strided_slice %179 {offsets = [0, 16], sizes = [8, 16], strides = [1, 1]} : vector<8x48xf32> to vector<8x16xf32>
    %189 = vector.extract_strided_slice %177 {offsets = [0, 16], sizes = [8, 16], strides = [1, 1]} : vector<8x48xf32> to vector<8x16xf32>
    %190 = arith.addf %188, %189 : vector<8x16xf32>
    %191 = arith.negf %190 : vector<8x16xf32>
    %192 = math.exp %191 : vector<8x16xf32>
    %cst_97 = arith.constant 1.000000e+00 : f32
    %193 = vector.broadcast %cst_97 : f32 to vector<8x16xf32>
    %194 = arith.addf %193, %192 : vector<8x16xf32>
    %195 = arith.divf %193, %194 : vector<8x16xf32>
    %196 = vector.extract_strided_slice %179 {offsets = [0, 32], sizes = [8, 16], strides = [1, 1]} : vector<8x48xf32> to vector<8x16xf32>
    %197 = vector.extract_strided_slice %177 {offsets = [0, 32], sizes = [8, 16], strides = [1, 1]} : vector<8x48xf32> to vector<8x16xf32>
    %198 = vector.broadcast %26 : vector<1x16xf32> to vector<8x16xf32>
    %199 = arith.addf %197, %198 : vector<8x16xf32>
    %200 = arith.mulf %187, %199 : vector<8x16xf32>
    %201 = arith.addf %196, %200 : vector<8x16xf32>
    %202 = math.tanh %201 : vector<8x16xf32>
    %cst_98 = arith.constant 1.000000e+00 : f32
    %203 = vector.broadcast %cst_98 : f32 to vector<8x16xf32>
    %204 = arith.subf %203, %195 : vector<8x16xf32>
    %205 = arith.mulf %204, %202 : vector<8x16xf32>
    %206 = arith.mulf %195, %175 : vector<8x16xf32>
    %207 = arith.addf %205, %206 : vector<8x16xf32>
    %c2_99 = arith.constant 2 : index
    %c0_100 = arith.constant 0 : index
    %c0_101 = arith.constant 0 : index
    %208 = vector.load %arg2[%c2_99, %c0_100, %c0_101] : memref<4x8x1xf32, #tpu.memory_space<vmem>>, vector<1x8x1xf32>
    %209 = vector.shape_cast %208 : vector<1x8x1xf32> to vector<8x1xf32>
    %210 = vector.broadcast %209 : vector<8x1xf32> to vector<8x16xf32>
    %211 = arith.mulf %210, %207 : vector<8x16xf32>
    %cst_102 = arith.constant 1.000000e+00 : f32
    %212 = vector.broadcast %cst_102 : f32 to vector<8x1xf32>
    %213 = arith.subf %212, %209 : vector<8x1xf32>
    %214 = vector.broadcast %213 : vector<8x1xf32> to vector<8x16xf32>
    %215 = arith.mulf %214, %175 : vector<8x16xf32>
    %216 = arith.addf %211, %215 : vector<8x16xf32>
    %c0_103 = arith.constant 0 : index
    %c0_104 = arith.constant 0 : index
    %217 = vector.load %arg13[%c0_103, %c0_104] : memref<8x16xf32, #tpu.memory_space<vmem>>, vector<8x16xf32>
    tpu.vector_store %arg13[%c0_103, %c0_104], %216 {strides = array<i32>} : memref<8x16xf32, #tpu.memory_space<vmem>>, vector<8x16xf32>,
    %218 = vector.broadcast %209 : vector<8x1xf32> to vector<8x16xf32>
    %219 = arith.mulf %218, %207 : vector<8x16xf32>
    %c2_105 = arith.constant 2 : index
    %c0_106 = arith.constant 0 : index
    %c0_107 = arith.constant 0 : index
    %220 = vector.load %arg11[%c2_105, %c0_106, %c0_107] : memref<4x8x16xf32, #tpu.memory_space<vmem>>, vector<1x8x16xf32>
    %221 = vector.shape_cast %220 : vector<1x8x16xf32> to vector<8x16xf32>
    %222 = vector.shape_cast %219 : vector<8x16xf32> to vector<1x8x16xf32>
    tpu.vector_store %arg11[%c2_105, %c0_106, %c0_107], %222 {strides = array<i32>} : memref<4x8x16xf32, #tpu.memory_space<vmem>>, vector<1x8x16xf32>,
    %c0_108 = arith.constant 0 : index
    %c0_109 = arith.constant 0 : index
    %223 = vector.load %arg12[%c0_108, %c0_109] : memref<8x16xf32, #tpu.memory_space<vmem>>, vector<8x16xf32>
    %224 = arith.truncf %223 : vector<8x16xf32> to vector<8x16xbf16>
    %cst_110 = arith.constant dense<0.000000e+00> : vector<8x48xf32>
    %225 = tpu.matmul %224, %20, %cst_110 {dimension_numbers = #tpu.dot_dimension_numbers<[1], [0], [0], [1], [0, 0, 1, 1], [], []>} : vector<8x16xbf16>, vector<16x48xbf16>, vector<8x48xf32> -> vector<8x48xf32>
    %c2_111 = arith.constant 2 : index
    %c0_112 = arith.constant 0 : index
    %c0_113 = arith.constant 0 : index
    %226 = vector.load %arg8[%c2_111, %c0_112, %c0_113] : memref<4x8x48xf32, #tpu.memory_space<vmem>>, vector<1x8x48xf32>
    %227 = vector.shape_cast %226 : vector<1x8x48xf32> to vector<8x48xf32>
    %228 = vector.extract_strided_slice %227 {offsets = [0, 0], sizes = [8, 16], strides = [1, 1]} : vector<8x48xf32> to vector<8x16xf32>
    %229 = vector.extract_strided_slice %225 {offsets = [0, 0], sizes = [8, 16], strides = [1, 1]} : vector<8x48xf32> to vector<8x16xf32>
    %230 = arith.addf %228, %229 : vector<8x16xf32>
    %231 = arith.negf %230 : vector<8x16xf32>
    %232 = math.exp %231 : vector<8x16xf32>
    %cst_114 = arith.constant 1.000000e+00 : f32
    %233 = vector.broadcast %cst_114 : f32 to vector<8x16xf32>
    %234 = arith.addf %233, %232 : vector<8x16xf32>
    %235 = arith.divf %233, %234 : vector<8x16xf32>
    %236 = vector.extract_strided_slice %227 {offsets = [0, 16], sizes = [8, 16], strides = [1, 1]} : vector<8x48xf32> to vector<8x16xf32>
    %237 = vector.extract_strided_slice %225 {offsets = [0, 16], sizes = [8, 16], strides = [1, 1]} : vector<8x48xf32> to vector<8x16xf32>
    %238 = arith.addf %236, %237 : vector<8x16xf32>
    %239 = arith.negf %238 : vector<8x16xf32>
    %240 = math.exp %239 : vector<8x16xf32>
    %cst_115 = arith.constant 1.000000e+00 : f32
    %241 = vector.broadcast %cst_115 : f32 to vector<8x16xf32>
    %242 = arith.addf %241, %240 : vector<8x16xf32>
    %243 = arith.divf %241, %242 : vector<8x16xf32>
    %244 = vector.extract_strided_slice %227 {offsets = [0, 32], sizes = [8, 16], strides = [1, 1]} : vector<8x48xf32> to vector<8x16xf32>
    %245 = vector.extract_strided_slice %225 {offsets = [0, 32], sizes = [8, 16], strides = [1, 1]} : vector<8x48xf32> to vector<8x16xf32>
    %246 = vector.broadcast %24 : vector<1x16xf32> to vector<8x16xf32>
    %247 = arith.addf %245, %246 : vector<8x16xf32>
    %248 = arith.mulf %235, %247 : vector<8x16xf32>
    %249 = arith.addf %244, %248 : vector<8x16xf32>
    %250 = math.tanh %249 : vector<8x16xf32>
    %cst_116 = arith.constant 1.000000e+00 : f32
    %251 = vector.broadcast %cst_116 : f32 to vector<8x16xf32>
    %252 = arith.subf %251, %243 : vector<8x16xf32>
    %253 = arith.mulf %252, %250 : vector<8x16xf32>
    %254 = arith.mulf %243, %223 : vector<8x16xf32>
    %255 = arith.addf %253, %254 : vector<8x16xf32>
    %c2_117 = arith.constant 2 : index
    %c0_118 = arith.constant 0 : index
    %c0_119 = arith.constant 0 : index
    %256 = vector.load %arg2[%c2_117, %c0_118, %c0_119] : memref<4x8x1xf32, #tpu.memory_space<vmem>>, vector<1x8x1xf32>
    %257 = vector.shape_cast %256 : vector<1x8x1xf32> to vector<8x1xf32>
    %258 = vector.broadcast %257 : vector<8x1xf32> to vector<8x16xf32>
    %259 = arith.mulf %258, %255 : vector<8x16xf32>
    %cst_120 = arith.constant 1.000000e+00 : f32
    %260 = vector.broadcast %cst_120 : f32 to vector<8x1xf32>
    %261 = arith.subf %260, %257 : vector<8x1xf32>
    %262 = vector.broadcast %261 : vector<8x1xf32> to vector<8x16xf32>
    %263 = arith.mulf %262, %223 : vector<8x16xf32>
    %264 = arith.addf %259, %263 : vector<8x16xf32>
    %c0_121 = arith.constant 0 : index
    %c0_122 = arith.constant 0 : index
    %265 = vector.load %arg12[%c0_121, %c0_122] : memref<8x16xf32, #tpu.memory_space<vmem>>, vector<8x16xf32>
    tpu.vector_store %arg12[%c0_121, %c0_122], %264 {strides = array<i32>} : memref<8x16xf32, #tpu.memory_space<vmem>>, vector<8x16xf32>,
    %266 = vector.broadcast %257 : vector<8x1xf32> to vector<8x16xf32>
    %267 = arith.mulf %266, %255 : vector<8x16xf32>
    %c2_123 = arith.constant 2 : index
    %c0_124 = arith.constant 0 : index
    %c0_125 = arith.constant 0 : index
    %268 = vector.load %arg10[%c2_123, %c0_124, %c0_125] : memref<4x8x16xf32, #tpu.memory_space<vmem>>, vector<1x8x16xf32>
    %269 = vector.shape_cast %268 : vector<1x8x16xf32> to vector<8x16xf32>
    %270 = vector.shape_cast %267 : vector<8x16xf32> to vector<1x8x16xf32>
    tpu.vector_store %arg10[%c2_123, %c0_124, %c0_125], %270 {strides = array<i32>} : memref<4x8x16xf32, #tpu.memory_space<vmem>>, vector<1x8x16xf32>,
    %c0_126 = arith.constant 0 : index
    %c0_127 = arith.constant 0 : index
    %271 = vector.load %arg13[%c0_126, %c0_127] : memref<8x16xf32, #tpu.memory_space<vmem>>, vector<8x16xf32>
    %272 = arith.truncf %271 : vector<8x16xf32> to vector<8x16xbf16>
    %cst_128 = arith.constant dense<0.000000e+00> : vector<8x48xf32>
    %273 = tpu.matmul %272, %22, %cst_128 {dimension_numbers = #tpu.dot_dimension_numbers<[1], [0], [0], [1], [0, 0, 1, 1], [], []>} : vector<8x16xbf16>, vector<16x48xbf16>, vector<8x48xf32> -> vector<8x48xf32>
    %c1_129 = arith.constant 1 : index
    %c0_130 = arith.constant 0 : index
    %c0_131 = arith.constant 0 : index
    %274 = vector.load %arg9[%c1_129, %c0_130, %c0_131] : memref<4x8x48xf32, #tpu.memory_space<vmem>>, vector<1x8x48xf32>
    %275 = vector.shape_cast %274 : vector<1x8x48xf32> to vector<8x48xf32>
    %276 = vector.extract_strided_slice %275 {offsets = [0, 0], sizes = [8, 16], strides = [1, 1]} : vector<8x48xf32> to vector<8x16xf32>
    %277 = vector.extract_strided_slice %273 {offsets = [0, 0], sizes = [8, 16], strides = [1, 1]} : vector<8x48xf32> to vector<8x16xf32>
    %278 = arith.addf %276, %277 : vector<8x16xf32>
    %279 = arith.negf %278 : vector<8x16xf32>
    %280 = math.exp %279 : vector<8x16xf32>
    %cst_132 = arith.constant 1.000000e+00 : f32
    %281 = vector.broadcast %cst_132 : f32 to vector<8x16xf32>
    %282 = arith.addf %281, %280 : vector<8x16xf32>
    %283 = arith.divf %281, %282 : vector<8x16xf32>
    %284 = vector.extract_strided_slice %275 {offsets = [0, 16], sizes = [8, 16], strides = [1, 1]} : vector<8x48xf32> to vector<8x16xf32>
    %285 = vector.extract_strided_slice %273 {offsets = [0, 16], sizes = [8, 16], strides = [1, 1]} : vector<8x48xf32> to vector<8x16xf32>
    %286 = arith.addf %284, %285 : vector<8x16xf32>
    %287 = arith.negf %286 : vector<8x16xf32>
    %288 = math.exp %287 : vector<8x16xf32>
    %cst_133 = arith.constant 1.000000e+00 : f32
    %289 = vector.broadcast %cst_133 : f32 to vector<8x16xf32>
    %290 = arith.addf %289, %288 : vector<8x16xf32>
    %291 = arith.divf %289, %290 : vector<8x16xf32>
    %292 = vector.extract_strided_slice %275 {offsets = [0, 32], sizes = [8, 16], strides = [1, 1]} : vector<8x48xf32> to vector<8x16xf32>
    %293 = vector.extract_strided_slice %273 {offsets = [0, 32], sizes = [8, 16], strides = [1, 1]} : vector<8x48xf32> to vector<8x16xf32>
    %294 = vector.broadcast %26 : vector<1x16xf32> to vector<8x16xf32>
    %295 = arith.addf %293, %294 : vector<8x16xf32>
    %296 = arith.mulf %283, %295 : vector<8x16xf32>
    %297 = arith.addf %292, %296 : vector<8x16xf32>
    %298 = math.tanh %297 : vector<8x16xf32>
    %cst_134 = arith.constant 1.000000e+00 : f32
    %299 = vector.broadcast %cst_134 : f32 to vector<8x16xf32>
    %300 = arith.subf %299, %291 : vector<8x16xf32>
    %301 = arith.mulf %300, %298 : vector<8x16xf32>
    %302 = arith.mulf %291, %271 : vector<8x16xf32>
    %303 = arith.addf %301, %302 : vector<8x16xf32>
    %c1_135 = arith.constant 1 : index
    %c0_136 = arith.constant 0 : index
    %c0_137 = arith.constant 0 : index
    %304 = vector.load %arg2[%c1_135, %c0_136, %c0_137] : memref<4x8x1xf32, #tpu.memory_space<vmem>>, vector<1x8x1xf32>
    %305 = vector.shape_cast %304 : vector<1x8x1xf32> to vector<8x1xf32>
    %306 = vector.broadcast %305 : vector<8x1xf32> to vector<8x16xf32>
    %307 = arith.mulf %306, %303 : vector<8x16xf32>
    %cst_138 = arith.constant 1.000000e+00 : f32
    %308 = vector.broadcast %cst_138 : f32 to vector<8x1xf32>
    %309 = arith.subf %308, %305 : vector<8x1xf32>
    %310 = vector.broadcast %309 : vector<8x1xf32> to vector<8x16xf32>
    %311 = arith.mulf %310, %271 : vector<8x16xf32>
    %312 = arith.addf %307, %311 : vector<8x16xf32>
    %c0_139 = arith.constant 0 : index
    %c0_140 = arith.constant 0 : index
    %313 = vector.load %arg13[%c0_139, %c0_140] : memref<8x16xf32, #tpu.memory_space<vmem>>, vector<8x16xf32>
    tpu.vector_store %arg13[%c0_139, %c0_140], %312 {strides = array<i32>} : memref<8x16xf32, #tpu.memory_space<vmem>>, vector<8x16xf32>,
    %314 = vector.broadcast %305 : vector<8x1xf32> to vector<8x16xf32>
    %315 = arith.mulf %314, %303 : vector<8x16xf32>
    %c1_141 = arith.constant 1 : index
    %c0_142 = arith.constant 0 : index
    %c0_143 = arith.constant 0 : index
    %316 = vector.load %arg11[%c1_141, %c0_142, %c0_143] : memref<4x8x16xf32, #tpu.memory_space<vmem>>, vector<1x8x16xf32>
    %317 = vector.shape_cast %316 : vector<1x8x16xf32> to vector<8x16xf32>
    %318 = vector.shape_cast %315 : vector<8x16xf32> to vector<1x8x16xf32>
    tpu.vector_store %arg11[%c1_141, %c0_142, %c0_143], %318 {strides = array<i32>} : memref<4x8x16xf32, #tpu.memory_space<vmem>>, vector<1x8x16xf32>,
    %c0_144 = arith.constant 0 : index
    %c0_145 = arith.constant 0 : index
    %319 = vector.load %arg12[%c0_144, %c0_145] : memref<8x16xf32, #tpu.memory_space<vmem>>, vector<8x16xf32>
    %320 = arith.truncf %319 : vector<8x16xf32> to vector<8x16xbf16>
    %cst_146 = arith.constant dense<0.000000e+00> : vector<8x48xf32>
    %321 = tpu.matmul %320, %20, %cst_146 {dimension_numbers = #tpu.dot_dimension_numbers<[1], [0], [0], [1], [0, 0, 1, 1], [], []>} : vector<8x16xbf16>, vector<16x48xbf16>, vector<8x48xf32> -> vector<8x48xf32>
    %c3_147 = arith.constant 3 : index
    %c0_148 = arith.constant 0 : index
    %c0_149 = arith.constant 0 : index
    %322 = vector.load %arg8[%c3_147, %c0_148, %c0_149] : memref<4x8x48xf32, #tpu.memory_space<vmem>>, vector<1x8x48xf32>
    %323 = vector.shape_cast %322 : vector<1x8x48xf32> to vector<8x48xf32>
    %324 = vector.extract_strided_slice %323 {offsets = [0, 0], sizes = [8, 16], strides = [1, 1]} : vector<8x48xf32> to vector<8x16xf32>
    %325 = vector.extract_strided_slice %321 {offsets = [0, 0], sizes = [8, 16], strides = [1, 1]} : vector<8x48xf32> to vector<8x16xf32>
    %326 = arith.addf %324, %325 : vector<8x16xf32>
    %327 = arith.negf %326 : vector<8x16xf32>
    %328 = math.exp %327 : vector<8x16xf32>
    %cst_150 = arith.constant 1.000000e+00 : f32
    %329 = vector.broadcast %cst_150 : f32 to vector<8x16xf32>
    %330 = arith.addf %329, %328 : vector<8x16xf32>
    %331 = arith.divf %329, %330 : vector<8x16xf32>
    %332 = vector.extract_strided_slice %323 {offsets = [0, 16], sizes = [8, 16], strides = [1, 1]} : vector<8x48xf32> to vector<8x16xf32>
    %333 = vector.extract_strided_slice %321 {offsets = [0, 16], sizes = [8, 16], strides = [1, 1]} : vector<8x48xf32> to vector<8x16xf32>
    %334 = arith.addf %332, %333 : vector<8x16xf32>
    %335 = arith.negf %334 : vector<8x16xf32>
    %336 = math.exp %335 : vector<8x16xf32>
    %cst_151 = arith.constant 1.000000e+00 : f32
    %337 = vector.broadcast %cst_151 : f32 to vector<8x16xf32>
    %338 = arith.addf %337, %336 : vector<8x16xf32>
    %339 = arith.divf %337, %338 : vector<8x16xf32>
    %340 = vector.extract_strided_slice %323 {offsets = [0, 32], sizes = [8, 16], strides = [1, 1]} : vector<8x48xf32> to vector<8x16xf32>
    %341 = vector.extract_strided_slice %321 {offsets = [0, 32], sizes = [8, 16], strides = [1, 1]} : vector<8x48xf32> to vector<8x16xf32>
    %342 = vector.broadcast %24 : vector<1x16xf32> to vector<8x16xf32>
    %343 = arith.addf %341, %342 : vector<8x16xf32>
    %344 = arith.mulf %331, %343 : vector<8x16xf32>
    %345 = arith.addf %340, %344 : vector<8x16xf32>
    %346 = math.tanh %345 : vector<8x16xf32>
    %cst_152 = arith.constant 1.000000e+00 : f32
    %347 = vector.broadcast %cst_152 : f32 to vector<8x16xf32>
    %348 = arith.subf %347, %339 : vector<8x16xf32>
    %349 = arith.mulf %348, %346 : vector<8x16xf32>
    %350 = arith.mulf %339, %319 : vector<8x16xf32>
    %351 = arith.addf %349, %350 : vector<8x16xf32>
    %c3_153 = arith.constant 3 : index
    %c0_154 = arith.constant 0 : index
    %c0_155 = arith.constant 0 : index
    %352 = vector.load %arg2[%c3_153, %c0_154, %c0_155] : memref<4x8x1xf32, #tpu.memory_space<vmem>>, vector<1x8x1xf32>
    %353 = vector.shape_cast %352 : vector<1x8x1xf32> to vector<8x1xf32>
    %354 = vector.broadcast %353 : vector<8x1xf32> to vector<8x16xf32>
    %355 = arith.mulf %354, %351 : vector<8x16xf32>
    %cst_156 = arith.constant 1.000000e+00 : f32
    %356 = vector.broadcast %cst_156 : f32 to vector<8x1xf32>
    %357 = arith.subf %356, %353 : vector<8x1xf32>
    %358 = vector.broadcast %357 : vector<8x1xf32> to vector<8x16xf32>
    %359 = arith.mulf %358, %319 : vector<8x16xf32>
    %360 = arith.addf %355, %359 : vector<8x16xf32>
    %c0_157 = arith.constant 0 : index
    %c0_158 = arith.constant 0 : index
    %361 = vector.load %arg12[%c0_157, %c0_158] : memref<8x16xf32, #tpu.memory_space<vmem>>, vector<8x16xf32>
    tpu.vector_store %arg12[%c0_157, %c0_158], %360 {strides = array<i32>} : memref<8x16xf32, #tpu.memory_space<vmem>>, vector<8x16xf32>,
    %362 = vector.broadcast %353 : vector<8x1xf32> to vector<8x16xf32>
    %363 = arith.mulf %362, %351 : vector<8x16xf32>
    %c3_159 = arith.constant 3 : index
    %c0_160 = arith.constant 0 : index
    %c0_161 = arith.constant 0 : index
    %364 = vector.load %arg10[%c3_159, %c0_160, %c0_161] : memref<4x8x16xf32, #tpu.memory_space<vmem>>, vector<1x8x16xf32>
    %365 = vector.shape_cast %364 : vector<1x8x16xf32> to vector<8x16xf32>
    %366 = vector.shape_cast %363 : vector<8x16xf32> to vector<1x8x16xf32>
    tpu.vector_store %arg10[%c3_159, %c0_160, %c0_161], %366 {strides = array<i32>} : memref<4x8x16xf32, #tpu.memory_space<vmem>>, vector<1x8x16xf32>,
    %c0_162 = arith.constant 0 : index
    %c0_163 = arith.constant 0 : index
    %367 = vector.load %arg13[%c0_162, %c0_163] : memref<8x16xf32, #tpu.memory_space<vmem>>, vector<8x16xf32>
    %368 = arith.truncf %367 : vector<8x16xf32> to vector<8x16xbf16>
    %cst_164 = arith.constant dense<0.000000e+00> : vector<8x48xf32>
    %369 = tpu.matmul %368, %22, %cst_164 {dimension_numbers = #tpu.dot_dimension_numbers<[1], [0], [0], [1], [0, 0, 1, 1], [], []>} : vector<8x16xbf16>, vector<16x48xbf16>, vector<8x48xf32> -> vector<8x48xf32>
    %c0_165 = arith.constant 0 : index
    %c0_166 = arith.constant 0 : index
    %c0_167 = arith.constant 0 : index
    %370 = vector.load %arg9[%c0_165, %c0_166, %c0_167] : memref<4x8x48xf32, #tpu.memory_space<vmem>>, vector<1x8x48xf32>
    %371 = vector.shape_cast %370 : vector<1x8x48xf32> to vector<8x48xf32>
    %372 = vector.extract_strided_slice %371 {offsets = [0, 0], sizes = [8, 16], strides = [1, 1]} : vector<8x48xf32> to vector<8x16xf32>
    %373 = vector.extract_strided_slice %369 {offsets = [0, 0], sizes = [8, 16], strides = [1, 1]} : vector<8x48xf32> to vector<8x16xf32>
    %374 = arith.addf %372, %373 : vector<8x16xf32>
    %375 = arith.negf %374 : vector<8x16xf32>
    %376 = math.exp %375 : vector<8x16xf32>
    %cst_168 = arith.constant 1.000000e+00 : f32
    %377 = vector.broadcast %cst_168 : f32 to vector<8x16xf32>
    %378 = arith.addf %377, %376 : vector<8x16xf32>
    %379 = arith.divf %377, %378 : vector<8x16xf32>
    %380 = vector.extract_strided_slice %371 {offsets = [0, 16], sizes = [8, 16], strides = [1, 1]} : vector<8x48xf32> to vector<8x16xf32>
    %381 = vector.extract_strided_slice %369 {offsets = [0, 16], sizes = [8, 16], strides = [1, 1]} : vector<8x48xf32> to vector<8x16xf32>
    %382 = arith.addf %380, %381 : vector<8x16xf32>
    %383 = arith.negf %382 : vector<8x16xf32>
    %384 = math.exp %383 : vector<8x16xf32>
    %cst_169 = arith.constant 1.000000e+00 : f32
    %385 = vector.broadcast %cst_169 : f32 to vector<8x16xf32>
    %386 = arith.addf %385, %384 : vector<8x16xf32>
    %387 = arith.divf %385, %386 : vector<8x16xf32>
    %388 = vector.extract_strided_slice %371 {offsets = [0, 32], sizes = [8, 16], strides = [1, 1]} : vector<8x48xf32> to vector<8x16xf32>
    %389 = vector.extract_strided_slice %369 {offsets = [0, 32], sizes = [8, 16], strides = [1, 1]} : vector<8x48xf32> to vector<8x16xf32>
    %390 = vector.broadcast %26 : vector<1x16xf32> to vector<8x16xf32>
    %391 = arith.addf %389, %390 : vector<8x16xf32>
    %392 = arith.mulf %379, %391 : vector<8x16xf32>
    %393 = arith.addf %388, %392 : vector<8x16xf32>
    %394 = math.tanh %393 : vector<8x16xf32>
    %cst_170 = arith.constant 1.000000e+00 : f32
    %395 = vector.broadcast %cst_170 : f32 to vector<8x16xf32>
    %396 = arith.subf %395, %387 : vector<8x16xf32>
    %397 = arith.mulf %396, %394 : vector<8x16xf32>
    %398 = arith.mulf %387, %367 : vector<8x16xf32>
    %399 = arith.addf %397, %398 : vector<8x16xf32>
    %c0_171 = arith.constant 0 : index
    %c0_172 = arith.constant 0 : index
    %c0_173 = arith.constant 0 : index
    %400 = vector.load %arg2[%c0_171, %c0_172, %c0_173] : memref<4x8x1xf32, #tpu.memory_space<vmem>>, vector<1x8x1xf32>
    %401 = vector.shape_cast %400 : vector<1x8x1xf32> to vector<8x1xf32>
    %402 = vector.broadcast %401 : vector<8x1xf32> to vector<8x16xf32>
    %403 = arith.mulf %402, %399 : vector<8x16xf32>
    %cst_174 = arith.constant 1.000000e+00 : f32
    %404 = vector.broadcast %cst_174 : f32 to vector<8x1xf32>
    %405 = arith.subf %404, %401 : vector<8x1xf32>
    %406 = vector.broadcast %405 : vector<8x1xf32> to vector<8x16xf32>
    %407 = arith.mulf %406, %367 : vector<8x16xf32>
    %408 = arith.addf %403, %407 : vector<8x16xf32>
    %c0_175 = arith.constant 0 : index
    %c0_176 = arith.constant 0 : index
    %409 = vector.load %arg13[%c0_175, %c0_176] : memref<8x16xf32, #tpu.memory_space<vmem>>, vector<8x16xf32>
    tpu.vector_store %arg13[%c0_175, %c0_176], %408 {strides = array<i32>} : memref<8x16xf32, #tpu.memory_space<vmem>>, vector<8x16xf32>,
    %410 = vector.broadcast %401 : vector<8x1xf32> to vector<8x16xf32>
    %411 = arith.mulf %410, %399 : vector<8x16xf32>
    %c0_177 = arith.constant 0 : index
    %c0_178 = arith.constant 0 : index
    %c0_179 = arith.constant 0 : index
    %412 = vector.load %arg11[%c0_177, %c0_178, %c0_179] : memref<4x8x16xf32, #tpu.memory_space<vmem>>, vector<1x8x16xf32>
    %413 = vector.shape_cast %412 : vector<1x8x16xf32> to vector<8x16xf32>
    %414 = vector.shape_cast %411 : vector<8x16xf32> to vector<1x8x16xf32>
    tpu.vector_store %arg11[%c0_177, %c0_178, %c0_179], %414 {strides = array<i32>} : memref<4x8x16xf32, #tpu.memory_space<vmem>>, vector<1x8x16xf32>,
    %c0_180 = arith.constant 0 : index
    %c0_181 = arith.constant 0 : index
    %c0_182 = arith.constant 0 : index
    %415 = vector.load %arg10[%c0_180, %c0_181, %c0_182] : memref<4x8x16xf32, #tpu.memory_space<vmem>>, vector<4x8x16xf32>
    %c0_183 = arith.constant 0 : index
    %c0_184 = arith.constant 0 : index
    %c0_185 = arith.constant 0 : index
    %416 = vector.load %arg11[%c0_183, %c0_184, %c0_185] : memref<4x8x16xf32, #tpu.memory_space<vmem>>, vector<4x8x16xf32>
    %417 = tpu.concatenate %415, %416 in 2 : vector<4x8x16xf32>, vector<4x8x16xf32> -> vector<4x8x32xf32>
    %c0_186 = arith.constant 0 : index
    %c0_187 = arith.constant 0 : index
    %c0_188 = arith.constant 0 : index
    %418 = vector.load %arg7[%c0_186, %c0_187, %c0_188] : memref<4x8x32xf32, #tpu.memory_space<vmem>>, vector<4x8x32xf32>
    tpu.vector_store %arg7[%c0_186, %c0_187, %c0_188], %417 {strides = array<i32>} : memref<4x8x32xf32, #tpu.memory_space<vmem>>, vector<4x8x32xf32>,
    return
  }
  func.func @transform_0(%arg0: i32) -> (i32, i32, i32) {
    %c0_i32 = arith.constant 0 : i32
    %c0_i32_0 = arith.constant 0 : i32
    %c0_i32_1 = arith.constant 0 : i32
    return %c0_i32, %arg0, %c0_i32_0 : i32, i32, i32
  }
  func.func @transform_1(%arg0: i32) -> (i32, i32, i32) {
    %c0_i32 = arith.constant 0 : i32
    %c0_i32_0 = arith.constant 0 : i32
    %c0_i32_1 = arith.constant 0 : i32
    return %c0_i32, %arg0, %c0_i32_0 : i32, i32, i32
  }
  func.func @transform_2(%arg0: i32) -> (i32, i32, i32) {
    %c0_i32 = arith.constant 0 : i32
    %c0_i32_0 = arith.constant 0 : i32
    %c0_i32_1 = arith.constant 0 : i32
    %c0_i32_2 = arith.constant 0 : i32
    return %c0_i32, %c0_i32_0, %c0_i32_1 : i32, i32, i32
  }
  func.func @transform_3(%arg0: i32) -> (i32, i32, i32) {
    %c0_i32 = arith.constant 0 : i32
    %c0_i32_0 = arith.constant 0 : i32
    %c0_i32_1 = arith.constant 0 : i32
    %c0_i32_2 = arith.constant 0 : i32
    return %c0_i32, %c0_i32_0, %c0_i32_1 : i32, i32, i32
  }
  func.func @transform_4(%arg0: i32) -> (i32, i32, i32) {
    %c0_i32 = arith.constant 0 : i32
    %c0_i32_0 = arith.constant 0 : i32
    %c0_i32_1 = arith.constant 0 : i32
    %c0_i32_2 = arith.constant 0 : i32
    return %c0_i32, %c0_i32_0, %c0_i32_1 : i32, i32, i32
  }
  func.func @transform_5(%arg0: i32) -> (i32, i32, i32) {
    %c0_i32 = arith.constant 0 : i32
    %c0_i32_0 = arith.constant 0 : i32
    %c0_i32_1 = arith.constant 0 : i32
    %c0_i32_2 = arith.constant 0 : i32
    return %c0_i32, %c0_i32_0, %c0_i32_1 : i32, i32, i32
  }
  func.func @transform_6(%arg0: i32) -> (i32, i32, i32) {
    %c0_i32 = arith.constant 0 : i32
    %c0_i32_0 = arith.constant 0 : i32
    %c0_i32_1 = arith.constant 0 : i32
    return %c0_i32, %arg0, %c0_i32_0 : i32, i32, i32
  }
}

module attributes {stable_mosaic.version = 11 : i64} {
  func.func @_cnn_kernel(%arg0: i32, %arg1: memref<16x11x16xbf16, #tpu.memory_space<vmem>>, %arg2: memref<4x16x128xbf16, #tpu.memory_space<vmem>>, %arg3: memref<1x128xf32, #tpu.memory_space<vmem>>, %arg4: memref<8x128xf32, #tpu.memory_space<vmem>>, %arg5: memref<16x128xbf16, #tpu.memory_space<vmem>>) attributes {dimension_semantics = [#tpu.dimension_semantics<parallel>], iteration_bounds = array<i64: 1>, scalar_prefetch = 0 : i64, scratch_operands = 0 : i64, tpu.core_type = #tpu.core_type<tc>, window_params = [{transform_indices = @transform_0, window_bounds = array<i64: 16, 11, 16>}, {pipeline_mode = #tpu.pipeline_mode<synchronous>, transform_indices = @transform_1, window_bounds = array<i64: 4, 16, 128>}, {pipeline_mode = #tpu.pipeline_mode<synchronous>, transform_indices = @transform_2, window_bounds = array<i64: 1, 128>}, {pipeline_mode = #tpu.pipeline_mode<synchronous>, transform_indices = @transform_3, window_bounds = array<i64: 8, 128>}, {transform_indices = @transform_4, window_bounds = array<i64: 16, 128>}]} {
    %c0 = arith.constant 0 : index
    %c0_0 = arith.constant 0 : index
    %c0_1 = arith.constant 0 : index
    %0 = vector.load %arg1[%c0, %c0_0, %c0_1] : memref<16x11x16xbf16, #tpu.memory_space<vmem>>, vector<16x11x16xbf16>
    %c0_2 = arith.constant 0 : index
    %c0_3 = arith.constant 0 : index
    %c0_4 = arith.constant 0 : index
    %1 = vector.load %arg2[%c0_2, %c0_3, %c0_4] : memref<4x16x128xbf16, #tpu.memory_space<vmem>>, vector<4x16x128xbf16>
    %cst = arith.constant 0.000000e+00 : f32
    %2 = vector.broadcast %cst : f32 to vector<16x8x128xf32>
    %3 = vector.extract_strided_slice %0 {offsets = [0, 0, 0], sizes = [16, 8, 16], strides = [1, 1, 1]} : vector<16x11x16xbf16> to vector<16x8x16xbf16>
    %4 = vector.extract_strided_slice %1 {offsets = [0, 0, 0], sizes = [1, 16, 128], strides = [1, 1, 1]} : vector<4x16x128xbf16> to vector<1x16x128xbf16>
    %5 = vector.shape_cast %4 : vector<1x16x128xbf16> to vector<16x128xbf16>
    "tpu.trace_start"() <{level = 10 : i32, message = "nle,ec->nlc"}> : () -> ()
    %cst_5 = arith.constant dense<0.000000e+00> : vector<16x8x128xf32>
    %6 = tpu.matmul %3, %5, %cst_5 {dimension_numbers = #tpu.dot_dimension_numbers<[2], [0], [0, 1], [1], [0, 0, 0, 1, 1, 1], [], []>} : vector<16x8x16xbf16>, vector<16x128xbf16>, vector<16x8x128xf32> -> vector<16x8x128xf32>
    "tpu.trace_stop"() : () -> ()
    %7 = arith.addf %2, %6 : vector<16x8x128xf32>
    %8 = vector.extract_strided_slice %0 {offsets = [0, 1, 0], sizes = [16, 8, 16], strides = [1, 1, 1]} : vector<16x11x16xbf16> to vector<16x8x16xbf16>
    %9 = vector.extract_strided_slice %1 {offsets = [1, 0, 0], sizes = [1, 16, 128], strides = [1, 1, 1]} : vector<4x16x128xbf16> to vector<1x16x128xbf16>
    %10 = vector.shape_cast %9 : vector<1x16x128xbf16> to vector<16x128xbf16>
    "tpu.trace_start"() <{level = 10 : i32, message = "nle,ec->nlc"}> : () -> ()
    %cst_6 = arith.constant dense<0.000000e+00> : vector<16x8x128xf32>
    %11 = tpu.matmul %8, %10, %cst_6 {dimension_numbers = #tpu.dot_dimension_numbers<[2], [0], [0, 1], [1], [0, 0, 0, 1, 1, 1], [], []>} : vector<16x8x16xbf16>, vector<16x128xbf16>, vector<16x8x128xf32> -> vector<16x8x128xf32>
    "tpu.trace_stop"() : () -> ()
    %12 = arith.addf %7, %11 : vector<16x8x128xf32>
    %13 = vector.extract_strided_slice %0 {offsets = [0, 2, 0], sizes = [16, 8, 16], strides = [1, 1, 1]} : vector<16x11x16xbf16> to vector<16x8x16xbf16>
    %14 = vector.extract_strided_slice %1 {offsets = [2, 0, 0], sizes = [1, 16, 128], strides = [1, 1, 1]} : vector<4x16x128xbf16> to vector<1x16x128xbf16>
    %15 = vector.shape_cast %14 : vector<1x16x128xbf16> to vector<16x128xbf16>
    "tpu.trace_start"() <{level = 10 : i32, message = "nle,ec->nlc"}> : () -> ()
    %cst_7 = arith.constant dense<0.000000e+00> : vector<16x8x128xf32>
    %16 = tpu.matmul %13, %15, %cst_7 {dimension_numbers = #tpu.dot_dimension_numbers<[2], [0], [0, 1], [1], [0, 0, 0, 1, 1, 1], [], []>} : vector<16x8x16xbf16>, vector<16x128xbf16>, vector<16x8x128xf32> -> vector<16x8x128xf32>
    "tpu.trace_stop"() : () -> ()
    %17 = arith.addf %12, %16 : vector<16x8x128xf32>
    %18 = vector.extract_strided_slice %0 {offsets = [0, 3, 0], sizes = [16, 8, 16], strides = [1, 1, 1]} : vector<16x11x16xbf16> to vector<16x8x16xbf16>
    %19 = vector.extract_strided_slice %1 {offsets = [3, 0, 0], sizes = [1, 16, 128], strides = [1, 1, 1]} : vector<4x16x128xbf16> to vector<1x16x128xbf16>
    %20 = vector.shape_cast %19 : vector<1x16x128xbf16> to vector<16x128xbf16>
    "tpu.trace_start"() <{level = 10 : i32, message = "nle,ec->nlc"}> : () -> ()
    %cst_8 = arith.constant dense<0.000000e+00> : vector<16x8x128xf32>
    %21 = tpu.matmul %18, %20, %cst_8 {dimension_numbers = #tpu.dot_dimension_numbers<[2], [0], [0, 1], [1], [0, 0, 0, 1, 1, 1], [], []>} : vector<16x8x16xbf16>, vector<16x128xbf16>, vector<16x8x128xf32> -> vector<16x8x128xf32>
    "tpu.trace_stop"() : () -> ()
    %22 = arith.addf %17, %21 : vector<16x8x128xf32>
    %c0_9 = arith.constant 0 : index
    %c0_10 = arith.constant 0 : index
    %23 = vector.load %arg3[%c0_9, %c0_10] : memref<1x128xf32, #tpu.memory_space<vmem>>, vector<1x128xf32>
    %24 = vector.shape_cast %23 : vector<1x128xf32> to vector<1x1x128xf32>
    %25 = vector.broadcast %24 : vector<1x1x128xf32> to vector<16x8x128xf32>
    %26 = arith.addf %22, %25 : vector<16x8x128xf32>
    %cst_11 = arith.constant 0.000000e+00 : f32
    %27 = vector.broadcast %cst_11 : f32 to vector<16x8x128xf32>
    %28 = arith.maximumf %26, %27 : vector<16x8x128xf32>
    %c0_12 = arith.constant 0 : index
    %c0_13 = arith.constant 0 : index
    %29 = vector.load %arg4[%c0_12, %c0_13] : memref<8x128xf32, #tpu.memory_space<vmem>>, vector<8x128xf32>
    %30 = vector.shape_cast %29 : vector<8x128xf32> to vector<1x8x128xf32>
    %31 = vector.broadcast %30 : vector<1x8x128xf32> to vector<16x8x128xf32>
    %32 = arith.mulf %28, %31 : vector<16x8x128xf32>
    %cst_14 = arith.constant dense<0xFF800000> : vector<16x128xf32>
    %33 = vector.multi_reduction <maximumf>, %32, %cst_14 [1] : vector<16x8x128xf32> to vector<16x128xf32>
    %34 = arith.truncf %33 : vector<16x128xf32> to vector<16x128xbf16>
    %c0_15 = arith.constant 0 : index
    %c0_16 = arith.constant 0 : index
    %35 = vector.load %arg5[%c0_15, %c0_16] : memref<16x128xbf16, #tpu.memory_space<vmem>>, vector<16x128xbf16>
    tpu.vector_store %arg5[%c0_15, %c0_16], %34 {strides = array<i32>} : memref<16x128xbf16, #tpu.memory_space<vmem>>, vector<16x128xbf16>,
    return
  }
  func.func @transform_0(%arg0: i32) -> (i32, i32, i32) {
    %c0_i32 = arith.constant 0 : i32
    %c0_i32_0 = arith.constant 0 : i32
    %c0_i32_1 = arith.constant 0 : i32
    return %arg0, %c0_i32, %c0_i32_0 : i32, i32, i32
  }
  func.func @transform_1(%arg0: i32) -> (i32, i32, i32) {
    %c0_i32 = arith.constant 0 : i32
    %c0_i32_0 = arith.constant 0 : i32
    %c0_i32_1 = arith.constant 0 : i32
    %c0_i32_2 = arith.constant 0 : i32
    return %c0_i32, %c0_i32_0, %c0_i32_1 : i32, i32, i32
  }
  func.func @transform_2(%arg0: i32) -> (i32, i32) {
    %c0_i32 = arith.constant 0 : i32
    %c0_i32_0 = arith.constant 0 : i32
    %c0_i32_1 = arith.constant 0 : i32
    return %c0_i32, %c0_i32_0 : i32, i32
  }
  func.func @transform_3(%arg0: i32) -> (i32, i32) {
    %c0_i32 = arith.constant 0 : i32
    %c0_i32_0 = arith.constant 0 : i32
    %c0_i32_1 = arith.constant 0 : i32
    return %c0_i32, %c0_i32_0 : i32, i32
  }
  func.func @transform_4(%arg0: i32) -> (i32, i32) {
    %c0_i32 = arith.constant 0 : i32
    %c0_i32_0 = arith.constant 0 : i32
    return %arg0, %c0_i32 : i32, i32
  }
}

module attributes {stable_mosaic.version = 11 : i64} {
  func.func @_gru_last_kernel(%arg0: i32, %arg1: memref<6x8x24xbf16, #tpu.memory_space<vmem>>, %arg2: memref<6x8x1xf32, #tpu.memory_space<vmem>>, %arg3: memref<8x32xf32, #tpu.memory_space<vmem>>, %arg4: memref<24x96xbf16, #tpu.memory_space<vmem>>, %arg5: memref<32x96xbf16, #tpu.memory_space<vmem>>, %arg6: memref<1x96xf32, #tpu.memory_space<vmem>>, %arg7: memref<1x32xf32, #tpu.memory_space<vmem>>, %arg8: memref<8x32xf32, #tpu.memory_space<vmem>>, %arg9: memref<6x8x96xf32, #tpu.memory_space<vmem>>, %arg10: memref<8x32xf32, #tpu.memory_space<vmem>>) attributes {dimension_semantics = [#tpu.dimension_semantics<parallel>], iteration_bounds = array<i64: 1>, scalar_prefetch = 0 : i64, scratch_operands = 2 : i64, tpu.core_type = #tpu.core_type<tc>, window_params = [{transform_indices = @transform_0, window_bounds = array<i64: 6, 8, 24>}, {transform_indices = @transform_1, window_bounds = array<i64: 6, 8, 1>}, {transform_indices = @transform_2, window_bounds = array<i64: 8, 32>}, {pipeline_mode = #tpu.pipeline_mode<synchronous>, transform_indices = @transform_3, window_bounds = array<i64: 24, 96>}, {pipeline_mode = #tpu.pipeline_mode<synchronous>, transform_indices = @transform_4, window_bounds = array<i64: 32, 96>}, {pipeline_mode = #tpu.pipeline_mode<synchronous>, transform_indices = @transform_5, window_bounds = array<i64: 1, 96>}, {pipeline_mode = #tpu.pipeline_mode<synchronous>, transform_indices = @transform_6, window_bounds = array<i64: 1, 32>}, {transform_indices = @transform_7, window_bounds = array<i64: 8, 32>}]} {
    %c0 = arith.constant 0 : index
    %c0_0 = arith.constant 0 : index
    %c0_1 = arith.constant 0 : index
    %0 = vector.load %arg1[%c0, %c0_0, %c0_1] : memref<6x8x24xbf16, #tpu.memory_space<vmem>>, vector<6x8x24xbf16>
    %c0_2 = arith.constant 0 : index
    %c0_3 = arith.constant 0 : index
    %1 = vector.load %arg4[%c0_2, %c0_3] : memref<24x96xbf16, #tpu.memory_space<vmem>>, vector<24x96xbf16>
    "tpu.trace_start"() <{level = 10 : i32, message = "tbd,dh->tbh"}> : () -> ()
    %cst = arith.constant dense<0.000000e+00> : vector<6x8x96xf32>
    %2 = tpu.matmul %0, %1, %cst {dimension_numbers = #tpu.dot_dimension_numbers<[2], [0], [0, 1], [1], [0, 0, 0, 1, 1, 1], [], []>} : vector<6x8x24xbf16>, vector<24x96xbf16>, vector<6x8x96xf32> -> vector<6x8x96xf32>
    "tpu.trace_stop"() : () -> ()
    %c0_4 = arith.constant 0 : index
    %c0_5 = arith.constant 0 : index
    %3 = vector.load %arg6[%c0_4, %c0_5] : memref<1x96xf32, #tpu.memory_space<vmem>>, vector<1x96xf32>
    %4 = vector.shape_cast %3 : vector<1x96xf32> to vector<1x1x96xf32>
    %5 = vector.broadcast %4 : vector<1x1x96xf32> to vector<6x8x96xf32>
    %6 = arith.addf %2, %5 : vector<6x8x96xf32>
    %c0_6 = arith.constant 0 : index
    %c0_7 = arith.constant 0 : index
    %c0_8 = arith.constant 0 : index
    %7 = vector.load %arg9[%c0_6, %c0_7, %c0_8] : memref<6x8x96xf32, #tpu.memory_space<vmem>>, vector<6x8x96xf32>
    tpu.vector_store %arg9[%c0_6, %c0_7, %c0_8], %6 {strides = array<i32>} : memref<6x8x96xf32, #tpu.memory_space<vmem>>, vector<6x8x96xf32>,
    %c0_9 = arith.constant 0 : index
    %c0_10 = arith.constant 0 : index
    %8 = vector.load %arg5[%c0_9, %c0_10] : memref<32x96xbf16, #tpu.memory_space<vmem>>, vector<32x96xbf16>
    %c0_11 = arith.constant 0 : index
    %c0_12 = arith.constant 0 : index
    %9 = vector.load %arg7[%c0_11, %c0_12] : memref<1x32xf32, #tpu.memory_space<vmem>>, vector<1x32xf32>
    %c0_13 = arith.constant 0 : index
    %c0_14 = arith.constant 0 : index
    %10 = vector.load %arg3[%c0_13, %c0_14] : memref<8x32xf32, #tpu.memory_space<vmem>>, vector<8x32xf32>
    %c0_15 = arith.constant 0 : index
    %c0_16 = arith.constant 0 : index
    %11 = vector.load %arg10[%c0_15, %c0_16] : memref<8x32xf32, #tpu.memory_space<vmem>>, vector<8x32xf32>
    tpu.vector_store %arg10[%c0_15, %c0_16], %10 {strides = array<i32>} : memref<8x32xf32, #tpu.memory_space<vmem>>, vector<8x32xf32>,
    %c0_17 = arith.constant 0 : index
    %c0_18 = arith.constant 0 : index
    %12 = vector.load %arg10[%c0_17, %c0_18] : memref<8x32xf32, #tpu.memory_space<vmem>>, vector<8x32xf32>
    %13 = arith.truncf %12 : vector<8x32xf32> to vector<8x32xbf16>
    %cst_19 = arith.constant dense<0.000000e+00> : vector<8x96xf32>
    %14 = tpu.matmul %13, %8, %cst_19 {dimension_numbers = #tpu.dot_dimension_numbers<[1], [0], [0], [1], [0, 0, 1, 1], [], []>} : vector<8x32xbf16>, vector<32x96xbf16>, vector<8x96xf32> -> vector<8x96xf32>
    %c0_20 = arith.constant 0 : index
    %c0_21 = arith.constant 0 : index
    %c0_22 = arith.constant 0 : index
    %15 = vector.load %arg9[%c0_20, %c0_21, %c0_22] : memref<6x8x96xf32, #tpu.memory_space<vmem>>, vector<1x8x96xf32>
    %16 = vector.shape_cast %15 : vector<1x8x96xf32> to vector<8x96xf32>
    %17 = vector.extract_strided_slice %16 {offsets = [0, 0], sizes = [8, 32], strides = [1, 1]} : vector<8x96xf32> to vector<8x32xf32>
    %18 = vector.extract_strided_slice %14 {offsets = [0, 0], sizes = [8, 32], strides = [1, 1]} : vector<8x96xf32> to vector<8x32xf32>
    %19 = arith.addf %17, %18 : vector<8x32xf32>
    %20 = arith.negf %19 : vector<8x32xf32>
    %21 = math.exp %20 : vector<8x32xf32>
    %cst_23 = arith.constant 1.000000e+00 : f32
    %22 = vector.broadcast %cst_23 : f32 to vector<8x32xf32>
    %23 = arith.addf %22, %21 : vector<8x32xf32>
    %24 = arith.divf %22, %23 : vector<8x32xf32>
    %25 = vector.extract_strided_slice %16 {offsets = [0, 32], sizes = [8, 32], strides = [1, 1]} : vector<8x96xf32> to vector<8x32xf32>
    %26 = vector.extract_strided_slice %14 {offsets = [0, 32], sizes = [8, 32], strides = [1, 1]} : vector<8x96xf32> to vector<8x32xf32>
    %27 = arith.addf %25, %26 : vector<8x32xf32>
    %28 = arith.negf %27 : vector<8x32xf32>
    %29 = math.exp %28 : vector<8x32xf32>
    %cst_24 = arith.constant 1.000000e+00 : f32
    %30 = vector.broadcast %cst_24 : f32 to vector<8x32xf32>
    %31 = arith.addf %30, %29 : vector<8x32xf32>
    %32 = arith.divf %30, %31 : vector<8x32xf32>
    %33 = vector.extract_strided_slice %16 {offsets = [0, 64], sizes = [8, 32], strides = [1, 1]} : vector<8x96xf32> to vector<8x32xf32>
    %34 = vector.extract_strided_slice %14 {offsets = [0, 64], sizes = [8, 32], strides = [1, 1]} : vector<8x96xf32> to vector<8x32xf32>
    %35 = vector.broadcast %9 : vector<1x32xf32> to vector<8x32xf32>
    %36 = arith.addf %34, %35 : vector<8x32xf32>
    %37 = arith.mulf %24, %36 : vector<8x32xf32>
    %38 = arith.addf %33, %37 : vector<8x32xf32>
    %39 = math.tanh %38 : vector<8x32xf32>
    %cst_25 = arith.constant 1.000000e+00 : f32
    %40 = vector.broadcast %cst_25 : f32 to vector<8x32xf32>
    %41 = arith.subf %40, %32 : vector<8x32xf32>
    %42 = arith.mulf %41, %39 : vector<8x32xf32>
    %43 = arith.mulf %32, %12 : vector<8x32xf32>
    %44 = arith.addf %42, %43 : vector<8x32xf32>
    %c0_26 = arith.constant 0 : index
    %c0_27 = arith.constant 0 : index
    %c0_28 = arith.constant 0 : index
    %45 = vector.load %arg2[%c0_26, %c0_27, %c0_28] : memref<6x8x1xf32, #tpu.memory_space<vmem>>, vector<1x8x1xf32>
    %46 = vector.shape_cast %45 : vector<1x8x1xf32> to vector<8x1xf32>
    %47 = vector.broadcast %46 : vector<8x1xf32> to vector<8x32xf32>
    %48 = arith.mulf %47, %44 : vector<8x32xf32>
    %cst_29 = arith.constant 1.000000e+00 : f32
    %49 = vector.broadcast %cst_29 : f32 to vector<8x1xf32>
    %50 = arith.subf %49, %46 : vector<8x1xf32>
    %51 = vector.broadcast %50 : vector<8x1xf32> to vector<8x32xf32>
    %52 = arith.mulf %51, %12 : vector<8x32xf32>
    %53 = arith.addf %48, %52 : vector<8x32xf32>
    %c0_30 = arith.constant 0 : index
    %c0_31 = arith.constant 0 : index
    %54 = vector.load %arg10[%c0_30, %c0_31] : memref<8x32xf32, #tpu.memory_space<vmem>>, vector<8x32xf32>
    tpu.vector_store %arg10[%c0_30, %c0_31], %53 {strides = array<i32>} : memref<8x32xf32, #tpu.memory_space<vmem>>, vector<8x32xf32>,
    %c0_32 = arith.constant 0 : index
    %c0_33 = arith.constant 0 : index
    %55 = vector.load %arg10[%c0_32, %c0_33] : memref<8x32xf32, #tpu.memory_space<vmem>>, vector<8x32xf32>
    %56 = arith.truncf %55 : vector<8x32xf32> to vector<8x32xbf16>
    %cst_34 = arith.constant dense<0.000000e+00> : vector<8x96xf32>
    %57 = tpu.matmul %56, %8, %cst_34 {dimension_numbers = #tpu.dot_dimension_numbers<[1], [0], [0], [1], [0, 0, 1, 1], [], []>} : vector<8x32xbf16>, vector<32x96xbf16>, vector<8x96xf32> -> vector<8x96xf32>
    %c1 = arith.constant 1 : index
    %c0_35 = arith.constant 0 : index
    %c0_36 = arith.constant 0 : index
    %58 = vector.load %arg9[%c1, %c0_35, %c0_36] : memref<6x8x96xf32, #tpu.memory_space<vmem>>, vector<1x8x96xf32>
    %59 = vector.shape_cast %58 : vector<1x8x96xf32> to vector<8x96xf32>
    %60 = vector.extract_strided_slice %59 {offsets = [0, 0], sizes = [8, 32], strides = [1, 1]} : vector<8x96xf32> to vector<8x32xf32>
    %61 = vector.extract_strided_slice %57 {offsets = [0, 0], sizes = [8, 32], strides = [1, 1]} : vector<8x96xf32> to vector<8x32xf32>
    %62 = arith.addf %60, %61 : vector<8x32xf32>
    %63 = arith.negf %62 : vector<8x32xf32>
    %64 = math.exp %63 : vector<8x32xf32>
    %cst_37 = arith.constant 1.000000e+00 : f32
    %65 = vector.broadcast %cst_37 : f32 to vector<8x32xf32>
    %66 = arith.addf %65, %64 : vector<8x32xf32>
    %67 = arith.divf %65, %66 : vector<8x32xf32>
    %68 = vector.extract_strided_slice %59 {offsets = [0, 32], sizes = [8, 32], strides = [1, 1]} : vector<8x96xf32> to vector<8x32xf32>
    %69 = vector.extract_strided_slice %57 {offsets = [0, 32], sizes = [8, 32], strides = [1, 1]} : vector<8x96xf32> to vector<8x32xf32>
    %70 = arith.addf %68, %69 : vector<8x32xf32>
    %71 = arith.negf %70 : vector<8x32xf32>
    %72 = math.exp %71 : vector<8x32xf32>
    %cst_38 = arith.constant 1.000000e+00 : f32
    %73 = vector.broadcast %cst_38 : f32 to vector<8x32xf32>
    %74 = arith.addf %73, %72 : vector<8x32xf32>
    %75 = arith.divf %73, %74 : vector<8x32xf32>
    %76 = vector.extract_strided_slice %59 {offsets = [0, 64], sizes = [8, 32], strides = [1, 1]} : vector<8x96xf32> to vector<8x32xf32>
    %77 = vector.extract_strided_slice %57 {offsets = [0, 64], sizes = [8, 32], strides = [1, 1]} : vector<8x96xf32> to vector<8x32xf32>
    %78 = vector.broadcast %9 : vector<1x32xf32> to vector<8x32xf32>
    %79 = arith.addf %77, %78 : vector<8x32xf32>
    %80 = arith.mulf %67, %79 : vector<8x32xf32>
    %81 = arith.addf %76, %80 : vector<8x32xf32>
    %82 = math.tanh %81 : vector<8x32xf32>
    %cst_39 = arith.constant 1.000000e+00 : f32
    %83 = vector.broadcast %cst_39 : f32 to vector<8x32xf32>
    %84 = arith.subf %83, %75 : vector<8x32xf32>
    %85 = arith.mulf %84, %82 : vector<8x32xf32>
    %86 = arith.mulf %75, %55 : vector<8x32xf32>
    %87 = arith.addf %85, %86 : vector<8x32xf32>
    %c1_40 = arith.constant 1 : index
    %c0_41 = arith.constant 0 : index
    %c0_42 = arith.constant 0 : index
    %88 = vector.load %arg2[%c1_40, %c0_41, %c0_42] : memref<6x8x1xf32, #tpu.memory_space<vmem>>, vector<1x8x1xf32>
    %89 = vector.shape_cast %88 : vector<1x8x1xf32> to vector<8x1xf32>
    %90 = vector.broadcast %89 : vector<8x1xf32> to vector<8x32xf32>
    %91 = arith.mulf %90, %87 : vector<8x32xf32>
    %cst_43 = arith.constant 1.000000e+00 : f32
    %92 = vector.broadcast %cst_43 : f32 to vector<8x1xf32>
    %93 = arith.subf %92, %89 : vector<8x1xf32>
    %94 = vector.broadcast %93 : vector<8x1xf32> to vector<8x32xf32>
    %95 = arith.mulf %94, %55 : vector<8x32xf32>
    %96 = arith.addf %91, %95 : vector<8x32xf32>
    %c0_44 = arith.constant 0 : index
    %c0_45 = arith.constant 0 : index
    %97 = vector.load %arg10[%c0_44, %c0_45] : memref<8x32xf32, #tpu.memory_space<vmem>>, vector<8x32xf32>
    tpu.vector_store %arg10[%c0_44, %c0_45], %96 {strides = array<i32>} : memref<8x32xf32, #tpu.memory_space<vmem>>, vector<8x32xf32>,
    %c0_46 = arith.constant 0 : index
    %c0_47 = arith.constant 0 : index
    %98 = vector.load %arg10[%c0_46, %c0_47] : memref<8x32xf32, #tpu.memory_space<vmem>>, vector<8x32xf32>
    %99 = arith.truncf %98 : vector<8x32xf32> to vector<8x32xbf16>
    %cst_48 = arith.constant dense<0.000000e+00> : vector<8x96xf32>
    %100 = tpu.matmul %99, %8, %cst_48 {dimension_numbers = #tpu.dot_dimension_numbers<[1], [0], [0], [1], [0, 0, 1, 1], [], []>} : vector<8x32xbf16>, vector<32x96xbf16>, vector<8x96xf32> -> vector<8x96xf32>
    %c2 = arith.constant 2 : index
    %c0_49 = arith.constant 0 : index
    %c0_50 = arith.constant 0 : index
    %101 = vector.load %arg9[%c2, %c0_49, %c0_50] : memref<6x8x96xf32, #tpu.memory_space<vmem>>, vector<1x8x96xf32>
    %102 = vector.shape_cast %101 : vector<1x8x96xf32> to vector<8x96xf32>
    %103 = vector.extract_strided_slice %102 {offsets = [0, 0], sizes = [8, 32], strides = [1, 1]} : vector<8x96xf32> to vector<8x32xf32>
    %104 = vector.extract_strided_slice %100 {offsets = [0, 0], sizes = [8, 32], strides = [1, 1]} : vector<8x96xf32> to vector<8x32xf32>
    %105 = arith.addf %103, %104 : vector<8x32xf32>
    %106 = arith.negf %105 : vector<8x32xf32>
    %107 = math.exp %106 : vector<8x32xf32>
    %cst_51 = arith.constant 1.000000e+00 : f32
    %108 = vector.broadcast %cst_51 : f32 to vector<8x32xf32>
    %109 = arith.addf %108, %107 : vector<8x32xf32>
    %110 = arith.divf %108, %109 : vector<8x32xf32>
    %111 = vector.extract_strided_slice %102 {offsets = [0, 32], sizes = [8, 32], strides = [1, 1]} : vector<8x96xf32> to vector<8x32xf32>
    %112 = vector.extract_strided_slice %100 {offsets = [0, 32], sizes = [8, 32], strides = [1, 1]} : vector<8x96xf32> to vector<8x32xf32>
    %113 = arith.addf %111, %112 : vector<8x32xf32>
    %114 = arith.negf %113 : vector<8x32xf32>
    %115 = math.exp %114 : vector<8x32xf32>
    %cst_52 = arith.constant 1.000000e+00 : f32
    %116 = vector.broadcast %cst_52 : f32 to vector<8x32xf32>
    %117 = arith.addf %116, %115 : vector<8x32xf32>
    %118 = arith.divf %116, %117 : vector<8x32xf32>
    %119 = vector.extract_strided_slice %102 {offsets = [0, 64], sizes = [8, 32], strides = [1, 1]} : vector<8x96xf32> to vector<8x32xf32>
    %120 = vector.extract_strided_slice %100 {offsets = [0, 64], sizes = [8, 32], strides = [1, 1]} : vector<8x96xf32> to vector<8x32xf32>
    %121 = vector.broadcast %9 : vector<1x32xf32> to vector<8x32xf32>
    %122 = arith.addf %120, %121 : vector<8x32xf32>
    %123 = arith.mulf %110, %122 : vector<8x32xf32>
    %124 = arith.addf %119, %123 : vector<8x32xf32>
    %125 = math.tanh %124 : vector<8x32xf32>
    %cst_53 = arith.constant 1.000000e+00 : f32
    %126 = vector.broadcast %cst_53 : f32 to vector<8x32xf32>
    %127 = arith.subf %126, %118 : vector<8x32xf32>
    %128 = arith.mulf %127, %125 : vector<8x32xf32>
    %129 = arith.mulf %118, %98 : vector<8x32xf32>
    %130 = arith.addf %128, %129 : vector<8x32xf32>
    %c2_54 = arith.constant 2 : index
    %c0_55 = arith.constant 0 : index
    %c0_56 = arith.constant 0 : index
    %131 = vector.load %arg2[%c2_54, %c0_55, %c0_56] : memref<6x8x1xf32, #tpu.memory_space<vmem>>, vector<1x8x1xf32>
    %132 = vector.shape_cast %131 : vector<1x8x1xf32> to vector<8x1xf32>
    %133 = vector.broadcast %132 : vector<8x1xf32> to vector<8x32xf32>
    %134 = arith.mulf %133, %130 : vector<8x32xf32>
    %cst_57 = arith.constant 1.000000e+00 : f32
    %135 = vector.broadcast %cst_57 : f32 to vector<8x1xf32>
    %136 = arith.subf %135, %132 : vector<8x1xf32>
    %137 = vector.broadcast %136 : vector<8x1xf32> to vector<8x32xf32>
    %138 = arith.mulf %137, %98 : vector<8x32xf32>
    %139 = arith.addf %134, %138 : vector<8x32xf32>
    %c0_58 = arith.constant 0 : index
    %c0_59 = arith.constant 0 : index
    %140 = vector.load %arg10[%c0_58, %c0_59] : memref<8x32xf32, #tpu.memory_space<vmem>>, vector<8x32xf32>
    tpu.vector_store %arg10[%c0_58, %c0_59], %139 {strides = array<i32>} : memref<8x32xf32, #tpu.memory_space<vmem>>, vector<8x32xf32>,
    %c0_60 = arith.constant 0 : index
    %c0_61 = arith.constant 0 : index
    %141 = vector.load %arg10[%c0_60, %c0_61] : memref<8x32xf32, #tpu.memory_space<vmem>>, vector<8x32xf32>
    %142 = arith.truncf %141 : vector<8x32xf32> to vector<8x32xbf16>
    %cst_62 = arith.constant dense<0.000000e+00> : vector<8x96xf32>
    %143 = tpu.matmul %142, %8, %cst_62 {dimension_numbers = #tpu.dot_dimension_numbers<[1], [0], [0], [1], [0, 0, 1, 1], [], []>} : vector<8x32xbf16>, vector<32x96xbf16>, vector<8x96xf32> -> vector<8x96xf32>
    %c3 = arith.constant 3 : index
    %c0_63 = arith.constant 0 : index
    %c0_64 = arith.constant 0 : index
    %144 = vector.load %arg9[%c3, %c0_63, %c0_64] : memref<6x8x96xf32, #tpu.memory_space<vmem>>, vector<1x8x96xf32>
    %145 = vector.shape_cast %144 : vector<1x8x96xf32> to vector<8x96xf32>
    %146 = vector.extract_strided_slice %145 {offsets = [0, 0], sizes = [8, 32], strides = [1, 1]} : vector<8x96xf32> to vector<8x32xf32>
    %147 = vector.extract_strided_slice %143 {offsets = [0, 0], sizes = [8, 32], strides = [1, 1]} : vector<8x96xf32> to vector<8x32xf32>
    %148 = arith.addf %146, %147 : vector<8x32xf32>
    %149 = arith.negf %148 : vector<8x32xf32>
    %150 = math.exp %149 : vector<8x32xf32>
    %cst_65 = arith.constant 1.000000e+00 : f32
    %151 = vector.broadcast %cst_65 : f32 to vector<8x32xf32>
    %152 = arith.addf %151, %150 : vector<8x32xf32>
    %153 = arith.divf %151, %152 : vector<8x32xf32>
    %154 = vector.extract_strided_slice %145 {offsets = [0, 32], sizes = [8, 32], strides = [1, 1]} : vector<8x96xf32> to vector<8x32xf32>
    %155 = vector.extract_strided_slice %143 {offsets = [0, 32], sizes = [8, 32], strides = [1, 1]} : vector<8x96xf32> to vector<8x32xf32>
    %156 = arith.addf %154, %155 : vector<8x32xf32>
    %157 = arith.negf %156 : vector<8x32xf32>
    %158 = math.exp %157 : vector<8x32xf32>
    %cst_66 = arith.constant 1.000000e+00 : f32
    %159 = vector.broadcast %cst_66 : f32 to vector<8x32xf32>
    %160 = arith.addf %159, %158 : vector<8x32xf32>
    %161 = arith.divf %159, %160 : vector<8x32xf32>
    %162 = vector.extract_strided_slice %145 {offsets = [0, 64], sizes = [8, 32], strides = [1, 1]} : vector<8x96xf32> to vector<8x32xf32>
    %163 = vector.extract_strided_slice %143 {offsets = [0, 64], sizes = [8, 32], strides = [1, 1]} : vector<8x96xf32> to vector<8x32xf32>
    %164 = vector.broadcast %9 : vector<1x32xf32> to vector<8x32xf32>
    %165 = arith.addf %163, %164 : vector<8x32xf32>
    %166 = arith.mulf %153, %165 : vector<8x32xf32>
    %167 = arith.addf %162, %166 : vector<8x32xf32>
    %168 = math.tanh %167 : vector<8x32xf32>
    %cst_67 = arith.constant 1.000000e+00 : f32
    %169 = vector.broadcast %cst_67 : f32 to vector<8x32xf32>
    %170 = arith.subf %169, %161 : vector<8x32xf32>
    %171 = arith.mulf %170, %168 : vector<8x32xf32>
    %172 = arith.mulf %161, %141 : vector<8x32xf32>
    %173 = arith.addf %171, %172 : vector<8x32xf32>
    %c3_68 = arith.constant 3 : index
    %c0_69 = arith.constant 0 : index
    %c0_70 = arith.constant 0 : index
    %174 = vector.load %arg2[%c3_68, %c0_69, %c0_70] : memref<6x8x1xf32, #tpu.memory_space<vmem>>, vector<1x8x1xf32>
    %175 = vector.shape_cast %174 : vector<1x8x1xf32> to vector<8x1xf32>
    %176 = vector.broadcast %175 : vector<8x1xf32> to vector<8x32xf32>
    %177 = arith.mulf %176, %173 : vector<8x32xf32>
    %cst_71 = arith.constant 1.000000e+00 : f32
    %178 = vector.broadcast %cst_71 : f32 to vector<8x1xf32>
    %179 = arith.subf %178, %175 : vector<8x1xf32>
    %180 = vector.broadcast %179 : vector<8x1xf32> to vector<8x32xf32>
    %181 = arith.mulf %180, %141 : vector<8x32xf32>
    %182 = arith.addf %177, %181 : vector<8x32xf32>
    %c0_72 = arith.constant 0 : index
    %c0_73 = arith.constant 0 : index
    %183 = vector.load %arg10[%c0_72, %c0_73] : memref<8x32xf32, #tpu.memory_space<vmem>>, vector<8x32xf32>
    tpu.vector_store %arg10[%c0_72, %c0_73], %182 {strides = array<i32>} : memref<8x32xf32, #tpu.memory_space<vmem>>, vector<8x32xf32>,
    %c0_74 = arith.constant 0 : index
    %c0_75 = arith.constant 0 : index
    %184 = vector.load %arg10[%c0_74, %c0_75] : memref<8x32xf32, #tpu.memory_space<vmem>>, vector<8x32xf32>
    %185 = arith.truncf %184 : vector<8x32xf32> to vector<8x32xbf16>
    %cst_76 = arith.constant dense<0.000000e+00> : vector<8x96xf32>
    %186 = tpu.matmul %185, %8, %cst_76 {dimension_numbers = #tpu.dot_dimension_numbers<[1], [0], [0], [1], [0, 0, 1, 1], [], []>} : vector<8x32xbf16>, vector<32x96xbf16>, vector<8x96xf32> -> vector<8x96xf32>
    %c4 = arith.constant 4 : index
    %c0_77 = arith.constant 0 : index
    %c0_78 = arith.constant 0 : index
    %187 = vector.load %arg9[%c4, %c0_77, %c0_78] : memref<6x8x96xf32, #tpu.memory_space<vmem>>, vector<1x8x96xf32>
    %188 = vector.shape_cast %187 : vector<1x8x96xf32> to vector<8x96xf32>
    %189 = vector.extract_strided_slice %188 {offsets = [0, 0], sizes = [8, 32], strides = [1, 1]} : vector<8x96xf32> to vector<8x32xf32>
    %190 = vector.extract_strided_slice %186 {offsets = [0, 0], sizes = [8, 32], strides = [1, 1]} : vector<8x96xf32> to vector<8x32xf32>
    %191 = arith.addf %189, %190 : vector<8x32xf32>
    %192 = arith.negf %191 : vector<8x32xf32>
    %193 = math.exp %192 : vector<8x32xf32>
    %cst_79 = arith.constant 1.000000e+00 : f32
    %194 = vector.broadcast %cst_79 : f32 to vector<8x32xf32>
    %195 = arith.addf %194, %193 : vector<8x32xf32>
    %196 = arith.divf %194, %195 : vector<8x32xf32>
    %197 = vector.extract_strided_slice %188 {offsets = [0, 32], sizes = [8, 32], strides = [1, 1]} : vector<8x96xf32> to vector<8x32xf32>
    %198 = vector.extract_strided_slice %186 {offsets = [0, 32], sizes = [8, 32], strides = [1, 1]} : vector<8x96xf32> to vector<8x32xf32>
    %199 = arith.addf %197, %198 : vector<8x32xf32>
    %200 = arith.negf %199 : vector<8x32xf32>
    %201 = math.exp %200 : vector<8x32xf32>
    %cst_80 = arith.constant 1.000000e+00 : f32
    %202 = vector.broadcast %cst_80 : f32 to vector<8x32xf32>
    %203 = arith.addf %202, %201 : vector<8x32xf32>
    %204 = arith.divf %202, %203 : vector<8x32xf32>
    %205 = vector.extract_strided_slice %188 {offsets = [0, 64], sizes = [8, 32], strides = [1, 1]} : vector<8x96xf32> to vector<8x32xf32>
    %206 = vector.extract_strided_slice %186 {offsets = [0, 64], sizes = [8, 32], strides = [1, 1]} : vector<8x96xf32> to vector<8x32xf32>
    %207 = vector.broadcast %9 : vector<1x32xf32> to vector<8x32xf32>
    %208 = arith.addf %206, %207 : vector<8x32xf32>
    %209 = arith.mulf %196, %208 : vector<8x32xf32>
    %210 = arith.addf %205, %209 : vector<8x32xf32>
    %211 = math.tanh %210 : vector<8x32xf32>
    %cst_81 = arith.constant 1.000000e+00 : f32
    %212 = vector.broadcast %cst_81 : f32 to vector<8x32xf32>
    %213 = arith.subf %212, %204 : vector<8x32xf32>
    %214 = arith.mulf %213, %211 : vector<8x32xf32>
    %215 = arith.mulf %204, %184 : vector<8x32xf32>
    %216 = arith.addf %214, %215 : vector<8x32xf32>
    %c4_82 = arith.constant 4 : index
    %c0_83 = arith.constant 0 : index
    %c0_84 = arith.constant 0 : index
    %217 = vector.load %arg2[%c4_82, %c0_83, %c0_84] : memref<6x8x1xf32, #tpu.memory_space<vmem>>, vector<1x8x1xf32>
    %218 = vector.shape_cast %217 : vector<1x8x1xf32> to vector<8x1xf32>
    %219 = vector.broadcast %218 : vector<8x1xf32> to vector<8x32xf32>
    %220 = arith.mulf %219, %216 : vector<8x32xf32>
    %cst_85 = arith.constant 1.000000e+00 : f32
    %221 = vector.broadcast %cst_85 : f32 to vector<8x1xf32>
    %222 = arith.subf %221, %218 : vector<8x1xf32>
    %223 = vector.broadcast %222 : vector<8x1xf32> to vector<8x32xf32>
    %224 = arith.mulf %223, %184 : vector<8x32xf32>
    %225 = arith.addf %220, %224 : vector<8x32xf32>
    %c0_86 = arith.constant 0 : index
    %c0_87 = arith.constant 0 : index
    %226 = vector.load %arg10[%c0_86, %c0_87] : memref<8x32xf32, #tpu.memory_space<vmem>>, vector<8x32xf32>
    tpu.vector_store %arg10[%c0_86, %c0_87], %225 {strides = array<i32>} : memref<8x32xf32, #tpu.memory_space<vmem>>, vector<8x32xf32>,
    %c0_88 = arith.constant 0 : index
    %c0_89 = arith.constant 0 : index
    %227 = vector.load %arg10[%c0_88, %c0_89] : memref<8x32xf32, #tpu.memory_space<vmem>>, vector<8x32xf32>
    %228 = arith.truncf %227 : vector<8x32xf32> to vector<8x32xbf16>
    %cst_90 = arith.constant dense<0.000000e+00> : vector<8x96xf32>
    %229 = tpu.matmul %228, %8, %cst_90 {dimension_numbers = #tpu.dot_dimension_numbers<[1], [0], [0], [1], [0, 0, 1, 1], [], []>} : vector<8x32xbf16>, vector<32x96xbf16>, vector<8x96xf32> -> vector<8x96xf32>
    %c5 = arith.constant 5 : index
    %c0_91 = arith.constant 0 : index
    %c0_92 = arith.constant 0 : index
    %230 = vector.load %arg9[%c5, %c0_91, %c0_92] : memref<6x8x96xf32, #tpu.memory_space<vmem>>, vector<1x8x96xf32>
    %231 = vector.shape_cast %230 : vector<1x8x96xf32> to vector<8x96xf32>
    %232 = vector.extract_strided_slice %231 {offsets = [0, 0], sizes = [8, 32], strides = [1, 1]} : vector<8x96xf32> to vector<8x32xf32>
    %233 = vector.extract_strided_slice %229 {offsets = [0, 0], sizes = [8, 32], strides = [1, 1]} : vector<8x96xf32> to vector<8x32xf32>
    %234 = arith.addf %232, %233 : vector<8x32xf32>
    %235 = arith.negf %234 : vector<8x32xf32>
    %236 = math.exp %235 : vector<8x32xf32>
    %cst_93 = arith.constant 1.000000e+00 : f32
    %237 = vector.broadcast %cst_93 : f32 to vector<8x32xf32>
    %238 = arith.addf %237, %236 : vector<8x32xf32>
    %239 = arith.divf %237, %238 : vector<8x32xf32>
    %240 = vector.extract_strided_slice %231 {offsets = [0, 32], sizes = [8, 32], strides = [1, 1]} : vector<8x96xf32> to vector<8x32xf32>
    %241 = vector.extract_strided_slice %229 {offsets = [0, 32], sizes = [8, 32], strides = [1, 1]} : vector<8x96xf32> to vector<8x32xf32>
    %242 = arith.addf %240, %241 : vector<8x32xf32>
    %243 = arith.negf %242 : vector<8x32xf32>
    %244 = math.exp %243 : vector<8x32xf32>
    %cst_94 = arith.constant 1.000000e+00 : f32
    %245 = vector.broadcast %cst_94 : f32 to vector<8x32xf32>
    %246 = arith.addf %245, %244 : vector<8x32xf32>
    %247 = arith.divf %245, %246 : vector<8x32xf32>
    %248 = vector.extract_strided_slice %231 {offsets = [0, 64], sizes = [8, 32], strides = [1, 1]} : vector<8x96xf32> to vector<8x32xf32>
    %249 = vector.extract_strided_slice %229 {offsets = [0, 64], sizes = [8, 32], strides = [1, 1]} : vector<8x96xf32> to vector<8x32xf32>
    %250 = vector.broadcast %9 : vector<1x32xf32> to vector<8x32xf32>
    %251 = arith.addf %249, %250 : vector<8x32xf32>
    %252 = arith.mulf %239, %251 : vector<8x32xf32>
    %253 = arith.addf %248, %252 : vector<8x32xf32>
    %254 = math.tanh %253 : vector<8x32xf32>
    %cst_95 = arith.constant 1.000000e+00 : f32
    %255 = vector.broadcast %cst_95 : f32 to vector<8x32xf32>
    %256 = arith.subf %255, %247 : vector<8x32xf32>
    %257 = arith.mulf %256, %254 : vector<8x32xf32>
    %258 = arith.mulf %247, %227 : vector<8x32xf32>
    %259 = arith.addf %257, %258 : vector<8x32xf32>
    %c5_96 = arith.constant 5 : index
    %c0_97 = arith.constant 0 : index
    %c0_98 = arith.constant 0 : index
    %260 = vector.load %arg2[%c5_96, %c0_97, %c0_98] : memref<6x8x1xf32, #tpu.memory_space<vmem>>, vector<1x8x1xf32>
    %261 = vector.shape_cast %260 : vector<1x8x1xf32> to vector<8x1xf32>
    %262 = vector.broadcast %261 : vector<8x1xf32> to vector<8x32xf32>
    %263 = arith.mulf %262, %259 : vector<8x32xf32>
    %cst_99 = arith.constant 1.000000e+00 : f32
    %264 = vector.broadcast %cst_99 : f32 to vector<8x1xf32>
    %265 = arith.subf %264, %261 : vector<8x1xf32>
    %266 = vector.broadcast %265 : vector<8x1xf32> to vector<8x32xf32>
    %267 = arith.mulf %266, %227 : vector<8x32xf32>
    %268 = arith.addf %263, %267 : vector<8x32xf32>
    %c0_100 = arith.constant 0 : index
    %c0_101 = arith.constant 0 : index
    %269 = vector.load %arg10[%c0_100, %c0_101] : memref<8x32xf32, #tpu.memory_space<vmem>>, vector<8x32xf32>
    tpu.vector_store %arg10[%c0_100, %c0_101], %268 {strides = array<i32>} : memref<8x32xf32, #tpu.memory_space<vmem>>, vector<8x32xf32>,
    %c0_102 = arith.constant 0 : index
    %c0_103 = arith.constant 0 : index
    %270 = vector.load %arg10[%c0_102, %c0_103] : memref<8x32xf32, #tpu.memory_space<vmem>>, vector<8x32xf32>
    %c0_104 = arith.constant 0 : index
    %c0_105 = arith.constant 0 : index
    %271 = vector.load %arg8[%c0_104, %c0_105] : memref<8x32xf32, #tpu.memory_space<vmem>>, vector<8x32xf32>
    tpu.vector_store %arg8[%c0_104, %c0_105], %270 {strides = array<i32>} : memref<8x32xf32, #tpu.memory_space<vmem>>, vector<8x32xf32>,
    return
  }
  func.func @transform_0(%arg0: i32) -> (i32, i32, i32) {
    %c0_i32 = arith.constant 0 : i32
    %c0_i32_0 = arith.constant 0 : i32
    %c0_i32_1 = arith.constant 0 : i32
    return %c0_i32, %arg0, %c0_i32_0 : i32, i32, i32
  }
  func.func @transform_1(%arg0: i32) -> (i32, i32, i32) {
    %c0_i32 = arith.constant 0 : i32
    %c0_i32_0 = arith.constant 0 : i32
    %c0_i32_1 = arith.constant 0 : i32
    return %c0_i32, %arg0, %c0_i32_0 : i32, i32, i32
  }
  func.func @transform_2(%arg0: i32) -> (i32, i32) {
    %c0_i32 = arith.constant 0 : i32
    %c0_i32_0 = arith.constant 0 : i32
    return %arg0, %c0_i32 : i32, i32
  }
  func.func @transform_3(%arg0: i32) -> (i32, i32) {
    %c0_i32 = arith.constant 0 : i32
    %c0_i32_0 = arith.constant 0 : i32
    %c0_i32_1 = arith.constant 0 : i32
    return %c0_i32, %c0_i32_0 : i32, i32
  }
  func.func @transform_4(%arg0: i32) -> (i32, i32) {
    %c0_i32 = arith.constant 0 : i32
    %c0_i32_0 = arith.constant 0 : i32
    %c0_i32_1 = arith.constant 0 : i32
    return %c0_i32, %c0_i32_0 : i32, i32
  }
  func.func @transform_5(%arg0: i32) -> (i32, i32) {
    %c0_i32 = arith.constant 0 : i32
    %c0_i32_0 = arith.constant 0 : i32
    %c0_i32_1 = arith.constant 0 : i32
    return %c0_i32, %c0_i32_0 : i32, i32
  }
  func.func @transform_6(%arg0: i32) -> (i32, i32) {
    %c0_i32 = arith.constant 0 : i32
    %c0_i32_0 = arith.constant 0 : i32
    %c0_i32_1 = arith.constant 0 : i32
    return %c0_i32, %c0_i32_0 : i32, i32
  }
  func.func @transform_7(%arg0: i32) -> (i32, i32) {
    %c0_i32 = arith.constant 0 : i32
    %c0_i32_0 = arith.constant 0 : i32
    return %arg0, %c0_i32 : i32, i32
  }
}

module attributes {stable_mosaic.version = 11 : i64} {
  func.func @_gcn_att_mlp_kernel(%arg0: i32, %arg1: memref<8x4x32xf32, #tpu.memory_space<vmem>>, %arg2: memref<8x4x4xbf16, #tpu.memory_space<vmem>>, %arg3: memref<8x4x4xbf16, #tpu.memory_space<vmem>>, %arg4: memref<8x4xf32, #tpu.memory_space<vmem>>, %arg5: memref<8x32xf32, #tpu.memory_space<vmem>>, %arg6: memref<2x32x160xbf16, #tpu.memory_space<vmem>>, %arg7: memref<2x160xf32, #tpu.memory_space<vmem>>, %arg8: memref<32x32xf32, #tpu.memory_space<vmem>>, %arg9: memref<32x32xf32, #tpu.memory_space<vmem>>, %arg10: memref<1x32xf32, #tpu.memory_space<vmem>>, %arg11: memref<32x16xf32, #tpu.memory_space<vmem>>, %arg12: memref<1x16xf32, #tpu.memory_space<vmem>>, %arg13: memref<16x128xf32, #tpu.memory_space<vmem>>, %arg14: memref<1x128xf32, #tpu.memory_space<vmem>>, %arg15: memref<8x128xf32, #tpu.memory_space<vmem>>) attributes {dimension_semantics = [#tpu.dimension_semantics<parallel>], iteration_bounds = array<i64: 1>, scalar_prefetch = 0 : i64, scratch_operands = 0 : i64, tpu.core_type = #tpu.core_type<tc>, window_params = [{transform_indices = @transform_0, window_bounds = array<i64: 8, 4, 32>}, {transform_indices = @transform_1, window_bounds = array<i64: 8, 4, 4>}, {transform_indices = @transform_2, window_bounds = array<i64: 8, 4, 4>}, {transform_indices = @transform_3, window_bounds = array<i64: 8, 4>}, {transform_indices = @transform_4, window_bounds = array<i64: 8, 32>}, {pipeline_mode = #tpu.pipeline_mode<synchronous>, transform_indices = @transform_5, window_bounds = array<i64: 2, 32, 160>}, {pipeline_mode = #tpu.pipeline_mode<synchronous>, transform_indices = @transform_6, window_bounds = array<i64: 2, 160>}, {pipeline_mode = #tpu.pipeline_mode<synchronous>, transform_indices = @transform_7, window_bounds = array<i64: 32, 32>}, {pipeline_mode = #tpu.pipeline_mode<synchronous>, transform_indices = @transform_8, window_bounds = array<i64: 32, 32>}, {pipeline_mode = #tpu.pipeline_mode<synchronous>, transform_indices = @transform_9, window_bounds = array<i64: 1, 32>}, {pipeline_mode = #tpu.pipeline_mode<synchronous>, transform_indices = @transform_10, window_bounds = array<i64: 32, 16>}, {pipeline_mode = #tpu.pipeline_mode<synchronous>, transform_indices = @transform_11, window_bounds = array<i64: 1, 16>}, {pipeline_mode = #tpu.pipeline_mode<synchronous>, transform_indices = @transform_12, window_bounds = array<i64: 16, 128>}, {pipeline_mode = #tpu.pipeline_mode<synchronous>, transform_indices = @transform_13, window_bounds = array<i64: 1, 128>}, {transform_indices = @transform_14, window_bounds = array<i64: 8, 128>}]} {
    %c0 = arith.constant 0 : index
    %c0_0 = arith.constant 0 : index
    %c0_1 = arith.constant 0 : index
    %0 = vector.load %arg1[%c0, %c0_0, %c0_1] : memref<8x4x32xf32, #tpu.memory_space<vmem>>, vector<8x4x32xf32>
    %c0_2 = arith.constant 0 : index
    %c0_3 = arith.constant 0 : index
    %c0_4 = arith.constant 0 : index
    %1 = vector.load %arg2[%c0_2, %c0_3, %c0_4] : memref<8x4x4xbf16, #tpu.memory_space<vmem>>, vector<8x4x4xbf16>
    %c0_5 = arith.constant 0 : index
    %c0_6 = arith.constant 0 : index
    %c0_7 = arith.constant 0 : index
    %2 = vector.load %arg3[%c0_5, %c0_6, %c0_7] : memref<8x4x4xbf16, #tpu.memory_space<vmem>>, vector<8x4x4xbf16>
    %c0_8 = arith.constant 0 : index
    %c0_9 = arith.constant 0 : index
    %3 = vector.load %arg4[%c0_8, %c0_9] : memref<8x4xf32, #tpu.memory_space<vmem>>, vector<8x4xf32>
    %4 = vector.shape_cast %3 : vector<8x4xf32> to vector<8x4x1xf32>
    %5 = arith.truncf %0 : vector<8x4x32xf32> to vector<8x4x32xbf16>
    %c0_10 = arith.constant 0 : index
    %c0_11 = arith.constant 0 : index
    %c0_12 = arith.constant 0 : index
    %6 = vector.load %arg6[%c0_10, %c0_11, %c0_12] : memref<2x32x160xbf16, #tpu.memory_space<vmem>>, vector<1x32x160xbf16>
    %7 = vector.shape_cast %6 : vector<1x32x160xbf16> to vector<32x160xbf16>
    "tpu.trace_start"() <{level = 10 : i32, message = "btd,de->bte"}> : () -> ()
    %cst = arith.constant dense<0.000000e+00> : vector<8x4x160xf32>
    %8 = tpu.matmul %5, %7, %cst {dimension_numbers = #tpu.dot_dimension_numbers<[2], [0], [0, 1], [1], [0, 0, 0, 1, 1, 1], [], []>} : vector<8x4x32xbf16>, vector<32x160xbf16>, vector<8x4x160xf32> -> vector<8x4x160xf32>
    "tpu.trace_stop"() : () -> ()
    %c0_13 = arith.constant 0 : index
    %c0_14 = arith.constant 0 : index
    %9 = vector.load %arg7[%c0_13, %c0_14] : memref<2x160xf32, #tpu.memory_space<vmem>>, vector<1x160xf32>
    %10 = vector.shape_cast %9 : vector<1x160xf32> to vector<160xf32>
    %11 = vector.shape_cast %10 : vector<160xf32> to vector<1x1x160xf32>
    %12 = vector.broadcast %11 : vector<1x1x160xf32> to vector<8x4x160xf32>
    %13 = arith.addf %8, %12 : vector<8x4x160xf32>
    %14 = vector.extract_strided_slice %13 {offsets = [0, 0, 0], sizes = [8, 4, 32], strides = [1, 1, 1]} : vector<8x4x160xf32> to vector<8x4x32xf32>
    %15 = vector.extract_strided_slice %13 {offsets = [0, 0, 32], sizes = [8, 4, 64], strides = [1, 1, 1]} : vector<8x4x160xf32> to vector<8x4x64xf32>
    %16 = arith.truncf %15 : vector<8x4x64xf32> to vector<8x4x64xbf16>
    %17 = vector.extract_strided_slice %13 {offsets = [0, 0, 96], sizes = [8, 4, 64], strides = [1, 1, 1]} : vector<8x4x160xf32> to vector<8x4x64xf32>
    %18 = arith.truncf %17 : vector<8x4x64xf32> to vector<8x4x64xbf16>
    "tpu.trace_start"() <{level = 10 : i32, message = "bqk,bkh->bqh"}> : () -> ()
    %cst_15 = arith.constant dense<0.000000e+00> : vector<8x4x64xf32>
    %19 = tpu.matmul %1, %16, %cst_15 {dimension_numbers = #tpu.dot_dimension_numbers<[2], [1], [1], [2], [0, 0, 0, 1, 1, 2], [0], [0]>} : vector<8x4x4xbf16>, vector<8x4x64xbf16>, vector<8x4x64xf32> -> vector<8x4x64xf32>
    %cst_16 = arith.constant dense<0.000000e+00> : vector<8x4x64xf32>
    %20 = tpu.matmul %2, %18, %cst_16 {dimension_numbers = #tpu.dot_dimension_numbers<[2], [1], [1], [2], [0, 0, 0, 1, 1, 2], [0], [0]>} : vector<8x4x4xbf16>, vector<8x4x64xbf16>, vector<8x4x64xf32> -> vector<8x4x64xf32>
    "tpu.trace_stop"() : () -> ()
    %21 = vector.extract_strided_slice %19 {offsets = [0, 0, 32], sizes = [8, 4, 32], strides = [1, 1, 1]} : vector<8x4x64xf32> to vector<8x4x32xf32>
    %22 = arith.negf %21 : vector<8x4x32xf32>
    %23 = math.exp %22 : vector<8x4x32xf32>
    %cst_17 = arith.constant 1.000000e+00 : f32
    %24 = vector.broadcast %cst_17 : f32 to vector<8x4x32xf32>
    %25 = arith.addf %24, %23 : vector<8x4x32xf32>
    %26 = arith.divf %24, %25 : vector<8x4x32xf32>
    %27 = vector.extract_strided_slice %20 {offsets = [0, 0, 32], sizes = [8, 4, 32], strides = [1, 1, 1]} : vector<8x4x64xf32> to vector<8x4x32xf32>
    %28 = arith.negf %27 : vector<8x4x32xf32>
    %29 = math.exp %28 : vector<8x4x32xf32>
    %cst_18 = arith.constant 1.000000e+00 : f32
    %30 = vector.broadcast %cst_18 : f32 to vector<8x4x32xf32>
    %31 = arith.addf %30, %29 : vector<8x4x32xf32>
    %32 = arith.divf %30, %31 : vector<8x4x32xf32>
    %33 = vector.extract_strided_slice %19 {offsets = [0, 0, 0], sizes = [8, 4, 32], strides = [1, 1, 1]} : vector<8x4x64xf32> to vector<8x4x32xf32>
    %34 = arith.mulf %26, %33 : vector<8x4x32xf32>
    %35 = arith.addf %14, %34 : vector<8x4x32xf32>
    %36 = vector.extract_strided_slice %20 {offsets = [0, 0, 0], sizes = [8, 4, 32], strides = [1, 1, 1]} : vector<8x4x64xf32> to vector<8x4x32xf32>
    %37 = arith.mulf %32, %36 : vector<8x4x32xf32>
    %38 = arith.addf %35, %37 : vector<8x4x32xf32>
    %cst_19 = arith.constant 0.000000e+00 : f32
    %39 = vector.broadcast %cst_19 : f32 to vector<8x4x32xf32>
    %40 = arith.maximumf %38, %39 : vector<8x4x32xf32>
    %41 = vector.broadcast %4 : vector<8x4x1xf32> to vector<8x4x32xf32>
    %42 = arith.mulf %40, %41 : vector<8x4x32xf32>
    %43 = arith.truncf %42 : vector<8x4x32xf32> to vector<8x4x32xbf16>
    %c1 = arith.constant 1 : index
    %c0_20 = arith.constant 0 : index
    %c0_21 = arith.constant 0 : index
    %44 = vector.load %arg6[%c1, %c0_20, %c0_21] : memref<2x32x160xbf16, #tpu.memory_space<vmem>>, vector<1x32x160xbf16>
    %45 = vector.shape_cast %44 : vector<1x32x160xbf16> to vector<32x160xbf16>
    "tpu.trace_start"() <{level = 10 : i32, message = "btd,de->bte"}> : () -> ()
    %cst_22 = arith.constant dense<0.000000e+00> : vector<8x4x160xf32>
    %46 = tpu.matmul %43, %45, %cst_22 {dimension_numbers = #tpu.dot_dimension_numbers<[2], [0], [0, 1], [1], [0, 0, 0, 1, 1, 1], [], []>} : vector<8x4x32xbf16>, vector<32x160xbf16>, vector<8x4x160xf32> -> vector<8x4x160xf32>
    "tpu.trace_stop"() : () -> ()
    %c1_23 = arith.constant 1 : index
    %c0_24 = arith.constant 0 : index
    %47 = vector.load %arg7[%c1_23, %c0_24] : memref<2x160xf32, #tpu.memory_space<vmem>>, vector<1x160xf32>
    %48 = vector.shape_cast %47 : vector<1x160xf32> to vector<160xf32>
    %49 = vector.shape_cast %48 : vector<160xf32> to vector<1x1x160xf32>
    %50 = vector.broadcast %49 : vector<1x1x160xf32> to vector<8x4x160xf32>
    %51 = arith.addf %46, %50 : vector<8x4x160xf32>
    %52 = vector.extract_strided_slice %51 {offsets = [0, 0, 0], sizes = [8, 4, 32], strides = [1, 1, 1]} : vector<8x4x160xf32> to vector<8x4x32xf32>
    %53 = vector.extract_strided_slice %51 {offsets = [0, 0, 32], sizes = [8, 4, 64], strides = [1, 1, 1]} : vector<8x4x160xf32> to vector<8x4x64xf32>
    %54 = arith.truncf %53 : vector<8x4x64xf32> to vector<8x4x64xbf16>
    %55 = vector.extract_strided_slice %51 {offsets = [0, 0, 96], sizes = [8, 4, 64], strides = [1, 1, 1]} : vector<8x4x160xf32> to vector<8x4x64xf32>
    %56 = arith.truncf %55 : vector<8x4x64xf32> to vector<8x4x64xbf16>
    "tpu.trace_start"() <{level = 10 : i32, message = "bqk,bkh->bqh"}> : () -> ()
    %cst_25 = arith.constant dense<0.000000e+00> : vector<8x4x64xf32>
    %57 = tpu.matmul %1, %54, %cst_25 {dimension_numbers = #tpu.dot_dimension_numbers<[2], [1], [1], [2], [0, 0, 0, 1, 1, 2], [0], [0]>} : vector<8x4x4xbf16>, vector<8x4x64xbf16>, vector<8x4x64xf32> -> vector<8x4x64xf32>
    %cst_26 = arith.constant dense<0.000000e+00> : vector<8x4x64xf32>
    %58 = tpu.matmul %2, %56, %cst_26 {dimension_numbers = #tpu.dot_dimension_numbers<[2], [1], [1], [2], [0, 0, 0, 1, 1, 2], [0], [0]>} : vector<8x4x4xbf16>, vector<8x4x64xbf16>, vector<8x4x64xf32> -> vector<8x4x64xf32>
    "tpu.trace_stop"() : () -> ()
    %59 = vector.extract_strided_slice %57 {offsets = [0, 0, 32], sizes = [8, 4, 32], strides = [1, 1, 1]} : vector<8x4x64xf32> to vector<8x4x32xf32>
    %60 = arith.negf %59 : vector<8x4x32xf32>
    %61 = math.exp %60 : vector<8x4x32xf32>
    %cst_27 = arith.constant 1.000000e+00 : f32
    %62 = vector.broadcast %cst_27 : f32 to vector<8x4x32xf32>
    %63 = arith.addf %62, %61 : vector<8x4x32xf32>
    %64 = arith.divf %62, %63 : vector<8x4x32xf32>
    %65 = vector.extract_strided_slice %58 {offsets = [0, 0, 32], sizes = [8, 4, 32], strides = [1, 1, 1]} : vector<8x4x64xf32> to vector<8x4x32xf32>
    %66 = arith.negf %65 : vector<8x4x32xf32>
    %67 = math.exp %66 : vector<8x4x32xf32>
    %cst_28 = arith.constant 1.000000e+00 : f32
    %68 = vector.broadcast %cst_28 : f32 to vector<8x4x32xf32>
    %69 = arith.addf %68, %67 : vector<8x4x32xf32>
    %70 = arith.divf %68, %69 : vector<8x4x32xf32>
    %71 = vector.extract_strided_slice %57 {offsets = [0, 0, 0], sizes = [8, 4, 32], strides = [1, 1, 1]} : vector<8x4x64xf32> to vector<8x4x32xf32>
    %72 = arith.mulf %64, %71 : vector<8x4x32xf32>
    %73 = arith.addf %52, %72 : vector<8x4x32xf32>
    %74 = vector.extract_strided_slice %58 {offsets = [0, 0, 0], sizes = [8, 4, 32], strides = [1, 1, 1]} : vector<8x4x64xf32> to vector<8x4x32xf32>
    %75 = arith.mulf %70, %74 : vector<8x4x32xf32>
    %76 = arith.addf %73, %75 : vector<8x4x32xf32>
    %cst_29 = arith.constant 0.000000e+00 : f32
    %77 = vector.broadcast %cst_29 : f32 to vector<8x4x32xf32>
    %78 = arith.maximumf %76, %77 : vector<8x4x32xf32>
    %79 = vector.broadcast %4 : vector<8x4x1xf32> to vector<8x4x32xf32>
    %80 = arith.mulf %78, %79 : vector<8x4x32xf32>
    %c0_30 = arith.constant 0 : index
    %c0_31 = arith.constant 0 : index
    %81 = vector.load %arg5[%c0_30, %c0_31] : memref<8x32xf32, #tpu.memory_space<vmem>>, vector<8x32xf32>
    %82 = vector.shape_cast %81 : vector<8x32xf32> to vector<8x1x32xf32>
    %83 = vector.broadcast %82 : vector<8x1x32xf32> to vector<8x4x32xf32>
    %84 = arith.mulf %80, %83 : vector<8x4x32xf32>
    %cst_32 = arith.constant dense<0.000000e+00> : vector<8x4xf32>
    %85 = vector.multi_reduction <add>, %84, %cst_32 [2] : vector<8x4x32xf32> to vector<8x4xf32>
    %cst_33 = arith.constant 1.000000e+00 : f32
    %86 = vector.broadcast %cst_33 : f32 to vector<8x4xf32>
    %87 = arith.subf %3, %86 : vector<8x4xf32>
    %cst_34 = arith.constant 1.000000e+30 : f32
    %88 = vector.broadcast %cst_34 : f32 to vector<8x4xf32>
    %89 = arith.mulf %87, %88 : vector<8x4xf32>
    %90 = arith.addf %85, %89 : vector<8x4xf32>
    %cst_35 = arith.constant dense<0xFF800000> : vector<8xf32>
    %91 = vector.multi_reduction <maximumf>, %90, %cst_35 [1] : vector<8x4xf32> to vector<8xf32>
    %92 = vector.shape_cast %91 : vector<8xf32> to vector<8x1xf32>
    %93 = vector.broadcast %92 : vector<8x1xf32> to vector<8x4xf32>
    %94 = arith.subf %90, %93 : vector<8x4xf32>
    %95 = math.exp %94 : vector<8x4xf32>
    %cst_36 = arith.constant dense<0.000000e+00> : vector<8xf32>
    %96 = vector.multi_reduction <add>, %95, %cst_36 [1] : vector<8x4xf32> to vector<8xf32>
    %97 = vector.shape_cast %96 : vector<8xf32> to vector<8x1xf32>
    %98 = tpu.reciprocal %97 {approx = true} : vector<8x1xf32> -> vector<8x1xf32>
    %99 = vector.broadcast %98 : vector<8x1xf32> to vector<8x4xf32>
    %100 = arith.mulf %95, %99 : vector<8x4xf32>
    %101 = vector.shape_cast %100 : vector<8x4xf32> to vector<8x4x1xf32>
    %102 = vector.broadcast %101 : vector<8x4x1xf32> to vector<8x4x32xf32>
    %103 = arith.mulf %80, %102 : vector<8x4x32xf32>
    %cst_37 = arith.constant dense<0.000000e+00> : vector<8x32xf32>
    %104 = vector.multi_reduction <add>, %103, %cst_37 [1] : vector<8x4x32xf32> to vector<8x32xf32>
    %c0_38 = arith.constant 0 : index
    %c0_39 = arith.constant 0 : index
    %105 = vector.load %arg8[%c0_38, %c0_39] : memref<32x32xf32, #tpu.memory_space<vmem>>, vector<32x32xf32>
    %cst_40 = arith.constant dense<0.000000e+00> : vector<8x32xf32>
    %106 = tpu.matmul %81, %105, %cst_40 {dimension_numbers = #tpu.dot_dimension_numbers<[1], [0], [0], [1], [0, 0, 1, 1], [], []>} : vector<8x32xf32>, vector<32x32xf32>, vector<8x32xf32> -> vector<8x32xf32>
    %c0_41 = arith.constant 0 : index
    %c0_42 = arith.constant 0 : index
    %107 = vector.load %arg9[%c0_41, %c0_42] : memref<32x32xf32, #tpu.memory_space<vmem>>, vector<32x32xf32>
    %cst_43 = arith.constant dense<0.000000e+00> : vector<8x32xf32>
    %108 = tpu.matmul %104, %107, %cst_43 {dimension_numbers = #tpu.dot_dimension_numbers<[1], [0], [0], [1], [0, 0, 1, 1], [], []>} : vector<8x32xf32>, vector<32x32xf32>, vector<8x32xf32> -> vector<8x32xf32>
    %109 = arith.addf %106, %108 : vector<8x32xf32>
    %c0_44 = arith.constant 0 : index
    %c0_45 = arith.constant 0 : index
    %110 = vector.load %arg10[%c0_44, %c0_45] : memref<1x32xf32, #tpu.memory_space<vmem>>, vector<1x32xf32>
    %111 = vector.broadcast %110 : vector<1x32xf32> to vector<8x32xf32>
    %112 = arith.addf %109, %111 : vector<8x32xf32>
    %cst_46 = arith.constant 0.000000e+00 : f32
    %113 = vector.broadcast %cst_46 : f32 to vector<8x32xf32>
    %114 = arith.maximumf %112, %113 : vector<8x32xf32>
    %c0_47 = arith.constant 0 : index
    %c0_48 = arith.constant 0 : index
    %115 = vector.load %arg11[%c0_47, %c0_48] : memref<32x16xf32, #tpu.memory_space<vmem>>, vector<32x16xf32>
    %cst_49 = arith.constant dense<0.000000e+00> : vector<8x16xf32>
    %116 = tpu.matmul %114, %115, %cst_49 {dimension_numbers = #tpu.dot_dimension_numbers<[1], [0], [0], [1], [0, 0, 1, 1], [], []>} : vector<8x32xf32>, vector<32x16xf32>, vector<8x16xf32> -> vector<8x16xf32>
    %c0_50 = arith.constant 0 : index
    %c0_51 = arith.constant 0 : index
    %117 = vector.load %arg12[%c0_50, %c0_51] : memref<1x16xf32, #tpu.memory_space<vmem>>, vector<1x16xf32>
    %118 = vector.broadcast %117 : vector<1x16xf32> to vector<8x16xf32>
    %119 = arith.addf %116, %118 : vector<8x16xf32>
    %cst_52 = arith.constant 0.000000e+00 : f32
    %120 = vector.broadcast %cst_52 : f32 to vector<8x16xf32>
    %121 = arith.maximumf %119, %120 : vector<8x16xf32>
    %c0_53 = arith.constant 0 : index
    %c0_54 = arith.constant 0 : index
    %122 = vector.load %arg13[%c0_53, %c0_54] : memref<16x128xf32, #tpu.memory_space<vmem>>, vector<16x128xf32>
    %cst_55 = arith.constant dense<0.000000e+00> : vector<8x128xf32>
    %123 = tpu.matmul %121, %122, %cst_55 {dimension_numbers = #tpu.dot_dimension_numbers<[1], [0], [0], [1], [0, 0, 1, 1], [], []>} : vector<8x16xf32>, vector<16x128xf32>, vector<8x128xf32> -> vector<8x128xf32>
    %c0_56 = arith.constant 0 : index
    %c0_57 = arith.constant 0 : index
    %124 = vector.load %arg14[%c0_56, %c0_57] : memref<1x128xf32, #tpu.memory_space<vmem>>, vector<1x128xf32>
    %125 = vector.broadcast %124 : vector<1x128xf32> to vector<8x128xf32>
    %126 = arith.addf %123, %125 : vector<8x128xf32>
    %127 = arith.negf %126 : vector<8x128xf32>
    %128 = math.exp %127 : vector<8x128xf32>
    %cst_58 = arith.constant 1.000000e+00 : f32
    %129 = vector.broadcast %cst_58 : f32 to vector<8x128xf32>
    %130 = arith.addf %129, %128 : vector<8x128xf32>
    %131 = arith.divf %129, %130 : vector<8x128xf32>
    %c0_59 = arith.constant 0 : index
    %c0_60 = arith.constant 0 : index
    %132 = vector.load %arg15[%c0_59, %c0_60] : memref<8x128xf32, #tpu.memory_space<vmem>>, vector<8x128xf32>
    tpu.vector_store %arg15[%c0_59, %c0_60], %131 {strides = array<i32>} : memref<8x128xf32, #tpu.memory_space<vmem>>, vector<8x128xf32>,
    return
  }
  func.func @transform_0(%arg0: i32) -> (i32, i32, i32) {
    %c0_i32 = arith.constant 0 : i32
    %c0_i32_0 = arith.constant 0 : i32
    %c0_i32_1 = arith.constant 0 : i32
    return %arg0, %c0_i32, %c0_i32_0 : i32, i32, i32
  }
  func.func @transform_1(%arg0: i32) -> (i32, i32, i32) {
    %c0_i32 = arith.constant 0 : i32
    %c0_i32_0 = arith.constant 0 : i32
    %c0_i32_1 = arith.constant 0 : i32
    return %arg0, %c0_i32, %c0_i32_0 : i32, i32, i32
  }
  func.func @transform_2(%arg0: i32) -> (i32, i32, i32) {
    %c0_i32 = arith.constant 0 : i32
    %c0_i32_0 = arith.constant 0 : i32
    %c0_i32_1 = arith.constant 0 : i32
    return %arg0, %c0_i32, %c0_i32_0 : i32, i32, i32
  }
  func.func @transform_3(%arg0: i32) -> (i32, i32) {
    %c0_i32 = arith.constant 0 : i32
    %c0_i32_0 = arith.constant 0 : i32
    return %arg0, %c0_i32 : i32, i32
  }
  func.func @transform_4(%arg0: i32) -> (i32, i32) {
    %c0_i32 = arith.constant 0 : i32
    %c0_i32_0 = arith.constant 0 : i32
    return %arg0, %c0_i32 : i32, i32
  }
  func.func @transform_5(%arg0: i32) -> (i32, i32, i32) {
    %c0_i32 = arith.constant 0 : i32
    %c0_i32_0 = arith.constant 0 : i32
    %c0_i32_1 = arith.constant 0 : i32
    %c0_i32_2 = arith.constant 0 : i32
    return %c0_i32, %c0_i32_0, %c0_i32_1 : i32, i32, i32
  }
  func.func @transform_6(%arg0: i32) -> (i32, i32) {
    %c0_i32 = arith.constant 0 : i32
    %c0_i32_0 = arith.constant 0 : i32
    %c0_i32_1 = arith.constant 0 : i32
    return %c0_i32, %c0_i32_0 : i32, i32
  }
  func.func @transform_7(%arg0: i32) -> (i32, i32) {
    %c0_i32 = arith.constant 0 : i32
    %c0_i32_0 = arith.constant 0 : i32
    %c0_i32_1 = arith.constant 0 : i32
    return %c0_i32, %c0_i32_0 : i32, i32
  }
  func.func @transform_8(%arg0: i32) -> (i32, i32) {
    %c0_i32 = arith.constant 0 : i32
    %c0_i32_0 = arith.constant 0 : i32
    %c0_i32_1 = arith.constant 0 : i32
    return %c0_i32, %c0_i32_0 : i32, i32
  }
  func.func @transform_9(%arg0: i32) -> (i32, i32) {
    %c0_i32 = arith.constant 0 : i32
    %c0_i32_0 = arith.constant 0 : i32
    %c0_i32_1 = arith.constant 0 : i32
    return %c0_i32, %c0_i32_0 : i32, i32
  }
  func.func @transform_10(%arg0: i32) -> (i32, i32) {
    %c0_i32 = arith.constant 0 : i32
    %c0_i32_0 = arith.constant 0 : i32
    %c0_i32_1 = arith.constant 0 : i32
    return %c0_i32, %c0_i32_0 : i32, i32
  }
  func.func @transform_11(%arg0: i32) -> (i32, i32) {
    %c0_i32 = arith.constant 0 : i32
    %c0_i32_0 = arith.constant 0 : i32
    %c0_i32_1 = arith.constant 0 : i32
    return %c0_i32, %c0_i32_0 : i32, i32
  }
  func.func @transform_12(%arg0: i32) -> (i32, i32) {
    %c0_i32 = arith.constant 0 : i32
    %c0_i32_0 = arith.constant 0 : i32
    %c0_i32_1 = arith.constant 0 : i32
    return %c0_i32, %c0_i32_0 : i32, i32
  }
  func.func @transform_13(%arg0: i32) -> (i32, i32) {
    %c0_i32 = arith.constant 0 : i32
    %c0_i32_0 = arith.constant 0 : i32
    %c0_i32_1 = arith.constant 0 : i32
    return %c0_i32, %c0_i32_0 : i32, i32
  }
  func.func @transform_14(%arg0: i32) -> (i32, i32) {
    %c0_i32 = arith.constant 0 : i32
    %c0_i32_0 = arith.constant 0 : i32
    return %arg0, %c0_i32 : i32, i32
  }
}

</mosaic_0001>

<llo_original>
// kernel: dcr_forward.7
$region0: #{dcr_forward.7}
  #allocation0 [shape = 'u32[]', space=smem, size = 0x4, offset = 0x4, fixed_abs, tag = 'smem constant byte address 0x4 - core index']
  #allocation1 [shape = 'u32[72,128]{1,0:T(1,128)}', space=vmem, size = 0x9000, scoped, tag = 'internal scratch']
  %s0 = inlined_call_operand.vmem [shape: bf16[8,11,16], index: 0, kind: input, shape index: {}]
  %s1 = inlined_call_operand.vmem [shape: bf16[4,16,128], index: 1, kind: input, shape index: {}]
  %s2 = inlined_call_operand.vmem [shape: f32[1,128], index: 2, kind: input, shape index: {}]
  %s3 = inlined_call_operand.vmem [shape: f32[8,128], index: 3, kind: input, shape index: {}]
  %s4 = inlined_call_operand.vmem [shape: bf16[8,128], index: 4, kind: output, shape index: {}]
  %s5 = sld [smem:[#allocation0]]
  $region26: #{dcr_forward.7} parent=0
    _
  %s7 = ssub.s32 1, %s5
  %s8 = scalar_select 0, %s7, %s5
  // Predicated region
  $region2: #{dcr_forward.7} parent=0 // pred_check
    _
  $region3: #{dcr_forward.7} parent=0 // pred_check_branch
    %10 = sbr.rel (0) target = $region5
  $region4: #{dcr_forward.7} parent=0 // pred_region
    _
  $region5: #{dcr_forward.7} parent=0 // pred_fallthru
    _
  // Predicated region
  $region6: #{dcr_forward.7} parent=0 // pred_check
    _
  $region7: #{dcr_forward.7} parent=0 // pred_check_branch
    %12 = sbr.rel (0) target = $region9
  $region8: #{dcr_forward.7} parent=0 // pred_region
    _
  $region9: #{dcr_forward.7} parent=0 // pred_fallthru
    _
  // Predicated region
  $region10: #{dcr_forward.7} parent=0 // pred_check
    _
  $region11: #{dcr_forward.7} parent=0 // pred_check_branch
    %14 = sbr.rel (0) target = $region13
  $region12: #{dcr_forward.7} parent=0 // pred_region
    _
  $region13: #{dcr_forward.7} parent=0 // pred_fallthru
    _
  // Predicated region
  $region14: #{dcr_forward.7} parent=0 // pred_check
    _
  $region15: #{dcr_forward.7} parent=0 // pred_check_branch
    %16 = sbr.rel (0) target = $region17
  $region16: #{dcr_forward.7} parent=0 // pred_region
    _
  $region17: #{dcr_forward.7} parent=0 // pred_fallthru
    _
  %v18 = vld [vmem:[%s0] sm:$0xf]
  %v19 = vld [vmem:[%s0 + $0x4] sm:$0x3]
  %v20 = vld [vmem:[%s0 + $0x8] sm:$0xf]
  %v21 = vld [vmem:[%s0 + $0xc] sm:$0x3]
  %v22 = vld [vmem:[%s0 + $0x10] sm:$0xf]
  %v23 = vld [vmem:[%s0 + $0x14] sm:$0x3]
  %v24 = vld [vmem:[%s0 + $0x18] sm:$0xf]
  %v25 = vld [vmem:[%s0 + $0x1c] sm:$0x3]
  %v26 = vld [vmem:[%s0 + $0x20] sm:$0xf]
  %v27 = vld [vmem:[%s0 + $0x24] sm:$0x3]
  %v28 = vld [vmem:[%s0 + $0x28] sm:$0xf]
  %v29 = vld [vmem:[%s0 + $0x2c] sm:$0x3]
  %v30 = vld [vmem:[%s0 + $0x30] sm:$0xf]
  %v31 = vld [vmem:[%s0 + $0x34] sm:$0x3]
  %v32 = vld [vmem:[%s0 + $0x38] sm:$0xf]
  %v33 = vld [vmem:[%s0 + $0x3c] sm:$0x3]
  %v34 = vld [vmem:[%s1] sm:$0xf]
  %v35 = vld [vmem:[%s1 + $0x4] sm:$0xf]
  %v36 = vld [vmem:[%s1 + $0x8] sm:$0xf]
  %v37 = vld [vmem:[%s1 + $0xc] sm:$0xf]
  %v38 = vld [vmem:[%s1 + $0x10] sm:$0xf]
  %v39 = vld [vmem:[%s1 + $0x14] sm:$0xf]
  %v40 = vld [vmem:[%s1 + $0x18] sm:$0xf]
  %v41 = vld [vmem:[%s1 + $0x1c] sm:$0xf]
  %vm42 = vsmask.f32 3328
  %vm43 = vsmask.f32 7440
  %vm44 = vmor %vm42, %vm43
  %v46 = vshrl.u32 %v18, 16
  %v48 = vrot.slane %v46, 4
  %v49 = vshll.u32 %v18, 16
  %v51 = vrot.slane %v49, 5
  %v52 = vor.u32 %v48, %v51
  %v53 = vrot.slane %v52, 4
  %v55 = vshll.u32 %v19, 16
  %v57 = vrot.slane %v55, 5
  %v58 = vsel %vm44, %v53, %v57
  %v60 = vshrl.u32 %v20, 16
  %v62 = vrot.slane %v60, 4
  %v63 = vshll.u32 %v20, 16
  %v65 = vrot.slane %v63, 5
  %v66 = vor.u32 %v62, %v65
  %v67 = vrot.slane %v66, 4
  %v69 = vshll.u32 %v21, 16
  %v71 = vrot.slane %v69, 5
  %v72 = vsel %vm44, %v67, %v71
  %v74 = vshrl.u32 %v22, 16
  %v76 = vrot.slane %v74, 4
  %v77 = vshll.u32 %v22, 16
  %v79 = vrot.slane %v77, 5
  %v80 = vor.u32 %v76, %v79
  %v81 = vrot.slane %v80, 4
  %v83 = vshll.u32 %v23, 16
  %v85 = vrot.slane %v83, 5
  %v86 = vsel %vm44, %v81, %v85
  %v88 = vshrl.u32 %v24, 16
  %v90 = vrot.slane %v88, 4
  %v91 = vshll.u32 %v24, 16
  %v93 = vrot.slane %v91, 5
  %v94 = vor.u32 %v90, %v93
  %v95 = vrot.slane %v94, 4
  %v97 = vshll.u32 %v25, 16
  %v99 = vrot.slane %v97, 5
  %v100 = vsel %vm44, %v95, %v99
  %v102 = vshrl.u32 %v26, 16
  %v104 = vrot.slane %v102, 4
  %v105 = vshll.u32 %v26, 16
  %v107 = vrot.slane %v105, 5
  %v108 = vor.u32 %v104, %v107
  %v109 = vrot.slane %v108, 4
  %v111 = vshll.u32 %v27, 16
  %v113 = vrot.slane %v111, 5
  %v114 = vsel %vm44, %v109, %v113
  %v116 = vshrl.u32 %v28, 16
  %v118 = vrot.slane %v116, 4
  %v119 = vshll.u32 %v28, 16
  %v121 = vrot.slane %v119, 5
  %v122 = vor.u32 %v118, %v121
  %v123 = vrot.slane %v122, 4
  %v125 = vshll.u32 %v29, 16
  %v127 = vrot.slane %v125, 5
  %v128 = vsel %vm44, %v123, %v127
  %v130 = vshrl.u32 %v30, 16
  %v132 = vrot.slane %v130, 4
  %v133 = vshll.u32 %v30, 16
  %v135 = vrot.slane %v133, 5
  %v136 = vor.u32 %v132, %v135
  %v137 = vrot.slane %v136, 4
  %v139 = vshll.u32 %v31, 16
  %v141 = vrot.slane %v139, 5
  %v142 = vsel %vm44, %v137, %v141
  %v144 = vshrl.u32 %v32, 16
  %v146 = vrot.slane %v144, 4
  %v147 = vshll.u32 %v32, 16
  %v149 = vrot.slane %v147, 5
  %v150 = vor.u32 %v146, %v149
  %v151 = vrot.slane %v150, 4
  %v153 = vshll.u32 %v33, 16
  %v155 = vrot.slane %v153, 5
  %v156 = vsel %vm44, %v151, %v155
  %v157 = vunpack.c.l.b16 %v58
  %v158 = vunpack.c.l.b16 %v72
  %v159 = vunpack.c.l.b16 %v86
  %v160 = vunpack.c.l.b16 %v100
  %v161 = vunpack.c.l.b16 %v114
  %v162 = vunpack.c.l.b16 %v128
  %v163 = vunpack.c.l.b16 %v142
  %v164 = vunpack.c.l.b16 %v156
  %v165 = vpack.c.b16 %v158, %v157
  %v166 = vpack.c.b16 %v160, %v159
  %v167 = vpack.c.b16 %v162, %v161
  %v168 = vpack.c.b16 %v164, %v163
  %v171 = vunpack.c.l.b16 %v36
  %v172 = vunpack.c.l.b16 %v37
  %v173 = vpack.c.b16 %v172, %v171
  %vm175 = vcmask 130048
  %v177 = vsel %vm175, %v165, 0
  %v180 = vsel %vm175, %v166, 0
  %v183 = vsel %vm175, %v167, 0
  %v186 = vsel %vm175, %v168, 0
  %188 = vmatpush.bf16.msra.mxu0 0
  %189 = vmatpush.bf16.msra.mxu0 0
  %190 = vmatpush.bf16.msra.mxu0 0
  %191 = vmatpush.bf16.msra.mxu0 0
  %192 = vmatpush.bf16.msra.mxu0 0
  %193 = vmatpush.bf16.msra.mxu0 0
  %194 = vmatpush.bf16.msra.mxu0 0
  %195 = vmatpush.bf16.msra.mxu0 %v173
  %196 = vmatmul.bf16.gmra.mxu0 %v177
  %v197 = vpop.f32.mrf.mxu0
  %v198 = vadd.f32 0.0, %v197
  %v199 = vpop.f32.mrf.mxu0
  %v200 = vadd.f32 0.0, %v199
  %201 = vmatmul.bf16.gmra.mxu0 %v180
  %v202 = vpop.f32.mrf.mxu0
  %v203 = vadd.f32 0.0, %v202
  %v204 = vpop.f32.mrf.mxu0
  %v205 = vadd.f32 0.0, %v204
  %206 = vmatmul.bf16.gmra.mxu0 %v183
  %v207 = vpop.f32.mrf.mxu0
  %v208 = vadd.f32 0.0, %v207
  %v209 = vpop.f32.mrf.mxu0
  %v210 = vadd.f32 0.0, %v209
  %211 = vmatmul.bf16.gmra.mxu0 %v186
  %v212 = vpop.f32.mrf.mxu0
  %v213 = vadd.f32 0.0, %v212
  %v214 = vpop.f32.mrf.mxu0
  %v215 = vadd.f32 0.0, %v214
  %216 = vdwg.mxu0
  %v225 = vunpack.c.l.b16 %v18
  %v226 = vunpack.c.l.b16 %v20
  %v227 = vunpack.c.l.b16 %v22
  %v228 = vunpack.c.l.b16 %v24
  %v229 = vunpack.c.l.b16 %v26
  %v230 = vunpack.c.l.b16 %v28
  %v231 = vunpack.c.l.b16 %v30
  %v232 = vunpack.c.l.b16 %v32
  %v233 = vpack.c.b16 %v226, %v225
  %v234 = vpack.c.b16 %v228, %v227
  %v235 = vpack.c.b16 %v230, %v229
  %v236 = vpack.c.b16 %v232, %v231
  %v239 = vunpack.c.l.b16 %v34
  %v240 = vunpack.c.l.b16 %v35
  %v241 = vpack.c.b16 %v240, %v239
  %v244 = vsel %vm175, %v233, 0
  %v247 = vsel %vm175, %v234, 0
  %v250 = vsel %vm175, %v235, 0
  %v253 = vsel %vm175, %v236, 0
  %255 = vmatpush.bf16.msra.mxu0 0
  %256 = vmatpush.bf16.msra.mxu0 0
  %257 = vmatpush.bf16.msra.mxu0 0
  %258 = vmatpush.bf16.msra.mxu0 0
  %259 = vmatpush.bf16.msra.mxu0 0
  %260 = vmatpush.bf16.msra.mxu0 0
  %261 = vmatpush.bf16.msra.mxu0 0
  %262 = vmatpush.bf16.msra.mxu0 %v241
  %263 = vmatmul.bf16.gmra.mxu0 %v244
  %v264 = vpop.f32.mrf.mxu0
  %v265 = vadd.f32 %v198, %v264
  %v266 = vpop.f32.mrf.mxu0
  %v267 = vadd.f32 %v200, %v266
  %268 = vmatmul.bf16.gmra.mxu0 %v247
  %v269 = vpop.f32.mrf.mxu0
  %v270 = vadd.f32 %v203, %v269
  %v271 = vpop.f32.mrf.mxu0
  %v272 = vadd.f32 %v205, %v271
  %273 = vmatmul.bf16.gmra.mxu0 %v250
  %v274 = vpop.f32.mrf.mxu0
  %v275 = vadd.f32 %v208, %v274
  %v276 = vpop.f32.mrf.mxu0
  %v277 = vadd.f32 %v210, %v276
  %278 = vmatmul.bf16.gmra.mxu0 %v253
  %v279 = vpop.f32.mrf.mxu0
  %v280 = vadd.f32 %v213, %v279
  %v281 = vpop.f32.mrf.mxu0
  %v282 = vadd.f32 %v215, %v281
  %283 = vdwg.mxu0
  %vm292 = vcmask 1042432
  %vm293 = vcmask 1046532
  %vm294 = vmor %vm292, %vm293
  %v295 = vrot.slane %v18, 5
  %v296 = vrot.slane %v295, 4
  %v297 = vrot.slane %v19, 5
  %v298 = vsel %vm294, %v296, %v297
  %v299 = vrot.slane %v20, 5
  %v300 = vrot.slane %v299, 4
  %v301 = vrot.slane %v21, 5
  %v302 = vsel %vm294, %v300, %v301
  %v303 = vrot.slane %v22, 5
  %v304 = vrot.slane %v303, 4
  %v305 = vrot.slane %v23, 5
  %v306 = vsel %vm294, %v304, %v305
  %v307 = vrot.slane %v24, 5
  %v308 = vrot.slane %v307, 4
  %v309 = vrot.slane %v25, 5
  %v310 = vsel %vm294, %v308, %v309
  %v311 = vrot.slane %v26, 5
  %v312 = vrot.slane %v311, 4
  %v313 = vrot.slane %v27, 5
  %v314 = vsel %vm294, %v312, %v313
  %v315 = vrot.slane %v28, 5
  %v316 = vrot.slane %v315, 4
  %v317 = vrot.slane %v29, 5
  %v318 = vsel %vm294, %v316, %v317
  %v319 = vrot.slane %v30, 5
  %v320 = vrot.slane %v319, 4
  %v321 = vrot.slane %v31, 5
  %v322 = vsel %vm294, %v320, %v321
  %v323 = vrot.slane %v32, 5
  %v324 = vrot.slane %v323, 4
  %v325 = vrot.slane %v33, 5
  %v326 = vsel %vm294, %v324, %v325
  %v327 = vunpack.c.l.b16 %v298
  %v328 = vunpack.c.l.b16 %v302
  %v329 = vunpack.c.l.b16 %v306
  %v330 = vunpack.c.l.b16 %v310
  %v331 = vunpack.c.l.b16 %v314
  %v332 = vunpack.c.l.b16 %v318
  %v333 = vunpack.c.l.b16 %v322
  %v334 = vunpack.c.l.b16 %v326
  %v335 = vpack.c.b16 %v328, %v327
  %v336 = vpack.c.b16 %v330, %v329
  %v337 = vpack.c.b16 %v332, %v331
  %v338 = vpack.c.b16 %v334, %v333
  %v341 = vunpack.c.l.b16 %v38
  %v342 = vunpack.c.l.b16 %v39
  %v343 = vpack.c.b16 %v342, %v341
  %v346 = vsel %vm175, %v335, 0
  %v349 = vsel %vm175, %v336, 0
  %v352 = vsel %vm175, %v337, 0
  %v355 = vsel %vm175, %v338, 0
  %357 = vmatpush.bf16.msra.mxu0 0
  %358 = vmatpush.bf16.msra.mxu0 0
  %359 = vmatpush.bf16.msra.mxu0 0
  %360 = vmatpush.bf16.msra.mxu0 0
  %361 = vmatpush.bf16.msra.mxu0 0
  %362 = vmatpush.bf16.msra.mxu0 0
  %363 = vmatpush.bf16.msra.mxu0 0
  %364 = vmatpush.bf16.msra.mxu0 %v343
  %365 = vmatmul.bf16.gmra.mxu0 %v346
  %v366 = vpop.f32.mrf.mxu0
  %v367 = vadd.f32 0.0, %v366
  %v368 = vpop.f32.mrf.mxu0
  %v369 = vadd.f32 0.0, %v368
  %370 = vmatmul.bf16.gmra.mxu0 %v349
  %v371 = vpop.f32.mrf.mxu0
  %v372 = vadd.f32 0.0, %v371
  %v373 = vpop.f32.mrf.mxu0
  %v374 = vadd.f32 0.0, %v373
  %375 = vmatmul.bf16.gmra.mxu0 %v352
  %v376 = vpop.f32.mrf.mxu0
  %v377 = vadd.f32 0.0, %v376
  %v378 = vpop.f32.mrf.mxu0
  %v379 = vadd.f32 0.0, %v378
  %380 = vmatmul.bf16.gmra.mxu0 %v355
  %v381 = vpop.f32.mrf.mxu0
  %v382 = vadd.f32 0.0, %v381
  %v383 = vpop.f32.mrf.mxu0
  %v384 = vadd.f32 0.0, %v383
  %385 = vdwg.mxu0
  %v386 = vadd.f32 %v265, %v367
  %v387 = vadd.f32 %v267, %v369
  %v388 = vadd.f32 %v270, %v372
  %v389 = vadd.f32 %v272, %v374
  %v390 = vadd.f32 %v275, %v377
  %v391 = vadd.f32 %v277, %v379
  %v392 = vadd.f32 %v280, %v382
  %v393 = vadd.f32 %v282, %v384
  %vm394 = vsmask.f32 2304
  %vm395 = vsmask.f32 6416
  %vm396 = vmor %vm394, %vm395
  %v397 = vrot.slane %v46, 5
  %v398 = vrot.slane %v49, 6
  %v399 = vor.u32 %v397, %v398
  %v400 = vrot.slane %v399, 4
  %v401 = vshrl.u32 %v19, 16
  %v403 = vrot.slane %v401, 5
  %v404 = vrot.slane %v55, 6
  %v405 = vor.u32 %v403, %v404
  %v406 = vsel %vm396, %v400, %v405
  %v407 = vrot.slane %v60, 5
  %v408 = vrot.slane %v63, 6
  %v409 = vor.u32 %v407, %v408
  %v410 = vrot.slane %v409, 4
  %v411 = vshrl.u32 %v21, 16
  %v413 = vrot.slane %v411, 5
  %v414 = vrot.slane %v69, 6
  %v415 = vor.u32 %v413, %v414
  %v416 = vsel %vm396, %v410, %v415
  %v417 = vrot.slane %v74, 5
  %v418 = vrot.slane %v77, 6
  %v419 = vor.u32 %v417, %v418
  %v420 = vrot.slane %v419, 4
  %v421 = vshrl.u32 %v23, 16
  %v423 = vrot.slane %v421, 5
  %v424 = vrot.slane %v83, 6
  %v425 = vor.u32 %v423, %v424
  %v426 = vsel %vm396, %v420, %v425
  %v427 = vrot.slane %v88, 5
  %v428 = vrot.slane %v91, 6
  %v429 = vor.u32 %v427, %v428
  %v430 = vrot.slane %v429, 4
  %v431 = vshrl.u32 %v25, 16
  %v433 = vrot.slane %v431, 5
  %v434 = vrot.slane %v97, 6
  %v435 = vor.u32 %v433, %v434
  %v436 = vsel %vm396, %v430, %v435
  %v437 = vrot.slane %v102, 5
  %v438 = vrot.slane %v105, 6
  %v439 = vor.u32 %v437, %v438
  %v440 = vrot.slane %v439, 4
  %v441 = vshrl.u32 %v27, 16
  %v443 = vrot.slane %v441, 5
  %v444 = vrot.slane %v111, 6
  %v445 = vor.u32 %v443, %v444
  %v446 = vsel %vm396, %v440, %v445
  %v447 = vrot.slane %v116, 5
  %v448 = vrot.slane %v119, 6
  %v449 = vor.u32 %v447, %v448
  %v450 = vrot.slane %v449, 4
  %v451 = vshrl.u32 %v29, 16
  %v453 = vrot.slane %v451, 5
  %v454 = vrot.slane %v125, 6
  %v455 = vor.u32 %v453, %v454
  %v456 = vsel %vm396, %v450, %v455
  %v457 = vrot.slane %v130, 5
  %v458 = vrot.slane %v133, 6
  %v459 = vor.u32 %v457, %v458
  %v460 = vrot.slane %v459, 4
  %v461 = vshrl.u32 %v31, 16
  %v463 = vrot.slane %v461, 5
  %v464 = vrot.slane %v139, 6
  %v465 = vor.u32 %v463, %v464
  %v466 = vsel %vm396, %v460, %v465
  %v467 = vrot.slane %v144, 5
  %v468 = vrot.slane %v147, 6
  %v469 = vor.u32 %v467, %v468
  %v470 = vrot.slane %v469, 4
  %v471 = vshrl.u32 %v33, 16
  %v473 = vrot.slane %v471, 5
  %v474 = vrot.slane %v153, 6
  %v475 = vor.u32 %v473, %v474
  %v476 = vsel %vm396, %v470, %v475
  %v477 = vunpack.c.l.b16 %v406
  %v478 = vunpack.c.l.b16 %v416
  %v479 = vunpack.c.l.b16 %v426
  %v480 = vunpack.c.l.b16 %v436
  %v481 = vunpack.c.l.b16 %v446
  %v482 = vunpack.c.l.b16 %v456
  %v483 = vunpack.c.l.b16 %v466
  %v484 = vunpack.c.l.b16 %v476
  %v485 = vpack.c.b16 %v478, %v477
  %v486 = vpack.c.b16 %v480, %v479
  %v487 = vpack.c.b16 %v482, %v481
  %v488 = vpack.c.b16 %v484, %v483
  %v491 = vunpack.c.l.b16 %v40
  %v492 = vunpack.c.l.b16 %v41
  %v493 = vpack.c.b16 %v492, %v491
  %v496 = vsel %vm175, %v485, 0
  %v499 = vsel %vm175, %v486, 0
  %v502 = vsel %vm175, %v487, 0
  %v505 = vsel %vm175, %v488, 0
  %507 = vmatpush.bf16.msra.mxu0 0
  %508 = vmatpush.bf16.msra.mxu0 0
  %509 = vmatpush.bf16.msra.mxu0 0
  %510 = vmatpush.bf16.msra.mxu0 0
  %511 = vmatpush.bf16.msra.mxu0 0
  %512 = vmatpush.bf16.msra.mxu0 0
  %513 = vmatpush.bf16.msra.mxu0 0
  %514 = vmatpush.bf16.msra.mxu0 %v493
  %515 = vmatmul.bf16.gmra.mxu0 %v496
  %v516 = vpop.f32.mrf.mxu0
  %v517 = vadd.f32 0.0, %v516
  %v518 = vpop.f32.mrf.mxu0
  %v519 = vadd.f32 0.0, %v518
  %520 = vmatmul.bf16.gmra.mxu0 %v499
  %v521 = vpop.f32.mrf.mxu0
  %v522 = vadd.f32 0.0, %v521
  %v523 = vpop.f32.mrf.mxu0
  %v524 = vadd.f32 0.0, %v523
  %525 = vmatmul.bf16.gmra.mxu0 %v502
  %v526 = vpop.f32.mrf.mxu0
  %v527 = vadd.f32 0.0, %v526
  %v528 = vpop.f32.mrf.mxu0
  %v529 = vadd.f32 0.0, %v528
  %530 = vmatmul.bf16.gmra.mxu0 %v505
  %v531 = vpop.f32.mrf.mxu0
  %v532 = vadd.f32 0.0, %v531
  %v533 = vpop.f32.mrf.mxu0
  %v534 = vadd.f32 0.0, %v533
  %535 = vdwg.mxu0
  %v536 = vadd.f32 %v386, %v517
  %v537 = vadd.f32 %v387, %v519
  %v538 = vadd.f32 %v388, %v522
  %v539 = vadd.f32 %v389, %v524
  %v540 = vadd.f32 %v390, %v527
  %v541 = vadd.f32 %v391, %v529
  %v542 = vadd.f32 %v392, %v532
  %v543 = vadd.f32 %v393, %v534
  %v544 = vld [vmem:[%s2] sm:$0x1]
  %v546 = vperm.slane %v544, 0
  %v548 = vadd.f32 %v536, %v546
  %v549 = vadd.f32 %v537, %v546
  %v550 = vadd.f32 %v538, %v546
  %v551 = vadd.f32 %v539, %v546
  %v552 = vadd.f32 %v540, %v546
  %v553 = vadd.f32 %v541, %v546
  %v554 = vadd.f32 %v542, %v546
  %v555 = vadd.f32 %v543, %v546
  %v556 = vmax.f32 %v548, 0.0
  %v557 = vmax.f32 %v549, 0.0
  %v558 = vmax.f32 %v550, 0.0
  %v559 = vmax.f32 %v551, 0.0
  %v560 = vmax.f32 %v552, 0.0
  %v561 = vmax.f32 %v553, 0.0
  %v562 = vmax.f32 %v554, 0.0
  %v563 = vmax.f32 %v555, 0.0
  %v564 = vld [vmem:[%s3] sm:$0xff]
  %v565 = vmul.f32 %v556, %v564
  %v566 = vmul.f32 %v557, %v564
  %v567 = vmul.f32 %v558, %v564
  %v568 = vmul.f32 %v559, %v564
  %v569 = vmul.f32 %v560, %v564
  %v570 = vmul.f32 %v561, %v564
  %v571 = vmul.f32 %v562, %v564
  %v572 = vmul.f32 %v563, %v564
  %v573 = vrot.slane %v565, 4
  %v574 = vmax.f32 %v565, %v573
  %v575 = vrot.slane %v574, 2
  %v576 = vmax.f32 %v574, %v575
  %v577 = vrot.slane %v576, 1
  %v578 = vmax.f32 %v576, %v577
  %v579 = vrot.slane %v566, 4
  %v580 = vmax.f32 %v566, %v579
  %v581 = vrot.slane %v580, 2
  %v582 = vmax.f32 %v580, %v581
  %v583 = vrot.slane %v582, 1
  %v584 = vmax.f32 %v582, %v583
  %v585 = vrot.slane %v567, 4
  %v586 = vmax.f32 %v567, %v585
  %v587 = vrot.slane %v586, 2
  %v588 = vmax.f32 %v586, %v587
  %v589 = vrot.slane %v588, 1
  %v590 = vmax.f32 %v588, %v589
  %v591 = vrot.slane %v568, 4
  %v592 = vmax.f32 %v568, %v591
  %v593 = vrot.slane %v592, 2
  %v594 = vmax.f32 %v592, %v593
  %v595 = vrot.slane %v594, 1
  %v596 = vmax.f32 %v594, %v595
  %v597 = vrot.slane %v569, 4
  %v598 = vmax.f32 %v569, %v597
  %v599 = vrot.slane %v598, 2
  %v600 = vmax.f32 %v598, %v599
  %v601 = vrot.slane %v600, 1
  %v602 = vmax.f32 %v600, %v601
  %v603 = vrot.slane %v570, 4
  %v604 = vmax.f32 %v570, %v603
  %v605 = vrot.slane %v604, 2
  %v606 = vmax.f32 %v604, %v605
  %v607 = vrot.slane %v606, 1
  %v608 = vmax.f32 %v606, %v607
  %v609 = vrot.slane %v571, 4
  %v610 = vmax.f32 %v571, %v609
  %v611 = vrot.slane %v610, 2
  %v612 = vmax.f32 %v610, %v611
  %v613 = vrot.slane %v612, 1
  %v614 = vmax.f32 %v612, %v613
  %v615 = vrot.slane %v572, 4
  %v616 = vmax.f32 %v572, %v615
  %v617 = vrot.slane %v616, 2
  %v618 = vmax.f32 %v616, %v617
  %v619 = vrot.slane %v618, 1
  %v620 = vmax.f32 %v618, %v619
  %v621 = vpack.c.bf16 %v578, %v578
  %v622 = vpack.c.bf16 %v584, %v584
  %v623 = vpack.c.bf16 %v590, %v590
  %v624 = vpack.c.bf16 %v596, %v596
  %v625 = vpack.c.bf16 %v602, %v602
  %v626 = vpack.c.bf16 %v608, %v608
  %v627 = vpack.c.bf16 %v614, %v614
  %v628 = vpack.c.bf16 %v620, %v620
  %v637 = vunpack.c.l.b16 %v621
  %v638 = vunpack.c.l.b16 %v622
  %v639 = vunpack.c.l.b16 %v623
  %v640 = vunpack.c.l.b16 %v624
  %v641 = vunpack.c.l.b16 %v625
  %v642 = vunpack.c.l.b16 %v626
  %v643 = vunpack.c.l.b16 %v627
  %v644 = vunpack.c.l.b16 %v628
  %vm645 = vcmask 1041409
  %v646 = vsel %vm645, %v638, %v637
  %vm647 = vcmask 1042434
  %v648 = vsel %vm647, %v639, %v646
  %vm649 = vcmask 1043459
  %v650 = vsel %vm649, %v640, %v648
  %vm651 = vcmask 1044484
  %v652 = vsel %vm651, %v641, %v650
  %vm653 = vcmask 1045509
  %v654 = vsel %vm653, %v642, %v652
  %vm655 = vcmask 1046534
  %v656 = vsel %vm655, %v643, %v654
  %vm657 = vcmask 1047559
  %v658 = vsel %vm657, %v644, %v656
  %v659 = vpack.c.b16 %v658, %v658
  %661 = vst [vmem:[%s4] sm:$0xf] %v659
  // Predicated region
  $region18: #{dcr_forward.7} parent=0 // pred_check
    _
  $region19: #{dcr_forward.7} parent=0 // pred_check_branch
    %663 = sbr.rel (0) target = $region21
  $region20: #{dcr_forward.7} parent=0 // pred_region
    _
  $region21: #{dcr_forward.7} parent=0 // pred_fallthru
    _
  // Predicated region
  $region22: #{dcr_forward.7} parent=0 // pred_check
    _
  $region23: #{dcr_forward.7} parent=0 // pred_check_branch
    %665 = sbr.rel (0) target = $region25
  $region24: #{dcr_forward.7} parent=0 // pred_region
    _
  $region25: #{dcr_forward.7} parent=0 // pred_fallthru
    _

// kernel: dcr_forward.8
$region0: #{dcr_forward.8}
  #allocation0 [shape = 'u32[]', space=smem, size = 0x4, offset = 0x4, fixed_abs, tag = 'smem constant byte address 0x4 - core index']
  #allocation1 [shape = 'u32[72,128]{1,0:T(1,128)}', space=vmem, size = 0x9000, scoped, tag = 'internal scratch']
  #allocation2 [shape = 'f32[4,8,48]{2,1,0:T(8,128)}', space=vmem, size = 0x4000, scoped, tag = 'scratch operand']
  #allocation3 [shape = 'f32[4,8,48]{2,1,0:T(8,128)}', space=vmem, size = 0x4000, scoped, tag = 'scratch operand']
  #allocation4 [shape = 'f32[4,8,16]{2,1,0:T(8,128)}', space=vmem, size = 0x4000, scoped, tag = 'scratch operand']
  #allocation5 [shape = 'f32[4,8,16]{2,1,0:T(8,128)}', space=vmem, size = 0x4000, scoped, tag = 'scratch operand']
  #allocation6 [shape = 'f32[8,16]{1,0:T(8,128)}', space=vmem, size = 0x1000, scoped, tag = 'scratch operand']
  #allocation7 [shape = 'f32[8,16]{1,0:T(8,128)}', space=vmem, size = 0x1000, scoped, tag = 'scratch operand']
  %s0 = inlined_call_operand.vmem [shape: bf16[4,8,32], index: 0, kind: input, shape index: {}]
  %s1 = inlined_call_operand.vmem [shape: f32[4,8,1], index: 1, kind: input, shape index: {}]
  %s2 = inlined_call_operand.vmem [shape: bf16[2,32,48], index: 2, kind: input, shape index: {}]
  %s3 = inlined_call_operand.vmem [shape: bf16[2,16,48], index: 3, kind: input, shape index: {}]
  %s4 = inlined_call_operand.vmem [shape: f32[2,1,48], index: 4, kind: input, shape index: {}]
  %s5 = inlined_call_operand.vmem [shape: f32[2,1,16], index: 5, kind: input, shape index: {}]
  %s6 = inlined_call_operand.vmem [shape: f32[4,8,32], index: 6, kind: output, shape index: {}]
  %s7 = sld [smem:[#allocation0]]
  $region34: #{dcr_forward.8} parent=0
    _
  %s9 = ssub.s32 1, %s7
  %s10 = scalar_select 0, %s9, %s7
  // Predicated region
  $region2: #{dcr_forward.8} parent=0 // pred_check
    _
  $region3: #{dcr_forward.8} parent=0 // pred_check_branch
    %12 = sbr.rel (0) target = $region5
  $region4: #{dcr_forward.8} parent=0 // pred_region
    _
  $region5: #{dcr_forward.8} parent=0 // pred_fallthru
    _
  // Predicated region
  $region6: #{dcr_forward.8} parent=0 // pred_check
    _
  $region7: #{dcr_forward.8} parent=0 // pred_check_branch
    %14 = sbr.rel (0) target = $region9
  $region8: #{dcr_forward.8} parent=0 // pred_region
    _
  $region9: #{dcr_forward.8} parent=0 // pred_fallthru
    _
  // Predicated region
  $region10: #{dcr_forward.8} parent=0 // pred_check
    _
  $region11: #{dcr_forward.8} parent=0 // pred_check_branch
    %16 = sbr.rel (0) target = $region13
  $region12: #{dcr_forward.8} parent=0 // pred_region
    _
  $region13: #{dcr_forward.8} parent=0 // pred_fallthru
    _
  // Predicated region
  $region14: #{dcr_forward.8} parent=0 // pred_check
    _
  $region15: #{dcr_forward.8} parent=0 // pred_check_branch
    %18 = sbr.rel (0) target = $region17
  $region16: #{dcr_forward.8} parent=0 // pred_region
    _
  $region17: #{dcr_forward.8} parent=0 // pred_fallthru
    _
  // Predicated region
  $region18: #{dcr_forward.8} parent=0 // pred_check
    _
  $region19: #{dcr_forward.8} parent=0 // pred_check_branch
    %20 = sbr.rel (0) target = $region21
  $region20: #{dcr_forward.8} parent=0 // pred_region
    _
  $region21: #{dcr_forward.8} parent=0 // pred_fallthru
    _
  // Predicated region
  $region22: #{dcr_forward.8} parent=0 // pred_check
    _
  $region23: #{dcr_forward.8} parent=0 // pred_check_branch
    %22 = sbr.rel (0) target = $region25
  $region24: #{dcr_forward.8} parent=0 // pred_region
    _
  $region25: #{dcr_forward.8} parent=0 // pred_fallthru
    _
  %v24 = vld [vmem:[%s0] sm:$0xf]
  %v25 = vld [vmem:[%s0 + $0x4] sm:$0xf]
  %v26 = vld [vmem:[%s0 + $0x8] sm:$0xf]
  %v27 = vld [vmem:[%s0 + $0xc] sm:$0xf]
  %v28 = vld [vmem:[%s2] sm:$0xf]
  %v29 = vld [vmem:[%s2 + $0x4] sm:$0xf]
  %v30 = vld [vmem:[%s2 + $0x8] sm:$0xf]
  %v31 = vld [vmem:[%s2 + $0xc] sm:$0xf]
  %v32 = vld [vmem:[%s4] sm:$0x1]
  %v34 = vperm.slane %v32, 0
  %v40 = vunpack.c.l.b16 %v24
  %v41 = vunpack.c.l.b16 %v25
  %v42 = vunpack.c.l.b16 %v26
  %v43 = vunpack.c.l.b16 %v27
  %v44 = vpack.c.b16 %v41, %v40
  %v45 = vpack.c.b16 %v43, %v42
  %v50 = vunpack.c.l.b16 %v28
  %v51 = vunpack.c.l.b16 %v29
  %v52 = vunpack.c.l.b16 %v30
  %v53 = vunpack.c.l.b16 %v31
  %v54 = vpack.c.b16 %v51, %v50
  %v55 = vpack.c.b16 %v53, %v52
  %vm58 = vcmask 261120
  %v60 = vsel %vm58, %v44, 0
  %v63 = vsel %vm58, %v45, 0
  %65 = vmatpush.bf16.msra.mxu0 0
  %66 = vmatpush.bf16.msra.mxu0 0
  %67 = vmatpush.bf16.msra.mxu0 0
  %68 = vmatpush.bf16.msra.mxu0 0
  %69 = vmatpush.bf16.msra.mxu0 0
  %70 = vmatpush.bf16.msra.mxu0 0
  %71 = vmatpush.bf16.msra.mxu0 %v55
  %72 = vmatpush.bf16.msra.mxu0 %v54
  %73 = vmatmul.bf16.gmra.mxu0 %v60
  %v74 = vpop.f32.mrf.mxu0
  %v75 = vadd.f32 %v34, %v74
  %v76 = vpop.f32.mrf.mxu0
  %v77 = vadd.f32 %v34, %v76
  %78 = vmatmul.bf16.gmra.mxu0 %v63
  %v79 = vpop.f32.mrf.mxu0
  %v80 = vadd.f32 %v34, %v79
  %v81 = vpop.f32.mrf.mxu0
  %v82 = vadd.f32 %v34, %v81
  %83 = vdwg.mxu0
  %vm84 = vcmask 392192
  %85 = vst.msk [vmem:[#allocation2] sm:$0xff] %vm84, %v75
  %86 = vst.msk [vmem:[#allocation2 + $0x8] sm:$0xff] %vm84, %v77
  %87 = vst.msk [vmem:[#allocation2 + $0x10] sm:$0xff] %vm84, %v80
  %88 = vst.msk [vmem:[#allocation2 + $0x18] sm:$0xff] %vm84, %v82
  %s89 = scalar_lea.vmem %s2, 16
  %v90 = vld [vmem:[%s89] sm:$0xf]
  %v91 = vld [vmem:[%s89 + $0x4] sm:$0xf]
  %v92 = vld [vmem:[%s89 + $0x8] sm:$0xf]
  %v93 = vld [vmem:[%s89 + $0xc] sm:$0xf]
  %s94 = scalar_lea.vmem %s4, 1
  %v95 = vld [vmem:[%s94] sm:$0x1]
  %v97 = vperm.slane %v95, 0
  %v103 = vunpack.c.l.b16 %v90
  %v104 = vunpack.c.l.b16 %v91
  %v105 = vunpack.c.l.b16 %v92
  %v106 = vunpack.c.l.b16 %v93
  %v107 = vpack.c.b16 %v104, %v103
  %v108 = vpack.c.b16 %v106, %v105
  %111 = vmatpush.bf16.msra.mxu0 0
  %112 = vmatpush.bf16.msra.mxu0 0
  %113 = vmatpush.bf16.msra.mxu0 0
  %114 = vmatpush.bf16.msra.mxu0 0
  %115 = vmatpush.bf16.msra.mxu0 0
  %116 = vmatpush.bf16.msra.mxu0 0
  %117 = vmatpush.bf16.msra.mxu0 %v108
  %118 = vmatpush.bf16.msra.mxu0 %v107
  %119 = vmatmul.bf16.gmra.mxu0 %v60
  %v120 = vpop.f32.mrf.mxu0
  %v121 = vadd.f32 %v97, %v120
  %v122 = vpop.f32.mrf.mxu0
  %v123 = vadd.f32 %v97, %v122
  %124 = vmatmul.bf16.gmra.mxu0 %v63
  %v125 = vpop.f32.mrf.mxu0
  %v126 = vadd.f32 %v97, %v125
  %v127 = vpop.f32.mrf.mxu0
  %v128 = vadd.f32 %v97, %v127
  %129 = vdwg.mxu0
  %130 = vst.msk [vmem:[#allocation3] sm:$0xff] %vm84, %v121
  %131 = vst.msk [vmem:[#allocation3 + $0x8] sm:$0xff] %vm84, %v123
  %132 = vst.msk [vmem:[#allocation3 + $0x10] sm:$0xff] %vm84, %v126
  %133 = vst.msk [vmem:[#allocation3 + $0x18] sm:$0xff] %vm84, %v128
  %v134 = vld [vmem:[%s3] sm:$0xf]
  %v135 = vld [vmem:[%s3 + $0x4] sm:$0xf]
  %s136 = scalar_lea.vmem %s3, 8
  %v137 = vld [vmem:[%s136] sm:$0xf]
  %v138 = vld [vmem:[%s136 + $0x4] sm:$0xf]
  %v139 = vld [vmem:[%s5] sm:$0x1]
  %s140 = scalar_lea.vmem %s5, 1
  %v141 = vld [vmem:[%s140] sm:$0x1]
  %vm142 = vcmask 130048
  %143 = vst.msk [vmem:[#allocation6] sm:$0xff] %vm142, 0.0
  %144 = vst.msk [vmem:[#allocation7] sm:$0xff] %vm142, 0.0
  %v145 = vld [vmem:[#allocation6] sm:$0xff]
  %v146 = vpack.c.bf16 %v145, %v145
  %v149 = vunpack.c.l.b16 %v134
  %v150 = vunpack.c.l.b16 %v135
  %v151 = vpack.c.b16 %v150, %v149
  %v154 = vsel %vm142, %v146, 0
  %156 = vmatpush.bf16.msra.mxu0 0
  %157 = vmatpush.bf16.msra.mxu0 0
  %158 = vmatpush.bf16.msra.mxu0 0
  %159 = vmatpush.bf16.msra.mxu0 0
  %160 = vmatpush.bf16.msra.mxu0 0
  %161 = vmatpush.bf16.msra.mxu0 0
  %162 = vmatpush.bf16.msra.mxu0 0
  %163 = vmatpush.bf16.msra.mxu0 %v151
  %164 = vmatmul.bf16.gmra.mxu0 %v154
  %v165 = vpop.f32.mrf.mxu0
  %v166 = vadd.f32 0.0, %v165
  %v167 = vpop.f32.mrf.mxu0
  %168 = vdwg.mxu0
  %v169 = vld [vmem:[#allocation2] sm:$0xff]
  %v170 = vadd.f32 %v169, %v166
  %v171 = vxor.u32 %v170, 2147483648
  %v172 = vmul.f32 %v171, 1.442695
  %v173 = vpow.pop %v172
  %v174 = vadd.f32 %v173, 1.0
  %v175 = vrcp.pop %v174
  %v176 = vmul.f32 %v174, %v175
  %v177 = vsub.f32 1.0, %v176
  %v178 = vmul.f32 %v175, %v177
  %v179 = vadd.f32 %v175, %v178
  %vm180 = vweird.f32 %v174
  %vm181 = vweird.f32 %v175
  %vm182 = vmor %vm180, %vm181
  %v183 = vsel %vm182, %v175, %v179
  %v184 = vand.u32 2147483647, %v174
  %vm185 = vcmp.eq.f32.partialorder %v184, 8.507059e+37
  %v186 = vand.u32 %v174, 2147483648
  %v187 = vor.u32 1.1754944e-38, %v186
  %v188 = vsel %vm185, %v187, %v183
  %v189 = vmul.f32 1.0, %v188
  %v191 = vperm.slane %v139, 0
  %192 = vrot.lane.b32.xlu0 %v191, 32
  %v193 = vpop.permute.xlu0 %192
  %v195 = vadd.f32 %v166, %v193
  %197 = vrot.lane.b32.xlu0 %v195, 96
  %v198 = vpop.permute.xlu0 %197
  %v200 = vmul.f32 %v189, %v198
  %202 = vrot.lane.b32.xlu0 %v200, 32
  %v203 = vpop.permute.xlu0 %202
  %v205 = vadd.f32 %v169, %v203
  %v206 = vtanh.pop %v205
  %v207 = vsub.f32 1.0, %v189
  %209 = vrot.lane.b32.xlu0 %v206, 112
  %v210 = vpop.permute.xlu0 %209
  %v212 = vmul.f32 %v207, %v210
  %214 = vrot.lane.b32.xlu0 %v145, 16
  %v215 = vpop.permute.xlu0 %214
  %v217 = vmul.f32 %v189, %v215
  %v218 = vadd.f32 %v212, %v217
  %v219 = vld [vmem:[%s1] sm:$0xff]
  %221 = vset.pattern.permute.xlu0 0
  %222 = vperm.xlu0 %221, %v219
  %v223 = vpop.permute.xlu0 %222
  %v225 = vmul.f32 %v223, %v218
  %v226 = vsub.f32 1.0, %v219
  %228 = vset.pattern.permute.xlu0 0
  %229 = vperm.xlu0 %228, %v226
  %v230 = vpop.permute.xlu0 %229
  %v232 = vmul.f32 %v230, %v145
  %234 = vrot.lane.b32.xlu0 %v232, 16
  %v235 = vpop.permute.xlu0 %234
  %v237 = vadd.f32 %v225, %v235
  %239 = vrot.lane.b32.xlu0 %v237, 112
  %v240 = vpop.permute.xlu0 %239
  %242 = vst.msk [vmem:[#allocation6] sm:$0xff] %vm142, %v240
  %244 = vrot.lane.b32.xlu0 %v225, 112
  %v245 = vpop.permute.xlu0 %244
  %247 = vst.msk [vmem:[#allocation4] sm:$0xff] %vm142, %v245
  %v248 = vld [vmem:[#allocation7] sm:$0xff]
  %v249 = vpack.c.bf16 %v248, %v248
  %v252 = vunpack.c.l.b16 %v137
  %v253 = vunpack.c.l.b16 %v138
  %v254 = vpack.c.b16 %v253, %v252
  %v257 = vsel %vm142, %v249, 0
  %259 = vmatpush.bf16.msra.mxu0 0
  %260 = vmatpush.bf16.msra.mxu0 0
  %261 = vmatpush.bf16.msra.mxu0 0
  %262 = vmatpush.bf16.msra.mxu0 0
  %263 = vmatpush.bf16.msra.mxu0 0
  %264 = vmatpush.bf16.msra.mxu0 0
  %265 = vmatpush.bf16.msra.mxu0 0
  %266 = vmatpush.bf16.msra.mxu0 %v254
  %267 = vmatmul.bf16.gmra.mxu0 %v257
  %v268 = vpop.f32.mrf.mxu0
  %v269 = vadd.f32 0.0, %v268
  %v270 = vpop.f32.mrf.mxu0
  %271 = vdwg.mxu0
  %s272 = scalar_lea.vmem [#allocation3], 24
  %v273 = vld [vmem:[%s272] sm:$0xff]
  %v274 = vadd.f32 %v273, %v269
  %v275 = vxor.u32 %v274, 2147483648
  %v276 = vmul.f32 %v275, 1.442695
  %v277 = vpow.pop %v276
  %v278 = vadd.f32 %v277, 1.0
  %v279 = vrcp.pop %v278
  %v280 = vmul.f32 %v278, %v279
  %v281 = vsub.f32 1.0, %v280
  %v282 = vmul.f32 %v279, %v281
  %v283 = vadd.f32 %v279, %v282
  %vm284 = vweird.f32 %v278
  %vm285 = vweird.f32 %v279
  %vm286 = vmor %vm284, %vm285
  %v287 = vsel %vm286, %v279, %v283
  %v288 = vand.u32 2147483647, %v278
  %vm289 = vcmp.eq.f32.partialorder %v288, 8.507059e+37
  %v290 = vand.u32 %v278, 2147483648
  %v291 = vor.u32 1.1754944e-38, %v290
  %v292 = vsel %vm289, %v291, %v287
  %v293 = vmul.f32 1.0, %v292
  %v295 = vperm.slane %v141, 0
  %296 = vrot.lane.b32.xlu0 %v295, 32
  %v297 = vpop.permute.xlu0 %296
  %v299 = vadd.f32 %v269, %v297
  %301 = vrot.lane.b32.xlu0 %v299, 96
  %v302 = vpop.permute.xlu0 %301
  %v304 = vmul.f32 %v293, %v302
  %306 = vrot.lane.b32.xlu0 %v304, 32
  %v307 = vpop.permute.xlu0 %306
  %v309 = vadd.f32 %v273, %v307
  %v310 = vtanh.pop %v309
  %v311 = vsub.f32 1.0, %v293
  %313 = vrot.lane.b32.xlu0 %v310, 112
  %v314 = vpop.permute.xlu0 %313
  %v316 = vmul.f32 %v311, %v314
  %318 = vrot.lane.b32.xlu0 %v248, 16
  %v319 = vpop.permute.xlu0 %318
  %v321 = vmul.f32 %v293, %v319
  %v322 = vadd.f32 %v316, %v321
  %s323 = scalar_lea.vmem %s1, 24
  %v324 = vld [vmem:[%s323] sm:$0xff]
  %326 = vset.pattern.permute.xlu0 0
  %327 = vperm.xlu0 %326, %v324
  %v328 = vpop.permute.xlu0 %327
  %v330 = vmul.f32 %v328, %v322
  %v331 = vsub.f32 1.0, %v324
  %333 = vset.pattern.permute.xlu0 0
  %334 = vperm.xlu0 %333, %v331
  %v335 = vpop.permute.xlu0 %334
  %v337 = vmul.f32 %v335, %v248
  %339 = vrot.lane.b32.xlu0 %v337, 16
  %v340 = vpop.permute.xlu0 %339
  %v342 = vadd.f32 %v330, %v340
  %344 = vrot.lane.b32.xlu0 %v342, 112
  %v345 = vpop.permute.xlu0 %344
  %347 = vst.msk [vmem:[#allocation7] sm:$0xff] %vm142, %v345
  %349 = vrot.lane.b32.xlu0 %v330, 112
  %v350 = vpop.permute.xlu0 %349
  %s352 = scalar_lea.vmem [#allocation5], 24
  %353 = vst.msk [vmem:[%s352] sm:$0xff] %vm142, %v350
  %v354 = vld [vmem:[#allocation6] sm:$0xff]
  %v355 = vpack.c.bf16 %v354, %v354
  %v357 = vsel %vm142, %v355, 0
  %359 = vmatpush.bf16.msra.mxu0 0
  %360 = vmatpush.bf16.msra.mxu0 0
  %361 = vmatpush.bf16.msra.mxu0 0
  %362 = vmatpush.bf16.msra.mxu0 0
  %363 = vmatpush.bf16.msra.mxu0 0
  %364 = vmatpush.bf16.msra.mxu0 0
  %365 = vmatpush.bf16.msra.mxu0 0
  %366 = vmatpush.bf16.msra.mxu0 %v151
  %367 = vmatmul.bf16.gmra.mxu0 %v357
  %v368 = vpop.f32.mrf.mxu0
  %v369 = vadd.f32 0.0, %v368
  %v370 = vpop.f32.mrf.mxu0
  %371 = vdwg.mxu0
  %s372 = scalar_lea.vmem [#allocation2], 8
  %v373 = vld [vmem:[%s372] sm:$0xff]
  %v374 = vadd.f32 %v373, %v369
  %v375 = vxor.u32 %v374, 2147483648
  %v376 = vmul.f32 %v375, 1.442695
  %v377 = vpow.pop %v376
  %v378 = vadd.f32 %v377, 1.0
  %v379 = vrcp.pop %v378
  %v380 = vmul.f32 %v378, %v379
  %v381 = vsub.f32 1.0, %v380
  %v382 = vmul.f32 %v379, %v381
  %v383 = vadd.f32 %v379, %v382
  %vm384 = vweird.f32 %v378
  %vm385 = vweird.f32 %v379
  %vm386 = vmor %vm384, %vm385
  %v387 = vsel %vm386, %v379, %v383
  %v388 = vand.u32 2147483647, %v378
  %vm389 = vcmp.eq.f32.partialorder %v388, 8.507059e+37
  %v390 = vand.u32 %v378, 2147483648
  %v391 = vor.u32 1.1754944e-38, %v390
  %v392 = vsel %vm389, %v391, %v387
  %v393 = vmul.f32 1.0, %v392
  %v394 = vadd.f32 %v369, %v193
  %396 = vrot.lane.b32.xlu0 %v394, 96
  %v397 = vpop.permute.xlu0 %396
  %v399 = vmul.f32 %v393, %v397
  %401 = vrot.lane.b32.xlu0 %v399, 32
  %v402 = vpop.permute.xlu0 %401
  %v404 = vadd.f32 %v373, %v402
  %v405 = vtanh.pop %v404
  %v406 = vsub.f32 1.0, %v393
  %408 = vrot.lane.b32.xlu0 %v405, 112
  %v409 = vpop.permute.xlu0 %408
  %v411 = vmul.f32 %v406, %v409
  %413 = vrot.lane.b32.xlu0 %v354, 16
  %v414 = vpop.permute.xlu0 %413
  %v416 = vmul.f32 %v393, %v414
  %v417 = vadd.f32 %v411, %v416
  %s418 = scalar_lea.vmem %s1, 8
  %v419 = vld [vmem:[%s418] sm:$0xff]
  %421 = vset.pattern.permute.xlu0 0
  %422 = vperm.xlu0 %421, %v419
  %v423 = vpop.permute.xlu0 %422
  %v425 = vmul.f32 %v423, %v417
  %v426 = vsub.f32 1.0, %v419
  %428 = vset.pattern.permute.xlu0 0
  %429 = vperm.xlu0 %428, %v426
  %v430 = vpop.permute.xlu0 %429
  %v432 = vmul.f32 %v430, %v354
  %434 = vrot.lane.b32.xlu0 %v432, 16
  %v435 = vpop.permute.xlu0 %434
  %v437 = vadd.f32 %v425, %v435
  %439 = vrot.lane.b32.xlu0 %v437, 112
  %v440 = vpop.permute.xlu0 %439
  %442 = vst.msk [vmem:[#allocation6] sm:$0xff] %vm142, %v440
  %444 = vrot.lane.b32.xlu0 %v425, 112
  %v445 = vpop.permute.xlu0 %444
  %s447 = scalar_lea.vmem [#allocation4], 8
  %448 = vst.msk [vmem:[%s447] sm:$0xff] %vm142, %v445
  %v449 = vld [vmem:[#allocation7] sm:$0xff]
  %v450 = vpack.c.bf16 %v449, %v449
  %v452 = vsel %vm142, %v450, 0
  %454 = vmatpush.bf16.msra.mxu0 0
  %455 = vmatpush.bf16.msra.mxu0 0
  %456 = vmatpush.bf16.msra.mxu0 0
  %457 = vmatpush.bf16.msra.mxu0 0
  %458 = vmatpush.bf16.msra.mxu0 0
  %459 = vmatpush.bf16.msra.mxu0 0
  %460 = vmatpush.bf16.msra.mxu0 0
  %461 = vmatpush.bf16.msra.mxu0 %v254
  %462 = vmatmul.bf16.gmra.mxu0 %v452
  %v463 = vpop.f32.mrf.mxu0
  %v464 = vadd.f32 0.0, %v463
  %v465 = vpop.f32.mrf.mxu0
  %466 = vdwg.mxu0
  %s467 = scalar_lea.vmem [#allocation3], 16
  %v468 = vld [vmem:[%s467] sm:$0xff]
  %v469 = vadd.f32 %v468, %v464
  %v470 = vxor.u32 %v469, 2147483648
  %v471 = vmul.f32 %v470, 1.442695
  %v472 = vpow.pop %v471
  %v473 = vadd.f32 %v472, 1.0
  %v474 = vrcp.pop %v473
  %v475 = vmul.f32 %v473, %v474
  %v476 = vsub.f32 1.0, %v475
  %v477 = vmul.f32 %v474, %v476
  %v478 = vadd.f32 %v474, %v477
  %vm479 = vweird.f32 %v473
  %vm480 = vweird.f32 %v474
  %vm481 = vmor %vm479, %vm480
  %v482 = vsel %vm481, %v474, %v478
  %v483 = vand.u32 2147483647, %v473
  %vm484 = vcmp.eq.f32.partialorder %v483, 8.507059e+37
  %v485 = vand.u32 %v473, 2147483648
  %v486 = vor.u32 1.1754944e-38, %v485
  %v487 = vsel %vm484, %v486, %v482
  %v488 = vmul.f32 1.0, %v487
  %v489 = vadd.f32 %v464, %v297
  %491 = vrot.lane.b32.xlu0 %v489, 96
  %v492 = vpop.permute.xlu0 %491
  %v494 = vmul.f32 %v488, %v492
  %496 = vrot.lane.b32.xlu0 %v494, 32
  %v497 = vpop.permute.xlu0 %496
  %v499 = vadd.f32 %v468, %v497
  %v500 = vtanh.pop %v499
  %v501 = vsub.f32 1.0, %v488
  %503 = vrot.lane.b32.xlu0 %v500, 112
  %v504 = vpop.permute.xlu0 %503
  %v506 = vmul.f32 %v501, %v504
  %508 = vrot.lane.b32.xlu0 %v449, 16
  %v509 = vpop.permute.xlu0 %508
  %v511 = vmul.f32 %v488, %v509
  %v512 = vadd.f32 %v506, %v511
  %s513 = scalar_lea.vmem %s1, 16
  %v514 = vld [vmem:[%s513] sm:$0xff]
  %516 = vset.pattern.permute.xlu0 0
  %517 = vperm.xlu0 %516, %v514
  %v518 = vpop.permute.xlu0 %517
  %v520 = vmul.f32 %v518, %v512
  %v521 = vsub.f32 1.0, %v514
  %523 = vset.pattern.permute.xlu0 0
  %524 = vperm.xlu0 %523, %v521
  %v525 = vpop.permute.xlu0 %524
  %v527 = vmul.f32 %v525, %v449
  %529 = vrot.lane.b32.xlu0 %v527, 16
  %v530 = vpop.permute.xlu0 %529
  %v532 = vadd.f32 %v520, %v530
  %534 = vrot.lane.b32.xlu0 %v532, 112
  %v535 = vpop.permute.xlu0 %534
  %537 = vst.msk [vmem:[#allocation7] sm:$0xff] %vm142, %v535
  %539 = vrot.lane.b32.xlu0 %v520, 112
  %v540 = vpop.permute.xlu0 %539
  %s542 = scalar_lea.vmem [#allocation5], 16
  %543 = vst.msk [vmem:[%s542] sm:$0xff] %vm142, %v540
  %v544 = vld [vmem:[#allocation6] sm:$0xff]
  %v545 = vpack.c.bf16 %v544, %v544
  %v547 = vsel %vm142, %v545, 0
  %549 = vmatpush.bf16.msra.mxu0 0
  %550 = vmatpush.bf16.msra.mxu0 0
  %551 = vmatpush.bf16.msra.mxu0 0
  %552 = vmatpush.bf16.msra.mxu0 0
  %553 = vmatpush.bf16.msra.mxu0 0
  %554 = vmatpush.bf16.msra.mxu0 0
  %555 = vmatpush.bf16.msra.mxu0 0
  %556 = vmatpush.bf16.msra.mxu0 %v151
  %557 = vmatmul.bf16.gmra.mxu0 %v547
  %v558 = vpop.f32.mrf.mxu0
  %v559 = vadd.f32 0.0, %v558
  %v560 = vpop.f32.mrf.mxu0
  %561 = vdwg.mxu0
  %s562 = scalar_lea.vmem [#allocation2], 16
  %v563 = vld [vmem:[%s562] sm:$0xff]
  %v564 = vadd.f32 %v563, %v559
  %v565 = vxor.u32 %v564, 2147483648
  %v566 = vmul.f32 %v565, 1.442695
  %v567 = vpow.pop %v566
  %v568 = vadd.f32 %v567, 1.0
  %v569 = vrcp.pop %v568
  %v570 = vmul.f32 %v568, %v569
  %v571 = vsub.f32 1.0, %v570
  %v572 = vmul.f32 %v569, %v571
  %v573 = vadd.f32 %v569, %v572
  %vm574 = vweird.f32 %v568
  %vm575 = vweird.f32 %v569
  %vm576 = vmor %vm574, %vm575
  %v577 = vsel %vm576, %v569, %v573
  %v578 = vand.u32 2147483647, %v568
  %vm579 = vcmp.eq.f32.partialorder %v578, 8.507059e+37
  %v580 = vand.u32 %v568, 2147483648
  %v581 = vor.u32 1.1754944e-38, %v580
  %v582 = vsel %vm579, %v581, %v577
  %v583 = vmul.f32 1.0, %v582
  %v584 = vadd.f32 %v559, %v193
  %586 = vrot.lane.b32.xlu0 %v584, 96
  %v587 = vpop.permute.xlu0 %586
  %v589 = vmul.f32 %v583, %v587
  %591 = vrot.lane.b32.xlu0 %v589, 32
  %v592 = vpop.permute.xlu0 %591
  %v594 = vadd.f32 %v563, %v592
  %v595 = vtanh.pop %v594
  %v596 = vsub.f32 1.0, %v583
  %598 = vrot.lane.b32.xlu0 %v595, 112
  %v599 = vpop.permute.xlu0 %598
  %v601 = vmul.f32 %v596, %v599
  %603 = vrot.lane.b32.xlu0 %v544, 16
  %v604 = vpop.permute.xlu0 %603
  %v606 = vmul.f32 %v583, %v604
  %v607 = vadd.f32 %v601, %v606
  %v608 = vld [vmem:[%s513] sm:$0xff]
  %610 = vset.pattern.permute.xlu0 0
  %611 = vperm.xlu0 %610, %v608
  %v612 = vpop.permute.xlu0 %611
  %v614 = vmul.f32 %v612, %v607
  %v615 = vsub.f32 1.0, %v608
  %617 = vset.pattern.permute.xlu0 0
  %618 = vperm.xlu0 %617, %v615
  %v619 = vpop.permute.xlu0 %618
  %v621 = vmul.f32 %v619, %v544
  %623 = vrot.lane.b32.xlu0 %v621, 16
  %v624 = vpop.permute.xlu0 %623
  %v626 = vadd.f32 %v614, %v624
  %628 = vrot.lane.b32.xlu0 %v626, 112
  %v629 = vpop.permute.xlu0 %628
  %631 = vst.msk [vmem:[#allocation6] sm:$0xff] %vm142, %v629
  %633 = vrot.lane.b32.xlu0 %v614, 112
  %v634 = vpop.permute.xlu0 %633
  %s636 = scalar_lea.vmem [#allocation4], 16
  %637 = vst.msk [vmem:[%s636] sm:$0xff] %vm142, %v634
  %v638 = vld [vmem:[#allocation7] sm:$0xff]
  %v639 = vpack.c.bf16 %v638, %v638
  %v641 = vsel %vm142, %v639, 0
  %643 = vmatpush.bf16.msra.mxu0 0
  %644 = vmatpush.bf16.msra.mxu0 0
  %645 = vmatpush.bf16.msra.mxu0 0
  %646 = vmatpush.bf16.msra.mxu0 0
  %647 = vmatpush.bf16.msra.mxu0 0
  %648 = vmatpush.bf16.msra.mxu0 0
  %649 = vmatpush.bf16.msra.mxu0 0
  %650 = vmatpush.bf16.msra.mxu0 %v254
  %651 = vmatmul.bf16.gmra.mxu0 %v641
  %v652 = vpop.f32.mrf.mxu0
  %v653 = vadd.f32 0.0, %v652
  %v654 = vpop.f32.mrf.mxu0
  %655 = vdwg.mxu0
  %s656 = scalar_lea.vmem [#allocation3], 8
  %v657 = vld [vmem:[%s656] sm:$0xff]
  %v658 = vadd.f32 %v657, %v653
  %v659 = vxor.u32 %v658, 2147483648
  %v660 = vmul.f32 %v659, 1.442695
  %v661 = vpow.pop %v660
  %v662 = vadd.f32 %v661, 1.0
  %v663 = vrcp.pop %v662
  %v664 = vmul.f32 %v662, %v663
  %v665 = vsub.f32 1.0, %v664
  %v666 = vmul.f32 %v663, %v665
  %v667 = vadd.f32 %v663, %v666
  %vm668 = vweird.f32 %v662
  %vm669 = vweird.f32 %v663
  %vm670 = vmor %vm668, %vm669
  %v671 = vsel %vm670, %v663, %v667
  %v672 = vand.u32 2147483647, %v662
  %vm673 = vcmp.eq.f32.partialorder %v672, 8.507059e+37
  %v674 = vand.u32 %v662, 2147483648
  %v675 = vor.u32 1.1754944e-38, %v674
  %v676 = vsel %vm673, %v675, %v671
  %v677 = vmul.f32 1.0, %v676
  %v678 = vadd.f32 %v653, %v297
  %680 = vrot.lane.b32.xlu0 %v678, 96
  %v681 = vpop.permute.xlu0 %680
  %v683 = vmul.f32 %v677, %v681
  %685 = vrot.lane.b32.xlu0 %v683, 32
  %v686 = vpop.permute.xlu0 %685
  %v688 = vadd.f32 %v657, %v686
  %v689 = vtanh.pop %v688
  %v690 = vsub.f32 1.0, %v677
  %692 = vrot.lane.b32.xlu0 %v689, 112
  %v693 = vpop.permute.xlu0 %692
  %v695 = vmul.f32 %v690, %v693
  %697 = vrot.lane.b32.xlu0 %v638, 16
  %v698 = vpop.permute.xlu0 %697
  %v700 = vmul.f32 %v677, %v698
  %v701 = vadd.f32 %v695, %v700
  %v702 = vld [vmem:[%s418] sm:$0xff]
  %704 = vset.pattern.permute.xlu0 0
  %705 = vperm.xlu0 %704, %v702
  %v706 = vpop.permute.xlu0 %705
  %v708 = vmul.f32 %v706, %v701
  %v709 = vsub.f32 1.0, %v702
  %711 = vset.pattern.permute.xlu0 0
  %712 = vperm.xlu0 %711, %v709
  %v713 = vpop.permute.xlu0 %712
  %v715 = vmul.f32 %v713, %v638
  %717 = vrot.lane.b32.xlu0 %v715, 16
  %v718 = vpop.permute.xlu0 %717
  %v720 = vadd.f32 %v708, %v718
  %722 = vrot.lane.b32.xlu0 %v720, 112
  %v723 = vpop.permute.xlu0 %722
  %725 = vst.msk [vmem:[#allocation7] sm:$0xff] %vm142, %v723
  %727 = vrot.lane.b32.xlu0 %v708, 112
  %v728 = vpop.permute.xlu0 %727
  %s730 = scalar_lea.vmem [#allocation5], 8
  %731 = vst.msk [vmem:[%s730] sm:$0xff] %vm142, %v728
  %v732 = vld [vmem:[#allocation6] sm:$0xff]
  %v733 = vpack.c.bf16 %v732, %v732
  %v735 = vsel %vm142, %v733, 0
  %737 = vmatpush.bf16.msra.mxu0 0
  %738 = vmatpush.bf16.msra.mxu0 0
  %739 = vmatpush.bf16.msra.mxu0 0
  %740 = vmatpush.bf16.msra.mxu0 0
  %741 = vmatpush.bf16.msra.mxu0 0
  %742 = vmatpush.bf16.msra.mxu0 0
  %743 = vmatpush.bf16.msra.mxu0 0
  %744 = vmatpush.bf16.msra.mxu0 %v151
  %745 = vmatmul.bf16.gmra.mxu0 %v735
  %v746 = vpop.f32.mrf.mxu0
  %v747 = vadd.f32 0.0, %v746
  %v748 = vpop.f32.mrf.mxu0
  %749 = vdwg.mxu0
  %s750 = scalar_lea.vmem [#allocation2], 24
  %v751 = vld [vmem:[%s750] sm:$0xff]
  %v752 = vadd.f32 %v751, %v747
  %v753 = vxor.u32 %v752, 2147483648
  %v754 = vmul.f32 %v753, 1.442695
  %v755 = vpow.pop %v754
  %v756 = vadd.f32 %v755, 1.0
  %v757 = vrcp.pop %v756
  %v758 = vmul.f32 %v756, %v757
  %v759 = vsub.f32 1.0, %v758
  %v760 = vmul.f32 %v757, %v759
  %v761 = vadd.f32 %v757, %v760
  %vm762 = vweird.f32 %v756
  %vm763 = vweird.f32 %v757
  %vm764 = vmor %vm762, %vm763
  %v765 = vsel %vm764, %v757, %v761
  %v766 = vand.u32 2147483647, %v756
  %vm767 = vcmp.eq.f32.partialorder %v766, 8.507059e+37
  %v768 = vand.u32 %v756, 2147483648
  %v769 = vor.u32 1.1754944e-38, %v768
  %v770 = vsel %vm767, %v769, %v765
  %v771 = vmul.f32 1.0, %v770
  %v772 = vadd.f32 %v747, %v193
  %774 = vrot.lane.b32.xlu0 %v772, 96
  %v775 = vpop.permute.xlu0 %774
  %v777 = vmul.f32 %v771, %v775
  %779 = vrot.lane.b32.xlu0 %v777, 32
  %v780 = vpop.permute.xlu0 %779
  %v782 = vadd.f32 %v751, %v780
  %v783 = vtanh.pop %v782
  %v784 = vsub.f32 1.0, %v771
  %786 = vrot.lane.b32.xlu0 %v783, 112
  %v787 = vpop.permute.xlu0 %786
  %v789 = vmul.f32 %v784, %v787
  %791 = vrot.lane.b32.xlu0 %v732, 16
  %v792 = vpop.permute.xlu0 %791
  %v794 = vmul.f32 %v771, %v792
  %v795 = vadd.f32 %v789, %v794
  %v796 = vld [vmem:[%s323] sm:$0xff]
  %798 = vset.pattern.permute.xlu0 0
  %799 = vperm.xlu0 %798, %v796
  %v800 = vpop.permute.xlu0 %799
  %v802 = vmul.f32 %v800, %v795
  %v803 = vsub.f32 1.0, %v796
  %805 = vset.pattern.permute.xlu0 0
  %806 = vperm.xlu0 %805, %v803
  %v807 = vpop.permute.xlu0 %806
  %v809 = vmul.f32 %v807, %v732
  %811 = vrot.lane.b32.xlu0 %v809, 16
  %v812 = vpop.permute.xlu0 %811
  %v814 = vadd.f32 %v802, %v812
  %816 = vrot.lane.b32.xlu0 %v814, 112
  %v817 = vpop.permute.xlu0 %816
  %819 = vst.msk [vmem:[#allocation6] sm:$0xff] %vm142, %v817
  %821 = vrot.lane.b32.xlu0 %v802, 112
  %v822 = vpop.permute.xlu0 %821
  %s824 = scalar_lea.vmem [#allocation4], 24
  %825 = vst.msk [vmem:[%s824] sm:$0xff] %vm142, %v822
  %v826 = vld [vmem:[#allocation7] sm:$0xff]
  %v827 = vpack.c.bf16 %v826, %v826
  %v829 = vsel %vm142, %v827, 0
  %831 = vmatpush.bf16.msra.mxu0 0
  %832 = vmatpush.bf16.msra.mxu0 0
  %833 = vmatpush.bf16.msra.mxu0 0
  %834 = vmatpush.bf16.msra.mxu0 0
  %835 = vmatpush.bf16.msra.mxu0 0
  %836 = vmatpush.bf16.msra.mxu0 0
  %837 = vmatpush.bf16.msra.mxu0 0
  %838 = vmatpush.bf16.msra.mxu0 %v254
  %839 = vmatmul.bf16.gmra.mxu0 %v829
  %v840 = vpop.f32.mrf.mxu0
  %v841 = vadd.f32 0.0, %v840
  %v842 = vpop.f32.mrf.mxu0
  %843 = vdwg.mxu0
  %v844 = vld [vmem:[#allocation3] sm:$0xff]
  %v845 = vadd.f32 %v844, %v841
  %v846 = vxor.u32 %v845, 2147483648
  %v847 = vmul.f32 %v846, 1.442695
  %v848 = vpow.pop %v847
  %v849 = vadd.f32 %v848, 1.0
  %v850 = vrcp.pop %v849
  %v851 = vmul.f32 %v849, %v850
  %v852 = vsub.f32 1.0, %v851
  %v853 = vmul.f32 %v850, %v852
  %v854 = vadd.f32 %v850, %v853
  %vm855 = vweird.f32 %v849
  %vm856 = vweird.f32 %v850
  %vm857 = vmor %vm855, %vm856
  %v858 = vsel %vm857, %v850, %v854
  %v859 = vand.u32 2147483647, %v849
  %vm860 = vcmp.eq.f32.partialorder %v859, 8.507059e+37
  %v861 = vand.u32 %v849, 2147483648
  %v862 = vor.u32 1.1754944e-38, %v861
  %v863 = vsel %vm860, %v862, %v858
  %v864 = vmul.f32 1.0, %v863
  %v865 = vadd.f32 %v841, %v297
  %867 = vrot.lane.b32.xlu0 %v865, 96
  %v868 = vpop.permute.xlu0 %867
  %v870 = vmul.f32 %v864, %v868
  %872 = vrot.lane.b32.xlu0 %v870, 32
  %v873 = vpop.permute.xlu0 %872
  %v875 = vadd.f32 %v844, %v873
  %v876 = vtanh.pop %v875
  %v877 = vsub.f32 1.0, %v864
  %879 = vrot.lane.b32.xlu0 %v876, 112
  %v880 = vpop.permute.xlu0 %879
  %v882 = vmul.f32 %v877, %v880
  %884 = vrot.lane.b32.xlu0 %v826, 16
  %v885 = vpop.permute.xlu0 %884
  %v887 = vmul.f32 %v864, %v885
  %v888 = vadd.f32 %v882, %v887
  %v889 = vld [vmem:[%s1] sm:$0xff]
  %891 = vset.pattern.permute.xlu0 0
  %892 = vperm.xlu0 %891, %v889
  %v893 = vpop.permute.xlu0 %892
  %v895 = vmul.f32 %v893, %v888
  %v896 = vsub.f32 1.0, %v889
  %898 = vset.pattern.permute.xlu0 0
  %899 = vperm.xlu0 %898, %v896
  %v900 = vpop.permute.xlu0 %899
  %v902 = vmul.f32 %v900, %v826
  %904 = vrot.lane.b32.xlu0 %v902, 16
  %v905 = vpop.permute.xlu0 %904
  %v907 = vadd.f32 %v895, %v905
  %909 = vrot.lane.b32.xlu0 %v907, 112
  %v910 = vpop.permute.xlu0 %909
  %912 = vst.msk [vmem:[#allocation7] sm:$0xff] %vm142, %v910
  %914 = vrot.lane.b32.xlu0 %v895, 112
  %v915 = vpop.permute.xlu0 %914
  %917 = vst.msk [vmem:[#allocation5] sm:$0xff] %vm142, %v915
  %v918 = vld [vmem:[#allocation4] sm:$0xff]
  %v919 = vld [vmem:[#allocation4 + $0x8] sm:$0xff]
  %v920 = vld [vmem:[#allocation4 + $0x10] sm:$0xff]
  %v921 = vld [vmem:[#allocation4 + $0x18] sm:$0xff]
  %v922 = vld [vmem:[#allocation5] sm:$0xff]
  %v923 = vld [vmem:[#allocation5 + $0x8] sm:$0xff]
  %v924 = vld [vmem:[#allocation5 + $0x10] sm:$0xff]
  %v925 = vld [vmem:[#allocation5 + $0x18] sm:$0xff]
  %930 = vrot.lane.b32.xlu0 %v922, 16
  %v931 = vpop.permute.xlu0 %930
  %932 = vrot.lane.b32.xlu0 %v923, 16
  %v933 = vpop.permute.xlu0 %932
  %934 = vrot.lane.b32.xlu0 %v924, 16
  %v935 = vpop.permute.xlu0 %934
  %936 = vrot.lane.b32.xlu0 %v925, 16
  %v937 = vpop.permute.xlu0 %936
  %v942 = vsel %vm142, %v918, %v931
  %v943 = vsel %vm142, %v919, %v933
  %v944 = vsel %vm142, %v920, %v935
  %v945 = vsel %vm142, %v921, %v937
  %946 = vst.msk [vmem:[%s6] sm:$0xff] %vm58, %v942
  %947 = vst.msk [vmem:[%s6 + $0x8] sm:$0xff] %vm58, %v943
  %948 = vst.msk [vmem:[%s6 + $0x10] sm:$0xff] %vm58, %v944
  %949 = vst.msk [vmem:[%s6 + $0x18] sm:$0xff] %vm58, %v945
  // Predicated region
  $region26: #{dcr_forward.8} parent=0 // pred_check
    _
  $region27: #{dcr_forward.8} parent=0 // pred_check_branch
    %951 = sbr.rel (0) target = $region29
  $region28: #{dcr_forward.8} parent=0 // pred_region
    _
  $region29: #{dcr_forward.8} parent=0 // pred_fallthru
    _
  // Predicated region
  $region30: #{dcr_forward.8} parent=0 // pred_check
    _
  $region31: #{dcr_forward.8} parent=0 // pred_check_branch
    %953 = sbr.rel (0) target = $region33
  $region32: #{dcr_forward.8} parent=0 // pred_region
    _
  $region33: #{dcr_forward.8} parent=0 // pred_fallthru
    _

// kernel: dcr_forward.5
$region0: #{dcr_forward.5}
  #allocation0 [shape = 'u32[]', space=smem, size = 0x4, offset = 0x4, fixed_abs, tag = 'smem constant byte address 0x4 - core index']
  #allocation1 [shape = 'u32[72,128]{1,0:T(1,128)}', space=vmem, size = 0x9000, scoped, tag = 'internal scratch']
  %s0 = inlined_call_operand.vmem [shape: bf16[16,11,16], index: 0, kind: input, shape index: {}]
  %s1 = inlined_call_operand.vmem [shape: bf16[4,16,128], index: 1, kind: input, shape index: {}]
  %s2 = inlined_call_operand.vmem [shape: f32[1,128], index: 2, kind: input, shape index: {}]
  %s3 = inlined_call_operand.vmem [shape: f32[8,128], index: 3, kind: input, shape index: {}]
  %s4 = inlined_call_operand.vmem [shape: bf16[16,128], index: 4, kind: output, shape index: {}]
  %s5 = sld [smem:[#allocation0]]
  $region26: #{dcr_forward.5} parent=0
    _
  %s7 = ssub.s32 1, %s5
  %s8 = scalar_select 0, %s7, %s5
  // Predicated region
  $region2: #{dcr_forward.5} parent=0 // pred_check
    _
  $region3: #{dcr_forward.5} parent=0 // pred_check_branch
    %10 = sbr.rel (0) target = $region5
  $region4: #{dcr_forward.5} parent=0 // pred_region
    _
  $region5: #{dcr_forward.5} parent=0 // pred_fallthru
    _
  // Predicated region
  $region6: #{dcr_forward.5} parent=0 // pred_check
    _
  $region7: #{dcr_forward.5} parent=0 // pred_check_branch
    %12 = sbr.rel (0) target = $region9
  $region8: #{dcr_forward.5} parent=0 // pred_region
    _
  $region9: #{dcr_forward.5} parent=0 // pred_fallthru
    _
  // Predicated region
  $region10: #{dcr_forward.5} parent=0 // pred_check
    _
  $region11: #{dcr_forward.5} parent=0 // pred_check_branch
    %14 = sbr.rel (0) target = $region13
  $region12: #{dcr_forward.5} parent=0 // pred_region
    _
  $region13: #{dcr_forward.5} parent=0 // pred_fallthru
    _
  // Predicated region
  $region14: #{dcr_forward.5} parent=0 // pred_check
    _
  $region15: #{dcr_forward.5} parent=0 // pred_check_branch
    %16 = sbr.rel (0) target = $region17
  $region16: #{dcr_forward.5} parent=0 // pred_region
    _
  $region17: #{dcr_forward.5} parent=0 // pred_fallthru
    _
  %v18 = vld [vmem:[%s0] sm:$0xf]
  %v19 = vld [vmem:[%s0 + $0x4] sm:$0x3]
  %v20 = vld [vmem:[%s0 + $0x8] sm:$0xf]
  %v21 = vld [vmem:[%s0 + $0xc] sm:$0x3]
  %v22 = vld [vmem:[%s0 + $0x10] sm:$0xf]
  %v23 = vld [vmem:[%s0 + $0x14] sm:$0x3]
  %v24 = vld [vmem:[%s0 + $0x18] sm:$0xf]
  %v25 = vld [vmem:[%s0 + $0x1c] sm:$0x3]
  %v26 = vld [vmem:[%s0 + $0x20] sm:$0xf]
  %v27 = vld [vmem:[%s0 + $0x24] sm:$0x3]
  %v28 = vld [vmem:[%s0 + $0x28] sm:$0xf]
  %v29 = vld [vmem:[%s0 + $0x2c] sm:$0x3]
  %v30 = vld [vmem:[%s0 + $0x30] sm:$0xf]
  %v31 = vld [vmem:[%s0 + $0x34] sm:$0x3]
  %v32 = vld [vmem:[%s0 + $0x38] sm:$0xf]
  %v33 = vld [vmem:[%s0 + $0x3c] sm:$0x3]
  %v34 = vld [vmem:[%s0 + $0x40] sm:$0xf]
  %v35 = vld [vmem:[%s0 + $0x44] sm:$0x3]
  %v36 = vld [vmem:[%s0 + $0x48] sm:$0xf]
  %v37 = vld [vmem:[%s0 + $0x4c] sm:$0x3]
  %v38 = vld [vmem:[%s0 + $0x50] sm:$0xf]
  %v39 = vld [vmem:[%s0 + $0x54] sm:$0x3]
  %v40 = vld [vmem:[%s0 + $0x58] sm:$0xf]
  %v41 = vld [vmem:[%s0 + $0x5c] sm:$0x3]
  %v42 = vld [vmem:[%s0 + $0x60] sm:$0xf]
  %v43 = vld [vmem:[%s0 + $0x64] sm:$0x3]
  %v44 = vld [vmem:[%s0 + $0x68] sm:$0xf]
  %v45 = vld [vmem:[%s0 + $0x6c] sm:$0x3]
  %v46 = vld [vmem:[%s0 + $0x70] sm:$0xf]
  %v47 = vld [vmem:[%s0 + $0x74] sm:$0x3]
  %v48 = vld [vmem:[%s0 + $0x78] sm:$0xf]
  %v49 = vld [vmem:[%s0 + $0x7c] sm:$0x3]
  %v50 = vld [vmem:[%s1] sm:$0xf]
  %v51 = vld [vmem:[%s1 + $0x4] sm:$0xf]
  %v52 = vld [vmem:[%s1 + $0x8] sm:$0xf]
  %v53 = vld [vmem:[%s1 + $0xc] sm:$0xf]
  %v54 = vld [vmem:[%s1 + $0x10] sm:$0xf]
  %v55 = vld [vmem:[%s1 + $0x14] sm:$0xf]
  %v56 = vld [vmem:[%s1 + $0x18] sm:$0xf]
  %v57 = vld [vmem:[%s1 + $0x1c] sm:$0xf]
  %vm58 = vsmask.f32 3328
  %vm59 = vsmask.f32 7440
  %vm60 = vmor %vm58, %vm59
  %v62 = vshrl.u32 %v18, 16
  %v64 = vrot.slane %v62, 4
  %v65 = vshll.u32 %v18, 16
  %v67 = vrot.slane %v65, 5
  %v68 = vor.u32 %v64, %v67
  %v69 = vrot.slane %v68, 4
  %v71 = vshll.u32 %v19, 16
  %v73 = vrot.slane %v71, 5
  %v74 = vsel %vm60, %v69, %v73
  %v76 = vshrl.u32 %v20, 16
  %v78 = vrot.slane %v76, 4
  %v79 = vshll.u32 %v20, 16
  %v81 = vrot.slane %v79, 5
  %v82 = vor.u32 %v78, %v81
  %v83 = vrot.slane %v82, 4
  %v85 = vshll.u32 %v21, 16
  %v87 = vrot.slane %v85, 5
  %v88 = vsel %vm60, %v83, %v87
  %v90 = vshrl.u32 %v22, 16
  %v92 = vrot.slane %v90, 4
  %v93 = vshll.u32 %v22, 16
  %v95 = vrot.slane %v93, 5
  %v96 = vor.u32 %v92, %v95
  %v97 = vrot.slane %v96, 4
  %v99 = vshll.u32 %v23, 16
  %v101 = vrot.slane %v99, 5
  %v102 = vsel %vm60, %v97, %v101
  %v104 = vshrl.u32 %v24, 16
  %v106 = vrot.slane %v104, 4
  %v107 = vshll.u32 %v24, 16
  %v109 = vrot.slane %v107, 5
  %v110 = vor.u32 %v106, %v109
  %v111 = vrot.slane %v110, 4
  %v113 = vshll.u32 %v25, 16
  %v115 = vrot.slane %v113, 5
  %v116 = vsel %vm60, %v111, %v115
  %v118 = vshrl.u32 %v26, 16
  %v120 = vrot.slane %v118, 4
  %v121 = vshll.u32 %v26, 16
  %v123 = vrot.slane %v121, 5
  %v124 = vor.u32 %v120, %v123
  %v125 = vrot.slane %v124, 4
  %v127 = vshll.u32 %v27, 16
  %v129 = vrot.slane %v127, 5
  %v130 = vsel %vm60, %v125, %v129
  %v132 = vshrl.u32 %v28, 16
  %v134 = vrot.slane %v132, 4
  %v135 = vshll.u32 %v28, 16
  %v137 = vrot.slane %v135, 5
  %v138 = vor.u32 %v134, %v137
  %v139 = vrot.slane %v138, 4
  %v141 = vshll.u32 %v29, 16
  %v143 = vrot.slane %v141, 5
  %v144 = vsel %vm60, %v139, %v143
  %v146 = vshrl.u32 %v30, 16
  %v148 = vrot.slane %v146, 4
  %v149 = vshll.u32 %v30, 16
  %v151 = vrot.slane %v149, 5
  %v152 = vor.u32 %v148, %v151
  %v153 = vrot.slane %v152, 4
  %v155 = vshll.u32 %v31, 16
  %v157 = vrot.slane %v155, 5
  %v158 = vsel %vm60, %v153, %v157
  %v160 = vshrl.u32 %v32, 16
  %v162 = vrot.slane %v160, 4
  %v163 = vshll.u32 %v32, 16
  %v165 = vrot.slane %v163, 5
  %v166 = vor.u32 %v162, %v165
  %v167 = vrot.slane %v166, 4
  %v169 = vshll.u32 %v33, 16
  %v171 = vrot.slane %v169, 5
  %v172 = vsel %vm60, %v167, %v171
  %v174 = vshrl.u32 %v34, 16
  %v176 = vrot.slane %v174, 4
  %v177 = vshll.u32 %v34, 16
  %v179 = vrot.slane %v177, 5
  %v180 = vor.u32 %v176, %v179
  %v181 = vrot.slane %v180, 4
  %v183 = vshll.u32 %v35, 16
  %v185 = vrot.slane %v183, 5
  %v186 = vsel %vm60, %v181, %v185
  %v188 = vshrl.u32 %v36, 16
  %v190 = vrot.slane %v188, 4
  %v191 = vshll.u32 %v36, 16
  %v193 = vrot.slane %v191, 5
  %v194 = vor.u32 %v190, %v193
  %v195 = vrot.slane %v194, 4
  %v197 = vshll.u32 %v37, 16
  %v199 = vrot.slane %v197, 5
  %v200 = vsel %vm60, %v195, %v199
  %v202 = vshrl.u32 %v38, 16
  %v204 = vrot.slane %v202, 4
  %v205 = vshll.u32 %v38, 16
  %v207 = vrot.slane %v205, 5
  %v208 = vor.u32 %v204, %v207
  %v209 = vrot.slane %v208, 4
  %v211 = vshll.u32 %v39, 16
  %v213 = vrot.slane %v211, 5
  %v214 = vsel %vm60, %v209, %v213
  %v216 = vshrl.u32 %v40, 16
  %v218 = vrot.slane %v216, 4
  %v219 = vshll.u32 %v40, 16
  %v221 = vrot.slane %v219, 5
  %v222 = vor.u32 %v218, %v221
  %v223 = vrot.slane %v222, 4
  %v225 = vshll.u32 %v41, 16
  %v227 = vrot.slane %v225, 5
  %v228 = vsel %vm60, %v223, %v227
  %v230 = vshrl.u32 %v42, 16
  %v232 = vrot.slane %v230, 4
  %v233 = vshll.u32 %v42, 16
  %v235 = vrot.slane %v233, 5
  %v236 = vor.u32 %v232, %v235
  %v237 = vrot.slane %v236, 4
  %v239 = vshll.u32 %v43, 16
  %v241 = vrot.slane %v239, 5
  %v242 = vsel %vm60, %v237, %v241
  %v244 = vshrl.u32 %v44, 16
  %v246 = vrot.slane %v244, 4
  %v247 = vshll.u32 %v44, 16
  %v249 = vrot.slane %v247, 5
  %v250 = vor.u32 %v246, %v249
  %v251 = vrot.slane %v250, 4
  %v253 = vshll.u32 %v45, 16
  %v255 = vrot.slane %v253, 5
  %v256 = vsel %vm60, %v251, %v255
  %v258 = vshrl.u32 %v46, 16
  %v260 = vrot.slane %v258, 4
  %v261 = vshll.u32 %v46, 16
  %v263 = vrot.slane %v261, 5
  %v264 = vor.u32 %v260, %v263
  %v265 = vrot.slane %v264, 4
  %v267 = vshll.u32 %v47, 16
  %v269 = vrot.slane %v267, 5
  %v270 = vsel %vm60, %v265, %v269
  %v272 = vshrl.u32 %v48, 16
  %v274 = vrot.slane %v272, 4
  %v275 = vshll.u32 %v48, 16
  %v277 = vrot.slane %v275, 5
  %v278 = vor.u32 %v274, %v277
  %v279 = vrot.slane %v278, 4
  %v281 = vshll.u32 %v49, 16
  %v283 = vrot.slane %v281, 5
  %v284 = vsel %vm60, %v279, %v283
  %v285 = vunpack.c.l.b16 %v74
  %v286 = vunpack.c.l.b16 %v88
  %v287 = vunpack.c.l.b16 %v102
  %v288 = vunpack.c.l.b16 %v116
  %v289 = vunpack.c.l.b16 %v130
  %v290 = vunpack.c.l.b16 %v144
  %v291 = vunpack.c.l.b16 %v158
  %v292 = vunpack.c.l.b16 %v172
  %v293 = vunpack.c.l.b16 %v186
  %v294 = vunpack.c.l.b16 %v200
  %v295 = vunpack.c.l.b16 %v214
  %v296 = vunpack.c.l.b16 %v228
  %v297 = vunpack.c.l.b16 %v242
  %v298 = vunpack.c.l.b16 %v256
  %v299 = vunpack.c.l.b16 %v270
  %v300 = vunpack.c.l.b16 %v284
  %v301 = vpack.c.b16 %v286, %v285
  %v302 = vpack.c.b16 %v288, %v287
  %v303 = vpack.c.b16 %v290, %v289
  %v304 = vpack.c.b16 %v292, %v291
  %v305 = vpack.c.b16 %v294, %v293
  %v306 = vpack.c.b16 %v296, %v295
  %v307 = vpack.c.b16 %v298, %v297
  %v308 = vpack.c.b16 %v300, %v299
  %v311 = vunpack.c.l.b16 %v52
  %v312 = vunpack.c.l.b16 %v53
  %v313 = vpack.c.b16 %v312, %v311
  %vm315 = vcmask 130048
  %v317 = vsel %vm315, %v301, 0
  %v320 = vsel %vm315, %v302, 0
  %v323 = vsel %vm315, %v303, 0
  %v326 = vsel %vm315, %v304, 0
  %v329 = vsel %vm315, %v305, 0
  %v332 = vsel %vm315, %v306, 0
  %v335 = vsel %vm315, %v307, 0
  %v338 = vsel %vm315, %v308, 0
  %340 = vmatpush.bf16.msra.mxu0 0
  %341 = vmatpush.bf16.msra.mxu0 0
  %342 = vmatpush.bf16.msra.mxu0 0
  %343 = vmatpush.bf16.msra.mxu0 0
  %344 = vmatpush.bf16.msra.mxu0 0
  %345 = vmatpush.bf16.msra.mxu0 0
  %346 = vmatpush.bf16.msra.mxu0 0
  %347 = vmatpush.bf16.msra.mxu0 %v313
  %348 = vmatmul.bf16.gmra.mxu0 %v317
  %v349 = vpop.f32.mrf.mxu0
  %v350 = vadd.f32 0.0, %v349
  %v351 = vpop.f32.mrf.mxu0
  %v352 = vadd.f32 0.0, %v351
  %353 = vmatmul.bf16.gmra.mxu0 %v320
  %v354 = vpop.f32.mrf.mxu0
  %v355 = vadd.f32 0.0, %v354
  %v356 = vpop.f32.mrf.mxu0
  %v357 = vadd.f32 0.0, %v356
  %358 = vmatmul.bf16.gmra.mxu0 %v323
  %v359 = vpop.f32.mrf.mxu0
  %v360 = vadd.f32 0.0, %v359
  %v361 = vpop.f32.mrf.mxu0
  %v362 = vadd.f32 0.0, %v361
  %363 = vmatmul.bf16.gmra.mxu0 %v326
  %v364 = vpop.f32.mrf.mxu0
  %v365 = vadd.f32 0.0, %v364
  %v366 = vpop.f32.mrf.mxu0
  %v367 = vadd.f32 0.0, %v366
  %368 = vmatmul.bf16.gmra.mxu0 %v329
  %v369 = vpop.f32.mrf.mxu0
  %v370 = vadd.f32 0.0, %v369
  %v371 = vpop.f32.mrf.mxu0
  %v372 = vadd.f32 0.0, %v371
  %373 = vmatmul.bf16.gmra.mxu0 %v332
  %v374 = vpop.f32.mrf.mxu0
  %v375 = vadd.f32 0.0, %v374
  %v376 = vpop.f32.mrf.mxu0
  %v377 = vadd.f32 0.0, %v376
  %378 = vmatmul.bf16.gmra.mxu0 %v335
  %v379 = vpop.f32.mrf.mxu0
  %v380 = vadd.f32 0.0, %v379
  %v381 = vpop.f32.mrf.mxu0
  %v382 = vadd.f32 0.0, %v381
  %383 = vmatmul.bf16.gmra.mxu0 %v338
  %v384 = vpop.f32.mrf.mxu0
  %v385 = vadd.f32 0.0, %v384
  %v386 = vpop.f32.mrf.mxu0
  %v387 = vadd.f32 0.0, %v386
  %388 = vdwg.mxu0
  %v405 = vunpack.c.l.b16 %v18
  %v406 = vunpack.c.l.b16 %v20
  %v407 = vunpack.c.l.b16 %v22
  %v408 = vunpack.c.l.b16 %v24
  %v409 = vunpack.c.l.b16 %v26
  %v410 = vunpack.c.l.b16 %v28
  %v411 = vunpack.c.l.b16 %v30
  %v412 = vunpack.c.l.b16 %v32
  %v413 = vunpack.c.l.b16 %v34
  %v414 = vunpack.c.l.b16 %v36
  %v415 = vunpack.c.l.b16 %v38
  %v416 = vunpack.c.l.b16 %v40
  %v417 = vunpack.c.l.b16 %v42
  %v418 = vunpack.c.l.b16 %v44
  %v419 = vunpack.c.l.b16 %v46
  %v420 = vunpack.c.l.b16 %v48
  %v421 = vpack.c.b16 %v406, %v405
  %v422 = vpack.c.b16 %v408, %v407
  %v423 = vpack.c.b16 %v410, %v409
  %v424 = vpack.c.b16 %v412, %v411
  %v425 = vpack.c.b16 %v414, %v413
  %v426 = vpack.c.b16 %v416, %v415
  %v427 = vpack.c.b16 %v418, %v417
  %v428 = vpack.c.b16 %v420, %v419
  %v431 = vunpack.c.l.b16 %v50
  %v432 = vunpack.c.l.b16 %v51
  %v433 = vpack.c.b16 %v432, %v431
  %v436 = vsel %vm315, %v421, 0
  %v439 = vsel %vm315, %v422, 0
  %v442 = vsel %vm315, %v423, 0
  %v445 = vsel %vm315, %v424, 0
  %v448 = vsel %vm315, %v425, 0
  %v451 = vsel %vm315, %v426, 0
  %v454 = vsel %vm315, %v427, 0
  %v457 = vsel %vm315, %v428, 0
  %459 = vmatpush.bf16.msra.mxu0 0
  %460 = vmatpush.bf16.msra.mxu0 0
  %461 = vmatpush.bf16.msra.mxu0 0
  %462 = vmatpush.bf16.msra.mxu0 0
  %463 = vmatpush.bf16.msra.mxu0 0
  %464 = vmatpush.bf16.msra.mxu0 0
  %465 = vmatpush.bf16.msra.mxu0 0
  %466 = vmatpush.bf16.msra.mxu0 %v433
  %467 = vmatmul.bf16.gmra.mxu0 %v436
  %v468 = vpop.f32.mrf.mxu0
  %v469 = vadd.f32 %v350, %v468
  %v470 = vpop.f32.mrf.mxu0
  %v471 = vadd.f32 %v352, %v470
  %472 = vmatmul.bf16.gmra.mxu0 %v439
  %v473 = vpop.f32.mrf.mxu0
  %v474 = vadd.f32 %v355, %v473
  %v475 = vpop.f32.mrf.mxu0
  %v476 = vadd.f32 %v357, %v475
  %477 = vmatmul.bf16.gmra.mxu0 %v442
  %v478 = vpop.f32.mrf.mxu0
  %v479 = vadd.f32 %v360, %v478
  %v480 = vpop.f32.mrf.mxu0
  %v481 = vadd.f32 %v362, %v480
  %482 = vmatmul.bf16.gmra.mxu0 %v445
  %v483 = vpop.f32.mrf.mxu0
  %v484 = vadd.f32 %v365, %v483
  %v485 = vpop.f32.mrf.mxu0
  %v486 = vadd.f32 %v367, %v485
  %487 = vmatmul.bf16.gmra.mxu0 %v448
  %v488 = vpop.f32.mrf.mxu0
  %v489 = vadd.f32 %v370, %v488
  %v490 = vpop.f32.mrf.mxu0
  %v491 = vadd.f32 %v372, %v490
  %492 = vmatmul.bf16.gmra.mxu0 %v451
  %v493 = vpop.f32.mrf.mxu0
  %v494 = vadd.f32 %v375, %v493
  %v495 = vpop.f32.mrf.mxu0
  %v496 = vadd.f32 %v377, %v495
  %497 = vmatmul.bf16.gmra.mxu0 %v454
  %v498 = vpop.f32.mrf.mxu0
  %v499 = vadd.f32 %v380, %v498
  %v500 = vpop.f32.mrf.mxu0
  %v501 = vadd.f32 %v382, %v500
  %502 = vmatmul.bf16.gmra.mxu0 %v457
  %v503 = vpop.f32.mrf.mxu0
  %v504 = vadd.f32 %v385, %v503
  %v505 = vpop.f32.mrf.mxu0
  %v506 = vadd.f32 %v387, %v505
  %507 = vdwg.mxu0
  %vm524 = vcmask 1042432
  %vm525 = vcmask 1046532
  %vm526 = vmor %vm524, %vm525
  %v527 = vrot.slane %v18, 5
  %v528 = vrot.slane %v527, 4
  %v529 = vrot.slane %v19, 5
  %v530 = vsel %vm526, %v528, %v529
  %v531 = vrot.slane %v20, 5
  %v532 = vrot.slane %v531, 4
  %v533 = vrot.slane %v21, 5
  %v534 = vsel %vm526, %v532, %v533
  %v535 = vrot.slane %v22, 5
  %v536 = vrot.slane %v535, 4
  %v537 = vrot.slane %v23, 5
  %v538 = vsel %vm526, %v536, %v537
  %v539 = vrot.slane %v24, 5
  %v540 = vrot.slane %v539, 4
  %v541 = vrot.slane %v25, 5
  %v542 = vsel %vm526, %v540, %v541
  %v543 = vrot.slane %v26, 5
  %v544 = vrot.slane %v543, 4
  %v545 = vrot.slane %v27, 5
  %v546 = vsel %vm526, %v544, %v545
  %v547 = vrot.slane %v28, 5
  %v548 = vrot.slane %v547, 4
  %v549 = vrot.slane %v29, 5
  %v550 = vsel %vm526, %v548, %v549
  %v551 = vrot.slane %v30, 5
  %v552 = vrot.slane %v551, 4
  %v553 = vrot.slane %v31, 5
  %v554 = vsel %vm526, %v552, %v553
  %v555 = vrot.slane %v32, 5
  %v556 = vrot.slane %v555, 4
  %v557 = vrot.slane %v33, 5
  %v558 = vsel %vm526, %v556, %v557
  %v559 = vrot.slane %v34, 5
  %v560 = vrot.slane %v559, 4
  %v561 = vrot.slane %v35, 5
  %v562 = vsel %vm526, %v560, %v561
  %v563 = vrot.slane %v36, 5
  %v564 = vrot.slane %v563, 4
  %v565 = vrot.slane %v37, 5
  %v566 = vsel %vm526, %v564, %v565
  %v567 = vrot.slane %v38, 5
  %v568 = vrot.slane %v567, 4
  %v569 = vrot.slane %v39, 5
  %v570 = vsel %vm526, %v568, %v569
  %v571 = vrot.slane %v40, 5
  %v572 = vrot.slane %v571, 4
  %v573 = vrot.slane %v41, 5
  %v574 = vsel %vm526, %v572, %v573
  %v575 = vrot.slane %v42, 5
  %v576 = vrot.slane %v575, 4
  %v577 = vrot.slane %v43, 5
  %v578 = vsel %vm526, %v576, %v577
  %v579 = vrot.slane %v44, 5
  %v580 = vrot.slane %v579, 4
  %v581 = vrot.slane %v45, 5
  %v582 = vsel %vm526, %v580, %v581
  %v583 = vrot.slane %v46, 5
  %v584 = vrot.slane %v583, 4
  %v585 = vrot.slane %v47, 5
  %v586 = vsel %vm526, %v584, %v585
  %v587 = vrot.slane %v48, 5
  %v588 = vrot.slane %v587, 4
  %v589 = vrot.slane %v49, 5
  %v590 = vsel %vm526, %v588, %v589
  %v591 = vunpack.c.l.b16 %v530
  %v592 = vunpack.c.l.b16 %v534
  %v593 = vunpack.c.l.b16 %v538
  %v594 = vunpack.c.l.b16 %v542
  %v595 = vunpack.c.l.b16 %v546
  %v596 = vunpack.c.l.b16 %v550
  %v597 = vunpack.c.l.b16 %v554
  %v598 = vunpack.c.l.b16 %v558
  %v599 = vunpack.c.l.b16 %v562
  %v600 = vunpack.c.l.b16 %v566
  %v601 = vunpack.c.l.b16 %v570
  %v602 = vunpack.c.l.b16 %v574
  %v603 = vunpack.c.l.b16 %v578
  %v604 = vunpack.c.l.b16 %v582
  %v605 = vunpack.c.l.b16 %v586
  %v606 = vunpack.c.l.b16 %v590
  %v607 = vpack.c.b16 %v592, %v591
  %v608 = vpack.c.b16 %v594, %v593
  %v609 = vpack.c.b16 %v596, %v595
  %v610 = vpack.c.b16 %v598, %v597
  %v611 = vpack.c.b16 %v600, %v599
  %v612 = vpack.c.b16 %v602, %v601
  %v613 = vpack.c.b16 %v604, %v603
  %v614 = vpack.c.b16 %v606, %v605
  %v617 = vunpack.c.l.b16 %v54
  %v618 = vunpack.c.l.b16 %v55
  %v619 = vpack.c.b16 %v618, %v617
  %v622 = vsel %vm315, %v607, 0
  %v625 = vsel %vm315, %v608, 0
  %v628 = vsel %vm315, %v609, 0
  %v631 = vsel %vm315, %v610, 0
  %v634 = vsel %vm315, %v611, 0
  %v637 = vsel %vm315, %v612, 0
  %v640 = vsel %vm315, %v613, 0
  %v643 = vsel %vm315, %v614, 0
  %645 = vmatpush.bf16.msra.mxu0 0
  %646 = vmatpush.bf16.msra.mxu0 0
  %647 = vmatpush.bf16.msra.mxu0 0
  %648 = vmatpush.bf16.msra.mxu0 0
  %649 = vmatpush.bf16.msra.mxu0 0
  %650 = vmatpush.bf16.msra.mxu0 0
  %651 = vmatpush.bf16.msra.mxu0 0
  %652 = vmatpush.bf16.msra.mxu0 %v619
  %653 = vmatmul.bf16.gmra.mxu0 %v622
  %v654 = vpop.f32.mrf.mxu0
  %v655 = vadd.f32 0.0, %v654
  %v656 = vpop.f32.mrf.mxu0
  %v657 = vadd.f32 0.0, %v656
  %658 = vmatmul.bf16.gmra.mxu0 %v625
  %v659 = vpop.f32.mrf.mxu0
  %v660 = vadd.f32 0.0, %v659
  %v661 = vpop.f32.mrf.mxu0
  %v662 = vadd.f32 0.0, %v661
  %663 = vmatmul.bf16.gmra.mxu0 %v628
  %v664 = vpop.f32.mrf.mxu0
  %v665 = vadd.f32 0.0, %v664
  %v666 = vpop.f32.mrf.mxu0
  %v667 = vadd.f32 0.0, %v666
  %668 = vmatmul.bf16.gmra.mxu0 %v631
  %v669 = vpop.f32.mrf.mxu0
  %v670 = vadd.f32 0.0, %v669
  %v671 = vpop.f32.mrf.mxu0
  %v672 = vadd.f32 0.0, %v671
  %673 = vmatmul.bf16.gmra.mxu0 %v634
  %v674 = vpop.f32.mrf.mxu0
  %v675 = vadd.f32 0.0, %v674
  %v676 = vpop.f32.mrf.mxu0
  %v677 = vadd.f32 0.0, %v676
  %678 = vmatmul.bf16.gmra.mxu0 %v637
  %v679 = vpop.f32.mrf.mxu0
  %v680 = vadd.f32 0.0, %v679
  %v681 = vpop.f32.mrf.mxu0
  %v682 = vadd.f32 0.0, %v681
  %683 = vmatmul.bf16.gmra.mxu0 %v640
  %v684 = vpop.f32.mrf.mxu0
  %v685 = vadd.f32 0.0, %v684
  %v686 = vpop.f32.mrf.mxu0
  %v687 = vadd.f32 0.0, %v686
  %688 = vmatmul.bf16.gmra.mxu0 %v643
  %v689 = vpop.f32.mrf.mxu0
  %v690 = vadd.f32 0.0, %v689
  %v691 = vpop.f32.mrf.mxu0
  %v692 = vadd.f32 0.0, %v691
  %693 = vdwg.mxu0
  %v694 = vadd.f32 %v469, %v655
  %v695 = vadd.f32 %v471, %v657
  %v696 = vadd.f32 %v474, %v660
  %v697 = vadd.f32 %v476, %v662
  %v698 = vadd.f32 %v479, %v665
  %v699 = vadd.f32 %v481, %v667
  %v700 = vadd.f32 %v484, %v670
  %v701 = vadd.f32 %v486, %v672
  %v702 = vadd.f32 %v489, %v675
  %v703 = vadd.f32 %v491, %v677
  %v704 = vadd.f32 %v494, %v680
  %v705 = vadd.f32 %v496, %v682
  %v706 = vadd.f32 %v499, %v685
  %v707 = vadd.f32 %v501, %v687
  %v708 = vadd.f32 %v504, %v690
  %v709 = vadd.f32 %v506, %v692
  %vm710 = vsmask.f32 2304
  %vm711 = vsmask.f32 6416
  %vm712 = vmor %vm710, %vm711
  %v713 = vrot.slane %v62, 5
  %v714 = vrot.slane %v65, 6
  %v715 = vor.u32 %v713, %v714
  %v716 = vrot.slane %v715, 4
  %v717 = vshrl.u32 %v19, 16
  %v719 = vrot.slane %v717, 5
  %v720 = vrot.slane %v71, 6
  %v721 = vor.u32 %v719, %v720
  %v722 = vsel %vm712, %v716, %v721
  %v723 = vrot.slane %v76, 5
  %v724 = vrot.slane %v79, 6
  %v725 = vor.u32 %v723, %v724
  %v726 = vrot.slane %v725, 4
  %v727 = vshrl.u32 %v21, 16
  %v729 = vrot.slane %v727, 5
  %v730 = vrot.slane %v85, 6
  %v731 = vor.u32 %v729, %v730
  %v732 = vsel %vm712, %v726, %v731
  %v733 = vrot.slane %v90, 5
  %v734 = vrot.slane %v93, 6
  %v735 = vor.u32 %v733, %v734
  %v736 = vrot.slane %v735, 4
  %v737 = vshrl.u32 %v23, 16
  %v739 = vrot.slane %v737, 5
  %v740 = vrot.slane %v99, 6
  %v741 = vor.u32 %v739, %v740
  %v742 = vsel %vm712, %v736, %v741
  %v743 = vrot.slane %v104, 5
  %v744 = vrot.slane %v107, 6
  %v745 = vor.u32 %v743, %v744
  %v746 = vrot.slane %v745, 4
  %v747 = vshrl.u32 %v25, 16
  %v749 = vrot.slane %v747, 5
  %v750 = vrot.slane %v113, 6
  %v751 = vor.u32 %v749, %v750
  %v752 = vsel %vm712, %v746, %v751
  %v753 = vrot.slane %v118, 5
  %v754 = vrot.slane %v121, 6
  %v755 = vor.u32 %v753, %v754
  %v756 = vrot.slane %v755, 4
  %v757 = vshrl.u32 %v27, 16
  %v759 = vrot.slane %v757, 5
  %v760 = vrot.slane %v127, 6
  %v761 = vor.u32 %v759, %v760
  %v762 = vsel %vm712, %v756, %v761
  %v763 = vrot.slane %v132, 5
  %v764 = vrot.slane %v135, 6
  %v765 = vor.u32 %v763, %v764
  %v766 = vrot.slane %v765, 4
  %v767 = vshrl.u32 %v29, 16
  %v769 = vrot.slane %v767, 5
  %v770 = vrot.slane %v141, 6
  %v771 = vor.u32 %v769, %v770
  %v772 = vsel %vm712, %v766, %v771
  %v773 = vrot.slane %v146, 5
  %v774 = vrot.slane %v149, 6
  %v775 = vor.u32 %v773, %v774
  %v776 = vrot.slane %v775, 4
  %v777 = vshrl.u32 %v31, 16
  %v779 = vrot.slane %v777, 5
  %v780 = vrot.slane %v155, 6
  %v781 = vor.u32 %v779, %v780
  %v782 = vsel %vm712, %v776, %v781
  %v783 = vrot.slane %v160, 5
  %v784 = vrot.slane %v163, 6
  %v785 = vor.u32 %v783, %v784
  %v786 = vrot.slane %v785, 4
  %v787 = vshrl.u32 %v33, 16
  %v789 = vrot.slane %v787, 5
  %v790 = vrot.slane %v169, 6
  %v791 = vor.u32 %v789, %v790
  %v792 = vsel %vm712, %v786, %v791
  %v793 = vrot.slane %v174, 5
  %v794 = vrot.slane %v177, 6
  %v795 = vor.u32 %v793, %v794
  %v796 = vrot.slane %v795, 4
  %v797 = vshrl.u32 %v35, 16
  %v799 = vrot.slane %v797, 5
  %v800 = vrot.slane %v183, 6
  %v801 = vor.u32 %v799, %v800
  %v802 = vsel %vm712, %v796, %v801
  %v803 = vrot.slane %v188, 5
  %v804 = vrot.slane %v191, 6
  %v805 = vor.u32 %v803, %v804
  %v806 = vrot.slane %v805, 4
  %v807 = vshrl.u32 %v37, 16
  %v809 = vrot.slane %v807, 5
  %v810 = vrot.slane %v197, 6
  %v811 = vor.u32 %v809, %v810
  %v812 = vsel %vm712, %v806, %v811
  %v813 = vrot.slane %v202, 5
  %v814 = vrot.slane %v205, 6
  %v815 = vor.u32 %v813, %v814
  %v816 = vrot.slane %v815, 4
  %v817 = vshrl.u32 %v39, 16
  %v819 = vrot.slane %v817, 5
  %v820 = vrot.slane %v211, 6
  %v821 = vor.u32 %v819, %v820
  %v822 = vsel %vm712, %v816, %v821
  %v823 = vrot.slane %v216, 5
  %v824 = vrot.slane %v219, 6
  %v825 = vor.u32 %v823, %v824
  %v826 = vrot.slane %v825, 4
  %v827 = vshrl.u32 %v41, 16
  %v829 = vrot.slane %v827, 5
  %v830 = vrot.slane %v225, 6
  %v831 = vor.u32 %v829, %v830
  %v832 = vsel %vm712, %v826, %v831
  %v833 = vrot.slane %v230, 5
  %v834 = vrot.slane %v233, 6
  %v835 = vor.u32 %v833, %v834
  %v836 = vrot.slane %v835, 4
  %v837 = vshrl.u32 %v43, 16
  %v839 = vrot.slane %v837, 5
  %v840 = vrot.slane %v239, 6
  %v841 = vor.u32 %v839, %v840
  %v842 = vsel %vm712, %v836, %v841
  %v843 = vrot.slane %v244, 5
  %v844 = vrot.slane %v247, 6
  %v845 = vor.u32 %v843, %v844
  %v846 = vrot.slane %v845, 4
  %v847 = vshrl.u32 %v45, 16
  %v849 = vrot.slane %v847, 5
  %v850 = vrot.slane %v253, 6
  %v851 = vor.u32 %v849, %v850
  %v852 = vsel %vm712, %v846, %v851
  %v853 = vrot.slane %v258, 5
  %v854 = vrot.slane %v261, 6
  %v855 = vor.u32 %v853, %v854
  %v856 = vrot.slane %v855, 4
  %v857 = vshrl.u32 %v47, 16
  %v859 = vrot.slane %v857, 5
  %v860 = vrot.slane %v267, 6
  %v861 = vor.u32 %v859, %v860
  %v862 = vsel %vm712, %v856, %v861
  %v863 = vrot.slane %v272, 5
  %v864 = vrot.slane %v275, 6
  %v865 = vor.u32 %v863, %v864
  %v866 = vrot.slane %v865, 4
  %v867 = vshrl.u32 %v49, 16
  %v869 = vrot.slane %v867, 5
  %v870 = vrot.slane %v281, 6
  %v871 = vor.u32 %v869, %v870
  %v872 = vsel %vm712, %v866, %v871
  %v873 = vunpack.c.l.b16 %v722
  %v874 = vunpack.c.l.b16 %v732
  %v875 = vunpack.c.l.b16 %v742
  %v876 = vunpack.c.l.b16 %v752
  %v877 = vunpack.c.l.b16 %v762
  %v878 = vunpack.c.l.b16 %v772
  %v879 = vunpack.c.l.b16 %v782
  %v880 = vunpack.c.l.b16 %v792
  %v881 = vunpack.c.l.b16 %v802
  %v882 = vunpack.c.l.b16 %v812
  %v883 = vunpack.c.l.b16 %v822
  %v884 = vunpack.c.l.b16 %v832
  %v885 = vunpack.c.l.b16 %v842
  %v886 = vunpack.c.l.b16 %v852
  %v887 = vunpack.c.l.b16 %v862
  %v888 = vunpack.c.l.b16 %v872
  %v889 = vpack.c.b16 %v874, %v873
  %v890 = vpack.c.b16 %v876, %v875
  %v891 = vpack.c.b16 %v878, %v877
  %v892 = vpack.c.b16 %v880, %v879
  %v893 = vpack.c.b16 %v882, %v881
  %v894 = vpack.c.b16 %v884, %v883
  %v895 = vpack.c.b16 %v886, %v885
  %v896 = vpack.c.b16 %v888, %v887
  %v899 = vunpack.c.l.b16 %v56
  %v900 = vunpack.c.l.b16 %v57
  %v901 = vpack.c.b16 %v900, %v899
  %v904 = vsel %vm315, %v889, 0
  %v907 = vsel %vm315, %v890, 0
  %v910 = vsel %vm315, %v891, 0
  %v913 = vsel %vm315, %v892, 0
  %v916 = vsel %vm315, %v893, 0
  %v919 = vsel %vm315, %v894, 0
  %v922 = vsel %vm315, %v895, 0
  %v925 = vsel %vm315, %v896, 0
  %927 = vmatpush.bf16.msra.mxu0 0
  %928 = vmatpush.bf16.msra.mxu0 0
  %929 = vmatpush.bf16.msra.mxu0 0
  %930 = vmatpush.bf16.msra.mxu0 0
  %931 = vmatpush.bf16.msra.mxu0 0
  %932 = vmatpush.bf16.msra.mxu0 0
  %933 = vmatpush.bf16.msra.mxu0 0
  %934 = vmatpush.bf16.msra.mxu0 %v901
  %935 = vmatmul.bf16.gmra.mxu0 %v904
  %v936 = vpop.f32.mrf.mxu0
  %v937 = vadd.f32 0.0, %v936
  %v938 = vpop.f32.mrf.mxu0
  %v939 = vadd.f32 0.0, %v938
  %940 = vmatmul.bf16.gmra.mxu0 %v907
  %v941 = vpop.f32.mrf.mxu0
  %v942 = vadd.f32 0.0, %v941
  %v943 = vpop.f32.mrf.mxu0
  %v944 = vadd.f32 0.0, %v943
  %945 = vmatmul.bf16.gmra.mxu0 %v910
  %v946 = vpop.f32.mrf.mxu0
  %v947 = vadd.f32 0.0, %v946
  %v948 = vpop.f32.mrf.mxu0
  %v949 = vadd.f32 0.0, %v948
  %950 = vmatmul.bf16.gmra.mxu0 %v913
  %v951 = vpop.f32.mrf.mxu0
  %v952 = vadd.f32 0.0, %v951
  %v953 = vpop.f32.mrf.mxu0
  %v954 = vadd.f32 0.0, %v953
  %955 = vmatmul.bf16.gmra.mxu0 %v916
  %v956 = vpop.f32.mrf.mxu0
  %v957 = vadd.f32 0.0, %v956
  %v958 = vpop.f32.mrf.mxu0
  %v959 = vadd.f32 0.0, %v958
  %960 = vmatmul.bf16.gmra.mxu0 %v919
  %v961 = vpop.f32.mrf.mxu0
  %v962 = vadd.f32 0.0, %v961
  %v963 = vpop.f32.mrf.mxu0
  %v964 = vadd.f32 0.0, %v963
  %965 = vmatmul.bf16.gmra.mxu0 %v922
  %v966 = vpop.f32.mrf.mxu0
  %v967 = vadd.f32 0.0, %v966
  %v968 = vpop.f32.mrf.mxu0
  %v969 = vadd.f32 0.0, %v968
  %970 = vmatmul.bf16.gmra.mxu0 %v925
  %v971 = vpop.f32.mrf.mxu0
  %v972 = vadd.f32 0.0, %v971
  %v973 = vpop.f32.mrf.mxu0
  %v974 = vadd.f32 0.0, %v973
  %975 = vdwg.mxu0
  %v976 = vadd.f32 %v694, %v937
  %v977 = vadd.f32 %v695, %v939
  %v978 = vadd.f32 %v696, %v942
  %v979 = vadd.f32 %v697, %v944
  %v980 = vadd.f32 %v698, %v947
  %v981 = vadd.f32 %v699, %v949
  %v982 = vadd.f32 %v700, %v952
  %v983 = vadd.f32 %v701, %v954
  %v984 = vadd.f32 %v702, %v957
  %v985 = vadd.f32 %v703, %v959
  %v986 = vadd.f32 %v704, %v962
  %v987 = vadd.f32 %v705, %v964
  %v988 = vadd.f32 %v706, %v967
  %v989 = vadd.f32 %v707, %v969
  %v990 = vadd.f32 %v708, %v972
  %v991 = vadd.f32 %v709, %v974
  %v992 = vld [vmem:[%s2] sm:$0x1]
  %v994 = vperm.slane %v992, 0
  %v996 = vadd.f32 %v976, %v994
  %v997 = vadd.f32 %v977, %v994
  %v998 = vadd.f32 %v978, %v994
  %v999 = vadd.f32 %v979, %v994
  %v1000 = vadd.f32 %v980, %v994
  %v1001 = vadd.f32 %v981, %v994
  %v1002 = vadd.f32 %v982, %v994
  %v1003 = vadd.f32 %v983, %v994
  %v1004 = vadd.f32 %v984, %v994
  %v1005 = vadd.f32 %v985, %v994
  %v1006 = vadd.f32 %v986, %v994
  %v1007 = vadd.f32 %v987, %v994
  %v1008 = vadd.f32 %v988, %v994
  %v1009 = vadd.f32 %v989, %v994
  %v1010 = vadd.f32 %v990, %v994
  %v1011 = vadd.f32 %v991, %v994
  %v1012 = vmax.f32 %v996, 0.0
  %v1013 = vmax.f32 %v997, 0.0
  %v1014 = vmax.f32 %v998, 0.0
  %v1015 = vmax.f32 %v999, 0.0
  %v1016 = vmax.f32 %v1000, 0.0
  %v1017 = vmax.f32 %v1001, 0.0
  %v1018 = vmax.f32 %v1002, 0.0
  %v1019 = vmax.f32 %v1003, 0.0
  %v1020 = vmax.f32 %v1004, 0.0
  %v1021 = vmax.f32 %v1005, 0.0
  %v1022 = vmax.f32 %v1006, 0.0
  %v1023 = vmax.f32 %v1007, 0.0
  %v1024 = vmax.f32 %v1008, 0.0
  %v1025 = vmax.f32 %v1009, 0.0
  %v1026 = vmax.f32 %v1010, 0.0
  %v1027 = vmax.f32 %v1011, 0.0
  %v1028 = vld [vmem:[%s3] sm:$0xff]
  %v1029 = vmul.f32 %v1012, %v1028
  %v1030 = vmul.f32 %v1013, %v1028
  %v1031 = vmul.f32 %v1014, %v1028
  %v1032 = vmul.f32 %v1015, %v1028
  %v1033 = vmul.f32 %v1016, %v1028
  %v1034 = vmul.f32 %v1017, %v1028
  %v1035 = vmul.f32 %v1018, %v1028
  %v1036 = vmul.f32 %v1019, %v1028
  %v1037 = vmul.f32 %v1020, %v1028
  %v1038 = vmul.f32 %v1021, %v1028
  %v1039 = vmul.f32 %v1022, %v1028
  %v1040 = vmul.f32 %v1023, %v1028
  %v1041 = vmul.f32 %v1024, %v1028
  %v1042 = vmul.f32 %v1025, %v1028
  %v1043 = vmul.f32 %v1026, %v1028
  %v1044 = vmul.f32 %v1027, %v1028
  %v1045 = vrot.slane %v1029, 4
  %v1046 = vmax.f32 %v1029, %v1045
  %v1047 = vrot.slane %v1046, 2
  %v1048 = vmax.f32 %v1046, %v1047
  %v1049 = vrot.slane %v1048, 1
  %v1050 = vmax.f32 %v1048, %v1049
  %v1051 = vrot.slane %v1030, 4
  %v1052 = vmax.f32 %v1030, %v1051
  %v1053 = vrot.slane %v1052, 2
  %v1054 = vmax.f32 %v1052, %v1053
  %v1055 = vrot.slane %v1054, 1
  %v1056 = vmax.f32 %v1054, %v1055
  %v1057 = vrot.slane %v1031, 4
  %v1058 = vmax.f32 %v1031, %v1057
  %v1059 = vrot.slane %v1058, 2
  %v1060 = vmax.f32 %v1058, %v1059
  %v1061 = vrot.slane %v1060, 1
  %v1062 = vmax.f32 %v1060, %v1061
  %v1063 = vrot.slane %v1032, 4
  %v1064 = vmax.f32 %v1032, %v1063
  %v1065 = vrot.slane %v1064, 2
  %v1066 = vmax.f32 %v1064, %v1065
  %v1067 = vrot.slane %v1066, 1
  %v1068 = vmax.f32 %v1066, %v1067
  %v1069 = vrot.slane %v1033, 4
  %v1070 = vmax.f32 %v1033, %v1069
  %v1071 = vrot.slane %v1070, 2
  %v1072 = vmax.f32 %v1070, %v1071
  %v1073 = vrot.slane %v1072, 1
  %v1074 = vmax.f32 %v1072, %v1073
  %v1075 = vrot.slane %v1034, 4
  %v1076 = vmax.f32 %v1034, %v1075
  %v1077 = vrot.slane %v1076, 2
  %v1078 = vmax.f32 %v1076, %v1077
  %v1079 = vrot.slane %v1078, 1
  %v1080 = vmax.f32 %v1078, %v1079
  %v1081 = vrot.slane %v1035, 4
  %v1082 = vmax.f32 %v1035, %v1081
  %v1083 = vrot.slane %v1082, 2
  %v1084 = vmax.f32 %v1082, %v1083
  %v1085 = vrot.slane %v1084, 1
  %v1086 = vmax.f32 %v1084, %v1085
  %v1087 = vrot.slane %v1036, 4
  %v1088 = vmax.f32 %v1036, %v1087
  %v1089 = vrot.slane %v1088, 2
  %v1090 = vmax.f32 %v1088, %v1089
  %v1091 = vrot.slane %v1090, 1
  %v1092 = vmax.f32 %v1090, %v1091
  %v1093 = vrot.slane %v1037, 4
  %v1094 = vmax.f32 %v1037, %v1093
  %v1095 = vrot.slane %v1094, 2
  %v1096 = vmax.f32 %v1094, %v1095
  %v1097 = vrot.slane %v1096, 1
  %v1098 = vmax.f32 %v1096, %v1097
  %v1099 = vrot.slane %v1038, 4
  %v1100 = vmax.f32 %v1038, %v1099
  %v1101 = vrot.slane %v1100, 2
  %v1102 = vmax.f32 %v1100, %v1101
  %v1103 = vrot.slane %v1102, 1
  %v1104 = vmax.f32 %v1102, %v1103
  %v1105 = vrot.slane %v1039, 4
  %v1106 = vmax.f32 %v1039, %v1105
  %v1107 = vrot.slane %v1106, 2
  %v1108 = vmax.f32 %v1106, %v1107
  %v1109 = vrot.slane %v1108, 1
  %v1110 = vmax.f32 %v1108, %v1109
  %v1111 = vrot.slane %v1040, 4
  %v1112 = vmax.f32 %v1040, %v1111
  %v1113 = vrot.slane %v1112, 2
  %v1114 = vmax.f32 %v1112, %v1113
  %v1115 = vrot.slane %v1114, 1
  %v1116 = vmax.f32 %v1114, %v1115
  %v1117 = vrot.slane %v1041, 4
  %v1118 = vmax.f32 %v1041, %v1117
  %v1119 = vrot.slane %v1118, 2
  %v1120 = vmax.f32 %v1118, %v1119
  %v1121 = vrot.slane %v1120, 1
  %v1122 = vmax.f32 %v1120, %v1121
  %v1123 = vrot.slane %v1042, 4
  %v1124 = vmax.f32 %v1042, %v1123
  %v1125 = vrot.slane %v1124, 2
  %v1126 = vmax.f32 %v1124, %v1125
  %v1127 = vrot.slane %v1126, 1
  %v1128 = vmax.f32 %v1126, %v1127
  %v1129 = vrot.slane %v1043, 4
  %v1130 = vmax.f32 %v1043, %v1129
  %v1131 = vrot.slane %v1130, 2
  %v1132 = vmax.f32 %v1130, %v1131
  %v1133 = vrot.slane %v1132, 1
  %v1134 = vmax.f32 %v1132, %v1133
  %v1135 = vrot.slane %v1044, 4
  %v1136 = vmax.f32 %v1044, %v1135
  %v1137 = vrot.slane %v1136, 2
  %v1138 = vmax.f32 %v1136, %v1137
  %v1139 = vrot.slane %v1138, 1
  %v1140 = vmax.f32 %v1138, %v1139
  %v1141 = vpack.c.bf16 %v1050, %v1050
  %v1142 = vpack.c.bf16 %v1056, %v1056
  %v1143 = vpack.c.bf16 %v1062, %v1062
  %v1144 = vpack.c.bf16 %v1068, %v1068
  %v1145 = vpack.c.bf16 %v1074, %v1074
  %v1146 = vpack.c.bf16 %v1080, %v1080
  %v1147 = vpack.c.bf16 %v1086, %v1086
  %v1148 = vpack.c.bf16 %v1092, %v1092
  %v1149 = vpack.c.bf16 %v1098, %v1098
  %v1150 = vpack.c.bf16 %v1104, %v1104
  %v1151 = vpack.c.bf16 %v1110, %v1110
  %v1152 = vpack.c.bf16 %v1116, %v1116
  %v1153 = vpack.c.bf16 %v1122, %v1122
  %v1154 = vpack.c.bf16 %v1128, %v1128
  %v1155 = vpack.c.bf16 %v1134, %v1134
  %v1156 = vpack.c.bf16 %v1140, %v1140
  %v1173 = vunpack.c.l.b16 %v1141
  %v1174 = vunpack.c.l.b16 %v1142
  %v1175 = vunpack.c.l.b16 %v1143
  %v1176 = vunpack.c.l.b16 %v1144
  %v1177 = vunpack.c.l.b16 %v1145
  %v1178 = vunpack.c.l.b16 %v1146
  %v1179 = vunpack.c.l.b16 %v1147
  %v1180 = vunpack.c.l.b16 %v1148
  %v1181 = vunpack.c.l.b16 %v1149
  %v1182 = vunpack.c.l.b16 %v1150
  %v1183 = vunpack.c.l.b16 %v1151
  %v1184 = vunpack.c.l.b16 %v1152
  %v1185 = vunpack.c.l.b16 %v1153
  %v1186 = vunpack.c.l.b16 %v1154
  %v1187 = vunpack.c.l.b16 %v1155
  %v1188 = vunpack.c.l.b16 %v1156
  %vm1189 = vcmask 1041409
  %v1190 = vsel %vm1189, %v1174, %v1173
  %vm1191 = vcmask 1042434
  %v1192 = vsel %vm1191, %v1175, %v1190
  %vm1193 = vcmask 1043459
  %v1194 = vsel %vm1193, %v1176, %v1192
  %vm1195 = vcmask 1044484
  %v1196 = vsel %vm1195, %v1177, %v1194
  %vm1197 = vcmask 1045509
  %v1198 = vsel %vm1197, %v1178, %v1196
  %vm1199 = vcmask 1046534
  %v1200 = vsel %vm1199, %v1179, %v1198
  %vm1201 = vcmask 1047559
  %v1202 = vsel %vm1201, %v1180, %v1200
  %v1203 = vsel %vm1189, %v1182, %v1181
  %v1204 = vsel %vm1191, %v1183, %v1203
  %v1205 = vsel %vm1193, %v1184, %v1204
  %v1206 = vsel %vm1195, %v1185, %v1205
  %v1207 = vsel %vm1197, %v1186, %v1206
  %v1208 = vsel %vm1199, %v1187, %v1207
  %v1209 = vsel %vm1201, %v1188, %v1208
  %v1210 = vpack.c.b16 %v1202, %v1202
  %v1211 = vpack.c.b16 %v1209, %v1209
  %1214 = vst [vmem:[%s4] sm:$0xf] %v1210
  %1215 = vst [vmem:[%s4 + $0x4] sm:$0xf] %v1211
  // Predicated region
  $region18: #{dcr_forward.5} parent=0 // pred_check
    _
  $region19: #{dcr_forward.5} parent=0 // pred_check_branch
    %1217 = sbr.rel (0) target = $region21
  $region20: #{dcr_forward.5} parent=0 // pred_region
    _
  $region21: #{dcr_forward.5} parent=0 // pred_fallthru
    _
  // Predicated region
  $region22: #{dcr_forward.5} parent=0 // pred_check
    _
  $region23: #{dcr_forward.5} parent=0 // pred_check_branch
    %1219 = sbr.rel (0) target = $region25
  $region24: #{dcr_forward.5} parent=0 // pred_region
    _
  $region25: #{dcr_forward.5} parent=0 // pred_fallthru
    _

// kernel: dcr_forward.6
$region0: #{dcr_forward.6}
  #allocation0 [shape = 'u32[]', space=smem, size = 0x4, offset = 0x4, fixed_abs, tag = 'smem constant byte address 0x4 - core index']
  #allocation1 [shape = 'u32[72,128]{1,0:T(1,128)}', space=vmem, size = 0x9000, scoped, tag = 'internal scratch']
  #allocation2 [shape = 'f32[6,8,96]{2,1,0:T(8,128)}', space=vmem, size = 0x6000, scoped, tag = 'scratch operand']
  #allocation3 [shape = 'f32[8,32]{1,0:T(8,128)}', space=vmem, size = 0x1000, scoped, tag = 'scratch operand']
  %s0 = inlined_call_operand.vmem [shape: bf16[6,8,24], index: 0, kind: input, shape index: {}]
  %s1 = inlined_call_operand.vmem [shape: f32[6,8,1], index: 1, kind: input, shape index: {}]
  %s2 = inlined_call_operand.vmem [shape: f32[8,32], index: 2, kind: input, shape index: {}]
  %s3 = inlined_call_operand.vmem [shape: bf16[24,96], index: 3, kind: input, shape index: {}]
  %s4 = inlined_call_operand.vmem [shape: bf16[32,96], index: 4, kind: input, shape index: {}]
  %s5 = inlined_call_operand.vmem [shape: f32[1,96], index: 5, kind: input, shape index: {}]
  %s6 = inlined_call_operand.vmem [shape: f32[1,32], index: 6, kind: input, shape index: {}]
  %s7 = inlined_call_operand.vmem [shape: f32[8,32], index: 7, kind: output, shape index: {}]
  %s8 = sld [smem:[#allocation0]]
  $region38: #{dcr_forward.6} parent=0
    _
  %s10 = ssub.s32 1, %s8
  %s11 = scalar_select 0, %s10, %s8
  // Predicated region
  $region2: #{dcr_forward.6} parent=0 // pred_check
    _
  $region3: #{dcr_forward.6} parent=0 // pred_check_branch
    %13 = sbr.rel (0) target = $region5
  $region4: #{dcr_forward.6} parent=0 // pred_region
    _
  $region5: #{dcr_forward.6} parent=0 // pred_fallthru
    _
  // Predicated region
  $region6: #{dcr_forward.6} parent=0 // pred_check
    _
  $region7: #{dcr_forward.6} parent=0 // pred_check_branch
    %15 = sbr.rel (0) target = $region9
  $region8: #{dcr_forward.6} parent=0 // pred_region
    _
  $region9: #{dcr_forward.6} parent=0 // pred_fallthru
    _
  // Predicated region
  $region10: #{dcr_forward.6} parent=0 // pred_check
    _
  $region11: #{dcr_forward.6} parent=0 // pred_check_branch
    %17 = sbr.rel (0) target = $region13
  $region12: #{dcr_forward.6} parent=0 // pred_region
    _
  $region13: #{dcr_forward.6} parent=0 // pred_fallthru
    _
  // Predicated region
  $region14: #{dcr_forward.6} parent=0 // pred_check
    _
  $region15: #{dcr_forward.6} parent=0 // pred_check_branch
    %19 = sbr.rel (0) target = $region17
  $region16: #{dcr_forward.6} parent=0 // pred_region
    _
  $region17: #{dcr_forward.6} parent=0 // pred_fallthru
    _
  // Predicated region
  $region18: #{dcr_forward.6} parent=0 // pred_check
    _
  $region19: #{dcr_forward.6} parent=0 // pred_check_branch
    %21 = sbr.rel (0) target = $region21
  $region20: #{dcr_forward.6} parent=0 // pred_region
    _
  $region21: #{dcr_forward.6} parent=0 // pred_fallthru
    _
  // Predicated region
  $region22: #{dcr_forward.6} parent=0 // pred_check
    _
  $region23: #{dcr_forward.6} parent=0 // pred_check_branch
    %23 = sbr.rel (0) target = $region25
  $region24: #{dcr_forward.6} parent=0 // pred_region
    _
  $region25: #{dcr_forward.6} parent=0 // pred_fallthru
    _
  // Predicated region
  $region26: #{dcr_forward.6} parent=0 // pred_check
    _
  $region27: #{dcr_forward.6} parent=0 // pred_check_branch
    %25 = sbr.rel (0) target = $region29
  $region28: #{dcr_forward.6} parent=0 // pred_region
    _
  $region29: #{dcr_forward.6} parent=0 // pred_fallthru
    _
  %v27 = vld [vmem:[%s0] sm:$0xf]
  %v28 = vld [vmem:[%s0 + $0x4] sm:$0xf]
  %v29 = vld [vmem:[%s0 + $0x8] sm:$0xf]
  %v30 = vld [vmem:[%s0 + $0xc] sm:$0xf]
  %v31 = vld [vmem:[%s0 + $0x10] sm:$0xf]
  %v32 = vld [vmem:[%s0 + $0x14] sm:$0xf]
  %v33 = vld [vmem:[%s3] sm:$0xf]
  %v34 = vld [vmem:[%s3 + $0x4] sm:$0xf]
  %v35 = vld [vmem:[%s3 + $0x8] sm:$0xf]
  %v36 = vld [vmem:[%s5] sm:$0x1]
  %v38 = vperm.slane %v36, 0
  %v46 = vunpack.c.l.b16 %v27
  %v47 = vunpack.c.l.b16 %v28
  %v48 = vunpack.c.l.b16 %v29
  %v49 = vunpack.c.l.b16 %v30
  %v50 = vunpack.c.l.b16 %v31
  %v51 = vunpack.c.l.b16 %v32
  %v52 = vpack.c.b16 %v47, %v46
  %v53 = vpack.c.b16 %v49, %v48
  %v54 = vpack.c.b16 %v51, %v50
  %v58 = vunpack.c.l.b16 %v33
  %v59 = vunpack.c.l.b16 %v34
  %v60 = vunpack.c.l.b16 %v35
  %v61 = vpack.c.b16 %v59, %v58
  %v62 = vpack.c.b16 %v60, %v60
  %vm64 = vcmask 195584
  %v66 = vsel %vm64, %v52, 0
  %v69 = vsel %vm64, %v53, 0
  %v72 = vsel %vm64, %v54, 0
  %vm74 = vcmask 1043456
  %v76 = vsel %vm74, %v62, 0
  %78 = vmatpush.bf16.msra.mxu0 0
  %79 = vmatpush.bf16.msra.mxu0 0
  %80 = vmatpush.bf16.msra.mxu0 0
  %81 = vmatpush.bf16.msra.mxu0 0
  %82 = vmatpush.bf16.msra.mxu0 0
  %83 = vmatpush.bf16.msra.mxu0 0
  %84 = vmatpush.bf16.msra.mxu0 %v76
  %85 = vmatpush.bf16.msra.mxu0 %v61
  %86 = vmatmul.bf16.gmra.mxu0 %v66
  %v87 = vpop.f32.mrf.mxu0
  %v88 = vadd.f32 %v38, %v87
  %v89 = vpop.f32.mrf.mxu0
  %v90 = vadd.f32 %v38, %v89
  %91 = vmatmul.bf16.gmra.mxu0 %v69
  %v92 = vpop.f32.mrf.mxu0
  %v93 = vadd.f32 %v38, %v92
  %v94 = vpop.f32.mrf.mxu0
  %v95 = vadd.f32 %v38, %v94
  %96 = vmatmul.bf16.gmra.mxu0 %v72
  %v97 = vpop.f32.mrf.mxu0
  %v98 = vadd.f32 %v38, %v97
  %v99 = vpop.f32.mrf.mxu0
  %v100 = vadd.f32 %v38, %v99
  %101 = vdwg.mxu0
  %vm102 = vcmask 785408
  %103 = vst.msk [vmem:[#allocation2] sm:$0xff] %vm102, %v88
  %104 = vst.msk [vmem:[#allocation2 + $0x8] sm:$0xff] %vm102, %v90
  %105 = vst.msk [vmem:[#allocation2 + $0x10] sm:$0xff] %vm102, %v93
  %106 = vst.msk [vmem:[#allocation2 + $0x18] sm:$0xff] %vm102, %v95
  %107 = vst.msk [vmem:[#allocation2 + $0x20] sm:$0xff] %vm102, %v98
  %108 = vst.msk [vmem:[#allocation2 + $0x28] sm:$0xff] %vm102, %v100
  %v109 = vld [vmem:[%s4] sm:$0xf]
  %v110 = vld [vmem:[%s4 + $0x4] sm:$0xf]
  %v111 = vld [vmem:[%s4 + $0x8] sm:$0xf]
  %v112 = vld [vmem:[%s4 + $0xc] sm:$0xf]
  %v113 = vld [vmem:[%s6] sm:$0x1]
  %v114 = vld [vmem:[%s2] sm:$0xff]
  %vm115 = vcmask 261120
  %116 = vst.msk [vmem:[#allocation3] sm:$0xff] %vm115, %v114
  %v117 = vld [vmem:[#allocation3] sm:$0xff]
  %v118 = vpack.c.bf16 %v117, %v117
  %v123 = vunpack.c.l.b16 %v109
  %v124 = vunpack.c.l.b16 %v110
  %v125 = vunpack.c.l.b16 %v111
  %v126 = vunpack.c.l.b16 %v112
  %v127 = vpack.c.b16 %v124, %v123
  %v128 = vpack.c.b16 %v126, %v125
  %v132 = vsel %vm115, %v118, 0
  %134 = vmatpush.bf16.msra.mxu0 0
  %135 = vmatpush.bf16.msra.mxu0 0
  %136 = vmatpush.bf16.msra.mxu0 0
  %137 = vmatpush.bf16.msra.mxu0 0
  %138 = vmatpush.bf16.msra.mxu0 0
  %139 = vmatpush.bf16.msra.mxu0 0
  %140 = vmatpush.bf16.msra.mxu0 %v128
  %141 = vmatpush.bf16.msra.mxu0 %v127
  %142 = vmatmul.bf16.gmra.mxu0 %v132
  %v143 = vpop.f32.mrf.mxu0
  %v144 = vadd.f32 0.0, %v143
  %v145 = vpop.f32.mrf.mxu0
  %146 = vdwg.mxu0
  %v147 = vld [vmem:[#allocation2] sm:$0xff]
  %v148 = vadd.f32 %v147, %v144
  %v149 = vxor.u32 %v148, 2147483648
  %v150 = vmul.f32 %v149, 1.442695
  %v151 = vpow.pop %v150
  %v152 = vadd.f32 %v151, 1.0
  %v153 = vrcp.pop %v152
  %v154 = vmul.f32 %v152, %v153
  %v155 = vsub.f32 1.0, %v154
  %v156 = vmul.f32 %v153, %v155
  %v157 = vadd.f32 %v153, %v156
  %vm158 = vweird.f32 %v152
  %vm159 = vweird.f32 %v153
  %vm160 = vmor %vm158, %vm159
  %v161 = vsel %vm160, %v153, %v157
  %v162 = vand.u32 2147483647, %v152
  %vm163 = vcmp.eq.f32.partialorder %v162, 8.507059e+37
  %v164 = vand.u32 %v152, 2147483648
  %v165 = vor.u32 1.1754944e-38, %v164
  %v166 = vsel %vm163, %v165, %v161
  %v167 = vmul.f32 1.0, %v166
  %v169 = vperm.slane %v113, 0
  %170 = vrot.lane.b32.xlu0 %v169, 64
  %v171 = vpop.permute.xlu0 %170
  %v173 = vadd.f32 %v144, %v171
  %175 = vrot.lane.b32.xlu0 %v173, 64
  %v176 = vpop.permute.xlu0 %175
  %v178 = vmul.f32 %v167, %v176
  %180 = vrot.lane.b32.xlu0 %v178, 64
  %v181 = vpop.permute.xlu0 %180
  %v183 = vadd.f32 %v147, %v181
  %v184 = vtanh.pop %v183
  %v185 = vsub.f32 1.0, %v167
  %187 = vrot.lane.b32.xlu0 %v184, 96
  %v188 = vpop.permute.xlu0 %187
  %v190 = vmul.f32 %v185, %v188
  %192 = vrot.lane.b32.xlu0 %v117, 32
  %v193 = vpop.permute.xlu0 %192
  %v195 = vmul.f32 %v167, %v193
  %v196 = vadd.f32 %v190, %v195
  %v197 = vld [vmem:[%s1] sm:$0xff]
  %199 = vset.pattern.permute.xlu0 0
  %200 = vperm.xlu0 %199, %v197
  %v201 = vpop.permute.xlu0 %200
  %v203 = vmul.f32 %v201, %v196
  %v204 = vsub.f32 1.0, %v197
  %206 = vset.pattern.permute.xlu0 0
  %207 = vperm.xlu0 %206, %v204
  %v208 = vpop.permute.xlu0 %207
  %v210 = vmul.f32 %v208, %v117
  %212 = vrot.lane.b32.xlu0 %v210, 32
  %v213 = vpop.permute.xlu0 %212
  %v215 = vadd.f32 %v203, %v213
  %217 = vrot.lane.b32.xlu0 %v215, 96
  %v218 = vpop.permute.xlu0 %217
  %220 = vst.msk [vmem:[#allocation3] sm:$0xff] %vm115, %v218
  %v221 = vld [vmem:[#allocation3] sm:$0xff]
  %v222 = vpack.c.bf16 %v221, %v221
  %v224 = vsel %vm115, %v222, 0
  %226 = vmatpush.bf16.msra.mxu0 0
  %227 = vmatpush.bf16.msra.mxu0 0
  %228 = vmatpush.bf16.msra.mxu0 0
  %229 = vmatpush.bf16.msra.mxu0 0
  %230 = vmatpush.bf16.msra.mxu0 0
  %231 = vmatpush.bf16.msra.mxu0 0
  %232 = vmatpush.bf16.msra.mxu0 %v128
  %233 = vmatpush.bf16.msra.mxu0 %v127
  %234 = vmatmul.bf16.gmra.mxu0 %v224
  %v235 = vpop.f32.mrf.mxu0
  %v236 = vadd.f32 0.0, %v235
  %v237 = vpop.f32.mrf.mxu0
  %238 = vdwg.mxu0
  %s239 = scalar_lea.vmem [#allocation2], 8
  %v240 = vld [vmem:[%s239] sm:$0xff]
  %v241 = vadd.f32 %v240, %v236
  %v242 = vxor.u32 %v241, 2147483648
  %v243 = vmul.f32 %v242, 1.442695
  %v244 = vpow.pop %v243
  %v245 = vadd.f32 %v244, 1.0
  %v246 = vrcp.pop %v245
  %v247 = vmul.f32 %v245, %v246
  %v248 = vsub.f32 1.0, %v247
  %v249 = vmul.f32 %v246, %v248
  %v250 = vadd.f32 %v246, %v249
  %vm251 = vweird.f32 %v245
  %vm252 = vweird.f32 %v246
  %vm253 = vmor %vm251, %vm252
  %v254 = vsel %vm253, %v246, %v250
  %v255 = vand.u32 2147483647, %v245
  %vm256 = vcmp.eq.f32.partialorder %v255, 8.507059e+37
  %v257 = vand.u32 %v245, 2147483648
  %v258 = vor.u32 1.1754944e-38, %v257
  %v259 = vsel %vm256, %v258, %v254
  %v260 = vmul.f32 1.0, %v259
  %v261 = vadd.f32 %v236, %v171
  %263 = vrot.lane.b32.xlu0 %v261, 64
  %v264 = vpop.permute.xlu0 %263
  %v266 = vmul.f32 %v260, %v264
  %268 = vrot.lane.b32.xlu0 %v266, 64
  %v269 = vpop.permute.xlu0 %268
  %v271 = vadd.f32 %v240, %v269
  %v272 = vtanh.pop %v271
  %v273 = vsub.f32 1.0, %v260
  %275 = vrot.lane.b32.xlu0 %v272, 96
  %v276 = vpop.permute.xlu0 %275
  %v278 = vmul.f32 %v273, %v276
  %280 = vrot.lane.b32.xlu0 %v221, 32
  %v281 = vpop.permute.xlu0 %280
  %v283 = vmul.f32 %v260, %v281
  %v284 = vadd.f32 %v278, %v283
  %s285 = scalar_lea.vmem %s1, 8
  %v286 = vld [vmem:[%s285] sm:$0xff]
  %288 = vset.pattern.permute.xlu0 0
  %289 = vperm.xlu0 %288, %v286
  %v290 = vpop.permute.xlu0 %289
  %v292 = vmul.f32 %v290, %v284
  %v293 = vsub.f32 1.0, %v286
  %295 = vset.pattern.permute.xlu0 0
  %296 = vperm.xlu0 %295, %v293
  %v297 = vpop.permute.xlu0 %296
  %v299 = vmul.f32 %v297, %v221
  %301 = vrot.lane.b32.xlu0 %v299, 32
  %v302 = vpop.permute.xlu0 %301
  %v304 = vadd.f32 %v292, %v302
  %306 = vrot.lane.b32.xlu0 %v304, 96
  %v307 = vpop.permute.xlu0 %306
  %309 = vst.msk [vmem:[#allocation3] sm:$0xff] %vm115, %v307
  %v310 = vld [vmem:[#allocation3] sm:$0xff]
  %v311 = vpack.c.bf16 %v310, %v310
  %v313 = vsel %vm115, %v311, 0
  %315 = vmatpush.bf16.msra.mxu0 0
  %316 = vmatpush.bf16.msra.mxu0 0
  %317 = vmatpush.bf16.msra.mxu0 0
  %318 = vmatpush.bf16.msra.mxu0 0
  %319 = vmatpush.bf16.msra.mxu0 0
  %320 = vmatpush.bf16.msra.mxu0 0
  %321 = vmatpush.bf16.msra.mxu0 %v128
  %322 = vmatpush.bf16.msra.mxu0 %v127
  %323 = vmatmul.bf16.gmra.mxu0 %v313
  %v324 = vpop.f32.mrf.mxu0
  %v325 = vadd.f32 0.0, %v324
  %v326 = vpop.f32.mrf.mxu0
  %327 = vdwg.mxu0
  %s328 = scalar_lea.vmem [#allocation2], 16
  %v329 = vld [vmem:[%s328] sm:$0xff]
  %v330 = vadd.f32 %v329, %v325
  %v331 = vxor.u32 %v330, 2147483648
  %v332 = vmul.f32 %v331, 1.442695
  %v333 = vpow.pop %v332
  %v334 = vadd.f32 %v333, 1.0
  %v335 = vrcp.pop %v334
  %v336 = vmul.f32 %v334, %v335
  %v337 = vsub.f32 1.0, %v336
  %v338 = vmul.f32 %v335, %v337
  %v339 = vadd.f32 %v335, %v338
  %vm340 = vweird.f32 %v334
  %vm341 = vweird.f32 %v335
  %vm342 = vmor %vm340, %vm341
  %v343 = vsel %vm342, %v335, %v339
  %v344 = vand.u32 2147483647, %v334
  %vm345 = vcmp.eq.f32.partialorder %v344, 8.507059e+37
  %v346 = vand.u32 %v334, 2147483648
  %v347 = vor.u32 1.1754944e-38, %v346
  %v348 = vsel %vm345, %v347, %v343
  %v349 = vmul.f32 1.0, %v348
  %v350 = vadd.f32 %v325, %v171
  %352 = vrot.lane.b32.xlu0 %v350, 64
  %v353 = vpop.permute.xlu0 %352
  %v355 = vmul.f32 %v349, %v353
  %357 = vrot.lane.b32.xlu0 %v355, 64
  %v358 = vpop.permute.xlu0 %357
  %v360 = vadd.f32 %v329, %v358
  %v361 = vtanh.pop %v360
  %v362 = vsub.f32 1.0, %v349
  %364 = vrot.lane.b32.xlu0 %v361, 96
  %v365 = vpop.permute.xlu0 %364
  %v367 = vmul.f32 %v362, %v365
  %369 = vrot.lane.b32.xlu0 %v310, 32
  %v370 = vpop.permute.xlu0 %369
  %v372 = vmul.f32 %v349, %v370
  %v373 = vadd.f32 %v367, %v372
  %s374 = scalar_lea.vmem %s1, 16
  %v375 = vld [vmem:[%s374] sm:$0xff]
  %377 = vset.pattern.permute.xlu0 0
  %378 = vperm.xlu0 %377, %v375
  %v379 = vpop.permute.xlu0 %378
  %v381 = vmul.f32 %v379, %v373
  %v382 = vsub.f32 1.0, %v375
  %384 = vset.pattern.permute.xlu0 0
  %385 = vperm.xlu0 %384, %v382
  %v386 = vpop.permute.xlu0 %385
  %v388 = vmul.f32 %v386, %v310
  %390 = vrot.lane.b32.xlu0 %v388, 32
  %v391 = vpop.permute.xlu0 %390
  %v393 = vadd.f32 %v381, %v391
  %395 = vrot.lane.b32.xlu0 %v393, 96
  %v396 = vpop.permute.xlu0 %395
  %398 = vst.msk [vmem:[#allocation3] sm:$0xff] %vm115, %v396
  %v399 = vld [vmem:[#allocation3] sm:$0xff]
  %v400 = vpack.c.bf16 %v399, %v399
  %v402 = vsel %vm115, %v400, 0
  %404 = vmatpush.bf16.msra.mxu0 0
  %405 = vmatpush.bf16.msra.mxu0 0
  %406 = vmatpush.bf16.msra.mxu0 0
  %407 = vmatpush.bf16.msra.mxu0 0
  %408 = vmatpush.bf16.msra.mxu0 0
  %409 = vmatpush.bf16.msra.mxu0 0
  %410 = vmatpush.bf16.msra.mxu0 %v128
  %411 = vmatpush.bf16.msra.mxu0 %v127
  %412 = vmatmul.bf16.gmra.mxu0 %v402
  %v413 = vpop.f32.mrf.mxu0
  %v414 = vadd.f32 0.0, %v413
  %v415 = vpop.f32.mrf.mxu0
  %416 = vdwg.mxu0
  %s417 = scalar_lea.vmem [#allocation2], 24
  %v418 = vld [vmem:[%s417] sm:$0xff]
  %v419 = vadd.f32 %v418, %v414
  %v420 = vxor.u32 %v419, 2147483648
  %v421 = vmul.f32 %v420, 1.442695
  %v422 = vpow.pop %v421
  %v423 = vadd.f32 %v422, 1.0
  %v424 = vrcp.pop %v423
  %v425 = vmul.f32 %v423, %v424
  %v426 = vsub.f32 1.0, %v425
  %v427 = vmul.f32 %v424, %v426
  %v428 = vadd.f32 %v424, %v427
  %vm429 = vweird.f32 %v423
  %vm430 = vweird.f32 %v424
  %vm431 = vmor %vm429, %vm430
  %v432 = vsel %vm431, %v424, %v428
  %v433 = vand.u32 2147483647, %v423
  %vm434 = vcmp.eq.f32.partialorder %v433, 8.507059e+37
  %v435 = vand.u32 %v423, 2147483648
  %v436 = vor.u32 1.1754944e-38, %v435
  %v437 = vsel %vm434, %v436, %v432
  %v438 = vmul.f32 1.0, %v437
  %v439 = vadd.f32 %v414, %v171
  %441 = vrot.lane.b32.xlu0 %v439, 64
  %v442 = vpop.permute.xlu0 %441
  %v444 = vmul.f32 %v438, %v442
  %446 = vrot.lane.b32.xlu0 %v444, 64
  %v447 = vpop.permute.xlu0 %446
  %v449 = vadd.f32 %v418, %v447
  %v450 = vtanh.pop %v449
  %v451 = vsub.f32 1.0, %v438
  %453 = vrot.lane.b32.xlu0 %v450, 96
  %v454 = vpop.permute.xlu0 %453
  %v456 = vmul.f32 %v451, %v454
  %458 = vrot.lane.b32.xlu0 %v399, 32
  %v459 = vpop.permute.xlu0 %458
  %v461 = vmul.f32 %v438, %v459
  %v462 = vadd.f32 %v456, %v461
  %s463 = scalar_lea.vmem %s1, 24
  %v464 = vld [vmem:[%s463] sm:$0xff]
  %466 = vset.pattern.permute.xlu0 0
  %467 = vperm.xlu0 %466, %v464
  %v468 = vpop.permute.xlu0 %467
  %v470 = vmul.f32 %v468, %v462
  %v471 = vsub.f32 1.0, %v464
  %473 = vset.pattern.permute.xlu0 0
  %474 = vperm.xlu0 %473, %v471
  %v475 = vpop.permute.xlu0 %474
  %v477 = vmul.f32 %v475, %v399
  %479 = vrot.lane.b32.xlu0 %v477, 32
  %v480 = vpop.permute.xlu0 %479
  %v482 = vadd.f32 %v470, %v480
  %484 = vrot.lane.b32.xlu0 %v482, 96
  %v485 = vpop.permute.xlu0 %484
  %487 = vst.msk [vmem:[#allocation3] sm:$0xff] %vm115, %v485
  %v488 = vld [vmem:[#allocation3] sm:$0xff]
  %v489 = vpack.c.bf16 %v488, %v488
  %v491 = vsel %vm115, %v489, 0
  %493 = vmatpush.bf16.msra.mxu0 0
  %494 = vmatpush.bf16.msra.mxu0 0
  %495 = vmatpush.bf16.msra.mxu0 0
  %496 = vmatpush.bf16.msra.mxu0 0
  %497 = vmatpush.bf16.msra.mxu0 0
  %498 = vmatpush.bf16.msra.mxu0 0
  %499 = vmatpush.bf16.msra.mxu0 %v128
  %500 = vmatpush.bf16.msra.mxu0 %v127
  %501 = vmatmul.bf16.gmra.mxu0 %v491
  %v502 = vpop.f32.mrf.mxu0
  %v503 = vadd.f32 0.0, %v502
  %v504 = vpop.f32.mrf.mxu0
  %505 = vdwg.mxu0
  %s506 = scalar_lea.vmem [#allocation2], 32
  %v507 = vld [vmem:[%s506] sm:$0xff]
  %v508 = vadd.f32 %v507, %v503
  %v509 = vxor.u32 %v508, 2147483648
  %v510 = vmul.f32 %v509, 1.442695
  %v511 = vpow.pop %v510
  %v512 = vadd.f32 %v511, 1.0
  %v513 = vrcp.pop %v512
  %v514 = vmul.f32 %v512, %v513
  %v515 = vsub.f32 1.0, %v514
  %v516 = vmul.f32 %v513, %v515
  %v517 = vadd.f32 %v513, %v516
  %vm518 = vweird.f32 %v512
  %vm519 = vweird.f32 %v513
  %vm520 = vmor %vm518, %vm519
  %v521 = vsel %vm520, %v513, %v517
  %v522 = vand.u32 2147483647, %v512
  %vm523 = vcmp.eq.f32.partialorder %v522, 8.507059e+37
  %v524 = vand.u32 %v512, 2147483648
  %v525 = vor.u32 1.1754944e-38, %v524
  %v526 = vsel %vm523, %v525, %v521
  %v527 = vmul.f32 1.0, %v526
  %v528 = vadd.f32 %v503, %v171
  %530 = vrot.lane.b32.xlu0 %v528, 64
  %v531 = vpop.permute.xlu0 %530
  %v533 = vmul.f32 %v527, %v531
  %535 = vrot.lane.b32.xlu0 %v533, 64
  %v536 = vpop.permute.xlu0 %535
  %v538 = vadd.f32 %v507, %v536
  %v539 = vtanh.pop %v538
  %v540 = vsub.f32 1.0, %v527
  %542 = vrot.lane.b32.xlu0 %v539, 96
  %v543 = vpop.permute.xlu0 %542
  %v545 = vmul.f32 %v540, %v543
  %547 = vrot.lane.b32.xlu0 %v488, 32
  %v548 = vpop.permute.xlu0 %547
  %v550 = vmul.f32 %v527, %v548
  %v551 = vadd.f32 %v545, %v550
  %s552 = scalar_lea.vmem %s1, 32
  %v553 = vld [vmem:[%s552] sm:$0xff]
  %555 = vset.pattern.permute.xlu0 0
  %556 = vperm.xlu0 %555, %v553
  %v557 = vpop.permute.xlu0 %556
  %v559 = vmul.f32 %v557, %v551
  %v560 = vsub.f32 1.0, %v553
  %562 = vset.pattern.permute.xlu0 0
  %563 = vperm.xlu0 %562, %v560
  %v564 = vpop.permute.xlu0 %563
  %v566 = vmul.f32 %v564, %v488
  %568 = vrot.lane.b32.xlu0 %v566, 32
  %v569 = vpop.permute.xlu0 %568
  %v571 = vadd.f32 %v559, %v569
  %573 = vrot.lane.b32.xlu0 %v571, 96
  %v574 = vpop.permute.xlu0 %573
  %576 = vst.msk [vmem:[#allocation3] sm:$0xff] %vm115, %v574
  %v577 = vld [vmem:[#allocation3] sm:$0xff]
  %v578 = vpack.c.bf16 %v577, %v577
  %v580 = vsel %vm115, %v578, 0
  %582 = vmatpush.bf16.msra.mxu0 0
  %583 = vmatpush.bf16.msra.mxu0 0
  %584 = vmatpush.bf16.msra.mxu0 0
  %585 = vmatpush.bf16.msra.mxu0 0
  %586 = vmatpush.bf16.msra.mxu0 0
  %587 = vmatpush.bf16.msra.mxu0 0
  %588 = vmatpush.bf16.msra.mxu0 %v128
  %589 = vmatpush.bf16.msra.mxu0 %v127
  %590 = vmatmul.bf16.gmra.mxu0 %v580
  %v591 = vpop.f32.mrf.mxu0
  %v592 = vadd.f32 0.0, %v591
  %v593 = vpop.f32.mrf.mxu0
  %594 = vdwg.mxu0
  %s595 = scalar_lea.vmem [#allocation2], 40
  %v596 = vld [vmem:[%s595] sm:$0xff]
  %v597 = vadd.f32 %v596, %v592
  %v598 = vxor.u32 %v597, 2147483648
  %v599 = vmul.f32 %v598, 1.442695
  %v600 = vpow.pop %v599
  %v601 = vadd.f32 %v600, 1.0
  %v602 = vrcp.pop %v601
  %v603 = vmul.f32 %v601, %v602
  %v604 = vsub.f32 1.0, %v603
  %v605 = vmul.f32 %v602, %v604
  %v606 = vadd.f32 %v602, %v605
  %vm607 = vweird.f32 %v601
  %vm608 = vweird.f32 %v602
  %vm609 = vmor %vm607, %vm608
  %v610 = vsel %vm609, %v602, %v606
  %v611 = vand.u32 2147483647, %v601
  %vm612 = vcmp.eq.f32.partialorder %v611, 8.507059e+37
  %v613 = vand.u32 %v601, 2147483648
  %v614 = vor.u32 1.1754944e-38, %v613
  %v615 = vsel %vm612, %v614, %v610
  %v616 = vmul.f32 1.0, %v615
  %v617 = vadd.f32 %v592, %v171
  %619 = vrot.lane.b32.xlu0 %v617, 64
  %v620 = vpop.permute.xlu0 %619
  %v622 = vmul.f32 %v616, %v620
  %624 = vrot.lane.b32.xlu0 %v622, 64
  %v625 = vpop.permute.xlu0 %624
  %v627 = vadd.f32 %v596, %v625
  %v628 = vtanh.pop %v627
  %v629 = vsub.f32 1.0, %v616
  %631 = vrot.lane.b32.xlu0 %v628, 96
  %v632 = vpop.permute.xlu0 %631
  %v634 = vmul.f32 %v629, %v632
  %636 = vrot.lane.b32.xlu0 %v577, 32
  %v637 = vpop.permute.xlu0 %636
  %v639 = vmul.f32 %v616, %v637
  %v640 = vadd.f32 %v634, %v639
  %s641 = scalar_lea.vmem %s1, 40
  %v642 = vld [vmem:[%s641] sm:$0xff]
  %644 = vset.pattern.permute.xlu0 0
  %645 = vperm.xlu0 %644, %v642
  %v646 = vpop.permute.xlu0 %645
  %v648 = vmul.f32 %v646, %v640
  %v649 = vsub.f32 1.0, %v642
  %651 = vset.pattern.permute.xlu0 0
  %652 = vperm.xlu0 %651, %v649
  %v653 = vpop.permute.xlu0 %652
  %v655 = vmul.f32 %v653, %v577
  %657 = vrot.lane.b32.xlu0 %v655, 32
  %v658 = vpop.permute.xlu0 %657
  %v660 = vadd.f32 %v648, %v658
  %662 = vrot.lane.b32.xlu0 %v660, 96
  %v663 = vpop.permute.xlu0 %662
  %665 = vst.msk [vmem:[#allocation3] sm:$0xff] %vm115, %v663
  %v666 = vld [vmem:[#allocation3] sm:$0xff]
  %667 = vst.msk [vmem:[%s7] sm:$0xff] %vm115, %v666
  // Predicated region
  $region30: #{dcr_forward.6} parent=0 // pred_check
    _
  $region31: #{dcr_forward.6} parent=0 // pred_check_branch
    %669 = sbr.rel (0) target = $region33
  $region32: #{dcr_forward.6} parent=0 // pred_region
    _
  $region33: #{dcr_forward.6} parent=0 // pred_fallthru
    _
  // Predicated region
  $region34: #{dcr_forward.6} parent=0 // pred_check
    _
  $region35: #{dcr_forward.6} parent=0 // pred_check_branch
    %671 = sbr.rel (0) target = $region37
  $region36: #{dcr_forward.6} parent=0 // pred_region
    _
  $region37: #{dcr_forward.6} parent=0 // pred_fallthru
    _

// kernel: dcr_forward.9
$region0: #{dcr_forward.9}
  #allocation0 [shape = 'u32[]', space=smem, size = 0x4, offset = 0x4, fixed_abs, tag = 'smem constant byte address 0x4 - core index']
  #allocation1 [shape = 'u32[72,128]{1,0:T(1,128)}', space=vmem, size = 0x9000, scoped, tag = 'internal scratch']
  %s0 = inlined_call_operand.vmem [shape: f32[8,4,32], index: 0, kind: input, shape index: {}]
  %s1 = inlined_call_operand.vmem [shape: bf16[8,4,4], index: 1, kind: input, shape index: {}]
  %s2 = inlined_call_operand.vmem [shape: bf16[8,4,4], index: 2, kind: input, shape index: {}]
  %s3 = inlined_call_operand.vmem [shape: f32[8,4], index: 3, kind: input, shape index: {}]
  %s4 = inlined_call_operand.vmem [shape: f32[8,32], index: 4, kind: input, shape index: {}]
  %s5 = inlined_call_operand.vmem [shape: bf16[2,32,160], index: 5, kind: input, shape index: {}]
  %s6 = inlined_call_operand.vmem [shape: f32[2,160], index: 6, kind: input, shape index: {}]
  %s7 = inlined_call_operand.vmem [shape: f32[32,32], index: 7, kind: input, shape index: {}]
  %s8 = inlined_call_operand.vmem [shape: f32[32,32], index: 8, kind: input, shape index: {}]
  %s9 = inlined_call_operand.vmem [shape: f32[1,32], index: 9, kind: input, shape index: {}]
  %s10 = inlined_call_operand.vmem [shape: f32[32,16], index: 10, kind: input, shape index: {}]
  %s11 = inlined_call_operand.vmem [shape: f32[1,16], index: 11, kind: input, shape index: {}]
  %s12 = inlined_call_operand.vmem [shape: f32[16,128], index: 12, kind: input, shape index: {}]
  %s13 = inlined_call_operand.vmem [shape: f32[1,128], index: 13, kind: input, shape index: {}]
  %s14 = inlined_call_operand.vmem [shape: f32[8,128], index: 14, kind: output, shape index: {}]
  %s15 = sld [smem:[#allocation0]]
  $region66: #{dcr_forward.9} parent=0
    _
  %s17 = ssub.s32 1, %s15
  %s18 = scalar_select 0, %s17, %s15
  // Predicated region
  $region2: #{dcr_forward.9} parent=0 // pred_check
    _
  $region3: #{dcr_forward.9} parent=0 // pred_check_branch
    %20 = sbr.rel (0) target = $region5
  $region4: #{dcr_forward.9} parent=0 // pred_region
    _
  $region5: #{dcr_forward.9} parent=0 // pred_fallthru
    _
  // Predicated region
  $region6: #{dcr_forward.9} parent=0 // pred_check
    _
  $region7: #{dcr_forward.9} parent=0 // pred_check_branch
    %22 = sbr.rel (0) target = $region9
  $region8: #{dcr_forward.9} parent=0 // pred_region
    _
  $region9: #{dcr_forward.9} parent=0 // pred_fallthru
    _
  // Predicated region
  $region10: #{dcr_forward.9} parent=0 // pred_check
    _
  $region11: #{dcr_forward.9} parent=0 // pred_check_branch
    %24 = sbr.rel (0) target = $region13
  $region12: #{dcr_forward.9} parent=0 // pred_region
    _
  $region13: #{dcr_forward.9} parent=0 // pred_fallthru
    _
  // Predicated region
  $region14: #{dcr_forward.9} parent=0 // pred_check
    _
  $region15: #{dcr_forward.9} parent=0 // pred_check_branch
    %26 = sbr.rel (0) target = $region17
  $region16: #{dcr_forward.9} parent=0 // pred_region
    _
  $region17: #{dcr_forward.9} parent=0 // pred_fallthru
    _
  // Predicated region
  $region18: #{dcr_forward.9} parent=0 // pred_check
    _
  $region19: #{dcr_forward.9} parent=0 // pred_check_branch
    %28 = sbr.rel (0) target = $region21
  $region20: #{dcr_forward.9} parent=0 // pred_region
    _
  $region21: #{dcr_forward.9} parent=0 // pred_fallthru
    _
  // Predicated region
  $region22: #{dcr_forward.9} parent=0 // pred_check
    _
  $region23: #{dcr_forward.9} parent=0 // pred_check_branch
    %30 = sbr.rel (0) target = $region25
  $region24: #{dcr_forward.9} parent=0 // pred_region
    _
  $region25: #{dcr_forward.9} parent=0 // pred_fallthru
    _
  // Predicated region
  $region26: #{dcr_forward.9} parent=0 // pred_check
    _
  $region27: #{dcr_forward.9} parent=0 // pred_check_branch
    %32 = sbr.rel (0) target = $region29
  $region28: #{dcr_forward.9} parent=0 // pred_region
    _
  $region29: #{dcr_forward.9} parent=0 // pred_fallthru
    _
  // Predicated region
  $region30: #{dcr_forward.9} parent=0 // pred_check
    _
  $region31: #{dcr_forward.9} parent=0 // pred_check_branch
    %34 = sbr.rel (0) target = $region33
  $region32: #{dcr_forward.9} parent=0 // pred_region
    _
  $region33: #{dcr_forward.9} parent=0 // pred_fallthru
    _
  // Predicated region
  $region34: #{dcr_forward.9} parent=0 // pred_check
    _
  $region35: #{dcr_forward.9} parent=0 // pred_check_branch
    %36 = sbr.rel (0) target = $region37
  $region36: #{dcr_forward.9} parent=0 // pred_region
    _
  $region37: #{dcr_forward.9} parent=0 // pred_fallthru
    _
  // Predicated region
  $region38: #{dcr_forward.9} parent=0 // pred_check
    _
  $region39: #{dcr_forward.9} parent=0 // pred_check_branch
    %38 = sbr.rel (0) target = $region41
  $region40: #{dcr_forward.9} parent=0 // pred_region
    _
  $region41: #{dcr_forward.9} parent=0 // pred_fallthru
    _
  // Predicated region
  $region42: #{dcr_forward.9} parent=0 // pred_check
    _
  $region43: #{dcr_forward.9} parent=0 // pred_check_branch
    %40 = sbr.rel (0) target = $region45
  $region44: #{dcr_forward.9} parent=0 // pred_region
    _
  $region45: #{dcr_forward.9} parent=0 // pred_fallthru
    _
  // Predicated region
  $region46: #{dcr_forward.9} parent=0 // pred_check
    _
  $region47: #{dcr_forward.9} parent=0 // pred_check_branch
    %42 = sbr.rel (0) target = $region49
  $region48: #{dcr_forward.9} parent=0 // pred_region
    _
  $region49: #{dcr_forward.9} parent=0 // pred_fallthru
    _
  // Predicated region
  $region50: #{dcr_forward.9} parent=0 // pred_check
    _
  $region51: #{dcr_forward.9} parent=0 // pred_check_branch
    %44 = sbr.rel (0) target = $region53
  $region52: #{dcr_forward.9} parent=0 // pred_region
    _
  $region53: #{dcr_forward.9} parent=0 // pred_fallthru
    _
  // Predicated region
  $region54: #{dcr_forward.9} parent=0 // pred_check
    _
  $region55: #{dcr_forward.9} parent=0 // pred_check_branch
    %46 = sbr.rel (0) target = $region57
  $region56: #{dcr_forward.9} parent=0 // pred_region
    _
  $region57: #{dcr_forward.9} parent=0 // pred_fallthru
    _
  %v48 = vld [vmem:[%s0] sm:$0xf]
  %v49 = vld [vmem:[%s0 + $0x4] sm:$0xf]
  %v50 = vld [vmem:[%s0 + $0x8] sm:$0xf]
  %v51 = vld [vmem:[%s0 + $0xc] sm:$0xf]
  %v52 = vld [vmem:[%s0 + $0x10] sm:$0xf]
  %v53 = vld [vmem:[%s0 + $0x14] sm:$0xf]
  %v54 = vld [vmem:[%s0 + $0x18] sm:$0xf]
  %v55 = vld [vmem:[%s0 + $0x1c] sm:$0xf]
  %v56 = vld [vmem:[%s1] sm:$0x3]
  %v57 = vld [vmem:[%s1 + $0x2] sm:$0x3]
  %v58 = vld [vmem:[%s1 + $0x4] sm:$0x3]
  %v59 = vld [vmem:[%s1 + $0x6] sm:$0x3]
  %v60 = vld [vmem:[%s1 + $0x8] sm:$0x3]
  %v61 = vld [vmem:[%s1 + $0xa] sm:$0x3]
  %v62 = vld [vmem:[%s1 + $0xc] sm:$0x3]
  %v63 = vld [vmem:[%s1 + $0xe] sm:$0x3]
  %v64 = vld [vmem:[%s2] sm:$0x3]
  %v65 = vld [vmem:[%s2 + $0x2] sm:$0x3]
  %v66 = vld [vmem:[%s2 + $0x4] sm:$0x3]
  %v67 = vld [vmem:[%s2 + $0x6] sm:$0x3]
  %v68 = vld [vmem:[%s2 + $0x8] sm:$0x3]
  %v69 = vld [vmem:[%s2 + $0xa] sm:$0x3]
  %v70 = vld [vmem:[%s2 + $0xc] sm:$0x3]
  %v71 = vld [vmem:[%s2 + $0xe] sm:$0x3]
  %v72 = vld [vmem:[%s3] sm:$0xff]
  %v73 = vperm.slane %v72, 0
  %v74 = vlaneseq
  %v75 = vshrl.u32 %v74, 7
  %77 = vset.pattern.permute.xlu0 %v75
  %78 = vperm.xlu0 %77, %v73
  %v79 = vpop.permute.xlu0 %78
  %v80 = vperm.slane %v72, 1
  %v81 = vlaneseq
  %v82 = vshrl.u32 %v81, 7
  %84 = vset.pattern.permute.xlu0 %v82
  %85 = vperm.xlu0 %84, %v80
  %v86 = vpop.permute.xlu0 %85
  %v87 = vperm.slane %v72, 2
  %v88 = vlaneseq
  %v89 = vshrl.u32 %v88, 7
  %91 = vset.pattern.permute.xlu0 %v89
  %92 = vperm.xlu0 %91, %v87
  %v93 = vpop.permute.xlu0 %92
  %v94 = vperm.slane %v72, 3
  %v95 = vlaneseq
  %v96 = vshrl.u32 %v95, 7
  %98 = vset.pattern.permute.xlu0 %v96
  %99 = vperm.xlu0 %98, %v94
  %v100 = vpop.permute.xlu0 %99
  %v101 = vperm.slane %v72, 4
  %v102 = vlaneseq
  %v103 = vshrl.u32 %v102, 7
  %105 = vset.pattern.permute.xlu0 %v103
  %106 = vperm.xlu0 %105, %v101
  %v107 = vpop.permute.xlu0 %106
  %v108 = vperm.slane %v72, 5
  %v109 = vlaneseq
  %v110 = vshrl.u32 %v109, 7
  %112 = vset.pattern.permute.xlu0 %v110
  %113 = vperm.xlu0 %112, %v108
  %v114 = vpop.permute.xlu0 %113
  %v115 = vperm.slane %v72, 6
  %v116 = vlaneseq
  %v117 = vshrl.u32 %v116, 7
  %119 = vset.pattern.permute.xlu0 %v117
  %120 = vperm.xlu0 %119, %v115
  %v121 = vpop.permute.xlu0 %120
  %v122 = vperm.slane %v72, 7
  %v123 = vlaneseq
  %v124 = vshrl.u32 %v123, 7
  %126 = vset.pattern.permute.xlu0 %v124
  %127 = vperm.xlu0 %126, %v122
  %v128 = vpop.permute.xlu0 %127
  %v129 = vpack.c.bf16 %v48, %v48
  %v130 = vpack.c.bf16 %v49, %v49
  %v131 = vpack.c.bf16 %v50, %v50
  %v132 = vpack.c.bf16 %v51, %v51
  %v133 = vpack.c.bf16 %v52, %v52
  %v134 = vpack.c.bf16 %v53, %v53
  %v135 = vpack.c.bf16 %v54, %v54
  %v136 = vpack.c.bf16 %v55, %v55
  %v137 = vld [vmem:[%s5] sm:$0xff]
  %v138 = vld [vmem:[%s5 + $0x8] sm:$0xff]
  %v139 = vld [vmem:[%s5 + $0x10] sm:$0xff]
  %v140 = vld [vmem:[%s5 + $0x18] sm:$0xff]
  %v141 = vld [vmem:[%s6] ss:$2 sm:$0x3]
  %v143 = vperm.slane %v141, 0
  %v144 = vperm.slane %v141, 1
  %v145 = vrot.slane %v144, 4
  %vm146 = vcmask 1043456
  %v147 = vsel %vm146, %v143, %v145
  %149 = vst [vmem:[#allocation1] ss:$4 sm:$0xff] %v129
  %s151 = scalar_lea.vmem [#allocation1], 1
  %152 = vst [vmem:[%s151] ss:$4 sm:$0xff] %v130
  %s154 = scalar_lea.vmem [#allocation1], 2
  %155 = vst [vmem:[%s154] ss:$4 sm:$0xff] %v131
  %s157 = scalar_lea.vmem [#allocation1], 3
  %158 = vst [vmem:[%s157] ss:$4 sm:$0xff] %v132
  %s160 = scalar_lea.vmem [#allocation1], 32
  %161 = vst [vmem:[%s160] ss:$4 sm:$0xff] %v133
  %s163 = scalar_lea.vmem [#allocation1], 33
  %164 = vst [vmem:[%s163] ss:$4 sm:$0xff] %v134
  %s166 = scalar_lea.vmem [#allocation1], 34
  %167 = vst [vmem:[%s166] ss:$4 sm:$0xff] %v135
  %s169 = scalar_lea.vmem [#allocation1], 35
  %170 = vst [vmem:[%s169] ss:$4 sm:$0xff] %v136
  %v171 = vld.sshfl [vmem:[#allocation1] sm:$0xff pattern:$0x73625140]
  %v172 = vld.sshfl [vmem:[#allocation1 + $0x20] sm:$0xff pattern:$0x73625140]
  %v177 = vunpack.c.l.b16 %v137
  %v178 = vunpack.c.h.b16 %v137
  %v179 = vunpack.c.l.b16 %v138
  %v180 = vunpack.c.h.b16 %v138
  %v181 = vunpack.c.l.b16 %v139
  %v182 = vunpack.c.h.b16 %v139
  %v183 = vunpack.c.l.b16 %v140
  %v184 = vunpack.c.h.b16 %v140
  %v185 = vpack.c.b16 %v179, %v177
  %v186 = vpack.c.b16 %v180, %v178
  %v187 = vpack.c.b16 %v183, %v181
  %v188 = vpack.c.b16 %v184, %v182
  %193 = vst [vmem:[#allocation1] ss:$2 sm:$0xff] %v147
  %s194 = scalar_lea.vmem [#allocation1], 1
  %195 = vst [vmem:[%s194] ss:$2 sm:$0xff] %v147
  %s196 = scalar_lea.vmem [#allocation1], 16
  %197 = vst [vmem:[%s196] ss:$2 sm:$0xff] %v147
  %s198 = scalar_lea.vmem [#allocation1], 17
  %199 = vst [vmem:[%s198] ss:$2 sm:$0xff] %v147
  %s200 = scalar_lea.vmem [#allocation1], 32
  %201 = vst [vmem:[%s200] ss:$2 sm:$0xff] %v147
  %s202 = scalar_lea.vmem [#allocation1], 33
  %203 = vst [vmem:[%s202] ss:$2 sm:$0xff] %v147
  %s204 = scalar_lea.vmem [#allocation1], 48
  %205 = vst [vmem:[%s204] ss:$2 sm:$0xff] %v147
  %s206 = scalar_lea.vmem [#allocation1], 49
  %207 = vst [vmem:[%s206] ss:$2 sm:$0xff] %v147
  %v208 = vld.sshfl [vmem:[#allocation1] sm:$0xff pattern:$0x75316420]
  %v209 = vld.sshfl [vmem:[#allocation1 + $0x8] sm:$0xff pattern:$0x75316420]
  %v210 = vld.sshfl [vmem:[#allocation1 + $0x10] sm:$0xff pattern:$0x75316420]
  %v211 = vld.sshfl [vmem:[#allocation1 + $0x18] sm:$0xff pattern:$0x75316420]
  %v212 = vld.sshfl [vmem:[#allocation1 + $0x20] sm:$0xff pattern:$0x75316420]
  %v213 = vld.sshfl [vmem:[#allocation1 + $0x28] sm:$0xff pattern:$0x75316420]
  %v214 = vld.sshfl [vmem:[#allocation1 + $0x30] sm:$0xff pattern:$0x75316420]
  %v215 = vld.sshfl [vmem:[#allocation1 + $0x38] sm:$0xff pattern:$0x75316420]
  %vm224 = vcmask 261120
  %v225 = vsel %vm224, %v171, 0
  %v227 = vsel %vm224, %v172, 0
  %229 = vmatpush.bf16.msra.mxu0 0
  %230 = vmatpush.bf16.msra.mxu0 0
  %231 = vmatpush.bf16.msra.mxu0 0
  %232 = vmatpush.bf16.msra.mxu0 0
  %233 = vmatpush.bf16.msra.mxu0 0
  %234 = vmatpush.bf16.msra.mxu0 0
  %235 = vmatpush.bf16.msra.mxu0 %v187
  %236 = vmatpush.bf16.msra.mxu0 %v185
  %237 = vmatmul.bf16.gmra.mxu0 %v225
  %v238 = vpop.f32.mrf.mxu0
  %v239 = vadd.f32 %v208, %v238
  %v240 = vpop.f32.mrf.mxu0
  %v241 = vadd.f32 %v210, %v240
  %242 = vmatmul.bf16.gmra.mxu0 %v227
  %v243 = vpop.f32.mrf.mxu0
  %v244 = vadd.f32 %v212, %v243
  %v245 = vpop.f32.mrf.mxu0
  %v246 = vadd.f32 %v214, %v245
  %247 = vdwg.mxu0
  %248 = vmatpush.bf16.msra.mxu0 0
  %249 = vmatpush.bf16.msra.mxu0 0
  %250 = vmatpush.bf16.msra.mxu0 0
  %251 = vmatpush.bf16.msra.mxu0 0
  %252 = vmatpush.bf16.msra.mxu0 0
  %253 = vmatpush.bf16.msra.mxu0 0
  %254 = vmatpush.bf16.msra.mxu0 %v188
  %255 = vmatpush.bf16.msra.mxu0 %v186
  %256 = vmatmul.bf16.gmra.mxu0 %v225
  %v257 = vpop.f32.mrf.mxu0
  %v258 = vadd.f32 %v209, %v257
  %v259 = vpop.f32.mrf.mxu0
  %v260 = vadd.f32 %v211, %v259
  %261 = vmatmul.bf16.gmra.mxu0 %v227
  %v262 = vpop.f32.mrf.mxu0
  %v263 = vadd.f32 %v213, %v262
  %v264 = vpop.f32.mrf.mxu0
  %v265 = vadd.f32 %v215, %v264
  %266 = vdwg.mxu0
  %v275 = vrot.slane %v258, 4
  %v276 = vrot.slane %v260, 4
  %v277 = vrot.slane %v263, 4
  %v278 = vrot.slane %v265, 4
  %v279 = vsel %vm146, %v239, %v275
  %v280 = vsel %vm146, %v275, %v239
  %v281 = vrot.slane %v280, 4
  %v282 = vsel %vm146, %v241, %v276
  %v283 = vsel %vm146, %v276, %v241
  %v284 = vrot.slane %v283, 4
  %v285 = vsel %vm146, %v244, %v277
  %v286 = vsel %vm146, %v277, %v244
  %v287 = vrot.slane %v286, 4
  %v288 = vsel %vm146, %v246, %v278
  %v289 = vsel %vm146, %v278, %v246
  %v290 = vrot.slane %v289, 4
  %v299 = vpack.c.bf16 %v279, %v279
  %v300 = vpack.c.bf16 %v281, %v281
  %v301 = vpack.c.bf16 %v282, %v282
  %v302 = vpack.c.bf16 %v284, %v284
  %v303 = vpack.c.bf16 %v285, %v285
  %v304 = vpack.c.bf16 %v287, %v287
  %v305 = vpack.c.bf16 %v288, %v288
  %v306 = vpack.c.bf16 %v290, %v290
  %307 = vst [vmem:[#allocation1] ss:$2 sm:$0xff] %v279
  %v308 = vld.sshfl [vmem:[#allocation1] sm:$0xff pattern:$0x75316420]
  %v309 = vld.sshfl [vmem:[#allocation1 + $0x8] sm:$0xff pattern:$0x75316420]
  %s310 = scalar_lea.vmem [#allocation1], 16
  %311 = vst [vmem:[%s310] ss:$2 sm:$0xff] %v281
  %v312 = vld.sshfl [vmem:[#allocation1 + $0x10] sm:$0xff pattern:$0x75316420]
  %v313 = vld.sshfl [vmem:[#allocation1 + $0x18] sm:$0xff pattern:$0x75316420]
  %s314 = scalar_lea.vmem [#allocation1], 32
  %315 = vst [vmem:[%s314] ss:$2 sm:$0xff] %v282
  %v316 = vld.sshfl [vmem:[#allocation1 + $0x20] sm:$0xff pattern:$0x75316420]
  %v317 = vld.sshfl [vmem:[#allocation1 + $0x28] sm:$0xff pattern:$0x75316420]
  %s318 = scalar_lea.vmem [#allocation1], 48
  %319 = vst [vmem:[%s318] ss:$2 sm:$0xff] %v284
  %v320 = vld.sshfl [vmem:[#allocation1 + $0x30] sm:$0xff pattern:$0x75316420]
  %v321 = vld.sshfl [vmem:[#allocation1 + $0x38] sm:$0xff pattern:$0x75316420]
  %322 = vst [vmem:[#allocation1] ss:$2 sm:$0xff] %v285
  %v323 = vld.sshfl [vmem:[#allocation1] sm:$0xff pattern:$0x75316420]
  %v324 = vld.sshfl [vmem:[#allocation1 + $0x8] sm:$0xff pattern:$0x75316420]
  %325 = vst [vmem:[%s310] ss:$2 sm:$0xff] %v287
  %v326 = vld.sshfl [vmem:[#allocation1 + $0x10] sm:$0xff pattern:$0x75316420]
  %v327 = vld.sshfl [vmem:[#allocation1 + $0x18] sm:$0xff pattern:$0x75316420]
  %328 = vst [vmem:[%s314] ss:$2 sm:$0xff] %v288
  %v329 = vld.sshfl [vmem:[#allocation1 + $0x20] sm:$0xff pattern:$0x75316420]
  %v330 = vld.sshfl [vmem:[#allocation1 + $0x28] sm:$0xff pattern:$0x75316420]
  %331 = vst [vmem:[%s318] ss:$2 sm:$0xff] %v290
  %v332 = vld.sshfl [vmem:[#allocation1 + $0x30] sm:$0xff pattern:$0x75316420]
  %v333 = vld.sshfl [vmem:[#allocation1 + $0x38] sm:$0xff pattern:$0x75316420]
  %v350 = vpack.c.bf16 %v309, %v308
  %v351 = vpack.c.bf16 %v313, %v312
  %v352 = vpack.c.bf16 %v317, %v316
  %v353 = vpack.c.bf16 %v321, %v320
  %v354 = vpack.c.bf16 %v324, %v323
  %v355 = vpack.c.bf16 %v327, %v326
  %v356 = vpack.c.bf16 %v330, %v329
  %v357 = vpack.c.bf16 %v333, %v332
  %v359 = vunpack.c.l.b16 %v299
  %v360 = vpack.c.b16 %v359, %v359
  %361 = vrot.lane.b32.xlu0 %v360, 96
  %v362 = vpop.permute.xlu0 %361
  %vm363 = vcmask 31744
  %v365 = vsel %vm363, %v56, 0
  %vm367 = vcmask 1041408
  %v369 = vsel %vm367, %v362, 0
  %371 = vmatpush.bf16.msra.mxu0 0
  %372 = vmatpush.bf16.msra.mxu0 0
  %373 = vmatpush.bf16.msra.mxu0 0
  %374 = vmatpush.bf16.msra.mxu0 0
  %375 = vmatpush.bf16.msra.mxu0 0
  %376 = vmatpush.bf16.msra.mxu0 0
  %377 = vmatpush.bf16.msra.mxu0 0
  %378 = vmatpush.bf16.msra.mxu0 %v369
  %379 = vmatmul.bf16.gmra.mxu0 %v365
  %v380 = vpop.f32.mrf.mxu0
  %v381 = vadd.f32 0.0, %v380
  %v382 = vpop.f32.mrf.mxu0
  %383 = vdwg.mxu0
  %v385 = vunpack.c.l.b16 %v300
  %v386 = vpack.c.b16 %v385, %v385
  %387 = vrot.lane.b32.xlu0 %v386, 96
  %v388 = vpop.permute.xlu0 %387
  %v390 = vsel %vm363, %v57, 0
  %v393 = vsel %vm367, %v388, 0
  %395 = vmatpush.bf16.msra.mxu0 0
  %396 = vmatpush.bf16.msra.mxu0 0
  %397 = vmatpush.bf16.msra.mxu0 0
  %398 = vmatpush.bf16.msra.mxu0 0
  %399 = vmatpush.bf16.msra.mxu0 0
  %400 = vmatpush.bf16.msra.mxu0 0
  %401 = vmatpush.bf16.msra.mxu0 0
  %402 = vmatpush.bf16.msra.mxu0 %v393
  %403 = vmatmul.bf16.gmra.mxu0 %v390
  %v404 = vpop.f32.mrf.mxu0
  %v405 = vadd.f32 0.0, %v404
  %v406 = vpop.f32.mrf.mxu0
  %407 = vdwg.mxu0
  %v409 = vunpack.c.l.b16 %v301
  %v410 = vpack.c.b16 %v409, %v409
  %411 = vrot.lane.b32.xlu0 %v410, 96
  %v412 = vpop.permute.xlu0 %411
  %v414 = vsel %vm363, %v58, 0
  %v417 = vsel %vm367, %v412, 0
  %419 = vmatpush.bf16.msra.mxu0 0
  %420 = vmatpush.bf16.msra.mxu0 0
  %421 = vmatpush.bf16.msra.mxu0 0
  %422 = vmatpush.bf16.msra.mxu0 0
  %423 = vmatpush.bf16.msra.mxu0 0
  %424 = vmatpush.bf16.msra.mxu0 0
  %425 = vmatpush.bf16.msra.mxu0 0
  %426 = vmatpush.bf16.msra.mxu0 %v417
  %427 = vmatmul.bf16.gmra.mxu0 %v414
  %v428 = vpop.f32.mrf.mxu0
  %v429 = vadd.f32 0.0, %v428
  %v430 = vpop.f32.mrf.mxu0
  %431 = vdwg.mxu0
  %v433 = vunpack.c.l.b16 %v302
  %v434 = vpack.c.b16 %v433, %v433
  %435 = vrot.lane.b32.xlu0 %v434, 96
  %v436 = vpop.permute.xlu0 %435
  %v438 = vsel %vm363, %v59, 0
  %v441 = vsel %vm367, %v436, 0
  %443 = vmatpush.bf16.msra.mxu0 0
  %444 = vmatpush.bf16.msra.mxu0 0
  %445 = vmatpush.bf16.msra.mxu0 0
  %446 = vmatpush.bf16.msra.mxu0 0
  %447 = vmatpush.bf16.msra.mxu0 0
  %448 = vmatpush.bf16.msra.mxu0 0
  %449 = vmatpush.bf16.msra.mxu0 0
  %450 = vmatpush.bf16.msra.mxu0 %v441
  %451 = vmatmul.bf16.gmra.mxu0 %v438
  %v452 = vpop.f32.mrf.mxu0
  %v453 = vadd.f32 0.0, %v452
  %v454 = vpop.f32.mrf.mxu0
  %455 = vdwg.mxu0
  %v457 = vunpack.c.l.b16 %v303
  %v458 = vpack.c.b16 %v457, %v457
  %459 = vrot.lane.b32.xlu0 %v458, 96
  %v460 = vpop.permute.xlu0 %459
  %v462 = vsel %vm363, %v60, 0
  %v465 = vsel %vm367, %v460, 0
  %467 = vmatpush.bf16.msra.mxu0 0
  %468 = vmatpush.bf16.msra.mxu0 0
  %469 = vmatpush.bf16.msra.mxu0 0
  %470 = vmatpush.bf16.msra.mxu0 0
  %471 = vmatpush.bf16.msra.mxu0 0
  %472 = vmatpush.bf16.msra.mxu0 0
  %473 = vmatpush.bf16.msra.mxu0 0
  %474 = vmatpush.bf16.msra.mxu0 %v465
  %475 = vmatmul.bf16.gmra.mxu0 %v462
  %v476 = vpop.f32.mrf.mxu0
  %v477 = vadd.f32 0.0, %v476
  %v478 = vpop.f32.mrf.mxu0
  %479 = vdwg.mxu0
  %v481 = vunpack.c.l.b16 %v304
  %v482 = vpack.c.b16 %v481, %v481
  %483 = vrot.lane.b32.xlu0 %v482, 96
  %v484 = vpop.permute.xlu0 %483
  %v486 = vsel %vm363, %v61, 0
  %v489 = vsel %vm367, %v484, 0
  %491 = vmatpush.bf16.msra.mxu0 0
  %492 = vmatpush.bf16.msra.mxu0 0
  %493 = vmatpush.bf16.msra.mxu0 0
  %494 = vmatpush.bf16.msra.mxu0 0
  %495 = vmatpush.bf16.msra.mxu0 0
  %496 = vmatpush.bf16.msra.mxu0 0
  %497 = vmatpush.bf16.msra.mxu0 0
  %498 = vmatpush.bf16.msra.mxu0 %v489
  %499 = vmatmul.bf16.gmra.mxu0 %v486
  %v500 = vpop.f32.mrf.mxu0
  %v501 = vadd.f32 0.0, %v500
  %v502 = vpop.f32.mrf.mxu0
  %503 = vdwg.mxu0
  %v505 = vunpack.c.l.b16 %v305
  %v506 = vpack.c.b16 %v505, %v505
  %507 = vrot.lane.b32.xlu0 %v506, 96
  %v508 = vpop.permute.xlu0 %507
  %v510 = vsel %vm363, %v62, 0
  %v513 = vsel %vm367, %v508, 0
  %515 = vmatpush.bf16.msra.mxu0 0
  %516 = vmatpush.bf16.msra.mxu0 0
  %517 = vmatpush.bf16.msra.mxu0 0
  %518 = vmatpush.bf16.msra.mxu0 0
  %519 = vmatpush.bf16.msra.mxu0 0
  %520 = vmatpush.bf16.msra.mxu0 0
  %521 = vmatpush.bf16.msra.mxu0 0
  %522 = vmatpush.bf16.msra.mxu0 %v513
  %523 = vmatmul.bf16.gmra.mxu0 %v510
  %v524 = vpop.f32.mrf.mxu0
  %v525 = vadd.f32 0.0, %v524
  %v526 = vpop.f32.mrf.mxu0
  %527 = vdwg.mxu0
  %v529 = vunpack.c.l.b16 %v306
  %v530 = vpack.c.b16 %v529, %v529
  %531 = vrot.lane.b32.xlu0 %v530, 96
  %v532 = vpop.permute.xlu0 %531
  %v534 = vsel %vm363, %v63, 0
  %v537 = vsel %vm367, %v532, 0
  %539 = vmatpush.bf16.msra.mxu0 0
  %540 = vmatpush.bf16.msra.mxu0 0
  %541 = vmatpush.bf16.msra.mxu0 0
  %542 = vmatpush.bf16.msra.mxu0 0
  %543 = vmatpush.bf16.msra.mxu0 0
  %544 = vmatpush.bf16.msra.mxu0 0
  %545 = vmatpush.bf16.msra.mxu0 0
  %546 = vmatpush.bf16.msra.mxu0 %v537
  %547 = vmatmul.bf16.gmra.mxu0 %v534
  %v548 = vpop.f32.mrf.mxu0
  %v549 = vadd.f32 0.0, %v548
  %v550 = vpop.f32.mrf.mxu0
  %551 = vdwg.mxu0
  %v553 = vunpack.c.l.b16 %v350
  %v554 = vunpack.c.h.b16 %v350
  %v555 = vpack.c.b16 %v553, %v553
  %v556 = vpack.c.b16 %v554, %v554
  %557 = vrot.lane.b32.xlu0 %v555, 32
  %v558 = vpop.permute.xlu0 %557
  %559 = vrot.lane.b32.xlu0 %v556, 32
  %v560 = vpop.permute.xlu0 %559
  %vm561 = vcmask 261120
  %v562 = vsel %vm561, %v558, %v560
  %v564 = vsel %vm363, %v64, 0
  %v567 = vsel %vm367, %v562, 0
  %569 = vmatpush.bf16.msra.mxu0 0
  %570 = vmatpush.bf16.msra.mxu0 0
  %571 = vmatpush.bf16.msra.mxu0 0
  %572 = vmatpush.bf16.msra.mxu0 0
  %573 = vmatpush.bf16.msra.mxu0 0
  %574 = vmatpush.bf16.msra.mxu0 0
  %575 = vmatpush.bf16.msra.mxu0 0
  %576 = vmatpush.bf16.msra.mxu0 %v567
  %577 = vmatmul.bf16.gmra.mxu0 %v564
  %v578 = vpop.f32.mrf.mxu0
  %v579 = vadd.f32 0.0, %v578
  %v580 = vpop.f32.mrf.mxu0
  %581 = vdwg.mxu0
  %v583 = vunpack.c.l.b16 %v351
  %v584 = vunpack.c.h.b16 %v351
  %v585 = vpack.c.b16 %v583, %v583
  %v586 = vpack.c.b16 %v584, %v584
  %587 = vrot.lane.b32.xlu0 %v585, 32
  %v588 = vpop.permute.xlu0 %587
  %589 = vrot.lane.b32.xlu0 %v586, 32
  %v590 = vpop.permute.xlu0 %589
  %v591 = vsel %vm561, %v588, %v590
  %v593 = vsel %vm363, %v65, 0
  %v596 = vsel %vm367, %v591, 0
  %598 = vmatpush.bf16.msra.mxu0 0
  %599 = vmatpush.bf16.msra.mxu0 0
  %600 = vmatpush.bf16.msra.mxu0 0
  %601 = vmatpush.bf16.msra.mxu0 0
  %602 = vmatpush.bf16.msra.mxu0 0
  %603 = vmatpush.bf16.msra.mxu0 0
  %604 = vmatpush.bf16.msra.mxu0 0
  %605 = vmatpush.bf16.msra.mxu0 %v596
  %606 = vmatmul.bf16.gmra.mxu0 %v593
  %v607 = vpop.f32.mrf.mxu0
  %v608 = vadd.f32 0.0, %v607
  %v609 = vpop.f32.mrf.mxu0
  %610 = vdwg.mxu0
  %v612 = vunpack.c.l.b16 %v352
  %v613 = vunpack.c.h.b16 %v352
  %v614 = vpack.c.b16 %v612, %v612
  %v615 = vpack.c.b16 %v613, %v613
  %616 = vrot.lane.b32.xlu0 %v614, 32
  %v617 = vpop.permute.xlu0 %616
  %618 = vrot.lane.b32.xlu0 %v615, 32
  %v619 = vpop.permute.xlu0 %618
  %v620 = vsel %vm561, %v617, %v619
  %v622 = vsel %vm363, %v66, 0
  %v625 = vsel %vm367, %v620, 0
  %627 = vmatpush.bf16.msra.mxu0 0
  %628 = vmatpush.bf16.msra.mxu0 0
  %629 = vmatpush.bf16.msra.mxu0 0
  %630 = vmatpush.bf16.msra.mxu0 0
  %631 = vmatpush.bf16.msra.mxu0 0
  %632 = vmatpush.bf16.msra.mxu0 0
  %633 = vmatpush.bf16.msra.mxu0 0
  %634 = vmatpush.bf16.msra.mxu0 %v625
  %635 = vmatmul.bf16.gmra.mxu0 %v622
  %v636 = vpop.f32.mrf.mxu0
  %v637 = vadd.f32 0.0, %v636
  %v638 = vpop.f32.mrf.mxu0
  %639 = vdwg.mxu0
  %v641 = vunpack.c.l.b16 %v353
  %v642 = vunpack.c.h.b16 %v353
  %v643 = vpack.c.b16 %v641, %v641
  %v644 = vpack.c.b16 %v642, %v642
  %645 = vrot.lane.b32.xlu0 %v643, 32
  %v646 = vpop.permute.xlu0 %645
  %647 = vrot.lane.b32.xlu0 %v644, 32
  %v648 = vpop.permute.xlu0 %647
  %v649 = vsel %vm561, %v646, %v648
  %v651 = vsel %vm363, %v67, 0
  %v654 = vsel %vm367, %v649, 0
  %656 = vmatpush.bf16.msra.mxu0 0
  %657 = vmatpush.bf16.msra.mxu0 0
  %658 = vmatpush.bf16.msra.mxu0 0
  %659 = vmatpush.bf16.msra.mxu0 0
  %660 = vmatpush.bf16.msra.mxu0 0
  %661 = vmatpush.bf16.msra.mxu0 0
  %662 = vmatpush.bf16.msra.mxu0 0
  %663 = vmatpush.bf16.msra.mxu0 %v654
  %664 = vmatmul.bf16.gmra.mxu0 %v651
  %v665 = vpop.f32.mrf.mxu0
  %v666 = vadd.f32 0.0, %v665
  %v667 = vpop.f32.mrf.mxu0
  %668 = vdwg.mxu0
  %v670 = vunpack.c.l.b16 %v354
  %v671 = vunpack.c.h.b16 %v354
  %v672 = vpack.c.b16 %v670, %v670
  %v673 = vpack.c.b16 %v671, %v671
  %674 = vrot.lane.b32.xlu0 %v672, 32
  %v675 = vpop.permute.xlu0 %674
  %676 = vrot.lane.b32.xlu0 %v673, 32
  %v677 = vpop.permute.xlu0 %676
  %v678 = vsel %vm561, %v675, %v677
  %v680 = vsel %vm363, %v68, 0
  %v683 = vsel %vm367, %v678, 0
  %685 = vmatpush.bf16.msra.mxu0 0
  %686 = vmatpush.bf16.msra.mxu0 0
  %687 = vmatpush.bf16.msra.mxu0 0
  %688 = vmatpush.bf16.msra.mxu0 0
  %689 = vmatpush.bf16.msra.mxu0 0
  %690 = vmatpush.bf16.msra.mxu0 0
  %691 = vmatpush.bf16.msra.mxu0 0
  %692 = vmatpush.bf16.msra.mxu0 %v683
  %693 = vmatmul.bf16.gmra.mxu0 %v680
  %v694 = vpop.f32.mrf.mxu0
  %v695 = vadd.f32 0.0, %v694
  %v696 = vpop.f32.mrf.mxu0
  %697 = vdwg.mxu0
  %v699 = vunpack.c.l.b16 %v355
  %v700 = vunpack.c.h.b16 %v355
  %v701 = vpack.c.b16 %v699, %v699
  %v702 = vpack.c.b16 %v700, %v700
  %703 = vrot.lane.b32.xlu0 %v701, 32
  %v704 = vpop.permute.xlu0 %703
  %705 = vrot.lane.b32.xlu0 %v702, 32
  %v706 = vpop.permute.xlu0 %705
  %v707 = vsel %vm561, %v704, %v706
  %v709 = vsel %vm363, %v69, 0
  %v712 = vsel %vm367, %v707, 0
  %714 = vmatpush.bf16.msra.mxu0 0
  %715 = vmatpush.bf16.msra.mxu0 0
  %716 = vmatpush.bf16.msra.mxu0 0
  %717 = vmatpush.bf16.msra.mxu0 0
  %718 = vmatpush.bf16.msra.mxu0 0
  %719 = vmatpush.bf16.msra.mxu0 0
  %720 = vmatpush.bf16.msra.mxu0 0
  %721 = vmatpush.bf16.msra.mxu0 %v712
  %722 = vmatmul.bf16.gmra.mxu0 %v709
  %v723 = vpop.f32.mrf.mxu0
  %v724 = vadd.f32 0.0, %v723
  %v725 = vpop.f32.mrf.mxu0
  %726 = vdwg.mxu0
  %v728 = vunpack.c.l.b16 %v356
  %v729 = vunpack.c.h.b16 %v356
  %v730 = vpack.c.b16 %v728, %v728
  %v731 = vpack.c.b16 %v729, %v729
  %732 = vrot.lane.b32.xlu0 %v730, 32
  %v733 = vpop.permute.xlu0 %732
  %734 = vrot.lane.b32.xlu0 %v731, 32
  %v735 = vpop.permute.xlu0 %734
  %v736 = vsel %vm561, %v733, %v735
  %v738 = vsel %vm363, %v70, 0
  %v741 = vsel %vm367, %v736, 0
  %743 = vmatpush.bf16.msra.mxu0 0
  %744 = vmatpush.bf16.msra.mxu0 0
  %745 = vmatpush.bf16.msra.mxu0 0
  %746 = vmatpush.bf16.msra.mxu0 0
  %747 = vmatpush.bf16.msra.mxu0 0
  %748 = vmatpush.bf16.msra.mxu0 0
  %749 = vmatpush.bf16.msra.mxu0 0
  %750 = vmatpush.bf16.msra.mxu0 %v741
  %751 = vmatmul.bf16.gmra.mxu0 %v738
  %v752 = vpop.f32.mrf.mxu0
  %v753 = vadd.f32 0.0, %v752
  %v754 = vpop.f32.mrf.mxu0
  %755 = vdwg.mxu0
  %v757 = vunpack.c.l.b16 %v357
  %v758 = vunpack.c.h.b16 %v357
  %v759 = vpack.c.b16 %v757, %v757
  %v760 = vpack.c.b16 %v758, %v758
  %761 = vrot.lane.b32.xlu0 %v759, 32
  %v762 = vpop.permute.xlu0 %761
  %763 = vrot.lane.b32.xlu0 %v760, 32
  %v764 = vpop.permute.xlu0 %763
  %v765 = vsel %vm561, %v762, %v764
  %v767 = vsel %vm363, %v71, 0
  %v770 = vsel %vm367, %v765, 0
  %772 = vmatpush.bf16.msra.mxu0 0
  %773 = vmatpush.bf16.msra.mxu0 0
  %774 = vmatpush.bf16.msra.mxu0 0
  %775 = vmatpush.bf16.msra.mxu0 0
  %776 = vmatpush.bf16.msra.mxu0 0
  %777 = vmatpush.bf16.msra.mxu0 0
  %778 = vmatpush.bf16.msra.mxu0 0
  %779 = vmatpush.bf16.msra.mxu0 %v770
  %780 = vmatmul.bf16.gmra.mxu0 %v767
  %v781 = vpop.f32.mrf.mxu0
  %v782 = vadd.f32 0.0, %v781
  %v783 = vpop.f32.mrf.mxu0
  %784 = vdwg.mxu0
  %v785 = vxor.u32 %v381, 2147483648
  %v786 = vxor.u32 %v405, 2147483648
  %v787 = vxor.u32 %v429, 2147483648
  %v788 = vxor.u32 %v453, 2147483648
  %v789 = vxor.u32 %v477, 2147483648
  %v790 = vxor.u32 %v501, 2147483648
  %v791 = vxor.u32 %v525, 2147483648
  %v792 = vxor.u32 %v549, 2147483648
  %v793 = vmul.f32 %v785, 1.442695
  %v794 = vpow.pop %v793
  %v795 = vmul.f32 %v786, 1.442695
  %v796 = vpow.pop %v795
  %v797 = vmul.f32 %v787, 1.442695
  %v798 = vpow.pop %v797
  %v799 = vmul.f32 %v788, 1.442695
  %v800 = vpow.pop %v799
  %v801 = vmul.f32 %v789, 1.442695
  %v802 = vpow.pop %v801
  %v803 = vmul.f32 %v790, 1.442695
  %v804 = vpow.pop %v803
  %v805 = vmul.f32 %v791, 1.442695
  %v806 = vpow.pop %v805
  %v807 = vmul.f32 %v792, 1.442695
  %v808 = vpow.pop %v807
  %v809 = vadd.f32 %v794, 1.0
  %v810 = vadd.f32 %v796, 1.0
  %v811 = vadd.f32 %v798, 1.0
  %v812 = vadd.f32 %v800, 1.0
  %v813 = vadd.f32 %v802, 1.0
  %v814 = vadd.f32 %v804, 1.0
  %v815 = vadd.f32 %v806, 1.0
  %v816 = vadd.f32 %v808, 1.0
  %v817 = vrcp.pop %v809
  %v818 = vmul.f32 %v809, %v817
  %v819 = vsub.f32 1.0, %v818
  %v820 = vmul.f32 %v817, %v819
  %v821 = vadd.f32 %v817, %v820
  %vm822 = vweird.f32 %v809
  %vm823 = vweird.f32 %v817
  %vm824 = vmor %vm822, %vm823
  %v825 = vsel %vm824, %v817, %v821
  %v826 = vand.u32 2147483647, %v809
  %vm827 = vcmp.eq.f32.partialorder %v826, 8.507059e+37
  %v828 = vand.u32 %v809, 2147483648
  %v829 = vor.u32 1.1754944e-38, %v828
  %v830 = vsel %vm827, %v829, %v825
  %v831 = vmul.f32 1.0, %v830
  %v832 = vrcp.pop %v810
  %v833 = vmul.f32 %v810, %v832
  %v834 = vsub.f32 1.0, %v833
  %v835 = vmul.f32 %v832, %v834
  %v836 = vadd.f32 %v832, %v835
  %vm837 = vweird.f32 %v810
  %vm838 = vweird.f32 %v832
  %vm839 = vmor %vm837, %vm838
  %v840 = vsel %vm839, %v832, %v836
  %v841 = vand.u32 2147483647, %v810
  %vm842 = vcmp.eq.f32.partialorder %v841, 8.507059e+37
  %v843 = vand.u32 %v810, 2147483648
  %v844 = vor.u32 1.1754944e-38, %v843
  %v845 = vsel %vm842, %v844, %v840
  %v846 = vmul.f32 1.0, %v845
  %v847 = vrcp.pop %v811
  %v848 = vmul.f32 %v811, %v847
  %v849 = vsub.f32 1.0, %v848
  %v850 = vmul.f32 %v847, %v849
  %v851 = vadd.f32 %v847, %v850
  %vm852 = vweird.f32 %v811
  %vm853 = vweird.f32 %v847
  %vm854 = vmor %vm852, %vm853
  %v855 = vsel %vm854, %v847, %v851
  %v856 = vand.u32 2147483647, %v811
  %vm857 = vcmp.eq.f32.partialorder %v856, 8.507059e+37
  %v858 = vand.u32 %v811, 2147483648
  %v859 = vor.u32 1.1754944e-38, %v858
  %v860 = vsel %vm857, %v859, %v855
  %v861 = vmul.f32 1.0, %v860
  %v862 = vrcp.pop %v812
  %v863 = vmul.f32 %v812, %v862
  %v864 = vsub.f32 1.0, %v863
  %v865 = vmul.f32 %v862, %v864
  %v866 = vadd.f32 %v862, %v865
  %vm867 = vweird.f32 %v812
  %vm868 = vweird.f32 %v862
  %vm869 = vmor %vm867, %vm868
  %v870 = vsel %vm869, %v862, %v866
  %v871 = vand.u32 2147483647, %v812
  %vm872 = vcmp.eq.f32.partialorder %v871, 8.507059e+37
  %v873 = vand.u32 %v812, 2147483648
  %v874 = vor.u32 1.1754944e-38, %v873
  %v875 = vsel %vm872, %v874, %v870
  %v876 = vmul.f32 1.0, %v875
  %v877 = vrcp.pop %v813
  %v878 = vmul.f32 %v813, %v877
  %v879 = vsub.f32 1.0, %v878
  %v880 = vmul.f32 %v877, %v879
  %v881 = vadd.f32 %v877, %v880
  %vm882 = vweird.f32 %v813
  %vm883 = vweird.f32 %v877
  %vm884 = vmor %vm882, %vm883
  %v885 = vsel %vm884, %v877, %v881
  %v886 = vand.u32 2147483647, %v813
  %vm887 = vcmp.eq.f32.partialorder %v886, 8.507059e+37
  %v888 = vand.u32 %v813, 2147483648
  %v889 = vor.u32 1.1754944e-38, %v888
  %v890 = vsel %vm887, %v889, %v885
  %v891 = vmul.f32 1.0, %v890
  %v892 = vrcp.pop %v814
  %v893 = vmul.f32 %v814, %v892
  %v894 = vsub.f32 1.0, %v893
  %v895 = vmul.f32 %v892, %v894
  %v896 = vadd.f32 %v892, %v895
  %vm897 = vweird.f32 %v814
  %vm898 = vweird.f32 %v892
  %vm899 = vmor %vm897, %vm898
  %v900 = vsel %vm899, %v892, %v896
  %v901 = vand.u32 2147483647, %v814
  %vm902 = vcmp.eq.f32.partialorder %v901, 8.507059e+37
  %v903 = vand.u32 %v814, 2147483648
  %v904 = vor.u32 1.1754944e-38, %v903
  %v905 = vsel %vm902, %v904, %v900
  %v906 = vmul.f32 1.0, %v905
  %v907 = vrcp.pop %v815
  %v908 = vmul.f32 %v815, %v907
  %v909 = vsub.f32 1.0, %v908
  %v910 = vmul.f32 %v907, %v909
  %v911 = vadd.f32 %v907, %v910
  %vm912 = vweird.f32 %v815
  %vm913 = vweird.f32 %v907
  %vm914 = vmor %vm912, %vm913
  %v915 = vsel %vm914, %v907, %v911
  %v916 = vand.u32 2147483647, %v815
  %vm917 = vcmp.eq.f32.partialorder %v916, 8.507059e+37
  %v918 = vand.u32 %v815, 2147483648
  %v919 = vor.u32 1.1754944e-38, %v918
  %v920 = vsel %vm917, %v919, %v915
  %v921 = vmul.f32 1.0, %v920
  %v922 = vrcp.pop %v816
  %v923 = vmul.f32 %v816, %v922
  %v924 = vsub.f32 1.0, %v923
  %v925 = vmul.f32 %v922, %v924
  %v926 = vadd.f32 %v922, %v925
  %vm927 = vweird.f32 %v816
  %vm928 = vweird.f32 %v922
  %vm929 = vmor %vm927, %vm928
  %v930 = vsel %vm929, %v922, %v926
  %v931 = vand.u32 2147483647, %v816
  %vm932 = vcmp.eq.f32.partialorder %v931, 8.507059e+37
  %v933 = vand.u32 %v816, 2147483648
  %v934 = vor.u32 1.1754944e-38, %v933
  %v935 = vsel %vm932, %v934, %v930
  %v936 = vmul.f32 1.0, %v935
  %v937 = vxor.u32 %v579, 2147483648
  %v938 = vxor.u32 %v608, 2147483648
  %v939 = vxor.u32 %v637, 2147483648
  %v940 = vxor.u32 %v666, 2147483648
  %v941 = vxor.u32 %v695, 2147483648
  %v942 = vxor.u32 %v724, 2147483648
  %v943 = vxor.u32 %v753, 2147483648
  %v944 = vxor.u32 %v782, 2147483648
  %v945 = vmul.f32 %v937, 1.442695
  %v946 = vpow.pop %v945
  %v947 = vmul.f32 %v938, 1.442695
  %v948 = vpow.pop %v947
  %v949 = vmul.f32 %v939, 1.442695
  %v950 = vpow.pop %v949
  %v951 = vmul.f32 %v940, 1.442695
  %v952 = vpow.pop %v951
  %v953 = vmul.f32 %v941, 1.442695
  %v954 = vpow.pop %v953
  %v955 = vmul.f32 %v942, 1.442695
  %v956 = vpow.pop %v955
  %v957 = vmul.f32 %v943, 1.442695
  %v958 = vpow.pop %v957
  %v959 = vmul.f32 %v944, 1.442695
  %v960 = vpow.pop %v959
  %v961 = vadd.f32 %v946, 1.0
  %v962 = vadd.f32 %v948, 1.0
  %v963 = vadd.f32 %v950, 1.0
  %v964 = vadd.f32 %v952, 1.0
  %v965 = vadd.f32 %v954, 1.0
  %v966 = vadd.f32 %v956, 1.0
  %v967 = vadd.f32 %v958, 1.0
  %v968 = vadd.f32 %v960, 1.0
  %v969 = vrcp.pop %v961
  %v970 = vmul.f32 %v961, %v969
  %v971 = vsub.f32 1.0, %v970
  %v972 = vmul.f32 %v969, %v971
  %v973 = vadd.f32 %v969, %v972
  %vm974 = vweird.f32 %v961
  %vm975 = vweird.f32 %v969
  %vm976 = vmor %vm974, %vm975
  %v977 = vsel %vm976, %v969, %v973
  %v978 = vand.u32 2147483647, %v961
  %vm979 = vcmp.eq.f32.partialorder %v978, 8.507059e+37
  %v980 = vand.u32 %v961, 2147483648
  %v981 = vor.u32 1.1754944e-38, %v980
  %v982 = vsel %vm979, %v981, %v977
  %v983 = vmul.f32 1.0, %v982
  %v984 = vrcp.pop %v962
  %v985 = vmul.f32 %v962, %v984
  %v986 = vsub.f32 1.0, %v985
  %v987 = vmul.f32 %v984, %v986
  %v988 = vadd.f32 %v984, %v987
  %vm989 = vweird.f32 %v962
  %vm990 = vweird.f32 %v984
  %vm991 = vmor %vm989, %vm990
  %v992 = vsel %vm991, %v984, %v988
  %v993 = vand.u32 2147483647, %v962
  %vm994 = vcmp.eq.f32.partialorder %v993, 8.507059e+37
  %v995 = vand.u32 %v962, 2147483648
  %v996 = vor.u32 1.1754944e-38, %v995
  %v997 = vsel %vm994, %v996, %v992
  %v998 = vmul.f32 1.0, %v997
  %v999 = vrcp.pop %v963
  %v1000 = vmul.f32 %v963, %v999
  %v1001 = vsub.f32 1.0, %v1000
  %v1002 = vmul.f32 %v999, %v1001
  %v1003 = vadd.f32 %v999, %v1002
  %vm1004 = vweird.f32 %v963
  %vm1005 = vweird.f32 %v999
  %vm1006 = vmor %vm1004, %vm1005
  %v1007 = vsel %vm1006, %v999, %v1003
  %v1008 = vand.u32 2147483647, %v963
  %vm1009 = vcmp.eq.f32.partialorder %v1008, 8.507059e+37
  %v1010 = vand.u32 %v963, 2147483648
  %v1011 = vor.u32 1.1754944e-38, %v1010
  %v1012 = vsel %vm1009, %v1011, %v1007
  %v1013 = vmul.f32 1.0, %v1012
  %v1014 = vrcp.pop %v964
  %v1015 = vmul.f32 %v964, %v1014
  %v1016 = vsub.f32 1.0, %v1015
  %v1017 = vmul.f32 %v1014, %v1016
  %v1018 = vadd.f32 %v1014, %v1017
  %vm1019 = vweird.f32 %v964
  %vm1020 = vweird.f32 %v1014
  %vm1021 = vmor %vm1019, %vm1020
  %v1022 = vsel %vm1021, %v1014, %v1018
  %v1023 = vand.u32 2147483647, %v964
  %vm1024 = vcmp.eq.f32.partialorder %v1023, 8.507059e+37
  %v1025 = vand.u32 %v964, 2147483648
  %v1026 = vor.u32 1.1754944e-38, %v1025
  %v1027 = vsel %vm1024, %v1026, %v1022
  %v1028 = vmul.f32 1.0, %v1027
  %v1029 = vrcp.pop %v965
  %v1030 = vmul.f32 %v965, %v1029
  %v1031 = vsub.f32 1.0, %v1030
  %v1032 = vmul.f32 %v1029, %v1031
  %v1033 = vadd.f32 %v1029, %v1032
  %vm1034 = vweird.f32 %v965
  %vm1035 = vweird.f32 %v1029
  %vm1036 = vmor %vm1034, %vm1035
  %v1037 = vsel %vm1036, %v1029, %v1033
  %v1038 = vand.u32 2147483647, %v965
  %vm1039 = vcmp.eq.f32.partialorder %v1038, 8.507059e+37
  %v1040 = vand.u32 %v965, 2147483648
  %v1041 = vor.u32 1.1754944e-38, %v1040
  %v1042 = vsel %vm1039, %v1041, %v1037
  %v1043 = vmul.f32 1.0, %v1042
  %v1044 = vrcp.pop %v966
  %v1045 = vmul.f32 %v966, %v1044
  %v1046 = vsub.f32 1.0, %v1045
  %v1047 = vmul.f32 %v1044, %v1046
  %v1048 = vadd.f32 %v1044, %v1047
  %vm1049 = vweird.f32 %v966
  %vm1050 = vweird.f32 %v1044
  %vm1051 = vmor %vm1049, %vm1050
  %v1052 = vsel %vm1051, %v1044, %v1048
  %v1053 = vand.u32 2147483647, %v966
  %vm1054 = vcmp.eq.f32.partialorder %v1053, 8.507059e+37
  %v1055 = vand.u32 %v966, 2147483648
  %v1056 = vor.u32 1.1754944e-38, %v1055
  %v1057 = vsel %vm1054, %v1056, %v1052
  %v1058 = vmul.f32 1.0, %v1057
  %v1059 = vrcp.pop %v967
  %v1060 = vmul.f32 %v967, %v1059
  %v1061 = vsub.f32 1.0, %v1060
  %v1062 = vmul.f32 %v1059, %v1061
  %v1063 = vadd.f32 %v1059, %v1062
  %vm1064 = vweird.f32 %v967
  %vm1065 = vweird.f32 %v1059
  %vm1066 = vmor %vm1064, %vm1065
  %v1067 = vsel %vm1066, %v1059, %v1063
  %v1068 = vand.u32 2147483647, %v967
  %vm1069 = vcmp.eq.f32.partialorder %v1068, 8.507059e+37
  %v1070 = vand.u32 %v967, 2147483648
  %v1071 = vor.u32 1.1754944e-38, %v1070
  %v1072 = vsel %vm1069, %v1071, %v1067
  %v1073 = vmul.f32 1.0, %v1072
  %v1074 = vrcp.pop %v968
  %v1075 = vmul.f32 %v968, %v1074
  %v1076 = vsub.f32 1.0, %v1075
  %v1077 = vmul.f32 %v1074, %v1076
  %v1078 = vadd.f32 %v1074, %v1077
  %vm1079 = vweird.f32 %v968
  %vm1080 = vweird.f32 %v1074
  %vm1081 = vmor %vm1079, %vm1080
  %v1082 = vsel %vm1081, %v1074, %v1078
  %v1083 = vand.u32 2147483647, %v968
  %vm1084 = vcmp.eq.f32.partialorder %v1083, 8.507059e+37
  %v1085 = vand.u32 %v968, 2147483648
  %v1086 = vor.u32 1.1754944e-38, %v1085
  %v1087 = vsel %vm1084, %v1086, %v1082
  %v1088 = vmul.f32 1.0, %v1087
  %1097 = vrot.lane.b32.xlu0 %v381, 32
  %v1098 = vpop.permute.xlu0 %1097
  %1099 = vrot.lane.b32.xlu0 %v405, 32
  %v1100 = vpop.permute.xlu0 %1099
  %1101 = vrot.lane.b32.xlu0 %v429, 32
  %v1102 = vpop.permute.xlu0 %1101
  %1103 = vrot.lane.b32.xlu0 %v453, 32
  %v1104 = vpop.permute.xlu0 %1103
  %1105 = vrot.lane.b32.xlu0 %v477, 32
  %v1106 = vpop.permute.xlu0 %1105
  %1107 = vrot.lane.b32.xlu0 %v501, 32
  %v1108 = vpop.permute.xlu0 %1107
  %1109 = vrot.lane.b32.xlu0 %v525, 32
  %v1110 = vpop.permute.xlu0 %1109
  %1111 = vrot.lane.b32.xlu0 %v549, 32
  %v1112 = vpop.permute.xlu0 %1111
  %v1121 = vmul.f32 %v831, %v1098
  %v1122 = vmul.f32 %v846, %v1100
  %v1123 = vmul.f32 %v861, %v1102
  %v1124 = vmul.f32 %v876, %v1104
  %v1125 = vmul.f32 %v891, %v1106
  %v1126 = vmul.f32 %v906, %v1108
  %v1127 = vmul.f32 %v921, %v1110
  %v1128 = vmul.f32 %v936, %v1112
  %1137 = vrot.lane.b32.xlu0 %v1121, 96
  %v1138 = vpop.permute.xlu0 %1137
  %1139 = vrot.lane.b32.xlu0 %v1122, 96
  %v1140 = vpop.permute.xlu0 %1139
  %1141 = vrot.lane.b32.xlu0 %v1123, 96
  %v1142 = vpop.permute.xlu0 %1141
  %1143 = vrot.lane.b32.xlu0 %v1124, 96
  %v1144 = vpop.permute.xlu0 %1143
  %1145 = vrot.lane.b32.xlu0 %v1125, 96
  %v1146 = vpop.permute.xlu0 %1145
  %1147 = vrot.lane.b32.xlu0 %v1126, 96
  %v1148 = vpop.permute.xlu0 %1147
  %1149 = vrot.lane.b32.xlu0 %v1127, 96
  %v1150 = vpop.permute.xlu0 %1149
  %1151 = vrot.lane.b32.xlu0 %v1128, 96
  %v1152 = vpop.permute.xlu0 %1151
  %v1161 = vadd.f32 %v279, %v1138
  %v1162 = vadd.f32 %v281, %v1140
  %v1163 = vadd.f32 %v282, %v1142
  %v1164 = vadd.f32 %v284, %v1144
  %v1165 = vadd.f32 %v285, %v1146
  %v1166 = vadd.f32 %v287, %v1148
  %v1167 = vadd.f32 %v288, %v1150
  %v1168 = vadd.f32 %v290, %v1152
  %1177 = vrot.lane.b32.xlu0 %v579, 32
  %v1178 = vpop.permute.xlu0 %1177
  %1179 = vrot.lane.b32.xlu0 %v608, 32
  %v1180 = vpop.permute.xlu0 %1179
  %1181 = vrot.lane.b32.xlu0 %v637, 32
  %v1182 = vpop.permute.xlu0 %1181
  %1183 = vrot.lane.b32.xlu0 %v666, 32
  %v1184 = vpop.permute.xlu0 %1183
  %1185 = vrot.lane.b32.xlu0 %v695, 32
  %v1186 = vpop.permute.xlu0 %1185
  %1187 = vrot.lane.b32.xlu0 %v724, 32
  %v1188 = vpop.permute.xlu0 %1187
  %1189 = vrot.lane.b32.xlu0 %v753, 32
  %v1190 = vpop.permute.xlu0 %1189
  %1191 = vrot.lane.b32.xlu0 %v782, 32
  %v1192 = vpop.permute.xlu0 %1191
  %v1201 = vmul.f32 %v983, %v1178
  %v1202 = vmul.f32 %v998, %v1180
  %v1203 = vmul.f32 %v1013, %v1182
  %v1204 = vmul.f32 %v1028, %v1184
  %v1205 = vmul.f32 %v1043, %v1186
  %v1206 = vmul.f32 %v1058, %v1188
  %v1207 = vmul.f32 %v1073, %v1190
  %v1208 = vmul.f32 %v1088, %v1192
  %1217 = vrot.lane.b32.xlu0 %v1201, 96
  %v1218 = vpop.permute.xlu0 %1217
  %1219 = vrot.lane.b32.xlu0 %v1202, 96
  %v1220 = vpop.permute.xlu0 %1219
  %1221 = vrot.lane.b32.xlu0 %v1203, 96
  %v1222 = vpop.permute.xlu0 %1221
  %1223 = vrot.lane.b32.xlu0 %v1204, 96
  %v1224 = vpop.permute.xlu0 %1223
  %1225 = vrot.lane.b32.xlu0 %v1205, 96
  %v1226 = vpop.permute.xlu0 %1225
  %1227 = vrot.lane.b32.xlu0 %v1206, 96
  %v1228 = vpop.permute.xlu0 %1227
  %1229 = vrot.lane.b32.xlu0 %v1207, 96
  %v1230 = vpop.permute.xlu0 %1229
  %1231 = vrot.lane.b32.xlu0 %v1208, 96
  %v1232 = vpop.permute.xlu0 %1231
  %v1241 = vadd.f32 %v1161, %v1218
  %v1242 = vadd.f32 %v1162, %v1220
  %v1243 = vadd.f32 %v1163, %v1222
  %v1244 = vadd.f32 %v1164, %v1224
  %v1245 = vadd.f32 %v1165, %v1226
  %v1246 = vadd.f32 %v1166, %v1228
  %v1247 = vadd.f32 %v1167, %v1230
  %v1248 = vadd.f32 %v1168, %v1232
  %v1249 = vmax.f32 %v1241, 0.0
  %v1250 = vmax.f32 %v1242, 0.0
  %v1251 = vmax.f32 %v1243, 0.0
  %v1252 = vmax.f32 %v1244, 0.0
  %v1253 = vmax.f32 %v1245, 0.0
  %v1254 = vmax.f32 %v1246, 0.0
  %v1255 = vmax.f32 %v1247, 0.0
  %v1256 = vmax.f32 %v1248, 0.0
  %v1257 = vmul.f32 %v1249, %v79
  %v1258 = vmul.f32 %v1250, %v86
  %v1259 = vmul.f32 %v1251, %v93
  %v1260 = vmul.f32 %v1252, %v100
  %v1261 = vmul.f32 %v1253, %v107
  %v1262 = vmul.f32 %v1254, %v114
  %v1263 = vmul.f32 %v1255, %v121
  %v1264 = vmul.f32 %v1256, %v128
  %v1265 = vpack.c.bf16 %v1257, %v1257
  %v1266 = vpack.c.bf16 %v1258, %v1258
  %v1267 = vpack.c.bf16 %v1259, %v1259
  %v1268 = vpack.c.bf16 %v1260, %v1260
  %v1269 = vpack.c.bf16 %v1261, %v1261
  %v1270 = vpack.c.bf16 %v1262, %v1262
  %v1271 = vpack.c.bf16 %v1263, %v1263
  %v1272 = vpack.c.bf16 %v1264, %v1264
  %s1273 = scalar_lea.vmem %s5, 32
  %v1274 = vld [vmem:[%s1273] sm:$0xff]
  %v1275 = vld [vmem:[%s1273 + $0x8] sm:$0xff]
  %v1276 = vld [vmem:[%s1273 + $0x10] sm:$0xff]
  %v1277 = vld [vmem:[%s1273 + $0x18] sm:$0xff]
  %s1278 = scalar_lea.vmem %s6, 1
  %v1279 = vld [vmem:[%s1278] ss:$2 sm:$0x3]
  %v1281 = vperm.slane %v1279, 0
  %v1282 = vperm.slane %v1279, 1
  %v1283 = vrot.slane %v1282, 4
  %v1284 = vsel %vm146, %v1281, %v1283
  %1286 = vst [vmem:[#allocation1] ss:$4 sm:$0xff] %v1265
  %s1288 = scalar_lea.vmem [#allocation1], 1
  %1289 = vst [vmem:[%s1288] ss:$4 sm:$0xff] %v1266
  %s1291 = scalar_lea.vmem [#allocation1], 2
  %1292 = vst [vmem:[%s1291] ss:$4 sm:$0xff] %v1267
  %s1294 = scalar_lea.vmem [#allocation1], 3
  %1295 = vst [vmem:[%s1294] ss:$4 sm:$0xff] %v1268
  %s1297 = scalar_lea.vmem [#allocation1], 32
  %1298 = vst [vmem:[%s1297] ss:$4 sm:$0xff] %v1269
  %s1300 = scalar_lea.vmem [#allocation1], 33
  %1301 = vst [vmem:[%s1300] ss:$4 sm:$0xff] %v1270
  %s1303 = scalar_lea.vmem [#allocation1], 34
  %1304 = vst [vmem:[%s1303] ss:$4 sm:$0xff] %v1271
  %s1306 = scalar_lea.vmem [#allocation1], 35
  %1307 = vst [vmem:[%s1306] ss:$4 sm:$0xff] %v1272
  %v1308 = vld.sshfl [vmem:[#allocation1] sm:$0xff pattern:$0x73625140]
  %v1309 = vld.sshfl [vmem:[#allocation1 + $0x20] sm:$0xff pattern:$0x73625140]
  %v1314 = vunpack.c.l.b16 %v1274
  %v1315 = vunpack.c.h.b16 %v1274
  %v1316 = vunpack.c.l.b16 %v1275
  %v1317 = vunpack.c.h.b16 %v1275
  %v1318 = vunpack.c.l.b16 %v1276
  %v1319 = vunpack.c.h.b16 %v1276
  %v1320 = vunpack.c.l.b16 %v1277
  %v1321 = vunpack.c.h.b16 %v1277
  %v1322 = vpack.c.b16 %v1316, %v1314
  %v1323 = vpack.c.b16 %v1317, %v1315
  %v1324 = vpack.c.b16 %v1320, %v1318
  %v1325 = vpack.c.b16 %v1321, %v1319
  %1330 = vst [vmem:[#allocation1] ss:$2 sm:$0xff] %v1284
  %s1331 = scalar_lea.vmem [#allocation1], 1
  %1332 = vst [vmem:[%s1331] ss:$2 sm:$0xff] %v1284
  %s1333 = scalar_lea.vmem [#allocation1], 16
  %1334 = vst [vmem:[%s1333] ss:$2 sm:$0xff] %v1284
  %s1335 = scalar_lea.vmem [#allocation1], 17
  %1336 = vst [vmem:[%s1335] ss:$2 sm:$0xff] %v1284
  %s1337 = scalar_lea.vmem [#allocation1], 32
  %1338 = vst [vmem:[%s1337] ss:$2 sm:$0xff] %v1284
  %s1339 = scalar_lea.vmem [#allocation1], 33
  %1340 = vst [vmem:[%s1339] ss:$2 sm:$0xff] %v1284
  %s1341 = scalar_lea.vmem [#allocation1], 48
  %1342 = vst [vmem:[%s1341] ss:$2 sm:$0xff] %v1284
  %s1343 = scalar_lea.vmem [#allocation1], 49
  %1344 = vst [vmem:[%s1343] ss:$2 sm:$0xff] %v1284
  %v1345 = vld.sshfl [vmem:[#allocation1] sm:$0xff pattern:$0x75316420]
  %v1346 = vld.sshfl [vmem:[#allocation1 + $0x8] sm:$0xff pattern:$0x75316420]
  %v1347 = vld.sshfl [vmem:[#allocation1 + $0x10] sm:$0xff pattern:$0x75316420]
  %v1348 = vld.sshfl [vmem:[#allocation1 + $0x18] sm:$0xff pattern:$0x75316420]
  %v1349 = vld.sshfl [vmem:[#allocation1 + $0x20] sm:$0xff pattern:$0x75316420]
  %v1350 = vld.sshfl [vmem:[#allocation1 + $0x28] sm:$0xff pattern:$0x75316420]
  %v1351 = vld.sshfl [vmem:[#allocation1 + $0x30] sm:$0xff pattern:$0x75316420]
  %v1352 = vld.sshfl [vmem:[#allocation1 + $0x38] sm:$0xff pattern:$0x75316420]
  %v1361 = vsel %vm224, %v1308, 0
  %v1363 = vsel %vm224, %v1309, 0
  %1365 = vmatpush.bf16.msra.mxu0 0
  %1366 = vmatpush.bf16.msra.mxu0 0
  %1367 = vmatpush.bf16.msra.mxu0 0
  %1368 = vmatpush.bf16.msra.mxu0 0
  %1369 = vmatpush.bf16.msra.mxu0 0
  %1370 = vmatpush.bf16.msra.mxu0 0
  %1371 = vmatpush.bf16.msra.mxu0 %v1324
  %1372 = vmatpush.bf16.msra.mxu0 %v1322
  %1373 = vmatmul.bf16.gmra.mxu0 %v1361
  %v1374 = vpop.f32.mrf.mxu0
  %v1375 = vadd.f32 %v1345, %v1374
  %v1376 = vpop.f32.mrf.mxu0
  %v1377 = vadd.f32 %v1347, %v1376
  %1378 = vmatmul.bf16.gmra.mxu0 %v1363
  %v1379 = vpop.f32.mrf.mxu0
  %v1380 = vadd.f32 %v1349, %v1379
  %v1381 = vpop.f32.mrf.mxu0
  %v1382 = vadd.f32 %v1351, %v1381
  %1383 = vdwg.mxu0
  %1384 = vmatpush.bf16.msra.mxu0 0
  %1385 = vmatpush.bf16.msra.mxu0 0
  %1386 = vmatpush.bf16.msra.mxu0 0
  %1387 = vmatpush.bf16.msra.mxu0 0
  %1388 = vmatpush.bf16.msra.mxu0 0
  %1389 = vmatpush.bf16.msra.mxu0 0
  %1390 = vmatpush.bf16.msra.mxu0 %v1325
  %1391 = vmatpush.bf16.msra.mxu0 %v1323
  %1392 = vmatmul.bf16.gmra.mxu0 %v1361
  %v1393 = vpop.f32.mrf.mxu0
  %v1394 = vadd.f32 %v1346, %v1393
  %v1395 = vpop.f32.mrf.mxu0
  %v1396 = vadd.f32 %v1348, %v1395
  %1397 = vmatmul.bf16.gmra.mxu0 %v1363
  %v1398 = vpop.f32.mrf.mxu0
  %v1399 = vadd.f32 %v1350, %v1398
  %v1400 = vpop.f32.mrf.mxu0
  %v1401 = vadd.f32 %v1352, %v1400
  %1402 = vdwg.mxu0
  %v1411 = vrot.slane %v1394, 4
  %v1412 = vrot.slane %v1396, 4
  %v1413 = vrot.slane %v1399, 4
  %v1414 = vrot.slane %v1401, 4
  %v1415 = vsel %vm146, %v1375, %v1411
  %v1416 = vsel %vm146, %v1411, %v1375
  %v1417 = vrot.slane %v1416, 4
  %v1418 = vsel %vm146, %v1377, %v1412
  %v1419 = vsel %vm146, %v1412, %v1377
  %v1420 = vrot.slane %v1419, 4
  %v1421 = vsel %vm146, %v1380, %v1413
  %v1422 = vsel %vm146, %v1413, %v1380
  %v1423 = vrot.slane %v1422, 4
  %v1424 = vsel %vm146, %v1382, %v1414
  %v1425 = vsel %vm146, %v1414, %v1382
  %v1426 = vrot.slane %v1425, 4
  %v1435 = vpack.c.bf16 %v1415, %v1415
  %v1436 = vpack.c.bf16 %v1417, %v1417
  %v1437 = vpack.c.bf16 %v1418, %v1418
  %v1438 = vpack.c.bf16 %v1420, %v1420
  %v1439 = vpack.c.bf16 %v1421, %v1421
  %v1440 = vpack.c.bf16 %v1423, %v1423
  %v1441 = vpack.c.bf16 %v1424, %v1424
  %v1442 = vpack.c.bf16 %v1426, %v1426
  %1443 = vst [vmem:[#allocation1] ss:$2 sm:$0xff] %v1415
  %v1444 = vld.sshfl [vmem:[#allocation1] sm:$0xff pattern:$0x75316420]
  %v1445 = vld.sshfl [vmem:[#allocation1 + $0x8] sm:$0xff pattern:$0x75316420]
  %s1446 = scalar_lea.vmem [#allocation1], 16
  %1447 = vst [vmem:[%s1446] ss:$2 sm:$0xff] %v1417
  %v1448 = vld.sshfl [vmem:[#allocation1 + $0x10] sm:$0xff pattern:$0x75316420]
  %v1449 = vld.sshfl [vmem:[#allocation1 + $0x18] sm:$0xff pattern:$0x75316420]
  %s1450 = scalar_lea.vmem [#allocation1], 32
  %1451 = vst [vmem:[%s1450] ss:$2 sm:$0xff] %v1418
  %v1452 = vld.sshfl [vmem:[#allocation1 + $0x20] sm:$0xff pattern:$0x75316420]
  %v1453 = vld.sshfl [vmem:[#allocation1 + $0x28] sm:$0xff pattern:$0x75316420]
  %s1454 = scalar_lea.vmem [#allocation1], 48
  %1455 = vst [vmem:[%s1454] ss:$2 sm:$0xff] %v1420
  %v1456 = vld.sshfl [vmem:[#allocation1 + $0x30] sm:$0xff pattern:$0x75316420]
  %v1457 = vld.sshfl [vmem:[#allocation1 + $0x38] sm:$0xff pattern:$0x75316420]
  %1458 = vst [vmem:[#allocation1] ss:$2 sm:$0xff] %v1421
  %v1459 = vld.sshfl [vmem:[#allocation1] sm:$0xff pattern:$0x75316420]
  %v1460 = vld.sshfl [vmem:[#allocation1 + $0x8] sm:$0xff pattern:$0x75316420]
  %1461 = vst [vmem:[%s1446] ss:$2 sm:$0xff] %v1423
  %v1462 = vld.sshfl [vmem:[#allocation1 + $0x10] sm:$0xff pattern:$0x75316420]
  %v1463 = vld.sshfl [vmem:[#allocation1 + $0x18] sm:$0xff pattern:$0x75316420]
  %1464 = vst [vmem:[%s1450] ss:$2 sm:$0xff] %v1424
  %v1465 = vld.sshfl [vmem:[#allocation1 + $0x20] sm:$0xff pattern:$0x75316420]
  %v1466 = vld.sshfl [vmem:[#allocation1 + $0x28] sm:$0xff pattern:$0x75316420]
  %1467 = vst [vmem:[%s1454] ss:$2 sm:$0xff] %v1426
  %v1468 = vld.sshfl [vmem:[#allocation1 + $0x30] sm:$0xff pattern:$0x75316420]
  %v1469 = vld.sshfl [vmem:[#allocation1 + $0x38] sm:$0xff pattern:$0x75316420]
  %v1486 = vpack.c.bf16 %v1445, %v1444
  %v1487 = vpack.c.bf16 %v1449, %v1448
  %v1488 = vpack.c.bf16 %v1453, %v1452
  %v1489 = vpack.c.bf16 %v1457, %v1456
  %v1490 = vpack.c.bf16 %v1460, %v1459
  %v1491 = vpack.c.bf16 %v1463, %v1462
  %v1492 = vpack.c.bf16 %v1466, %v1465
  %v1493 = vpack.c.bf16 %v1469, %v1468
  %v1495 = vunpack.c.l.b16 %v1435
  %v1496 = vpack.c.b16 %v1495, %v1495
  %1497 = vrot.lane.b32.xlu0 %v1496, 96
  %v1498 = vpop.permute.xlu0 %1497
  %v1500 = vsel %vm367, %v1498, 0
  %1502 = vmatpush.bf16.msra.mxu0 0
  %1503 = vmatpush.bf16.msra.mxu0 0
  %1504 = vmatpush.bf16.msra.mxu0 0
  %1505 = vmatpush.bf16.msra.mxu0 0
  %1506 = vmatpush.bf16.msra.mxu0 0
  %1507 = vmatpush.bf16.msra.mxu0 0
  %1508 = vmatpush.bf16.msra.mxu0 0
  %1509 = vmatpush.bf16.msra.mxu0 %v1500
  %1510 = vmatmul.bf16.gmra.mxu0 %v365
  %v1511 = vpop.f32.mrf.mxu0
  %v1512 = vadd.f32 0.0, %v1511
  %v1513 = vpop.f32.mrf.mxu0
  %1514 = vdwg.mxu0
  %v1516 = vunpack.c.l.b16 %v1436
  %v1517 = vpack.c.b16 %v1516, %v1516
  %1518 = vrot.lane.b32.xlu0 %v1517, 96
  %v1519 = vpop.permute.xlu0 %1518
  %v1521 = vsel %vm367, %v1519, 0
  %1523 = vmatpush.bf16.msra.mxu0 0
  %1524 = vmatpush.bf16.msra.mxu0 0
  %1525 = vmatpush.bf16.msra.mxu0 0
  %1526 = vmatpush.bf16.msra.mxu0 0
  %1527 = vmatpush.bf16.msra.mxu0 0
  %1528 = vmatpush.bf16.msra.mxu0 0
  %1529 = vmatpush.bf16.msra.mxu0 0
  %1530 = vmatpush.bf16.msra.mxu0 %v1521
  %1531 = vmatmul.bf16.gmra.mxu0 %v390
  %v1532 = vpop.f32.mrf.mxu0
  %v1533 = vadd.f32 0.0, %v1532
  %v1534 = vpop.f32.mrf.mxu0
  %1535 = vdwg.mxu0
  %v1537 = vunpack.c.l.b16 %v1437
  %v1538 = vpack.c.b16 %v1537, %v1537
  %1539 = vrot.lane.b32.xlu0 %v1538, 96
  %v1540 = vpop.permute.xlu0 %1539
  %v1542 = vsel %vm367, %v1540, 0
  %1544 = vmatpush.bf16.msra.mxu0 0
  %1545 = vmatpush.bf16.msra.mxu0 0
  %1546 = vmatpush.bf16.msra.mxu0 0
  %1547 = vmatpush.bf16.msra.mxu0 0
  %1548 = vmatpush.bf16.msra.mxu0 0
  %1549 = vmatpush.bf16.msra.mxu0 0
  %1550 = vmatpush.bf16.msra.mxu0 0
  %1551 = vmatpush.bf16.msra.mxu0 %v1542
  %1552 = vmatmul.bf16.gmra.mxu0 %v414
  %v1553 = vpop.f32.mrf.mxu0
  %v1554 = vadd.f32 0.0, %v1553
  %v1555 = vpop.f32.mrf.mxu0
  %1556 = vdwg.mxu0
  %v1558 = vunpack.c.l.b16 %v1438
  %v1559 = vpack.c.b16 %v1558, %v1558
  %1560 = vrot.lane.b32.xlu0 %v1559, 96
  %v1561 = vpop.permute.xlu0 %1560
  %v1563 = vsel %vm367, %v1561, 0
  %1565 = vmatpush.bf16.msra.mxu0 0
  %1566 = vmatpush.bf16.msra.mxu0 0
  %1567 = vmatpush.bf16.msra.mxu0 0
  %1568 = vmatpush.bf16.msra.mxu0 0
  %1569 = vmatpush.bf16.msra.mxu0 0
  %1570 = vmatpush.bf16.msra.mxu0 0
  %1571 = vmatpush.bf16.msra.mxu0 0
  %1572 = vmatpush.bf16.msra.mxu0 %v1563
  %1573 = vmatmul.bf16.gmra.mxu0 %v438
  %v1574 = vpop.f32.mrf.mxu0
  %v1575 = vadd.f32 0.0, %v1574
  %v1576 = vpop.f32.mrf.mxu0
  %1577 = vdwg.mxu0
  %v1579 = vunpack.c.l.b16 %v1439
  %v1580 = vpack.c.b16 %v1579, %v1579
  %1581 = vrot.lane.b32.xlu0 %v1580, 96
  %v1582 = vpop.permute.xlu0 %1581
  %v1584 = vsel %vm367, %v1582, 0
  %1586 = vmatpush.bf16.msra.mxu0 0
  %1587 = vmatpush.bf16.msra.mxu0 0
  %1588 = vmatpush.bf16.msra.mxu0 0
  %1589 = vmatpush.bf16.msra.mxu0 0
  %1590 = vmatpush.bf16.msra.mxu0 0
  %1591 = vmatpush.bf16.msra.mxu0 0
  %1592 = vmatpush.bf16.msra.mxu0 0
  %1593 = vmatpush.bf16.msra.mxu0 %v1584
  %1594 = vmatmul.bf16.gmra.mxu0 %v462
  %v1595 = vpop.f32.mrf.mxu0
  %v1596 = vadd.f32 0.0, %v1595
  %v1597 = vpop.f32.mrf.mxu0
  %1598 = vdwg.mxu0
  %v1600 = vunpack.c.l.b16 %v1440
  %v1601 = vpack.c.b16 %v1600, %v1600
  %1602 = vrot.lane.b32.xlu0 %v1601, 96
  %v1603 = vpop.permute.xlu0 %1602
  %v1605 = vsel %vm367, %v1603, 0
  %1607 = vmatpush.bf16.msra.mxu0 0
  %1608 = vmatpush.bf16.msra.mxu0 0
  %1609 = vmatpush.bf16.msra.mxu0 0
  %1610 = vmatpush.bf16.msra.mxu0 0
  %1611 = vmatpush.bf16.msra.mxu0 0
  %1612 = vmatpush.bf16.msra.mxu0 0
  %1613 = vmatpush.bf16.msra.mxu0 0
  %1614 = vmatpush.bf16.msra.mxu0 %v1605
  %1615 = vmatmul.bf16.gmra.mxu0 %v486
  %v1616 = vpop.f32.mrf.mxu0
  %v1617 = vadd.f32 0.0, %v1616
  %v1618 = vpop.f32.mrf.mxu0
  %1619 = vdwg.mxu0
  %v1621 = vunpack.c.l.b16 %v1441
  %v1622 = vpack.c.b16 %v1621, %v1621
  %1623 = vrot.lane.b32.xlu0 %v1622, 96
  %v1624 = vpop.permute.xlu0 %1623
  %v1626 = vsel %vm367, %v1624, 0
  %1628 = vmatpush.bf16.msra.mxu0 0
  %1629 = vmatpush.bf16.msra.mxu0 0
  %1630 = vmatpush.bf16.msra.mxu0 0
  %1631 = vmatpush.bf16.msra.mxu0 0
  %1632 = vmatpush.bf16.msra.mxu0 0
  %1633 = vmatpush.bf16.msra.mxu0 0
  %1634 = vmatpush.bf16.msra.mxu0 0
  %1635 = vmatpush.bf16.msra.mxu0 %v1626
  %1636 = vmatmul.bf16.gmra.mxu0 %v510
  %v1637 = vpop.f32.mrf.mxu0
  %v1638 = vadd.f32 0.0, %v1637
  %v1639 = vpop.f32.mrf.mxu0
  %1640 = vdwg.mxu0
  %v1642 = vunpack.c.l.b16 %v1442
  %v1643 = vpack.c.b16 %v1642, %v1642
  %1644 = vrot.lane.b32.xlu0 %v1643, 96
  %v1645 = vpop.permute.xlu0 %1644
  %v1647 = vsel %vm367, %v1645, 0
  %1649 = vmatpush.bf16.msra.mxu0 0
  %1650 = vmatpush.bf16.msra.mxu0 0
  %1651 = vmatpush.bf16.msra.mxu0 0
  %1652 = vmatpush.bf16.msra.mxu0 0
  %1653 = vmatpush.bf16.msra.mxu0 0
  %1654 = vmatpush.bf16.msra.mxu0 0
  %1655 = vmatpush.bf16.msra.mxu0 0
  %1656 = vmatpush.bf16.msra.mxu0 %v1647
  %1657 = vmatmul.bf16.gmra.mxu0 %v534
  %v1658 = vpop.f32.mrf.mxu0
  %v1659 = vadd.f32 0.0, %v1658
  %v1660 = vpop.f32.mrf.mxu0
  %1661 = vdwg.mxu0
  %v1663 = vunpack.c.l.b16 %v1486
  %v1664 = vunpack.c.h.b16 %v1486
  %v1665 = vpack.c.b16 %v1663, %v1663
  %v1666 = vpack.c.b16 %v1664, %v1664
  %1667 = vrot.lane.b32.xlu0 %v1665, 32
  %v1668 = vpop.permute.xlu0 %1667
  %1669 = vrot.lane.b32.xlu0 %v1666, 32
  %v1670 = vpop.permute.xlu0 %1669
  %v1671 = vsel %vm561, %v1668, %v1670
  %v1673 = vsel %vm367, %v1671, 0
  %1675 = vmatpush.bf16.msra.mxu0 0
  %1676 = vmatpush.bf16.msra.mxu0 0
  %1677 = vmatpush.bf16.msra.mxu0 0
  %1678 = vmatpush.bf16.msra.mxu0 0
  %1679 = vmatpush.bf16.msra.mxu0 0
  %1680 = vmatpush.bf16.msra.mxu0 0
  %1681 = vmatpush.bf16.msra.mxu0 0
  %1682 = vmatpush.bf16.msra.mxu0 %v1673
  %1683 = vmatmul.bf16.gmra.mxu0 %v564
  %v1684 = vpop.f32.mrf.mxu0
  %v1685 = vadd.f32 0.0, %v1684
  %v1686 = vpop.f32.mrf.mxu0
  %1687 = vdwg.mxu0
  %v1689 = vunpack.c.l.b16 %v1487
  %v1690 = vunpack.c.h.b16 %v1487
  %v1691 = vpack.c.b16 %v1689, %v1689
  %v1692 = vpack.c.b16 %v1690, %v1690
  %1693 = vrot.lane.b32.xlu0 %v1691, 32
  %v1694 = vpop.permute.xlu0 %1693
  %1695 = vrot.lane.b32.xlu0 %v1692, 32
  %v1696 = vpop.permute.xlu0 %1695
  %v1697 = vsel %vm561, %v1694, %v1696
  %v1699 = vsel %vm367, %v1697, 0
  %1701 = vmatpush.bf16.msra.mxu0 0
  %1702 = vmatpush.bf16.msra.mxu0 0
  %1703 = vmatpush.bf16.msra.mxu0 0
  %1704 = vmatpush.bf16.msra.mxu0 0
  %1705 = vmatpush.bf16.msra.mxu0 0
  %1706 = vmatpush.bf16.msra.mxu0 0
  %1707 = vmatpush.bf16.msra.mxu0 0
  %1708 = vmatpush.bf16.msra.mxu0 %v1699
  %1709 = vmatmul.bf16.gmra.mxu0 %v593
  %v1710 = vpop.f32.mrf.mxu0
  %v1711 = vadd.f32 0.0, %v1710
  %v1712 = vpop.f32.mrf.mxu0
  %1713 = vdwg.mxu0
  %v1715 = vunpack.c.l.b16 %v1488
  %v1716 = vunpack.c.h.b16 %v1488
  %v1717 = vpack.c.b16 %v1715, %v1715
  %v1718 = vpack.c.b16 %v1716, %v1716
  %1719 = vrot.lane.b32.xlu0 %v1717, 32
  %v1720 = vpop.permute.xlu0 %1719
  %1721 = vrot.lane.b32.xlu0 %v1718, 32
  %v1722 = vpop.permute.xlu0 %1721
  %v1723 = vsel %vm561, %v1720, %v1722
  %v1725 = vsel %vm367, %v1723, 0
  %1727 = vmatpush.bf16.msra.mxu0 0
  %1728 = vmatpush.bf16.msra.mxu0 0
  %1729 = vmatpush.bf16.msra.mxu0 0
  %1730 = vmatpush.bf16.msra.mxu0 0
  %1731 = vmatpush.bf16.msra.mxu0 0
  %1732 = vmatpush.bf16.msra.mxu0 0
  %1733 = vmatpush.bf16.msra.mxu0 0
  %1734 = vmatpush.bf16.msra.mxu0 %v1725
  %1735 = vmatmul.bf16.gmra.mxu0 %v622
  %v1736 = vpop.f32.mrf.mxu0
  %v1737 = vadd.f32 0.0, %v1736
  %v1738 = vpop.f32.mrf.mxu0
  %1739 = vdwg.mxu0
  %v1741 = vunpack.c.l.b16 %v1489
  %v1742 = vunpack.c.h.b16 %v1489
  %v1743 = vpack.c.b16 %v1741, %v1741
  %v1744 = vpack.c.b16 %v1742, %v1742
  %1745 = vrot.lane.b32.xlu0 %v1743, 32
  %v1746 = vpop.permute.xlu0 %1745
  %1747 = vrot.lane.b32.xlu0 %v1744, 32
  %v1748 = vpop.permute.xlu0 %1747
  %v1749 = vsel %vm561, %v1746, %v1748
  %v1751 = vsel %vm367, %v1749, 0
  %1753 = vmatpush.bf16.msra.mxu0 0
  %1754 = vmatpush.bf16.msra.mxu0 0
  %1755 = vmatpush.bf16.msra.mxu0 0
  %1756 = vmatpush.bf16.msra.mxu0 0
  %1757 = vmatpush.bf16.msra.mxu0 0
  %1758 = vmatpush.bf16.msra.mxu0 0
  %1759 = vmatpush.bf16.msra.mxu0 0
  %1760 = vmatpush.bf16.msra.mxu0 %v1751
  %1761 = vmatmul.bf16.gmra.mxu0 %v651
  %v1762 = vpop.f32.mrf.mxu0
  %v1763 = vadd.f32 0.0, %v1762
  %v1764 = vpop.f32.mrf.mxu0
  %1765 = vdwg.mxu0
  %v1767 = vunpack.c.l.b16 %v1490
  %v1768 = vunpack.c.h.b16 %v1490
  %v1769 = vpack.c.b16 %v1767, %v1767
  %v1770 = vpack.c.b16 %v1768, %v1768
  %1771 = vrot.lane.b32.xlu0 %v1769, 32
  %v1772 = vpop.permute.xlu0 %1771
  %1773 = vrot.lane.b32.xlu0 %v1770, 32
  %v1774 = vpop.permute.xlu0 %1773
  %v1775 = vsel %vm561, %v1772, %v1774
  %v1777 = vsel %vm367, %v1775, 0
  %1779 = vmatpush.bf16.msra.mxu0 0
  %1780 = vmatpush.bf16.msra.mxu0 0
  %1781 = vmatpush.bf16.msra.mxu0 0
  %1782 = vmatpush.bf16.msra.mxu0 0
  %1783 = vmatpush.bf16.msra.mxu0 0
  %1784 = vmatpush.bf16.msra.mxu0 0
  %1785 = vmatpush.bf16.msra.mxu0 0
  %1786 = vmatpush.bf16.msra.mxu0 %v1777
  %1787 = vmatmul.bf16.gmra.mxu0 %v680
  %v1788 = vpop.f32.mrf.mxu0
  %v1789 = vadd.f32 0.0, %v1788
  %v1790 = vpop.f32.mrf.mxu0
  %1791 = vdwg.mxu0
  %v1793 = vunpack.c.l.b16 %v1491
  %v1794 = vunpack.c.h.b16 %v1491
  %v1795 = vpack.c.b16 %v1793, %v1793
  %v1796 = vpack.c.b16 %v1794, %v1794
  %1797 = vrot.lane.b32.xlu0 %v1795, 32
  %v1798 = vpop.permute.xlu0 %1797
  %1799 = vrot.lane.b32.xlu0 %v1796, 32
  %v1800 = vpop.permute.xlu0 %1799
  %v1801 = vsel %vm561, %v1798, %v1800
  %v1803 = vsel %vm367, %v1801, 0
  %1805 = vmatpush.bf16.msra.mxu0 0
  %1806 = vmatpush.bf16.msra.mxu0 0
  %1807 = vmatpush.bf16.msra.mxu0 0
  %1808 = vmatpush.bf16.msra.mxu0 0
  %1809 = vmatpush.bf16.msra.mxu0 0
  %1810 = vmatpush.bf16.msra.mxu0 0
  %1811 = vmatpush.bf16.msra.mxu0 0
  %1812 = vmatpush.bf16.msra.mxu0 %v1803
  %1813 = vmatmul.bf16.gmra.mxu0 %v709
  %v1814 = vpop.f32.mrf.mxu0
  %v1815 = vadd.f32 0.0, %v1814
  %v1816 = vpop.f32.mrf.mxu0
  %1817 = vdwg.mxu0
  %v1819 = vunpack.c.l.b16 %v1492
  %v1820 = vunpack.c.h.b16 %v1492
  %v1821 = vpack.c.b16 %v1819, %v1819
  %v1822 = vpack.c.b16 %v1820, %v1820
  %1823 = vrot.lane.b32.xlu0 %v1821, 32
  %v1824 = vpop.permute.xlu0 %1823
  %1825 = vrot.lane.b32.xlu0 %v1822, 32
  %v1826 = vpop.permute.xlu0 %1825
  %v1827 = vsel %vm561, %v1824, %v1826
  %v1829 = vsel %vm367, %v1827, 0
  %1831 = vmatpush.bf16.msra.mxu0 0
  %1832 = vmatpush.bf16.msra.mxu0 0
  %1833 = vmatpush.bf16.msra.mxu0 0
  %1834 = vmatpush.bf16.msra.mxu0 0
  %1835 = vmatpush.bf16.msra.mxu0 0
  %1836 = vmatpush.bf16.msra.mxu0 0
  %1837 = vmatpush.bf16.msra.mxu0 0
  %1838 = vmatpush.bf16.msra.mxu0 %v1829
  %1839 = vmatmul.bf16.gmra.mxu0 %v738
  %v1840 = vpop.f32.mrf.mxu0
  %v1841 = vadd.f32 0.0, %v1840
  %v1842 = vpop.f32.mrf.mxu0
  %1843 = vdwg.mxu0
  %v1845 = vunpack.c.l.b16 %v1493
  %v1846 = vunpack.c.h.b16 %v1493
  %v1847 = vpack.c.b16 %v1845, %v1845
  %v1848 = vpack.c.b16 %v1846, %v1846
  %1849 = vrot.lane.b32.xlu0 %v1847, 32
  %v1850 = vpop.permute.xlu0 %1849
  %1851 = vrot.lane.b32.xlu0 %v1848, 32
  %v1852 = vpop.permute.xlu0 %1851
  %v1853 = vsel %vm561, %v1850, %v1852
  %v1855 = vsel %vm367, %v1853, 0
  %1857 = vmatpush.bf16.msra.mxu0 0
  %1858 = vmatpush.bf16.msra.mxu0 0
  %1859 = vmatpush.bf16.msra.mxu0 0
  %1860 = vmatpush.bf16.msra.mxu0 0
  %1861 = vmatpush.bf16.msra.mxu0 0
  %1862 = vmatpush.bf16.msra.mxu0 0
  %1863 = vmatpush.bf16.msra.mxu0 0
  %1864 = vmatpush.bf16.msra.mxu0 %v1855
  %1865 = vmatmul.bf16.gmra.mxu0 %v767
  %v1866 = vpop.f32.mrf.mxu0
  %v1867 = vadd.f32 0.0, %v1866
  %v1868 = vpop.f32.mrf.mxu0
  %1869 = vdwg.mxu0
  %v1870 = vxor.u32 %v1512, 2147483648
  %v1871 = vxor.u32 %v1533, 2147483648
  %v1872 = vxor.u32 %v1554, 2147483648
  %v1873 = vxor.u32 %v1575, 2147483648
  %v1874 = vxor.u32 %v1596, 2147483648
  %v1875 = vxor.u32 %v1617, 2147483648
  %v1876 = vxor.u32 %v1638, 2147483648
  %v1877 = vxor.u32 %v1659, 2147483648
  %v1878 = vmul.f32 %v1870, 1.442695
  %v1879 = vpow.pop %v1878
  %v1880 = vmul.f32 %v1871, 1.442695
  %v1881 = vpow.pop %v1880
  %v1882 = vmul.f32 %v1872, 1.442695
  %v1883 = vpow.pop %v1882
  %v1884 = vmul.f32 %v1873, 1.442695
  %v1885 = vpow.pop %v1884
  %v1886 = vmul.f32 %v1874, 1.442695
  %v1887 = vpow.pop %v1886
  %v1888 = vmul.f32 %v1875, 1.442695
  %v1889 = vpow.pop %v1888
  %v1890 = vmul.f32 %v1876, 1.442695
  %v1891 = vpow.pop %v1890
  %v1892 = vmul.f32 %v1877, 1.442695
  %v1893 = vpow.pop %v1892
  %v1894 = vadd.f32 %v1879, 1.0
  %v1895 = vadd.f32 %v1881, 1.0
  %v1896 = vadd.f32 %v1883, 1.0
  %v1897 = vadd.f32 %v1885, 1.0
  %v1898 = vadd.f32 %v1887, 1.0
  %v1899 = vadd.f32 %v1889, 1.0
  %v1900 = vadd.f32 %v1891, 1.0
  %v1901 = vadd.f32 %v1893, 1.0
  %v1902 = vrcp.pop %v1894
  %v1903 = vmul.f32 %v1894, %v1902
  %v1904 = vsub.f32 1.0, %v1903
  %v1905 = vmul.f32 %v1902, %v1904
  %v1906 = vadd.f32 %v1902, %v1905
  %vm1907 = vweird.f32 %v1894
  %vm1908 = vweird.f32 %v1902
  %vm1909 = vmor %vm1907, %vm1908
  %v1910 = vsel %vm1909, %v1902, %v1906
  %v1911 = vand.u32 2147483647, %v1894
  %vm1912 = vcmp.eq.f32.partialorder %v1911, 8.507059e+37
  %v1913 = vand.u32 %v1894, 2147483648
  %v1914 = vor.u32 1.1754944e-38, %v1913
  %v1915 = vsel %vm1912, %v1914, %v1910
  %v1916 = vmul.f32 1.0, %v1915
  %v1917 = vrcp.pop %v1895
  %v1918 = vmul.f32 %v1895, %v1917
  %v1919 = vsub.f32 1.0, %v1918
  %v1920 = vmul.f32 %v1917, %v1919
  %v1921 = vadd.f32 %v1917, %v1920
  %vm1922 = vweird.f32 %v1895
  %vm1923 = vweird.f32 %v1917
  %vm1924 = vmor %vm1922, %vm1923
  %v1925 = vsel %vm1924, %v1917, %v1921
  %v1926 = vand.u32 2147483647, %v1895
  %vm1927 = vcmp.eq.f32.partialorder %v1926, 8.507059e+37
  %v1928 = vand.u32 %v1895, 2147483648
  %v1929 = vor.u32 1.1754944e-38, %v1928
  %v1930 = vsel %vm1927, %v1929, %v1925
  %v1931 = vmul.f32 1.0, %v1930
  %v1932 = vrcp.pop %v1896
  %v1933 = vmul.f32 %v1896, %v1932
  %v1934 = vsub.f32 1.0, %v1933
  %v1935 = vmul.f32 %v1932, %v1934
  %v1936 = vadd.f32 %v1932, %v1935
  %vm1937 = vweird.f32 %v1896
  %vm1938 = vweird.f32 %v1932
  %vm1939 = vmor %vm1937, %vm1938
  %v1940 = vsel %vm1939, %v1932, %v1936
  %v1941 = vand.u32 2147483647, %v1896
  %vm1942 = vcmp.eq.f32.partialorder %v1941, 8.507059e+37
  %v1943 = vand.u32 %v1896, 2147483648
  %v1944 = vor.u32 1.1754944e-38, %v1943
  %v1945 = vsel %vm1942, %v1944, %v1940
  %v1946 = vmul.f32 1.0, %v1945
  %v1947 = vrcp.pop %v1897
  %v1948 = vmul.f32 %v1897, %v1947
  %v1949 = vsub.f32 1.0, %v1948
  %v1950 = vmul.f32 %v1947, %v1949
  %v1951 = vadd.f32 %v1947, %v1950
  %vm1952 = vweird.f32 %v1897
  %vm1953 = vweird.f32 %v1947
  %vm1954 = vmor %vm1952, %vm1953
  %v1955 = vsel %vm1954, %v1947, %v1951
  %v1956 = vand.u32 2147483647, %v1897
  %vm1957 = vcmp.eq.f32.partialorder %v1956, 8.507059e+37
  %v1958 = vand.u32 %v1897, 2147483648
  %v1959 = vor.u32 1.1754944e-38, %v1958
  %v1960 = vsel %vm1957, %v1959, %v1955
  %v1961 = vmul.f32 1.0, %v1960
  %v1962 = vrcp.pop %v1898
  %v1963 = vmul.f32 %v1898, %v1962
  %v1964 = vsub.f32 1.0, %v1963
  %v1965 = vmul.f32 %v1962, %v1964
  %v1966 = vadd.f32 %v1962, %v1965
  %vm1967 = vweird.f32 %v1898
  %vm1968 = vweird.f32 %v1962
  %vm1969 = vmor %vm1967, %vm1968
  %v1970 = vsel %vm1969, %v1962, %v1966
  %v1971 = vand.u32 2147483647, %v1898
  %vm1972 = vcmp.eq.f32.partialorder %v1971, 8.507059e+37
  %v1973 = vand.u32 %v1898, 2147483648
  %v1974 = vor.u32 1.1754944e-38, %v1973
  %v1975 = vsel %vm1972, %v1974, %v1970
  %v1976 = vmul.f32 1.0, %v1975
  %v1977 = vrcp.pop %v1899
  %v1978 = vmul.f32 %v1899, %v1977
  %v1979 = vsub.f32 1.0, %v1978
  %v1980 = vmul.f32 %v1977, %v1979
  %v1981 = vadd.f32 %v1977, %v1980
  %vm1982 = vweird.f32 %v1899
  %vm1983 = vweird.f32 %v1977
  %vm1984 = vmor %vm1982, %vm1983
  %v1985 = vsel %vm1984, %v1977, %v1981
  %v1986 = vand.u32 2147483647, %v1899
  %vm1987 = vcmp.eq.f32.partialorder %v1986, 8.507059e+37
  %v1988 = vand.u32 %v1899, 2147483648
  %v1989 = vor.u32 1.1754944e-38, %v1988
  %v1990 = vsel %vm1987, %v1989, %v1985
  %v1991 = vmul.f32 1.0, %v1990
  %v1992 = vrcp.pop %v1900
  %v1993 = vmul.f32 %v1900, %v1992
  %v1994 = vsub.f32 1.0, %v1993
  %v1995 = vmul.f32 %v1992, %v1994
  %v1996 = vadd.f32 %v1992, %v1995
  %vm1997 = vweird.f32 %v1900
  %vm1998 = vweird.f32 %v1992
  %vm1999 = vmor %vm1997, %vm1998
  %v2000 = vsel %vm1999, %v1992, %v1996
  %v2001 = vand.u32 2147483647, %v1900
  %vm2002 = vcmp.eq.f32.partialorder %v2001, 8.507059e+37
  %v2003 = vand.u32 %v1900, 2147483648
  %v2004 = vor.u32 1.1754944e-38, %v2003
  %v2005 = vsel %vm2002, %v2004, %v2000
  %v2006 = vmul.f32 1.0, %v2005
  %v2007 = vrcp.pop %v1901
  %v2008 = vmul.f32 %v1901, %v2007
  %v2009 = vsub.f32 1.0, %v2008
  %v2010 = vmul.f32 %v2007, %v2009
  %v2011 = vadd.f32 %v2007, %v2010
  %vm2012 = vweird.f32 %v1901
  %vm2013 = vweird.f32 %v2007
  %vm2014 = vmor %vm2012, %vm2013
  %v2015 = vsel %vm2014, %v2007, %v2011
  %v2016 = vand.u32 2147483647, %v1901
  %vm2017 = vcmp.eq.f32.partialorder %v2016, 8.507059e+37
  %v2018 = vand.u32 %v1901, 2147483648
  %v2019 = vor.u32 1.1754944e-38, %v2018
  %v2020 = vsel %vm2017, %v2019, %v2015
  %v2021 = vmul.f32 1.0, %v2020
  %v2022 = vxor.u32 %v1685, 2147483648
  %v2023 = vxor.u32 %v1711, 2147483648
  %v2024 = vxor.u32 %v1737, 2147483648
  %v2025 = vxor.u32 %v1763, 2147483648
  %v2026 = vxor.u32 %v1789, 2147483648
  %v2027 = vxor.u32 %v1815, 2147483648
  %v2028 = vxor.u32 %v1841, 2147483648
  %v2029 = vxor.u32 %v1867, 2147483648
  %v2030 = vmul.f32 %v2022, 1.442695
  %v2031 = vpow.pop %v2030
  %v2032 = vmul.f32 %v2023, 1.442695
  %v2033 = vpow.pop %v2032
  %v2034 = vmul.f32 %v2024, 1.442695
  %v2035 = vpow.pop %v2034
  %v2036 = vmul.f32 %v2025, 1.442695
  %v2037 = vpow.pop %v2036
  %v2038 = vmul.f32 %v2026, 1.442695
  %v2039 = vpow.pop %v2038
  %v2040 = vmul.f32 %v2027, 1.442695
  %v2041 = vpow.pop %v2040
  %v2042 = vmul.f32 %v2028, 1.442695
  %v2043 = vpow.pop %v2042
  %v2044 = vmul.f32 %v2029, 1.442695
  %v2045 = vpow.pop %v2044
  %v2046 = vadd.f32 %v2031, 1.0
  %v2047 = vadd.f32 %v2033, 1.0
  %v2048 = vadd.f32 %v2035, 1.0
  %v2049 = vadd.f32 %v2037, 1.0
  %v2050 = vadd.f32 %v2039, 1.0
  %v2051 = vadd.f32 %v2041, 1.0
  %v2052 = vadd.f32 %v2043, 1.0
  %v2053 = vadd.f32 %v2045, 1.0
  %v2054 = vrcp.pop %v2046
  %v2055 = vmul.f32 %v2046, %v2054
  %v2056 = vsub.f32 1.0, %v2055
  %v2057 = vmul.f32 %v2054, %v2056
  %v2058 = vadd.f32 %v2054, %v2057
  %vm2059 = vweird.f32 %v2046
  %vm2060 = vweird.f32 %v2054
  %vm2061 = vmor %vm2059, %vm2060
  %v2062 = vsel %vm2061, %v2054, %v2058
  %v2063 = vand.u32 2147483647, %v2046
  %vm2064 = vcmp.eq.f32.partialorder %v2063, 8.507059e+37
  %v2065 = vand.u32 %v2046, 2147483648
  %v2066 = vor.u32 1.1754944e-38, %v2065
  %v2067 = vsel %vm2064, %v2066, %v2062
  %v2068 = vmul.f32 1.0, %v2067
  %v2069 = vrcp.pop %v2047
  %v2070 = vmul.f32 %v2047, %v2069
  %v2071 = vsub.f32 1.0, %v2070
  %v2072 = vmul.f32 %v2069, %v2071
  %v2073 = vadd.f32 %v2069, %v2072
  %vm2074 = vweird.f32 %v2047
  %vm2075 = vweird.f32 %v2069
  %vm2076 = vmor %vm2074, %vm2075
  %v2077 = vsel %vm2076, %v2069, %v2073
  %v2078 = vand.u32 2147483647, %v2047
  %vm2079 = vcmp.eq.f32.partialorder %v2078, 8.507059e+37
  %v2080 = vand.u32 %v2047, 2147483648
  %v2081 = vor.u32 1.1754944e-38, %v2080
  %v2082 = vsel %vm2079, %v2081, %v2077
  %v2083 = vmul.f32 1.0, %v2082
  %v2084 = vrcp.pop %v2048
  %v2085 = vmul.f32 %v2048, %v2084
  %v2086 = vsub.f32 1.0, %v2085
  %v2087 = vmul.f32 %v2084, %v2086
  %v2088 = vadd.f32 %v2084, %v2087
  %vm2089 = vweird.f32 %v2048
  %vm2090 = vweird.f32 %v2084
  %vm2091 = vmor %vm2089, %vm2090
  %v2092 = vsel %vm2091, %v2084, %v2088
  %v2093 = vand.u32 2147483647, %v2048
  %vm2094 = vcmp.eq.f32.partialorder %v2093, 8.507059e+37
  %v2095 = vand.u32 %v2048, 2147483648
  %v2096 = vor.u32 1.1754944e-38, %v2095
  %v2097 = vsel %vm2094, %v2096, %v2092
  %v2098 = vmul.f32 1.0, %v2097
  %v2099 = vrcp.pop %v2049
  %v2100 = vmul.f32 %v2049, %v2099
  %v2101 = vsub.f32 1.0, %v2100
  %v2102 = vmul.f32 %v2099, %v2101
  %v2103 = vadd.f32 %v2099, %v2102
  %vm2104 = vweird.f32 %v2049
  %vm2105 = vweird.f32 %v2099
  %vm2106 = vmor %vm2104, %vm2105
  %v2107 = vsel %vm2106, %v2099, %v2103
  %v2108 = vand.u32 2147483647, %v2049
  %vm2109 = vcmp.eq.f32.partialorder %v2108, 8.507059e+37
  %v2110 = vand.u32 %v2049, 2147483648
  %v2111 = vor.u32 1.1754944e-38, %v2110
  %v2112 = vsel %vm2109, %v2111, %v2107
  %v2113 = vmul.f32 1.0, %v2112
  %v2114 = vrcp.pop %v2050
  %v2115 = vmul.f32 %v2050, %v2114
  %v2116 = vsub.f32 1.0, %v2115
  %v2117 = vmul.f32 %v2114, %v2116
  %v2118 = vadd.f32 %v2114, %v2117
  %vm2119 = vweird.f32 %v2050
  %vm2120 = vweird.f32 %v2114
  %vm2121 = vmor %vm2119, %vm2120
  %v2122 = vsel %vm2121, %v2114, %v2118
  %v2123 = vand.u32 2147483647, %v2050
  %vm2124 = vcmp.eq.f32.partialorder %v2123, 8.507059e+37
  %v2125 = vand.u32 %v2050, 2147483648
  %v2126 = vor.u32 1.1754944e-38, %v2125
  %v2127 = vsel %vm2124, %v2126, %v2122
  %v2128 = vmul.f32 1.0, %v2127
  %v2129 = vrcp.pop %v2051
  %v2130 = vmul.f32 %v2051, %v2129
  %v2131 = vsub.f32 1.0, %v2130
  %v2132 = vmul.f32 %v2129, %v2131
  %v2133 = vadd.f32 %v2129, %v2132
  %vm2134 = vweird.f32 %v2051
  %vm2135 = vweird.f32 %v2129
  %vm2136 = vmor %vm2134, %vm2135
  %v2137 = vsel %vm2136, %v2129, %v2133
  %v2138 = vand.u32 2147483647, %v2051
  %vm2139 = vcmp.eq.f32.partialorder %v2138, 8.507059e+37
  %v2140 = vand.u32 %v2051, 2147483648
  %v2141 = vor.u32 1.1754944e-38, %v2140
  %v2142 = vsel %vm2139, %v2141, %v2137
  %v2143 = vmul.f32 1.0, %v2142
  %v2144 = vrcp.pop %v2052
  %v2145 = vmul.f32 %v2052, %v2144
  %v2146 = vsub.f32 1.0, %v2145
  %v2147 = vmul.f32 %v2144, %v2146
  %v2148 = vadd.f32 %v2144, %v2147
  %vm2149 = vweird.f32 %v2052
  %vm2150 = vweird.f32 %v2144
  %vm2151 = vmor %vm2149, %vm2150
  %v2152 = vsel %vm2151, %v2144, %v2148
  %v2153 = vand.u32 2147483647, %v2052
  %vm2154 = vcmp.eq.f32.partialorder %v2153, 8.507059e+37
  %v2155 = vand.u32 %v2052, 2147483648
  %v2156 = vor.u32 1.1754944e-38, %v2155
  %v2157 = vsel %vm2154, %v2156, %v2152
  %v2158 = vmul.f32 1.0, %v2157
  %v2159 = vrcp.pop %v2053
  %v2160 = vmul.f32 %v2053, %v2159
  %v2161 = vsub.f32 1.0, %v2160
  %v2162 = vmul.f32 %v2159, %v2161
  %v2163 = vadd.f32 %v2159, %v2162
  %vm2164 = vweird.f32 %v2053
  %vm2165 = vweird.f32 %v2159
  %vm2166 = vmor %vm2164, %vm2165
  %v2167 = vsel %vm2166, %v2159, %v2163
  %v2168 = vand.u32 2147483647, %v2053
  %vm2169 = vcmp.eq.f32.partialorder %v2168, 8.507059e+37
  %v2170 = vand.u32 %v2053, 2147483648
  %v2171 = vor.u32 1.1754944e-38, %v2170
  %v2172 = vsel %vm2169, %v2171, %v2167
  %v2173 = vmul.f32 1.0, %v2172
  %2182 = vrot.lane.b32.xlu0 %v1512, 32
  %v2183 = vpop.permute.xlu0 %2182
  %2184 = vrot.lane.b32.xlu0 %v1533, 32
  %v2185 = vpop.permute.xlu0 %2184
  %2186 = vrot.lane.b32.xlu0 %v1554, 32
  %v2187 = vpop.permute.xlu0 %2186
  %2188 = vrot.lane.b32.xlu0 %v1575, 32
  %v2189 = vpop.permute.xlu0 %2188
  %2190 = vrot.lane.b32.xlu0 %v1596, 32
  %v2191 = vpop.permute.xlu0 %2190
  %2192 = vrot.lane.b32.xlu0 %v1617, 32
  %v2193 = vpop.permute.xlu0 %2192
  %2194 = vrot.lane.b32.xlu0 %v1638, 32
  %v2195 = vpop.permute.xlu0 %2194
  %2196 = vrot.lane.b32.xlu0 %v1659, 32
  %v2197 = vpop.permute.xlu0 %2196
  %v2206 = vmul.f32 %v1916, %v2183
  %v2207 = vmul.f32 %v1931, %v2185
  %v2208 = vmul.f32 %v1946, %v2187
  %v2209 = vmul.f32 %v1961, %v2189
  %v2210 = vmul.f32 %v1976, %v2191
  %v2211 = vmul.f32 %v1991, %v2193
  %v2212 = vmul.f32 %v2006, %v2195
  %v2213 = vmul.f32 %v2021, %v2197
  %2222 = vrot.lane.b32.xlu0 %v2206, 96
  %v2223 = vpop.permute.xlu0 %2222
  %2224 = vrot.lane.b32.xlu0 %v2207, 96
  %v2225 = vpop.permute.xlu0 %2224
  %2226 = vrot.lane.b32.xlu0 %v2208, 96
  %v2227 = vpop.permute.xlu0 %2226
  %2228 = vrot.lane.b32.xlu0 %v2209, 96
  %v2229 = vpop.permute.xlu0 %2228
  %2230 = vrot.lane.b32.xlu0 %v2210, 96
  %v2231 = vpop.permute.xlu0 %2230
  %2232 = vrot.lane.b32.xlu0 %v2211, 96
  %v2233 = vpop.permute.xlu0 %2232
  %2234 = vrot.lane.b32.xlu0 %v2212, 96
  %v2235 = vpop.permute.xlu0 %2234
  %2236 = vrot.lane.b32.xlu0 %v2213, 96
  %v2237 = vpop.permute.xlu0 %2236
  %v2246 = vadd.f32 %v1415, %v2223
  %v2247 = vadd.f32 %v1417, %v2225
  %v2248 = vadd.f32 %v1418, %v2227
  %v2249 = vadd.f32 %v1420, %v2229
  %v2250 = vadd.f32 %v1421, %v2231
  %v2251 = vadd.f32 %v1423, %v2233
  %v2252 = vadd.f32 %v1424, %v2235
  %v2253 = vadd.f32 %v1426, %v2237
  %2262 = vrot.lane.b32.xlu0 %v1685, 32
  %v2263 = vpop.permute.xlu0 %2262
  %2264 = vrot.lane.b32.xlu0 %v1711, 32
  %v2265 = vpop.permute.xlu0 %2264
  %2266 = vrot.lane.b32.xlu0 %v1737, 32
  %v2267 = vpop.permute.xlu0 %2266
  %2268 = vrot.lane.b32.xlu0 %v1763, 32
  %v2269 = vpop.permute.xlu0 %2268
  %2270 = vrot.lane.b32.xlu0 %v1789, 32
  %v2271 = vpop.permute.xlu0 %2270
  %2272 = vrot.lane.b32.xlu0 %v1815, 32
  %v2273 = vpop.permute.xlu0 %2272
  %2274 = vrot.lane.b32.xlu0 %v1841, 32
  %v2275 = vpop.permute.xlu0 %2274
  %2276 = vrot.lane.b32.xlu0 %v1867, 32
  %v2277 = vpop.permute.xlu0 %2276
  %v2286 = vmul.f32 %v2068, %v2263
  %v2287 = vmul.f32 %v2083, %v2265
  %v2288 = vmul.f32 %v2098, %v2267
  %v2289 = vmul.f32 %v2113, %v2269
  %v2290 = vmul.f32 %v2128, %v2271
  %v2291 = vmul.f32 %v2143, %v2273
  %v2292 = vmul.f32 %v2158, %v2275
  %v2293 = vmul.f32 %v2173, %v2277
  %2302 = vrot.lane.b32.xlu0 %v2286, 96
  %v2303 = vpop.permute.xlu0 %2302
  %2304 = vrot.lane.b32.xlu0 %v2287, 96
  %v2305 = vpop.permute.xlu0 %2304
  %2306 = vrot.lane.b32.xlu0 %v2288, 96
  %v2307 = vpop.permute.xlu0 %2306
  %2308 = vrot.lane.b32.xlu0 %v2289, 96
  %v2309 = vpop.permute.xlu0 %2308
  %2310 = vrot.lane.b32.xlu0 %v2290, 96
  %v2311 = vpop.permute.xlu0 %2310
  %2312 = vrot.lane.b32.xlu0 %v2291, 96
  %v2313 = vpop.permute.xlu0 %2312
  %2314 = vrot.lane.b32.xlu0 %v2292, 96
  %v2315 = vpop.permute.xlu0 %2314
  %2316 = vrot.lane.b32.xlu0 %v2293, 96
  %v2317 = vpop.permute.xlu0 %2316
  %v2326 = vadd.f32 %v2246, %v2303
  %v2327 = vadd.f32 %v2247, %v2305
  %v2328 = vadd.f32 %v2248, %v2307
  %v2329 = vadd.f32 %v2249, %v2309
  %v2330 = vadd.f32 %v2250, %v2311
  %v2331 = vadd.f32 %v2251, %v2313
  %v2332 = vadd.f32 %v2252, %v2315
  %v2333 = vadd.f32 %v2253, %v2317
  %v2334 = vmax.f32 %v2326, 0.0
  %v2335 = vmax.f32 %v2327, 0.0
  %v2336 = vmax.f32 %v2328, 0.0
  %v2337 = vmax.f32 %v2329, 0.0
  %v2338 = vmax.f32 %v2330, 0.0
  %v2339 = vmax.f32 %v2331, 0.0
  %v2340 = vmax.f32 %v2332, 0.0
  %v2341 = vmax.f32 %v2333, 0.0
  %v2342 = vmul.f32 %v2334, %v79
  %v2343 = vmul.f32 %v2335, %v86
  %v2344 = vmul.f32 %v2336, %v93
  %v2345 = vmul.f32 %v2337, %v100
  %v2346 = vmul.f32 %v2338, %v107
  %v2347 = vmul.f32 %v2339, %v114
  %v2348 = vmul.f32 %v2340, %v121
  %v2349 = vmul.f32 %v2341, %v128
  %v2350 = vld [vmem:[%s4] sm:$0xff]
  %v2352 = vrot.slane %v2350, 1
  %v2353 = vrot.slane %v2350, 2
  %v2354 = vrot.slane %v2350, 3
  %v2355 = vrot.slane %v2350, 4
  %v2356 = vrot.slane %v2350, 5
  %v2357 = vrot.slane %v2350, 6
  %v2358 = vrot.slane %v2350, 7
  %v2359 = vperm.slane %v2350, 0
  %v2360 = vperm.slane %v2352, 0
  %v2361 = vperm.slane %v2353, 0
  %v2362 = vperm.slane %v2354, 0
  %v2363 = vperm.slane %v2355, 0
  %v2364 = vperm.slane %v2356, 0
  %v2365 = vperm.slane %v2357, 0
  %v2366 = vperm.slane %v2358, 0
  %v2375 = vmul.f32 %v2342, %v2359
  %v2376 = vmul.f32 %v2343, %v2360
  %v2377 = vmul.f32 %v2344, %v2361
  %v2378 = vmul.f32 %v2345, %v2362
  %v2379 = vmul.f32 %v2346, %v2363
  %v2380 = vmul.f32 %v2347, %v2364
  %v2381 = vmul.f32 %v2348, %v2365
  %v2382 = vmul.f32 %v2349, %v2366
  %vm2383 = vcmask 257024
  %v2384 = vsel %vm2383, %v2375, 0.0
  %2385 = vadd.xlane.f32.xlu0 %v2384
  %v2386 = vpop.xlane.xlu0 %2385
  %v2387 = vsel %vm2383, %v2376, 0.0
  %2388 = vadd.xlane.f32.xlu0 %v2387
  %v2389 = vpop.xlane.xlu0 %2388
  %v2390 = vsel %vm2383, %v2377, 0.0
  %2391 = vadd.xlane.f32.xlu0 %v2390
  %v2392 = vpop.xlane.xlu0 %2391
  %v2393 = vsel %vm2383, %v2378, 0.0
  %2394 = vadd.xlane.f32.xlu0 %v2393
  %v2395 = vpop.xlane.xlu0 %2394
  %v2396 = vsel %vm2383, %v2379, 0.0
  %2397 = vadd.xlane.f32.xlu0 %v2396
  %v2398 = vpop.xlane.xlu0 %2397
  %v2399 = vsel %vm2383, %v2380, 0.0
  %2400 = vadd.xlane.f32.xlu0 %v2399
  %v2401 = vpop.xlane.xlu0 %2400
  %v2402 = vsel %vm2383, %v2381, 0.0
  %2403 = vadd.xlane.f32.xlu0 %v2402
  %v2404 = vpop.xlane.xlu0 %2403
  %v2405 = vsel %vm2383, %v2382, 0.0
  %2406 = vadd.xlane.f32.xlu0 %v2405
  %v2407 = vpop.xlane.xlu0 %2406
  %v2408 = vsub.f32 %v72, 1.0
  %v2409 = vmul.f32 %v2408, 1e+30
  %v2411 = vperm.slane %v2409, 0
  %v2412 = vlaneseq
  %v2413 = vshrl.u32 %v2412, 7
  %2415 = vset.pattern.permute.xlu0 %v2413
  %2416 = vperm.xlu0 %2415, %v2411
  %v2417 = vpop.permute.xlu0 %2416
  %v2418 = vperm.slane %v2409, 1
  %v2419 = vlaneseq
  %v2420 = vshrl.u32 %v2419, 7
  %2422 = vset.pattern.permute.xlu0 %v2420
  %2423 = vperm.xlu0 %2422, %v2418
  %v2424 = vpop.permute.xlu0 %2423
  %v2425 = vperm.slane %v2409, 2
  %v2426 = vlaneseq
  %v2427 = vshrl.u32 %v2426, 7
  %2429 = vset.pattern.permute.xlu0 %v2427
  %2430 = vperm.xlu0 %2429, %v2425
  %v2431 = vpop.permute.xlu0 %2430
  %v2432 = vperm.slane %v2409, 3
  %v2433 = vlaneseq
  %v2434 = vshrl.u32 %v2433, 7
  %2436 = vset.pattern.permute.xlu0 %v2434
  %2437 = vperm.xlu0 %2436, %v2432
  %v2438 = vpop.permute.xlu0 %2437
  %v2439 = vperm.slane %v2409, 4
  %v2440 = vlaneseq
  %v2441 = vshrl.u32 %v2440, 7
  %2443 = vset.pattern.permute.xlu0 %v2441
  %2444 = vperm.xlu0 %2443, %v2439
  %v2445 = vpop.permute.xlu0 %2444
  %v2446 = vperm.slane %v2409, 5
  %v2447 = vlaneseq
  %v2448 = vshrl.u32 %v2447, 7
  %2450 = vset.pattern.permute.xlu0 %v2448
  %2451 = vperm.xlu0 %2450, %v2446
  %v2452 = vpop.permute.xlu0 %2451
  %v2453 = vperm.slane %v2409, 6
  %v2454 = vlaneseq
  %v2455 = vshrl.u32 %v2454, 7
  %2457 = vset.pattern.permute.xlu0 %v2455
  %2458 = vperm.xlu0 %2457, %v2453
  %v2459 = vpop.permute.xlu0 %2458
  %v2460 = vperm.slane %v2409, 7
  %v2461 = vlaneseq
  %v2462 = vshrl.u32 %v2461, 7
  %2464 = vset.pattern.permute.xlu0 %v2462
  %2465 = vperm.xlu0 %2464, %v2460
  %v2466 = vpop.permute.xlu0 %2465
  %v2475 = vadd.f32 %v2386, %v2417
  %v2476 = vadd.f32 %v2389, %v2424
  %v2477 = vadd.f32 %v2392, %v2431
  %v2478 = vadd.f32 %v2395, %v2438
  %v2479 = vadd.f32 %v2398, %v2445
  %v2480 = vadd.f32 %v2401, %v2452
  %v2481 = vadd.f32 %v2404, %v2459
  %v2482 = vadd.f32 %v2407, %v2466
  %2491 = vset.pattern.permute.xlu0 0
  %2492 = vperm.xlu0 %2491, %v2475
  %v2493 = vpop.permute.xlu0 %2492
  %2494 = vset.pattern.permute.xlu0 0
  %2495 = vperm.xlu0 %2494, %v2476
  %v2496 = vpop.permute.xlu0 %2495
  %2497 = vset.pattern.permute.xlu0 0
  %2498 = vperm.xlu0 %2497, %v2477
  %v2499 = vpop.permute.xlu0 %2498
  %2500 = vset.pattern.permute.xlu0 0
  %2501 = vperm.xlu0 %2500, %v2478
  %v2502 = vpop.permute.xlu0 %2501
  %2503 = vset.pattern.permute.xlu0 0
  %2504 = vperm.xlu0 %2503, %v2479
  %v2505 = vpop.permute.xlu0 %2504
  %2506 = vset.pattern.permute.xlu0 0
  %2507 = vperm.xlu0 %2506, %v2480
  %v2508 = vpop.permute.xlu0 %2507
  %2509 = vset.pattern.permute.xlu0 0
  %2510 = vperm.xlu0 %2509, %v2481
  %v2511 = vpop.permute.xlu0 %2510
  %2512 = vset.pattern.permute.xlu0 0
  %2513 = vperm.xlu0 %2512, %v2482
  %v2514 = vpop.permute.xlu0 %2513
  %v2515 = vlaneseq
  %v2516 = vand.u32 %v2515, 127
  %v2517 = vperm.slane %v2493, %v2516
  %v2518 = vperm.slane %v2496, %v2516
  %v2519 = vperm.slane %v2499, %v2516
  %v2520 = vperm.slane %v2502, %v2516
  %v2521 = vperm.slane %v2505, %v2516
  %v2522 = vperm.slane %v2508, %v2516
  %v2523 = vperm.slane %v2511, %v2516
  %v2524 = vperm.slane %v2514, %v2516
  %vm2525 = vcmask 1041409
  %v2526 = vsel %vm2525, %v2518, %v2517
  %vm2527 = vcmask 1042434
  %v2528 = vsel %vm2527, %v2519, %v2526
  %vm2529 = vcmask 1043459
  %v2530 = vsel %vm2529, %v2520, %v2528
  %vm2531 = vcmask 1044484
  %v2532 = vsel %vm2531, %v2521, %v2530
  %vm2533 = vcmask 1045509
  %v2534 = vsel %vm2533, %v2522, %v2532
  %vm2535 = vcmask 1046534
  %v2536 = vsel %vm2535, %v2523, %v2534
  %vm2537 = vcmask 1047559
  %v2538 = vsel %vm2537, %v2524, %v2536
  %v2540 = vsel %vm363, %v2538, -inf
  %2541 = vmax.xlane.f32.xlu0 %v2540
  %v2542 = vpop.xlane.xlu0 %2541
  %v2544 = vperm.slane %v2542, 0
  %v2545 = vperm.slane %v2542, 1
  %v2546 = vperm.slane %v2542, 2
  %v2547 = vperm.slane %v2542, 3
  %v2548 = vperm.slane %v2542, 4
  %v2549 = vperm.slane %v2542, 5
  %v2550 = vperm.slane %v2542, 6
  %v2551 = vperm.slane %v2542, 7
  %v2560 = vsub.f32 %v2475, %v2544
  %v2561 = vsub.f32 %v2476, %v2545
  %v2562 = vsub.f32 %v2477, %v2546
  %v2563 = vsub.f32 %v2478, %v2547
  %v2564 = vsub.f32 %v2479, %v2548
  %v2565 = vsub.f32 %v2480, %v2549
  %v2566 = vsub.f32 %v2481, %v2550
  %v2567 = vsub.f32 %v2482, %v2551
  %v2568 = vmul.f32 %v2560, 1.442695
  %v2569 = vpow.pop %v2568
  %v2570 = vmul.f32 %v2561, 1.442695
  %v2571 = vpow.pop %v2570
  %v2572 = vmul.f32 %v2562, 1.442695
  %v2573 = vpow.pop %v2572
  %v2574 = vmul.f32 %v2563, 1.442695
  %v2575 = vpow.pop %v2574
  %v2576 = vmul.f32 %v2564, 1.442695
  %v2577 = vpow.pop %v2576
  %v2578 = vmul.f32 %v2565, 1.442695
  %v2579 = vpow.pop %v2578
  %v2580 = vmul.f32 %v2566, 1.442695
  %v2581 = vpow.pop %v2580
  %v2582 = vmul.f32 %v2567, 1.442695
  %v2583 = vpow.pop %v2582
  %2592 = vset.pattern.permute.xlu0 0
  %2593 = vperm.xlu0 %2592, %v2569
  %v2594 = vpop.permute.xlu0 %2593
  %2595 = vset.pattern.permute.xlu0 0
  %2596 = vperm.xlu0 %2595, %v2571
  %v2597 = vpop.permute.xlu0 %2596
  %2598 = vset.pattern.permute.xlu0 0
  %2599 = vperm.xlu0 %2598, %v2573
  %v2600 = vpop.permute.xlu0 %2599
  %2601 = vset.pattern.permute.xlu0 0
  %2602 = vperm.xlu0 %2601, %v2575
  %v2603 = vpop.permute.xlu0 %2602
  %2604 = vset.pattern.permute.xlu0 0
  %2605 = vperm.xlu0 %2604, %v2577
  %v2606 = vpop.permute.xlu0 %2605
  %2607 = vset.pattern.permute.xlu0 0
  %2608 = vperm.xlu0 %2607, %v2579
  %v2609 = vpop.permute.xlu0 %2608
  %2610 = vset.pattern.permute.xlu0 0
  %2611 = vperm.xlu0 %2610, %v2581
  %v2612 = vpop.permute.xlu0 %2611
  %2613 = vset.pattern.permute.xlu0 0
  %2614 = vperm.xlu0 %2613, %v2583
  %v2615 = vpop.permute.xlu0 %2614
  %v2616 = vperm.slane %v2594, %v2516
  %v2617 = vperm.slane %v2597, %v2516
  %v2618 = vperm.slane %v2600, %v2516
  %v2619 = vperm.slane %v2603, %v2516
  %v2620 = vperm.slane %v2606, %v2516
  %v2621 = vperm.slane %v2609, %v2516
  %v2622 = vperm.slane %v2612, %v2516
  %v2623 = vperm.slane %v2615, %v2516
  %v2624 = vsel %vm2525, %v2617, %v2616
  %v2625 = vsel %vm2527, %v2618, %v2624
  %v2626 = vsel %vm2529, %v2619, %v2625
  %v2627 = vsel %vm2531, %v2620, %v2626
  %v2628 = vsel %vm2533, %v2621, %v2627
  %v2629 = vsel %vm2535, %v2622, %v2628
  %v2630 = vsel %vm2537, %v2623, %v2629
  %v2632 = vsel %vm363, %v2630, 0.0
  %2633 = vadd.xlane.f32.xlu0 %v2632
  %v2634 = vpop.xlane.xlu0 %2633
  %v2635 = vrcp.pop %v2634
  %v2637 = vperm.slane %v2635, 0
  %v2638 = vperm.slane %v2635, 1
  %v2639 = vperm.slane %v2635, 2
  %v2640 = vperm.slane %v2635, 3
  %v2641 = vperm.slane %v2635, 4
  %v2642 = vperm.slane %v2635, 5
  %v2643 = vperm.slane %v2635, 6
  %v2644 = vperm.slane %v2635, 7
  %v2653 = vmul.f32 %v2569, %v2637
  %v2654 = vmul.f32 %v2571, %v2638
  %v2655 = vmul.f32 %v2573, %v2639
  %v2656 = vmul.f32 %v2575, %v2640
  %v2657 = vmul.f32 %v2577, %v2641
  %v2658 = vmul.f32 %v2579, %v2642
  %v2659 = vmul.f32 %v2581, %v2643
  %v2660 = vmul.f32 %v2583, %v2644
  %2662 = vset.pattern.permute.xlu0 0
  %2663 = vperm.xlu0 %2662, %v2653
  %v2664 = vpop.permute.xlu0 %2663
  %2667 = vset.pattern.permute.xlu0 0
  %2668 = vperm.xlu0 %2667, %v2654
  %v2669 = vpop.permute.xlu0 %2668
  %2672 = vset.pattern.permute.xlu0 0
  %2673 = vperm.xlu0 %2672, %v2655
  %v2674 = vpop.permute.xlu0 %2673
  %2677 = vset.pattern.permute.xlu0 0
  %2678 = vperm.xlu0 %2677, %v2656
  %v2679 = vpop.permute.xlu0 %2678
  %2682 = vset.pattern.permute.xlu0 0
  %2683 = vperm.xlu0 %2682, %v2657
  %v2684 = vpop.permute.xlu0 %2683
  %2687 = vset.pattern.permute.xlu0 0
  %2688 = vperm.xlu0 %2687, %v2658
  %v2689 = vpop.permute.xlu0 %2688
  %2692 = vset.pattern.permute.xlu0 0
  %2693 = vperm.xlu0 %2692, %v2659
  %v2694 = vpop.permute.xlu0 %2693
  %2697 = vset.pattern.permute.xlu0 0
  %2698 = vperm.xlu0 %2697, %v2660
  %v2699 = vpop.permute.xlu0 %2698
  %v2701 = vmul.f32 %v2342, %v2664
  %v2702 = vmul.f32 %v2343, %v2669
  %v2703 = vmul.f32 %v2344, %v2674
  %v2704 = vmul.f32 %v2345, %v2679
  %v2705 = vmul.f32 %v2346, %v2684
  %v2706 = vmul.f32 %v2347, %v2689
  %v2707 = vmul.f32 %v2348, %v2694
  %v2708 = vmul.f32 %v2349, %v2699
  %v2709 = vsel %vm2383, %v2701, 0.0
  %v2710 = vrot.slane %v2709, 4
  %v2711 = vadd.f32 %v2709, %v2710
  %v2712 = vrot.slane %v2711, 2
  %v2713 = vadd.f32 %v2711, %v2712
  %v2714 = vrot.slane %v2713, 1
  %v2715 = vadd.f32 %v2713, %v2714
  %v2716 = vsel %vm2383, %v2702, 0.0
  %v2717 = vrot.slane %v2716, 4
  %v2718 = vadd.f32 %v2716, %v2717
  %v2719 = vrot.slane %v2718, 2
  %v2720 = vadd.f32 %v2718, %v2719
  %v2721 = vrot.slane %v2720, 1
  %v2722 = vadd.f32 %v2720, %v2721
  %v2723 = vsel %vm2383, %v2703, 0.0
  %v2724 = vrot.slane %v2723, 4
  %v2725 = vadd.f32 %v2723, %v2724
  %v2726 = vrot.slane %v2725, 2
  %v2727 = vadd.f32 %v2725, %v2726
  %v2728 = vrot.slane %v2727, 1
  %v2729 = vadd.f32 %v2727, %v2728
  %v2730 = vsel %vm2383, %v2704, 0.0
  %v2731 = vrot.slane %v2730, 4
  %v2732 = vadd.f32 %v2730, %v2731
  %v2733 = vrot.slane %v2732, 2
  %v2734 = vadd.f32 %v2732, %v2733
  %v2735 = vrot.slane %v2734, 1
  %v2736 = vadd.f32 %v2734, %v2735
  %v2737 = vsel %vm2383, %v2705, 0.0
  %v2738 = vrot.slane %v2737, 4
  %v2739 = vadd.f32 %v2737, %v2738
  %v2740 = vrot.slane %v2739, 2
  %v2741 = vadd.f32 %v2739, %v2740
  %v2742 = vrot.slane %v2741, 1
  %v2743 = vadd.f32 %v2741, %v2742
  %v2744 = vsel %vm2383, %v2706, 0.0
  %v2745 = vrot.slane %v2744, 4
  %v2746 = vadd.f32 %v2744, %v2745
  %v2747 = vrot.slane %v2746, 2
  %v2748 = vadd.f32 %v2746, %v2747
  %v2749 = vrot.slane %v2748, 1
  %v2750 = vadd.f32 %v2748, %v2749
  %v2751 = vsel %vm2383, %v2707, 0.0
  %v2752 = vrot.slane %v2751, 4
  %v2753 = vadd.f32 %v2751, %v2752
  %v2754 = vrot.slane %v2753, 2
  %v2755 = vadd.f32 %v2753, %v2754
  %v2756 = vrot.slane %v2755, 1
  %v2757 = vadd.f32 %v2755, %v2756
  %v2758 = vsel %vm2383, %v2708, 0.0
  %v2759 = vrot.slane %v2758, 4
  %v2760 = vadd.f32 %v2758, %v2759
  %v2761 = vrot.slane %v2760, 2
  %v2762 = vadd.f32 %v2760, %v2761
  %v2763 = vrot.slane %v2762, 1
  %v2764 = vadd.f32 %v2762, %v2763
  %v2765 = vld [vmem:[%s7] sm:$0xff]
  %v2766 = vld [vmem:[%s7 + $0x8] sm:$0xff]
  %v2767 = vld [vmem:[%s7 + $0x10] sm:$0xff]
  %v2768 = vld [vmem:[%s7 + $0x18] sm:$0xff]
  %v2769 = vld [vmem:[%s8] sm:$0xff]
  %v2770 = vld [vmem:[%s8 + $0x8] sm:$0xff]
  %v2771 = vld [vmem:[%s8 + $0x10] sm:$0xff]
  %v2772 = vld [vmem:[%s8 + $0x18] sm:$0xff]
  %v2781 = vsel %vm2525, %v2722, %v2715
  %v2782 = vsel %vm2527, %v2729, %v2781
  %v2783 = vsel %vm2529, %v2736, %v2782
  %v2784 = vsel %vm2531, %v2743, %v2783
  %v2785 = vsel %vm2533, %v2750, %v2784
  %v2786 = vsel %vm2535, %v2757, %v2785
  %v2787 = vsel %vm2537, %v2764, %v2786
  %v2788 = vsel %vm224, %v2787, 0
  %2790 = vmatpush.msra.mxu0 0.0
  %2791 = vmatpush.msra.mxu0 0.0
  %2792 = vmatpush.msra.mxu0 0.0
  %2793 = vmatpush.msra.mxu0 0.0
  %2794 = vmatpush.msra.mxu0 0.0
  %2795 = vmatpush.msra.mxu0 0.0
  %2796 = vmatpush.msra.mxu0 0.0
  %2797 = vmatpush.msra.mxu0 0.0
  %2798 = vmatpush.msra.mxu0 0.0
  %2799 = vmatpush.msra.mxu0 0.0
  %2800 = vmatpush.msra.mxu0 0.0
  %2801 = vmatpush.msra.mxu0 0.0
  %2802 = vmatpush.msra.mxu0 %v2772
  %2803 = vmatpush.msra.mxu0 %v2771
  %2804 = vmatpush.msra.mxu0 %v2770
  %2805 = vmatpush.msra.mxu0 %v2769
  %2806 = vmatmul.f32.gmra.mxu0 %v2788
  %v2807 = vpop.f32.mrf.mxu0
  %v2808 = vadd.f32 0.0, %v2807
  %2809 = vdwg.mxu0
  %v2810 = vsel %vm224, %v2350, 0
  %2812 = vmatpush.msra.mxu0 0.0
  %2813 = vmatpush.msra.mxu0 0.0
  %2814 = vmatpush.msra.mxu0 0.0
  %2815 = vmatpush.msra.mxu0 0.0
  %2816 = vmatpush.msra.mxu0 0.0
  %2817 = vmatpush.msra.mxu0 0.0
  %2818 = vmatpush.msra.mxu0 0.0
  %2819 = vmatpush.msra.mxu0 0.0
  %2820 = vmatpush.msra.mxu0 0.0
  %2821 = vmatpush.msra.mxu0 0.0
  %2822 = vmatpush.msra.mxu0 0.0
  %2823 = vmatpush.msra.mxu0 0.0
  %2824 = vmatpush.msra.mxu0 %v2768
  %2825 = vmatpush.msra.mxu0 %v2767
  %2826 = vmatpush.msra.mxu0 %v2766
  %2827 = vmatpush.msra.mxu0 %v2765
  %2828 = vmatmul.f32.gmra.mxu0 %v2810
  %v2829 = vpop.f32.mrf.mxu0
  %v2830 = vadd.f32 %v2808, %v2829
  %2831 = vdwg.mxu0
  %v2832 = vld [vmem:[%s9] sm:$0x1]
  %v2834 = vperm.slane %v2832, 0
  %v2836 = vadd.f32 %v2830, %v2834
  %v2837 = vmax.f32 %v2836, 0.0
  %v2838 = vld [vmem:[%s10] sm:$0xff]
  %v2839 = vld [vmem:[%s10 + $0x8] sm:$0xff]
  %v2840 = vld [vmem:[%s10 + $0x10] sm:$0xff]
  %v2841 = vld [vmem:[%s10 + $0x18] sm:$0xff]
  %v2842 = vld [vmem:[%s11] sm:$0x1]
  %v2844 = vperm.slane %v2842, 0
  %v2847 = vsel %vm224, %v2837, 0
  %2849 = vmatpush.msra.mxu0 0.0
  %2850 = vmatpush.msra.mxu0 0.0
  %2851 = vmatpush.msra.mxu0 0.0
  %2852 = vmatpush.msra.mxu0 0.0
  %2853 = vmatpush.msra.mxu0 0.0
  %2854 = vmatpush.msra.mxu0 0.0
  %2855 = vmatpush.msra.mxu0 0.0
  %2856 = vmatpush.msra.mxu0 0.0
  %2857 = vmatpush.msra.mxu0 0.0
  %2858 = vmatpush.msra.mxu0 0.0
  %2859 = vmatpush.msra.mxu0 0.0
  %2860 = vmatpush.msra.mxu0 0.0
  %2861 = vmatpush.msra.mxu0 %v2841
  %2862 = vmatpush.msra.mxu0 %v2840
  %2863 = vmatpush.msra.mxu0 %v2839
  %2864 = vmatpush.msra.mxu0 %v2838
  %2865 = vmatmul.f32.gmra.mxu0 %v2847
  %v2866 = vpop.f32.mrf.mxu0
  %v2867 = vadd.f32 %v2844, %v2866
  %2868 = vdwg.mxu0
  %v2869 = vmax.f32 %v2867, 0.0
  %v2870 = vld [vmem:[%s12] sm:$0xff]
  %v2871 = vld [vmem:[%s12 + $0x8] sm:$0xff]
  %v2872 = vld [vmem:[%s13] sm:$0x1]
  %v2874 = vperm.slane %v2872, 0
  %vm2876 = vcmask 130048
  %v2878 = vsel %vm2876, %v2869, 0
  %2880 = vmatpush.msra.mxu0 0.0
  %2881 = vmatpush.msra.mxu0 0.0
  %2882 = vmatpush.msra.mxu0 0.0
  %2883 = vmatpush.msra.mxu0 0.0
  %2884 = vmatpush.msra.mxu0 0.0
  %2885 = vmatpush.msra.mxu0 0.0
  %2886 = vmatpush.msra.mxu0 0.0
  %2887 = vmatpush.msra.mxu0 0.0
  %2888 = vmatpush.msra.mxu0 0.0
  %2889 = vmatpush.msra.mxu0 0.0
  %2890 = vmatpush.msra.mxu0 0.0
  %2891 = vmatpush.msra.mxu0 0.0
  %2892 = vmatpush.msra.mxu0 0.0
  %2893 = vmatpush.msra.mxu0 0.0
  %2894 = vmatpush.msra.mxu0 %v2871
  %2895 = vmatpush.msra.mxu0 %v2870
  %2896 = vmatmul.f32.gmra.mxu0 %v2878
  %v2897 = vpop.f32.mrf.mxu0
  %v2898 = vadd.f32 %v2874, %v2897
  %2899 = vdwg.mxu0
  %v2900 = vxor.u32 %v2898, 2147483648
  %v2901 = vmul.f32 %v2900, 1.442695
  %v2902 = vpow.pop %v2901
  %v2903 = vadd.f32 %v2902, 1.0
  %v2904 = vrcp.pop %v2903
  %v2905 = vmul.f32 %v2903, %v2904
  %v2906 = vsub.f32 1.0, %v2905
  %v2907 = vmul.f32 %v2904, %v2906
  %v2908 = vadd.f32 %v2904, %v2907
  %vm2909 = vweird.f32 %v2903
  %vm2910 = vweird.f32 %v2904
  %vm2911 = vmor %vm2909, %vm2910
  %v2912 = vsel %vm2911, %v2904, %v2908
  %v2913 = vand.u32 2147483647, %v2903
  %vm2914 = vcmp.eq.f32.partialorder %v2913, 8.507059e+37
  %v2915 = vand.u32 %v2903, 2147483648
  %v2916 = vor.u32 1.1754944e-38, %v2915
  %v2917 = vsel %vm2914, %v2916, %v2912
  %v2918 = vmul.f32 1.0, %v2917
  %2919 = vst [vmem:[%s14] sm:$0xff] %v2918
  // Predicated region
  $region58: #{dcr_forward.9} parent=0 // pred_check
    _
  $region59: #{dcr_forward.9} parent=0 // pred_check_branch
    %2921 = sbr.rel (0) target = $region61
  $region60: #{dcr_forward.9} parent=0 // pred_region
    _
  $region61: #{dcr_forward.9} parent=0 // pred_fallthru
    _
  // Predicated region
  $region62: #{dcr_forward.9} parent=0 // pred_check
    _
  $region63: #{dcr_forward.9} parent=0 // pred_check_branch
    %2923 = sbr.rel (0) target = $region65
  $region64: #{dcr_forward.9} parent=0 // pred_region
    _
  $region65: #{dcr_forward.9} parent=0 // pred_fallthru
    _

</llo_original>
